<compile_context>
chip_gen: v7x
topology: tpu7x:2x2x1
jax: 0.10.0
libtpu: 0.0.40
codegen_flags: <defaults>
</compile_context>

<pallas_src>
import functools

import jax
import jax.numpy as jnp
import numpy as np
from jax.experimental import pallas as pl
from jax.experimental.pallas import tpu as pltpu


def _round_up(v, m):
    return (v + m - 1) // m * m


def _make_kernel(Wp_pad, TM, n_tiles):
    def kernel(x_ref, w_ref, b_ref, o_ref, acc_ref):
        # x_ref : (F, Cin)             flattened padded plane at depth d + kd
        # w_ref : (27, Cin, Cout_pad)  ALL conv taps, VMEM-resident (const map)
        # b_ref : (1, Cout_pad)        bias
        # o_ref : (M_pad, Cout_pad)    channels-last output slab for (n, d)
        # acc_ref: (M_pad, Cout_pad)   f32 scratch, resident across the kd axis
        kd = pl.program_id(2)
        n_kd = pl.num_programs(2)

        @pl.when(kd == 0)
        def _init():
            # broadcast the bias straight into the accumulator (no zeros+add)
            acc_ref[...] = jnp.broadcast_to(
                b_ref[...].astype(jnp.float32), acc_ref.shape)

        # Static (unrolled) loop over output-row tiles.  The (TM, Cout_pad)
        # f32 accumulator stays in vregs across all 9 (kh, kw) taps, so the
        # VMEM accumulator is touched once per tile instead of 9 times.
        for ti in range(n_tiles):
            m0 = ti * TM                       # multiple of 8 -> aligned
            acc = acc_ref[pl.ds(m0, TM), :]
            for kh in range(3):
                for kw in range(3):
                    # kh*Wp_pad is sublane aligned (Wp_pad % 8 == 0); kw=1,2
                    # shifts are small in-register relayouts.
                    t = m0 + kh * Wp_pad + kw
                    acc = acc + jnp.dot(
                        x_ref[pl.ds(t, TM), :],
                        w_ref[kd * 9 + kh * 3 + kw],   # dynamic tap select
                        preferred_element_type=jnp.float32)

            @pl.when(kd == n_kd - 1)
            def _store(acc=acc, m0=m0):
                o_ref[pl.ds(m0, TM), :] = acc.astype(o_ref.dtype)

            @pl.when(kd < n_kd - 1)
            def _carry(acc=acc, m0=m0):
                acc_ref[pl.ds(m0, TM), :] = acc

    return kernel


@functools.partial(jax.jit, static_argnames=("scale_factor", "matmul_dtype"))
def upsample_forward(x, weight, bias, scale_factor, matmul_dtype=None):
    """x: (N, Cin, D, H, W); weight: (Cout, Cin, 3, 3, 3); bias: (Cout,)."""
    ori_dtype = x.dtype
    s = int(scale_factor)
    assert s == scale_factor, "only integer scale_factor supported"
    # TODO(synk): non-integer scale factors (nearest idx = floor(i / scale)) not implemented.

    # nearest interpolation in float32, cast back (matches torch semantics)
    xf = x.astype(jnp.float32)
    xf = jnp.repeat(jnp.repeat(jnp.repeat(xf, s, axis=2), s, axis=3), s, axis=4)
    x_up = xf.astype(ori_dtype)

    N, Cin, Du, Hu, Wu = x_up.shape
    Cout = weight.shape[0]
    compute_dtype = jnp.dtype(matmul_dtype) if matmul_dtype is not None else x_up.dtype

    Dp, Hp, Wp = Du + 2, Hu + 2, Wu + 2
    Wp_pad = _round_up(Wp, 8)              # sublane-align the kh tap offsets
    Cout_pad = _round_up(Cout, 128)        # lane-dense MXU output / stores

    # Row-tile size: keep the (TM, Cout_pad) f32 vreg accumulator <= ~64 KiB
    # (well under the 256 KiB vreg file), clamped to [8, 128] rows.
    TM = max(8, min(128, (16384 // Cout_pad) // 8 * 8))
    M = Hu * Wp_pad                        # valid output rows per depth plane
    M_pad = _round_up(M, TM)
    n_tiles = M_pad // TM
    # Flattened padded-plane length: max tap offset is 2*Wp_pad + 2.
    F = _round_up(M_pad + 2 * Wp_pad + 2, 8)

    # Invariants the kernel relies on:
    #  * the kw "row wrap" of the flattened plane only affects output columns
    #    w >= Wu, which are dropped below;
    #  * rows in [M, M_pad) and tap-slack rows in [Hp*Wp_pad, F) are explicit
    #    zeros, and their outputs are dropped below.
    assert Wp_pad % 8 == 0 and M_pad % TM == 0 and F >= Hp * Wp_pad + 2

    # channels-last, zero-pad D/H by 1 and W by (1, 1 + Wp_pad - Wp), flatten
    # (Hp, Wp_pad), then zero-pad the flat axis with tap-slack rows.  All of
    # this fuses with the repeat above into one XLA pass under jit.
    xcl = jnp.transpose(x_up, (0, 2, 3, 4, 1))                    # (N,Du,Hu,Wu,Cin)
    xcl = jnp.pad(xcl, ((0, 0), (1, 1), (1, 1), (1, 1 + Wp_pad - Wp), (0, 0)))
    xcl = xcl.reshape(N, Dp, Hp * Wp_pad, Cin)
    xcl = jnp.pad(xcl, ((0, 0), (0, 0), (0, F - Hp * Wp_pad), (0, 0)))
    xcl = xcl.astype(compute_dtype)

    # weights: (Cout, Cin, 3, 3, 3) -> (27, Cin, Cout_pad), MXU-ready layout,
    # zero-padded along Cout for lane density.
    wk = jnp.transpose(weight, (2, 3, 4, 1, 0)).reshape(27, Cin, Cout)
    wk = jnp.pad(wk, ((0, 0), (0, 0), (0, Cout_pad - Cout))).astype(compute_dtype)
    b2 = jnp.pad(bias.astype(jnp.float32), (0, Cout_pad - Cout)).reshape(1, Cout_pad)

    # VMEM footprint -> vmem_limit (cap at 48 MiB for v7x's 64 MiB/TC).
    itm = jnp.dtype(compute_dtype).itemsize
    oitm = jnp.dtype(ori_dtype).itemsize
    vmem_need = (2 * F * Cin * itm                   # x plane, double-buffered
                 + 2 * 27 * Cin * Cout_pad * itm     # resident weights
                 + 2 * Cout_pad * 4                  # bias
                 + 2 * M_pad * Cout_pad * oitm       # out slab, double-buffered
                 + M_pad * Cout_pad * 4)             # f32 accumulator scratch
    # TODO(synk): if vmem_need approaches the 48 MiB cap (very large planes),
    # add a row tile over Hu as an extra grid axis instead of growing slabs.
    vmem_limit = int(min(max(vmem_need * 5 // 4, 32 << 20), 48 << 20))

    out_flat = pl.pallas_call(
        _make_kernel(Wp_pad, TM, n_tiles),
        out_shape=jax.ShapeDtypeStruct((N, Du, M_pad, Cout_pad), ori_dtype),
        grid=(N, Du, 3),
        in_specs=[
            # one padded depth plane (channels-last) per grid step
            pl.BlockSpec((None, None, F, Cin), lambda n, d, kd: (n, d + kd, 0, 0)),
            # ALL taps, constant block index -> DMA'd once and held in VMEM
            pl.BlockSpec((27, Cin, Cout_pad), lambda n, d, kd: (0, 0, 0)),
            pl.BlockSpec((1, Cout_pad), lambda n, d, kd: (0, 0)),
        ],
        out_specs=pl.BlockSpec((None, None, M_pad, Cout_pad),
                               lambda n, d, kd: (n, d, 0, 0)),
        scratch_shapes=[pltpu.VMEM((M_pad, Cout_pad), jnp.float32)],
        compiler_params=pltpu.CompilerParams(
            dimension_semantics=("parallel", "parallel", "arbitrary"),
            vmem_limit_bytes=vmem_limit),
    )(xcl, wk, b2)

    # (N, Du, M_pad, Cout_pad) -> (N, Cout, Du, Hu, Wu); drop pad rows/cols/ch.
    out = out_flat[:, :, :M, :Cout].reshape(N, Du, Hu, Wp_pad, Cout)[:, :, :, :Wu, :]
    return jnp.transpose(out, (0, 4, 1, 2, 3))


def upsample_reference(x, weight, bias, scale_factor):
    s = int(scale_factor)
    xf = x.astype(jnp.float32)
    xf = jnp.repeat(jnp.repeat(jnp.repeat(xf, s, axis=2), s, axis=3), s, axis=4)
    xf = xf.astype(x.dtype)
    out = jax.lax.conv_general_dilated(
        xf.astype(jnp.float32), weight.astype(jnp.float32),
        window_strides=(1, 1, 1),
        padding=((1, 1), (1, 1), (1, 1)),
        dimension_numbers=("NCDHW", "OIDHW", "NCDHW"))
    out = out + bias.astype(jnp.float32)[None, :, None, None, None]
    return out.astype(x.dtype)


if __name__ == "__main__":
    key = jax.random.PRNGKey(0)
    k_x, k_w, k_b = jax.random.split(key, 3)

    N, Cin, Cout = 2, 4, 8
    D, H, W = 4, 8, 8
    scale_factor = 2

    x = jax.random.normal(k_x, (N, Cin, D, H, W), dtype=jnp.float32)
    # deterministic synthetic Conv3d params (kernel_size=3)
    fan_in = Cin * 3 * 3 * 3
    bound = 1.0 / np.sqrt(fan_in)
    weight = jax.random.uniform(k_w, (Cout, Cin, 3, 3, 3),
                                minval=-bound, maxval=bound, dtype=jnp.float32)
    bias = jax.random.uniform(k_b, (Cout,), minval=-bound, maxval=bound,
                              dtype=jnp.float32)

    out = upsample_forward(x, weight, bias, scale_factor)
    out = jax.block_until_ready(out)

    ref = upsample_reference(x, weight, bias, scale_factor)
    assert out.shape == (N, Cout, D * scale_factor, H * scale_factor, W * scale_factor)
    np.testing.assert_allclose(np.asarray(out), np.asarray(ref), rtol=1e-4, atol=1e-4)

    print("KERNEL_OK")
</pallas_src>

<mosaic_0001>
module attributes {stable_mosaic.version = 11 : i64} {
  func.func @kernel(%arg0: i32, %arg1: i32, %arg2: i32, %arg3: memref<1x1x440x4xf32, #tpu.memory_space<vmem>>, %arg4: memref<27x4x128xf32, #tpu.memory_space<vmem>>, %arg5: memref<1x128xf32, #tpu.memory_space<vmem>>, %arg6: memref<1x1x384x128xf32, #tpu.memory_space<vmem>>, %arg7: memref<384x128xf32, #tpu.memory_space<vmem>>) attributes {dimension_semantics = [#tpu.dimension_semantics<parallel>, #tpu.dimension_semantics<parallel>, #tpu.dimension_semantics<arbitrary>], iteration_bounds = array<i64: 2, 8, 3>, scalar_prefetch = 0 : i64, scratch_operands = 1 : i64, tpu.core_type = #tpu.core_type<tc>, window_params = [{transform_indices = @transform_0, window_bounds = array<i64: 1, 1, 440, 4>}, {pipeline_mode = #tpu.pipeline_mode<synchronous>, transform_indices = @transform_1, window_bounds = array<i64: 27, 4, 128>}, {pipeline_mode = #tpu.pipeline_mode<synchronous>, transform_indices = @transform_2, window_bounds = array<i64: 1, 128>}, {transform_indices = @transform_3, window_bounds = array<i64: 1, 1, 384, 128>}]} {
    %c0_i32 = arith.constant 0 : i32
    %0 = arith.cmpi eq, %arg2, %c0_i32 : i32
    %1 = arith.extui %0 : i1 to i32
    %c0_i32_0 = arith.constant 0 : i32
    %2 = arith.cmpi ne, %1, %c0_i32_0 : i32
    scf.if %2 {
      %c0_256 = arith.constant 0 : index
      %c0_257 = arith.constant 0 : index
      %294 = vector.load %arg5[%c0_256, %c0_257] : memref<1x128xf32, #tpu.memory_space<vmem>>, vector<1x128xf32>
      %295 = vector.shape_cast %294 : vector<1x128xf32> to vector<1x128xf32>
      %296 = vector.broadcast %295 : vector<1x128xf32> to vector<384x128xf32>
      %c0_258 = arith.constant 0 : index
      %c0_259 = arith.constant 0 : index
      %297 = vector.load %arg7[%c0_258, %c0_259] : memref<384x128xf32, #tpu.memory_space<vmem>>, vector<384x128xf32>
      tpu.vector_store %arg7[%c0_258, %c0_259], %296 {strides = array<i32>} : memref<384x128xf32, #tpu.memory_space<vmem>>, vector<384x128xf32>,
    } else {
    }
    %c0 = arith.constant 0 : index
    %c0_1 = arith.constant 0 : index
    %3 = vector.load %arg7[%c0, %c0_1] : memref<384x128xf32, #tpu.memory_space<vmem>>, vector<128x128xf32>
    %c0_2 = arith.constant 0 : index
    %c0_3 = arith.constant 0 : index
    %c0_4 = arith.constant 0 : index
    %c0_5 = arith.constant 0 : index
    %4 = vector.load %arg3[%c0_2, %c0_3, %c0_4, %c0_5] : memref<1x1x440x4xf32, #tpu.memory_space<vmem>>, vector<1x1x128x4xf32>
    %5 = vector.shape_cast %4 : vector<1x1x128x4xf32> to vector<128x4xf32>
    %c9_i32 = arith.constant 9 : i32
    %6 = arith.muli %arg2, %c9_i32 : i32
    %c0_i32_6 = arith.constant 0 : i32
    %7 = arith.addi %6, %c0_i32_6 : i32
    %c0_i32_7 = arith.constant 0 : i32
    %8 = arith.addi %7, %c0_i32_7 : i32
    %9 = arith.index_cast %8 : i32 to index
    %c0_8 = arith.constant 0 : index
    %c0_9 = arith.constant 0 : index
    %10 = vector.load %arg4[%9, %c0_8, %c0_9] : memref<27x4x128xf32, #tpu.memory_space<vmem>>, vector<1x4x128xf32>
    %11 = vector.shape_cast %10 : vector<1x4x128xf32> to vector<4x128xf32>
    %cst = arith.constant dense<0.000000e+00> : vector<128x128xf32>
    %12 = tpu.matmul %5, %11, %cst {dimension_numbers = #tpu.dot_dimension_numbers<[1], [0], [0], [1], [0, 0, 1, 1], [], []>} : vector<128x4xf32>, vector<4x128xf32>, vector<128x128xf32> -> vector<128x128xf32>
    %13 = arith.addf %3, %12 : vector<128x128xf32>
    %c0_10 = arith.constant 0 : index
    %c0_11 = arith.constant 0 : index
    %c1 = arith.constant 1 : index
    %c0_12 = arith.constant 0 : index
    %14 = vector.load %arg3[%c0_10, %c0_11, %c1, %c0_12] : memref<1x1x440x4xf32, #tpu.memory_space<vmem>>, vector<1x1x128x4xf32>
    %15 = vector.shape_cast %14 : vector<1x1x128x4xf32> to vector<128x4xf32>
    %c9_i32_13 = arith.constant 9 : i32
    %16 = arith.muli %arg2, %c9_i32_13 : i32
    %c0_i32_14 = arith.constant 0 : i32
    %17 = arith.addi %16, %c0_i32_14 : i32
    %c1_i32 = arith.constant 1 : i32
    %18 = arith.addi %17, %c1_i32 : i32
    %19 = arith.index_cast %18 : i32 to index
    %c0_15 = arith.constant 0 : index
    %c0_16 = arith.constant 0 : index
    %20 = vector.load %arg4[%19, %c0_15, %c0_16] : memref<27x4x128xf32, #tpu.memory_space<vmem>>, vector<1x4x128xf32>
    %21 = vector.shape_cast %20 : vector<1x4x128xf32> to vector<4x128xf32>
    %cst_17 = arith.constant dense<0.000000e+00> : vector<128x128xf32>
    %22 = tpu.matmul %15, %21, %cst_17 {dimension_numbers = #tpu.dot_dimension_numbers<[1], [0], [0], [1], [0, 0, 1, 1], [], []>} : vector<128x4xf32>, vector<4x128xf32>, vector<128x128xf32> -> vector<128x128xf32>
    %23 = arith.addf %13, %22 : vector<128x128xf32>
    %c0_18 = arith.constant 0 : index
    %c0_19 = arith.constant 0 : index
    %c2 = arith.constant 2 : index
    %c0_20 = arith.constant 0 : index
    %24 = vector.load %arg3[%c0_18, %c0_19, %c2, %c0_20] : memref<1x1x440x4xf32, #tpu.memory_space<vmem>>, vector<1x1x128x4xf32>
    %25 = vector.shape_cast %24 : vector<1x1x128x4xf32> to vector<128x4xf32>
    %c9_i32_21 = arith.constant 9 : i32
    %26 = arith.muli %arg2, %c9_i32_21 : i32
    %c0_i32_22 = arith.constant 0 : i32
    %27 = arith.addi %26, %c0_i32_22 : i32
    %c2_i32 = arith.constant 2 : i32
    %28 = arith.addi %27, %c2_i32 : i32
    %29 = arith.index_cast %28 : i32 to index
    %c0_23 = arith.constant 0 : index
    %c0_24 = arith.constant 0 : index
    %30 = vector.load %arg4[%29, %c0_23, %c0_24] : memref<27x4x128xf32, #tpu.memory_space<vmem>>, vector<1x4x128xf32>
    %31 = vector.shape_cast %30 : vector<1x4x128xf32> to vector<4x128xf32>
    %cst_25 = arith.constant dense<0.000000e+00> : vector<128x128xf32>
    %32 = tpu.matmul %25, %31, %cst_25 {dimension_numbers = #tpu.dot_dimension_numbers<[1], [0], [0], [1], [0, 0, 1, 1], [], []>} : vector<128x4xf32>, vector<4x128xf32>, vector<128x128xf32> -> vector<128x128xf32>
    %33 = arith.addf %23, %32 : vector<128x128xf32>
    %c0_26 = arith.constant 0 : index
    %c0_27 = arith.constant 0 : index
    %c24 = arith.constant 24 : index
    %c0_28 = arith.constant 0 : index
    %34 = vector.load %arg3[%c0_26, %c0_27, %c24, %c0_28] : memref<1x1x440x4xf32, #tpu.memory_space<vmem>>, vector<1x1x128x4xf32>
    %35 = vector.shape_cast %34 : vector<1x1x128x4xf32> to vector<128x4xf32>
    %c9_i32_29 = arith.constant 9 : i32
    %36 = arith.muli %arg2, %c9_i32_29 : i32
    %c3_i32 = arith.constant 3 : i32
    %37 = arith.addi %36, %c3_i32 : i32
    %c0_i32_30 = arith.constant 0 : i32
    %38 = arith.addi %37, %c0_i32_30 : i32
    %39 = arith.index_cast %38 : i32 to index
    %c0_31 = arith.constant 0 : index
    %c0_32 = arith.constant 0 : index
    %40 = vector.load %arg4[%39, %c0_31, %c0_32] : memref<27x4x128xf32, #tpu.memory_space<vmem>>, vector<1x4x128xf32>
    %41 = vector.shape_cast %40 : vector<1x4x128xf32> to vector<4x128xf32>
    %cst_33 = arith.constant dense<0.000000e+00> : vector<128x128xf32>
    %42 = tpu.matmul %35, %41, %cst_33 {dimension_numbers = #tpu.dot_dimension_numbers<[1], [0], [0], [1], [0, 0, 1, 1], [], []>} : vector<128x4xf32>, vector<4x128xf32>, vector<128x128xf32> -> vector<128x128xf32>
    %43 = arith.addf %33, %42 : vector<128x128xf32>
    %c0_34 = arith.constant 0 : index
    %c0_35 = arith.constant 0 : index
    %c25 = arith.constant 25 : index
    %c0_36 = arith.constant 0 : index
    %44 = vector.load %arg3[%c0_34, %c0_35, %c25, %c0_36] : memref<1x1x440x4xf32, #tpu.memory_space<vmem>>, vector<1x1x128x4xf32>
    %45 = vector.shape_cast %44 : vector<1x1x128x4xf32> to vector<128x4xf32>
    %c9_i32_37 = arith.constant 9 : i32
    %46 = arith.muli %arg2, %c9_i32_37 : i32
    %c3_i32_38 = arith.constant 3 : i32
    %47 = arith.addi %46, %c3_i32_38 : i32
    %c1_i32_39 = arith.constant 1 : i32
    %48 = arith.addi %47, %c1_i32_39 : i32
    %49 = arith.index_cast %48 : i32 to index
    %c0_40 = arith.constant 0 : index
    %c0_41 = arith.constant 0 : index
    %50 = vector.load %arg4[%49, %c0_40, %c0_41] : memref<27x4x128xf32, #tpu.memory_space<vmem>>, vector<1x4x128xf32>
    %51 = vector.shape_cast %50 : vector<1x4x128xf32> to vector<4x128xf32>
    %cst_42 = arith.constant dense<0.000000e+00> : vector<128x128xf32>
    %52 = tpu.matmul %45, %51, %cst_42 {dimension_numbers = #tpu.dot_dimension_numbers<[1], [0], [0], [1], [0, 0, 1, 1], [], []>} : vector<128x4xf32>, vector<4x128xf32>, vector<128x128xf32> -> vector<128x128xf32>
    %53 = arith.addf %43, %52 : vector<128x128xf32>
    %c0_43 = arith.constant 0 : index
    %c0_44 = arith.constant 0 : index
    %c26 = arith.constant 26 : index
    %c0_45 = arith.constant 0 : index
    %54 = vector.load %arg3[%c0_43, %c0_44, %c26, %c0_45] : memref<1x1x440x4xf32, #tpu.memory_space<vmem>>, vector<1x1x128x4xf32>
    %55 = vector.shape_cast %54 : vector<1x1x128x4xf32> to vector<128x4xf32>
    %c9_i32_46 = arith.constant 9 : i32
    %56 = arith.muli %arg2, %c9_i32_46 : i32
    %c3_i32_47 = arith.constant 3 : i32
    %57 = arith.addi %56, %c3_i32_47 : i32
    %c2_i32_48 = arith.constant 2 : i32
    %58 = arith.addi %57, %c2_i32_48 : i32
    %59 = arith.index_cast %58 : i32 to index
    %c0_49 = arith.constant 0 : index
    %c0_50 = arith.constant 0 : index
    %60 = vector.load %arg4[%59, %c0_49, %c0_50] : memref<27x4x128xf32, #tpu.memory_space<vmem>>, vector<1x4x128xf32>
    %61 = vector.shape_cast %60 : vector<1x4x128xf32> to vector<4x128xf32>
    %cst_51 = arith.constant dense<0.000000e+00> : vector<128x128xf32>
    %62 = tpu.matmul %55, %61, %cst_51 {dimension_numbers = #tpu.dot_dimension_numbers<[1], [0], [0], [1], [0, 0, 1, 1], [], []>} : vector<128x4xf32>, vector<4x128xf32>, vector<128x128xf32> -> vector<128x128xf32>
    %63 = arith.addf %53, %62 : vector<128x128xf32>
    %c0_52 = arith.constant 0 : index
    %c0_53 = arith.constant 0 : index
    %c48 = arith.constant 48 : index
    %c0_54 = arith.constant 0 : index
    %64 = vector.load %arg3[%c0_52, %c0_53, %c48, %c0_54] : memref<1x1x440x4xf32, #tpu.memory_space<vmem>>, vector<1x1x128x4xf32>
    %65 = vector.shape_cast %64 : vector<1x1x128x4xf32> to vector<128x4xf32>
    %c9_i32_55 = arith.constant 9 : i32
    %66 = arith.muli %arg2, %c9_i32_55 : i32
    %c6_i32 = arith.constant 6 : i32
    %67 = arith.addi %66, %c6_i32 : i32
    %c0_i32_56 = arith.constant 0 : i32
    %68 = arith.addi %67, %c0_i32_56 : i32
    %69 = arith.index_cast %68 : i32 to index
    %c0_57 = arith.constant 0 : index
    %c0_58 = arith.constant 0 : index
    %70 = vector.load %arg4[%69, %c0_57, %c0_58] : memref<27x4x128xf32, #tpu.memory_space<vmem>>, vector<1x4x128xf32>
    %71 = vector.shape_cast %70 : vector<1x4x128xf32> to vector<4x128xf32>
    %cst_59 = arith.constant dense<0.000000e+00> : vector<128x128xf32>
    %72 = tpu.matmul %65, %71, %cst_59 {dimension_numbers = #tpu.dot_dimension_numbers<[1], [0], [0], [1], [0, 0, 1, 1], [], []>} : vector<128x4xf32>, vector<4x128xf32>, vector<128x128xf32> -> vector<128x128xf32>
    %73 = arith.addf %63, %72 : vector<128x128xf32>
    %c0_60 = arith.constant 0 : index
    %c0_61 = arith.constant 0 : index
    %c49 = arith.constant 49 : index
    %c0_62 = arith.constant 0 : index
    %74 = vector.load %arg3[%c0_60, %c0_61, %c49, %c0_62] : memref<1x1x440x4xf32, #tpu.memory_space<vmem>>, vector<1x1x128x4xf32>
    %75 = vector.shape_cast %74 : vector<1x1x128x4xf32> to vector<128x4xf32>
    %c9_i32_63 = arith.constant 9 : i32
    %76 = arith.muli %arg2, %c9_i32_63 : i32
    %c6_i32_64 = arith.constant 6 : i32
    %77 = arith.addi %76, %c6_i32_64 : i32
    %c1_i32_65 = arith.constant 1 : i32
    %78 = arith.addi %77, %c1_i32_65 : i32
    %79 = arith.index_cast %78 : i32 to index
    %c0_66 = arith.constant 0 : index
    %c0_67 = arith.constant 0 : index
    %80 = vector.load %arg4[%79, %c0_66, %c0_67] : memref<27x4x128xf32, #tpu.memory_space<vmem>>, vector<1x4x128xf32>
    %81 = vector.shape_cast %80 : vector<1x4x128xf32> to vector<4x128xf32>
    %cst_68 = arith.constant dense<0.000000e+00> : vector<128x128xf32>
    %82 = tpu.matmul %75, %81, %cst_68 {dimension_numbers = #tpu.dot_dimension_numbers<[1], [0], [0], [1], [0, 0, 1, 1], [], []>} : vector<128x4xf32>, vector<4x128xf32>, vector<128x128xf32> -> vector<128x128xf32>
    %83 = arith.addf %73, %82 : vector<128x128xf32>
    %c0_69 = arith.constant 0 : index
    %c0_70 = arith.constant 0 : index
    %c50 = arith.constant 50 : index
    %c0_71 = arith.constant 0 : index
    %84 = vector.load %arg3[%c0_69, %c0_70, %c50, %c0_71] : memref<1x1x440x4xf32, #tpu.memory_space<vmem>>, vector<1x1x128x4xf32>
    %85 = vector.shape_cast %84 : vector<1x1x128x4xf32> to vector<128x4xf32>
    %c9_i32_72 = arith.constant 9 : i32
    %86 = arith.muli %arg2, %c9_i32_72 : i32
    %c6_i32_73 = arith.constant 6 : i32
    %87 = arith.addi %86, %c6_i32_73 : i32
    %c2_i32_74 = arith.constant 2 : i32
    %88 = arith.addi %87, %c2_i32_74 : i32
    %89 = arith.index_cast %88 : i32 to index
    %c0_75 = arith.constant 0 : index
    %c0_76 = arith.constant 0 : index
    %90 = vector.load %arg4[%89, %c0_75, %c0_76] : memref<27x4x128xf32, #tpu.memory_space<vmem>>, vector<1x4x128xf32>
    %91 = vector.shape_cast %90 : vector<1x4x128xf32> to vector<4x128xf32>
    %cst_77 = arith.constant dense<0.000000e+00> : vector<128x128xf32>
    %92 = tpu.matmul %85, %91, %cst_77 {dimension_numbers = #tpu.dot_dimension_numbers<[1], [0], [0], [1], [0, 0, 1, 1], [], []>} : vector<128x4xf32>, vector<4x128xf32>, vector<128x128xf32> -> vector<128x128xf32>
    %93 = arith.addf %83, %92 : vector<128x128xf32>
    %c2_i32_78 = arith.constant 2 : i32
    %94 = arith.cmpi eq, %arg2, %c2_i32_78 : i32
    %95 = arith.extui %94 : i1 to i32
    %c0_i32_79 = arith.constant 0 : i32
    %96 = arith.cmpi ne, %95, %c0_i32_79 : i32
    scf.if %96 {
      %c0_256 = arith.constant 0 : index
      %c0_257 = arith.constant 0 : index
      %c0_258 = arith.constant 0 : index
      %c0_259 = arith.constant 0 : index
      %294 = vector.load %arg6[%c0_256, %c0_257, %c0_258, %c0_259] : memref<1x1x384x128xf32, #tpu.memory_space<vmem>>, vector<1x1x128x128xf32>
      %295 = vector.shape_cast %294 : vector<1x1x128x128xf32> to vector<128x128xf32>
      %296 = vector.shape_cast %93 : vector<128x128xf32> to vector<1x1x128x128xf32>
      tpu.vector_store %arg6[%c0_256, %c0_257, %c0_258, %c0_259], %296 {strides = array<i32>} : memref<1x1x384x128xf32, #tpu.memory_space<vmem>>, vector<1x1x128x128xf32>,
    } else {
    }
    %c2_i32_80 = arith.constant 2 : i32
    %97 = arith.cmpi slt, %arg2, %c2_i32_80 : i32
    %98 = arith.extui %97 : i1 to i32
    %c0_i32_81 = arith.constant 0 : i32
    %99 = arith.cmpi ne, %98, %c0_i32_81 : i32
    scf.if %99 {
      %c0_256 = arith.constant 0 : index
      %c0_257 = arith.constant 0 : index
      %294 = vector.load %arg7[%c0_256, %c0_257] : memref<384x128xf32, #tpu.memory_space<vmem>>, vector<128x128xf32>
      tpu.vector_store %arg7[%c0_256, %c0_257], %93 {strides = array<i32>} : memref<384x128xf32, #tpu.memory_space<vmem>>, vector<128x128xf32>,
    } else {
    }
    %c128 = arith.constant 128 : index
    %c0_82 = arith.constant 0 : index
    %100 = vector.load %arg7[%c128, %c0_82] : memref<384x128xf32, #tpu.memory_space<vmem>>, vector<128x128xf32>
    %c0_83 = arith.constant 0 : index
    %c0_84 = arith.constant 0 : index
    %c128_85 = arith.constant 128 : index
    %c0_86 = arith.constant 0 : index
    %101 = vector.load %arg3[%c0_83, %c0_84, %c128_85, %c0_86] : memref<1x1x440x4xf32, #tpu.memory_space<vmem>>, vector<1x1x128x4xf32>
    %102 = vector.shape_cast %101 : vector<1x1x128x4xf32> to vector<128x4xf32>
    %c9_i32_87 = arith.constant 9 : i32
    %103 = arith.muli %arg2, %c9_i32_87 : i32
    %c0_i32_88 = arith.constant 0 : i32
    %104 = arith.addi %103, %c0_i32_88 : i32
    %c0_i32_89 = arith.constant 0 : i32
    %105 = arith.addi %104, %c0_i32_89 : i32
    %106 = arith.index_cast %105 : i32 to index
    %c0_90 = arith.constant 0 : index
    %c0_91 = arith.constant 0 : index
    %107 = vector.load %arg4[%106, %c0_90, %c0_91] : memref<27x4x128xf32, #tpu.memory_space<vmem>>, vector<1x4x128xf32>
    %108 = vector.shape_cast %107 : vector<1x4x128xf32> to vector<4x128xf32>
    %cst_92 = arith.constant dense<0.000000e+00> : vector<128x128xf32>
    %109 = tpu.matmul %102, %108, %cst_92 {dimension_numbers = #tpu.dot_dimension_numbers<[1], [0], [0], [1], [0, 0, 1, 1], [], []>} : vector<128x4xf32>, vector<4x128xf32>, vector<128x128xf32> -> vector<128x128xf32>
    %110 = arith.addf %100, %109 : vector<128x128xf32>
    %c0_93 = arith.constant 0 : index
    %c0_94 = arith.constant 0 : index
    %c129 = arith.constant 129 : index
    %c0_95 = arith.constant 0 : index
    %111 = vector.load %arg3[%c0_93, %c0_94, %c129, %c0_95] : memref<1x1x440x4xf32, #tpu.memory_space<vmem>>, vector<1x1x128x4xf32>
    %112 = vector.shape_cast %111 : vector<1x1x128x4xf32> to vector<128x4xf32>
    %c9_i32_96 = arith.constant 9 : i32
    %113 = arith.muli %arg2, %c9_i32_96 : i32
    %c0_i32_97 = arith.constant 0 : i32
    %114 = arith.addi %113, %c0_i32_97 : i32
    %c1_i32_98 = arith.constant 1 : i32
    %115 = arith.addi %114, %c1_i32_98 : i32
    %116 = arith.index_cast %115 : i32 to index
    %c0_99 = arith.constant 0 : index
    %c0_100 = arith.constant 0 : index
    %117 = vector.load %arg4[%116, %c0_99, %c0_100] : memref<27x4x128xf32, #tpu.memory_space<vmem>>, vector<1x4x128xf32>
    %118 = vector.shape_cast %117 : vector<1x4x128xf32> to vector<4x128xf32>
    %cst_101 = arith.constant dense<0.000000e+00> : vector<128x128xf32>
    %119 = tpu.matmul %112, %118, %cst_101 {dimension_numbers = #tpu.dot_dimension_numbers<[1], [0], [0], [1], [0, 0, 1, 1], [], []>} : vector<128x4xf32>, vector<4x128xf32>, vector<128x128xf32> -> vector<128x128xf32>
    %120 = arith.addf %110, %119 : vector<128x128xf32>
    %c0_102 = arith.constant 0 : index
    %c0_103 = arith.constant 0 : index
    %c130 = arith.constant 130 : index
    %c0_104 = arith.constant 0 : index
    %121 = vector.load %arg3[%c0_102, %c0_103, %c130, %c0_104] : memref<1x1x440x4xf32, #tpu.memory_space<vmem>>, vector<1x1x128x4xf32>
    %122 = vector.shape_cast %121 : vector<1x1x128x4xf32> to vector<128x4xf32>
    %c9_i32_105 = arith.constant 9 : i32
    %123 = arith.muli %arg2, %c9_i32_105 : i32
    %c0_i32_106 = arith.constant 0 : i32
    %124 = arith.addi %123, %c0_i32_106 : i32
    %c2_i32_107 = arith.constant 2 : i32
    %125 = arith.addi %124, %c2_i32_107 : i32
    %126 = arith.index_cast %125 : i32 to index
    %c0_108 = arith.constant 0 : index
    %c0_109 = arith.constant 0 : index
    %127 = vector.load %arg4[%126, %c0_108, %c0_109] : memref<27x4x128xf32, #tpu.memory_space<vmem>>, vector<1x4x128xf32>
    %128 = vector.shape_cast %127 : vector<1x4x128xf32> to vector<4x128xf32>
    %cst_110 = arith.constant dense<0.000000e+00> : vector<128x128xf32>
    %129 = tpu.matmul %122, %128, %cst_110 {dimension_numbers = #tpu.dot_dimension_numbers<[1], [0], [0], [1], [0, 0, 1, 1], [], []>} : vector<128x4xf32>, vector<4x128xf32>, vector<128x128xf32> -> vector<128x128xf32>
    %130 = arith.addf %120, %129 : vector<128x128xf32>
    %c0_111 = arith.constant 0 : index
    %c0_112 = arith.constant 0 : index
    %c152 = arith.constant 152 : index
    %c0_113 = arith.constant 0 : index
    %131 = vector.load %arg3[%c0_111, %c0_112, %c152, %c0_113] : memref<1x1x440x4xf32, #tpu.memory_space<vmem>>, vector<1x1x128x4xf32>
    %132 = vector.shape_cast %131 : vector<1x1x128x4xf32> to vector<128x4xf32>
    %c9_i32_114 = arith.constant 9 : i32
    %133 = arith.muli %arg2, %c9_i32_114 : i32
    %c3_i32_115 = arith.constant 3 : i32
    %134 = arith.addi %133, %c3_i32_115 : i32
    %c0_i32_116 = arith.constant 0 : i32
    %135 = arith.addi %134, %c0_i32_116 : i32
    %136 = arith.index_cast %135 : i32 to index
    %c0_117 = arith.constant 0 : index
    %c0_118 = arith.constant 0 : index
    %137 = vector.load %arg4[%136, %c0_117, %c0_118] : memref<27x4x128xf32, #tpu.memory_space<vmem>>, vector<1x4x128xf32>
    %138 = vector.shape_cast %137 : vector<1x4x128xf32> to vector<4x128xf32>
    %cst_119 = arith.constant dense<0.000000e+00> : vector<128x128xf32>
    %139 = tpu.matmul %132, %138, %cst_119 {dimension_numbers = #tpu.dot_dimension_numbers<[1], [0], [0], [1], [0, 0, 1, 1], [], []>} : vector<128x4xf32>, vector<4x128xf32>, vector<128x128xf32> -> vector<128x128xf32>
    %140 = arith.addf %130, %139 : vector<128x128xf32>
    %c0_120 = arith.constant 0 : index
    %c0_121 = arith.constant 0 : index
    %c153 = arith.constant 153 : index
    %c0_122 = arith.constant 0 : index
    %141 = vector.load %arg3[%c0_120, %c0_121, %c153, %c0_122] : memref<1x1x440x4xf32, #tpu.memory_space<vmem>>, vector<1x1x128x4xf32>
    %142 = vector.shape_cast %141 : vector<1x1x128x4xf32> to vector<128x4xf32>
    %c9_i32_123 = arith.constant 9 : i32
    %143 = arith.muli %arg2, %c9_i32_123 : i32
    %c3_i32_124 = arith.constant 3 : i32
    %144 = arith.addi %143, %c3_i32_124 : i32
    %c1_i32_125 = arith.constant 1 : i32
    %145 = arith.addi %144, %c1_i32_125 : i32
    %146 = arith.index_cast %145 : i32 to index
    %c0_126 = arith.constant 0 : index
    %c0_127 = arith.constant 0 : index
    %147 = vector.load %arg4[%146, %c0_126, %c0_127] : memref<27x4x128xf32, #tpu.memory_space<vmem>>, vector<1x4x128xf32>
    %148 = vector.shape_cast %147 : vector<1x4x128xf32> to vector<4x128xf32>
    %cst_128 = arith.constant dense<0.000000e+00> : vector<128x128xf32>
    %149 = tpu.matmul %142, %148, %cst_128 {dimension_numbers = #tpu.dot_dimension_numbers<[1], [0], [0], [1], [0, 0, 1, 1], [], []>} : vector<128x4xf32>, vector<4x128xf32>, vector<128x128xf32> -> vector<128x128xf32>
    %150 = arith.addf %140, %149 : vector<128x128xf32>
    %c0_129 = arith.constant 0 : index
    %c0_130 = arith.constant 0 : index
    %c154 = arith.constant 154 : index
    %c0_131 = arith.constant 0 : index
    %151 = vector.load %arg3[%c0_129, %c0_130, %c154, %c0_131] : memref<1x1x440x4xf32, #tpu.memory_space<vmem>>, vector<1x1x128x4xf32>
    %152 = vector.shape_cast %151 : vector<1x1x128x4xf32> to vector<128x4xf32>
    %c9_i32_132 = arith.constant 9 : i32
    %153 = arith.muli %arg2, %c9_i32_132 : i32
    %c3_i32_133 = arith.constant 3 : i32
    %154 = arith.addi %153, %c3_i32_133 : i32
    %c2_i32_134 = arith.constant 2 : i32
    %155 = arith.addi %154, %c2_i32_134 : i32
    %156 = arith.index_cast %155 : i32 to index
    %c0_135 = arith.constant 0 : index
    %c0_136 = arith.constant 0 : index
    %157 = vector.load %arg4[%156, %c0_135, %c0_136] : memref<27x4x128xf32, #tpu.memory_space<vmem>>, vector<1x4x128xf32>
    %158 = vector.shape_cast %157 : vector<1x4x128xf32> to vector<4x128xf32>
    %cst_137 = arith.constant dense<0.000000e+00> : vector<128x128xf32>
    %159 = tpu.matmul %152, %158, %cst_137 {dimension_numbers = #tpu.dot_dimension_numbers<[1], [0], [0], [1], [0, 0, 1, 1], [], []>} : vector<128x4xf32>, vector<4x128xf32>, vector<128x128xf32> -> vector<128x128xf32>
    %160 = arith.addf %150, %159 : vector<128x128xf32>
    %c0_138 = arith.constant 0 : index
    %c0_139 = arith.constant 0 : index
    %c176 = arith.constant 176 : index
    %c0_140 = arith.constant 0 : index
    %161 = vector.load %arg3[%c0_138, %c0_139, %c176, %c0_140] : memref<1x1x440x4xf32, #tpu.memory_space<vmem>>, vector<1x1x128x4xf32>
    %162 = vector.shape_cast %161 : vector<1x1x128x4xf32> to vector<128x4xf32>
    %c9_i32_141 = arith.constant 9 : i32
    %163 = arith.muli %arg2, %c9_i32_141 : i32
    %c6_i32_142 = arith.constant 6 : i32
    %164 = arith.addi %163, %c6_i32_142 : i32
    %c0_i32_143 = arith.constant 0 : i32
    %165 = arith.addi %164, %c0_i32_143 : i32
    %166 = arith.index_cast %165 : i32 to index
    %c0_144 = arith.constant 0 : index
    %c0_145 = arith.constant 0 : index
    %167 = vector.load %arg4[%166, %c0_144, %c0_145] : memref<27x4x128xf32, #tpu.memory_space<vmem>>, vector<1x4x128xf32>
    %168 = vector.shape_cast %167 : vector<1x4x128xf32> to vector<4x128xf32>
    %cst_146 = arith.constant dense<0.000000e+00> : vector<128x128xf32>
    %169 = tpu.matmul %162, %168, %cst_146 {dimension_numbers = #tpu.dot_dimension_numbers<[1], [0], [0], [1], [0, 0, 1, 1], [], []>} : vector<128x4xf32>, vector<4x128xf32>, vector<128x128xf32> -> vector<128x128xf32>
    %170 = arith.addf %160, %169 : vector<128x128xf32>
    %c0_147 = arith.constant 0 : index
    %c0_148 = arith.constant 0 : index
    %c177 = arith.constant 177 : index
    %c0_149 = arith.constant 0 : index
    %171 = vector.load %arg3[%c0_147, %c0_148, %c177, %c0_149] : memref<1x1x440x4xf32, #tpu.memory_space<vmem>>, vector<1x1x128x4xf32>
    %172 = vector.shape_cast %171 : vector<1x1x128x4xf32> to vector<128x4xf32>
    %c9_i32_150 = arith.constant 9 : i32
    %173 = arith.muli %arg2, %c9_i32_150 : i32
    %c6_i32_151 = arith.constant 6 : i32
    %174 = arith.addi %173, %c6_i32_151 : i32
    %c1_i32_152 = arith.constant 1 : i32
    %175 = arith.addi %174, %c1_i32_152 : i32
    %176 = arith.index_cast %175 : i32 to index
    %c0_153 = arith.constant 0 : index
    %c0_154 = arith.constant 0 : index
    %177 = vector.load %arg4[%176, %c0_153, %c0_154] : memref<27x4x128xf32, #tpu.memory_space<vmem>>, vector<1x4x128xf32>
    %178 = vector.shape_cast %177 : vector<1x4x128xf32> to vector<4x128xf32>
    %cst_155 = arith.constant dense<0.000000e+00> : vector<128x128xf32>
    %179 = tpu.matmul %172, %178, %cst_155 {dimension_numbers = #tpu.dot_dimension_numbers<[1], [0], [0], [1], [0, 0, 1, 1], [], []>} : vector<128x4xf32>, vector<4x128xf32>, vector<128x128xf32> -> vector<128x128xf32>
    %180 = arith.addf %170, %179 : vector<128x128xf32>
    %c0_156 = arith.constant 0 : index
    %c0_157 = arith.constant 0 : index
    %c178 = arith.constant 178 : index
    %c0_158 = arith.constant 0 : index
    %181 = vector.load %arg3[%c0_156, %c0_157, %c178, %c0_158] : memref<1x1x440x4xf32, #tpu.memory_space<vmem>>, vector<1x1x128x4xf32>
    %182 = vector.shape_cast %181 : vector<1x1x128x4xf32> to vector<128x4xf32>
    %c9_i32_159 = arith.constant 9 : i32
    %183 = arith.muli %arg2, %c9_i32_159 : i32
    %c6_i32_160 = arith.constant 6 : i32
    %184 = arith.addi %183, %c6_i32_160 : i32
    %c2_i32_161 = arith.constant 2 : i32
    %185 = arith.addi %184, %c2_i32_161 : i32
    %186 = arith.index_cast %185 : i32 to index
    %c0_162 = arith.constant 0 : index
    %c0_163 = arith.constant 0 : index
    %187 = vector.load %arg4[%186, %c0_162, %c0_163] : memref<27x4x128xf32, #tpu.memory_space<vmem>>, vector<1x4x128xf32>
    %188 = vector.shape_cast %187 : vector<1x4x128xf32> to vector<4x128xf32>
    %cst_164 = arith.constant dense<0.000000e+00> : vector<128x128xf32>
    %189 = tpu.matmul %182, %188, %cst_164 {dimension_numbers = #tpu.dot_dimension_numbers<[1], [0], [0], [1], [0, 0, 1, 1], [], []>} : vector<128x4xf32>, vector<4x128xf32>, vector<128x128xf32> -> vector<128x128xf32>
    %190 = arith.addf %180, %189 : vector<128x128xf32>
    %c2_i32_165 = arith.constant 2 : i32
    %191 = arith.cmpi eq, %arg2, %c2_i32_165 : i32
    %192 = arith.extui %191 : i1 to i32
    %c0_i32_166 = arith.constant 0 : i32
    %193 = arith.cmpi ne, %192, %c0_i32_166 : i32
    scf.if %193 {
      %c0_256 = arith.constant 0 : index
      %c0_257 = arith.constant 0 : index
      %c128_258 = arith.constant 128 : index
      %c0_259 = arith.constant 0 : index
      %294 = vector.load %arg6[%c0_256, %c0_257, %c128_258, %c0_259] : memref<1x1x384x128xf32, #tpu.memory_space<vmem>>, vector<1x1x128x128xf32>
      %295 = vector.shape_cast %294 : vector<1x1x128x128xf32> to vector<128x128xf32>
      %296 = vector.shape_cast %190 : vector<128x128xf32> to vector<1x1x128x128xf32>
      tpu.vector_store %arg6[%c0_256, %c0_257, %c128_258, %c0_259], %296 {strides = array<i32>} : memref<1x1x384x128xf32, #tpu.memory_space<vmem>>, vector<1x1x128x128xf32>,
    } else {
    }
    %c2_i32_167 = arith.constant 2 : i32
    %194 = arith.cmpi slt, %arg2, %c2_i32_167 : i32
    %195 = arith.extui %194 : i1 to i32
    %c0_i32_168 = arith.constant 0 : i32
    %196 = arith.cmpi ne, %195, %c0_i32_168 : i32
    scf.if %196 {
      %c128_256 = arith.constant 128 : index
      %c0_257 = arith.constant 0 : index
      %294 = vector.load %arg7[%c128_256, %c0_257] : memref<384x128xf32, #tpu.memory_space<vmem>>, vector<128x128xf32>
      tpu.vector_store %arg7[%c128_256, %c0_257], %190 {strides = array<i32>} : memref<384x128xf32, #tpu.memory_space<vmem>>, vector<128x128xf32>,
    } else {
    }
    %c256 = arith.constant 256 : index
    %c0_169 = arith.constant 0 : index
    %197 = vector.load %arg7[%c256, %c0_169] : memref<384x128xf32, #tpu.memory_space<vmem>>, vector<128x128xf32>
    %c0_170 = arith.constant 0 : index
    %c0_171 = arith.constant 0 : index
    %c256_172 = arith.constant 256 : index
    %c0_173 = arith.constant 0 : index
    %198 = vector.load %arg3[%c0_170, %c0_171, %c256_172, %c0_173] : memref<1x1x440x4xf32, #tpu.memory_space<vmem>>, vector<1x1x128x4xf32>
    %199 = vector.shape_cast %198 : vector<1x1x128x4xf32> to vector<128x4xf32>
    %c9_i32_174 = arith.constant 9 : i32
    %200 = arith.muli %arg2, %c9_i32_174 : i32
    %c0_i32_175 = arith.constant 0 : i32
    %201 = arith.addi %200, %c0_i32_175 : i32
    %c0_i32_176 = arith.constant 0 : i32
    %202 = arith.addi %201, %c0_i32_176 : i32
    %203 = arith.index_cast %202 : i32 to index
    %c0_177 = arith.constant 0 : index
    %c0_178 = arith.constant 0 : index
    %204 = vector.load %arg4[%203, %c0_177, %c0_178] : memref<27x4x128xf32, #tpu.memory_space<vmem>>, vector<1x4x128xf32>
    %205 = vector.shape_cast %204 : vector<1x4x128xf32> to vector<4x128xf32>
    %cst_179 = arith.constant dense<0.000000e+00> : vector<128x128xf32>
    %206 = tpu.matmul %199, %205, %cst_179 {dimension_numbers = #tpu.dot_dimension_numbers<[1], [0], [0], [1], [0, 0, 1, 1], [], []>} : vector<128x4xf32>, vector<4x128xf32>, vector<128x128xf32> -> vector<128x128xf32>
    %207 = arith.addf %197, %206 : vector<128x128xf32>
    %c0_180 = arith.constant 0 : index
    %c0_181 = arith.constant 0 : index
    %c257 = arith.constant 257 : index
    %c0_182 = arith.constant 0 : index
    %208 = vector.load %arg3[%c0_180, %c0_181, %c257, %c0_182] : memref<1x1x440x4xf32, #tpu.memory_space<vmem>>, vector<1x1x128x4xf32>
    %209 = vector.shape_cast %208 : vector<1x1x128x4xf32> to vector<128x4xf32>
    %c9_i32_183 = arith.constant 9 : i32
    %210 = arith.muli %arg2, %c9_i32_183 : i32
    %c0_i32_184 = arith.constant 0 : i32
    %211 = arith.addi %210, %c0_i32_184 : i32
    %c1_i32_185 = arith.constant 1 : i32
    %212 = arith.addi %211, %c1_i32_185 : i32
    %213 = arith.index_cast %212 : i32 to index
    %c0_186 = arith.constant 0 : index
    %c0_187 = arith.constant 0 : index
    %214 = vector.load %arg4[%213, %c0_186, %c0_187] : memref<27x4x128xf32, #tpu.memory_space<vmem>>, vector<1x4x128xf32>
    %215 = vector.shape_cast %214 : vector<1x4x128xf32> to vector<4x128xf32>
    %cst_188 = arith.constant dense<0.000000e+00> : vector<128x128xf32>
    %216 = tpu.matmul %209, %215, %cst_188 {dimension_numbers = #tpu.dot_dimension_numbers<[1], [0], [0], [1], [0, 0, 1, 1], [], []>} : vector<128x4xf32>, vector<4x128xf32>, vector<128x128xf32> -> vector<128x128xf32>
    %217 = arith.addf %207, %216 : vector<128x128xf32>
    %c0_189 = arith.constant 0 : index
    %c0_190 = arith.constant 0 : index
    %c258 = arith.constant 258 : index
    %c0_191 = arith.constant 0 : index
    %218 = vector.load %arg3[%c0_189, %c0_190, %c258, %c0_191] : memref<1x1x440x4xf32, #tpu.memory_space<vmem>>, vector<1x1x128x4xf32>
    %219 = vector.shape_cast %218 : vector<1x1x128x4xf32> to vector<128x4xf32>
    %c9_i32_192 = arith.constant 9 : i32
    %220 = arith.muli %arg2, %c9_i32_192 : i32
    %c0_i32_193 = arith.constant 0 : i32
    %221 = arith.addi %220, %c0_i32_193 : i32
    %c2_i32_194 = arith.constant 2 : i32
    %222 = arith.addi %221, %c2_i32_194 : i32
    %223 = arith.index_cast %222 : i32 to index
    %c0_195 = arith.constant 0 : index
    %c0_196 = arith.constant 0 : index
    %224 = vector.load %arg4[%223, %c0_195, %c0_196] : memref<27x4x128xf32, #tpu.memory_space<vmem>>, vector<1x4x128xf32>
    %225 = vector.shape_cast %224 : vector<1x4x128xf32> to vector<4x128xf32>
    %cst_197 = arith.constant dense<0.000000e+00> : vector<128x128xf32>
    %226 = tpu.matmul %219, %225, %cst_197 {dimension_numbers = #tpu.dot_dimension_numbers<[1], [0], [0], [1], [0, 0, 1, 1], [], []>} : vector<128x4xf32>, vector<4x128xf32>, vector<128x128xf32> -> vector<128x128xf32>
    %227 = arith.addf %217, %226 : vector<128x128xf32>
    %c0_198 = arith.constant 0 : index
    %c0_199 = arith.constant 0 : index
    %c280 = arith.constant 280 : index
    %c0_200 = arith.constant 0 : index
    %228 = vector.load %arg3[%c0_198, %c0_199, %c280, %c0_200] : memref<1x1x440x4xf32, #tpu.memory_space<vmem>>, vector<1x1x128x4xf32>
    %229 = vector.shape_cast %228 : vector<1x1x128x4xf32> to vector<128x4xf32>
    %c9_i32_201 = arith.constant 9 : i32
    %230 = arith.muli %arg2, %c9_i32_201 : i32
    %c3_i32_202 = arith.constant 3 : i32
    %231 = arith.addi %230, %c3_i32_202 : i32
    %c0_i32_203 = arith.constant 0 : i32
    %232 = arith.addi %231, %c0_i32_203 : i32
    %233 = arith.index_cast %232 : i32 to index
    %c0_204 = arith.constant 0 : index
    %c0_205 = arith.constant 0 : index
    %234 = vector.load %arg4[%233, %c0_204, %c0_205] : memref<27x4x128xf32, #tpu.memory_space<vmem>>, vector<1x4x128xf32>
    %235 = vector.shape_cast %234 : vector<1x4x128xf32> to vector<4x128xf32>
    %cst_206 = arith.constant dense<0.000000e+00> : vector<128x128xf32>
    %236 = tpu.matmul %229, %235, %cst_206 {dimension_numbers = #tpu.dot_dimension_numbers<[1], [0], [0], [1], [0, 0, 1, 1], [], []>} : vector<128x4xf32>, vector<4x128xf32>, vector<128x128xf32> -> vector<128x128xf32>
    %237 = arith.addf %227, %236 : vector<128x128xf32>
    %c0_207 = arith.constant 0 : index
    %c0_208 = arith.constant 0 : index
    %c281 = arith.constant 281 : index
    %c0_209 = arith.constant 0 : index
    %238 = vector.load %arg3[%c0_207, %c0_208, %c281, %c0_209] : memref<1x1x440x4xf32, #tpu.memory_space<vmem>>, vector<1x1x128x4xf32>
    %239 = vector.shape_cast %238 : vector<1x1x128x4xf32> to vector<128x4xf32>
    %c9_i32_210 = arith.constant 9 : i32
    %240 = arith.muli %arg2, %c9_i32_210 : i32
    %c3_i32_211 = arith.constant 3 : i32
    %241 = arith.addi %240, %c3_i32_211 : i32
    %c1_i32_212 = arith.constant 1 : i32
    %242 = arith.addi %241, %c1_i32_212 : i32
    %243 = arith.index_cast %242 : i32 to index
    %c0_213 = arith.constant 0 : index
    %c0_214 = arith.constant 0 : index
    %244 = vector.load %arg4[%243, %c0_213, %c0_214] : memref<27x4x128xf32, #tpu.memory_space<vmem>>, vector<1x4x128xf32>
    %245 = vector.shape_cast %244 : vector<1x4x128xf32> to vector<4x128xf32>
    %cst_215 = arith.constant dense<0.000000e+00> : vector<128x128xf32>
    %246 = tpu.matmul %239, %245, %cst_215 {dimension_numbers = #tpu.dot_dimension_numbers<[1], [0], [0], [1], [0, 0, 1, 1], [], []>} : vector<128x4xf32>, vector<4x128xf32>, vector<128x128xf32> -> vector<128x128xf32>
    %247 = arith.addf %237, %246 : vector<128x128xf32>
    %c0_216 = arith.constant 0 : index
    %c0_217 = arith.constant 0 : index
    %c282 = arith.constant 282 : index
    %c0_218 = arith.constant 0 : index
    %248 = vector.load %arg3[%c0_216, %c0_217, %c282, %c0_218] : memref<1x1x440x4xf32, #tpu.memory_space<vmem>>, vector<1x1x128x4xf32>
    %249 = vector.shape_cast %248 : vector<1x1x128x4xf32> to vector<128x4xf32>
    %c9_i32_219 = arith.constant 9 : i32
    %250 = arith.muli %arg2, %c9_i32_219 : i32
    %c3_i32_220 = arith.constant 3 : i32
    %251 = arith.addi %250, %c3_i32_220 : i32
    %c2_i32_221 = arith.constant 2 : i32
    %252 = arith.addi %251, %c2_i32_221 : i32
    %253 = arith.index_cast %252 : i32 to index
    %c0_222 = arith.constant 0 : index
    %c0_223 = arith.constant 0 : index
    %254 = vector.load %arg4[%253, %c0_222, %c0_223] : memref<27x4x128xf32, #tpu.memory_space<vmem>>, vector<1x4x128xf32>
    %255 = vector.shape_cast %254 : vector<1x4x128xf32> to vector<4x128xf32>
    %cst_224 = arith.constant dense<0.000000e+00> : vector<128x128xf32>
    %256 = tpu.matmul %249, %255, %cst_224 {dimension_numbers = #tpu.dot_dimension_numbers<[1], [0], [0], [1], [0, 0, 1, 1], [], []>} : vector<128x4xf32>, vector<4x128xf32>, vector<128x128xf32> -> vector<128x128xf32>
    %257 = arith.addf %247, %256 : vector<128x128xf32>
    %c0_225 = arith.constant 0 : index
    %c0_226 = arith.constant 0 : index
    %c304 = arith.constant 304 : index
    %c0_227 = arith.constant 0 : index
    %258 = vector.load %arg3[%c0_225, %c0_226, %c304, %c0_227] : memref<1x1x440x4xf32, #tpu.memory_space<vmem>>, vector<1x1x128x4xf32>
    %259 = vector.shape_cast %258 : vector<1x1x128x4xf32> to vector<128x4xf32>
    %c9_i32_228 = arith.constant 9 : i32
    %260 = arith.muli %arg2, %c9_i32_228 : i32
    %c6_i32_229 = arith.constant 6 : i32
    %261 = arith.addi %260, %c6_i32_229 : i32
    %c0_i32_230 = arith.constant 0 : i32
    %262 = arith.addi %261, %c0_i32_230 : i32
    %263 = arith.index_cast %262 : i32 to index
    %c0_231 = arith.constant 0 : index
    %c0_232 = arith.constant 0 : index
    %264 = vector.load %arg4[%263, %c0_231, %c0_232] : memref<27x4x128xf32, #tpu.memory_space<vmem>>, vector<1x4x128xf32>
    %265 = vector.shape_cast %264 : vector<1x4x128xf32> to vector<4x128xf32>
    %cst_233 = arith.constant dense<0.000000e+00> : vector<128x128xf32>
    %266 = tpu.matmul %259, %265, %cst_233 {dimension_numbers = #tpu.dot_dimension_numbers<[1], [0], [0], [1], [0, 0, 1, 1], [], []>} : vector<128x4xf32>, vector<4x128xf32>, vector<128x128xf32> -> vector<128x128xf32>
    %267 = arith.addf %257, %266 : vector<128x128xf32>
    %c0_234 = arith.constant 0 : index
    %c0_235 = arith.constant 0 : index
    %c305 = arith.constant 305 : index
    %c0_236 = arith.constant 0 : index
    %268 = vector.load %arg3[%c0_234, %c0_235, %c305, %c0_236] : memref<1x1x440x4xf32, #tpu.memory_space<vmem>>, vector<1x1x128x4xf32>
    %269 = vector.shape_cast %268 : vector<1x1x128x4xf32> to vector<128x4xf32>
    %c9_i32_237 = arith.constant 9 : i32
    %270 = arith.muli %arg2, %c9_i32_237 : i32
    %c6_i32_238 = arith.constant 6 : i32
    %271 = arith.addi %270, %c6_i32_238 : i32
    %c1_i32_239 = arith.constant 1 : i32
    %272 = arith.addi %271, %c1_i32_239 : i32
    %273 = arith.index_cast %272 : i32 to index
    %c0_240 = arith.constant 0 : index
    %c0_241 = arith.constant 0 : index
    %274 = vector.load %arg4[%273, %c0_240, %c0_241] : memref<27x4x128xf32, #tpu.memory_space<vmem>>, vector<1x4x128xf32>
    %275 = vector.shape_cast %274 : vector<1x4x128xf32> to vector<4x128xf32>
    %cst_242 = arith.constant dense<0.000000e+00> : vector<128x128xf32>
    %276 = tpu.matmul %269, %275, %cst_242 {dimension_numbers = #tpu.dot_dimension_numbers<[1], [0], [0], [1], [0, 0, 1, 1], [], []>} : vector<128x4xf32>, vector<4x128xf32>, vector<128x128xf32> -> vector<128x128xf32>
    %277 = arith.addf %267, %276 : vector<128x128xf32>
    %c0_243 = arith.constant 0 : index
    %c0_244 = arith.constant 0 : index
    %c306 = arith.constant 306 : index
    %c0_245 = arith.constant 0 : index
    %278 = vector.load %arg3[%c0_243, %c0_244, %c306, %c0_245] : memref<1x1x440x4xf32, #tpu.memory_space<vmem>>, vector<1x1x128x4xf32>
    %279 = vector.shape_cast %278 : vector<1x1x128x4xf32> to vector<128x4xf32>
    %c9_i32_246 = arith.constant 9 : i32
    %280 = arith.muli %arg2, %c9_i32_246 : i32
    %c6_i32_247 = arith.constant 6 : i32
    %281 = arith.addi %280, %c6_i32_247 : i32
    %c2_i32_248 = arith.constant 2 : i32
    %282 = arith.addi %281, %c2_i32_248 : i32
    %283 = arith.index_cast %282 : i32 to index
    %c0_249 = arith.constant 0 : index
    %c0_250 = arith.constant 0 : index
    %284 = vector.load %arg4[%283, %c0_249, %c0_250] : memref<27x4x128xf32, #tpu.memory_space<vmem>>, vector<1x4x128xf32>
    %285 = vector.shape_cast %284 : vector<1x4x128xf32> to vector<4x128xf32>
    %cst_251 = arith.constant dense<0.000000e+00> : vector<128x128xf32>
    %286 = tpu.matmul %279, %285, %cst_251 {dimension_numbers = #tpu.dot_dimension_numbers<[1], [0], [0], [1], [0, 0, 1, 1], [], []>} : vector<128x4xf32>, vector<4x128xf32>, vector<128x128xf32> -> vector<128x128xf32>
    %287 = arith.addf %277, %286 : vector<128x128xf32>
    %c2_i32_252 = arith.constant 2 : i32
    %288 = arith.cmpi eq, %arg2, %c2_i32_252 : i32
    %289 = arith.extui %288 : i1 to i32
    %c0_i32_253 = arith.constant 0 : i32
    %290 = arith.cmpi ne, %289, %c0_i32_253 : i32
    scf.if %290 {
      %c0_256 = arith.constant 0 : index
      %c0_257 = arith.constant 0 : index
      %c256_258 = arith.constant 256 : index
      %c0_259 = arith.constant 0 : index
      %294 = vector.load %arg6[%c0_256, %c0_257, %c256_258, %c0_259] : memref<1x1x384x128xf32, #tpu.memory_space<vmem>>, vector<1x1x128x128xf32>
      %295 = vector.shape_cast %294 : vector<1x1x128x128xf32> to vector<128x128xf32>
      %296 = vector.shape_cast %287 : vector<128x128xf32> to vector<1x1x128x128xf32>
      tpu.vector_store %arg6[%c0_256, %c0_257, %c256_258, %c0_259], %296 {strides = array<i32>} : memref<1x1x384x128xf32, #tpu.memory_space<vmem>>, vector<1x1x128x128xf32>,
    } else {
    }
    %c2_i32_254 = arith.constant 2 : i32
    %291 = arith.cmpi slt, %arg2, %c2_i32_254 : i32
    %292 = arith.extui %291 : i1 to i32
    %c0_i32_255 = arith.constant 0 : i32
    %293 = arith.cmpi ne, %292, %c0_i32_255 : i32
    scf.if %293 {
      %c256_256 = arith.constant 256 : index
      %c0_257 = arith.constant 0 : index
      %294 = vector.load %arg7[%c256_256, %c0_257] : memref<384x128xf32, #tpu.memory_space<vmem>>, vector<128x128xf32>
      tpu.vector_store %arg7[%c256_256, %c0_257], %287 {strides = array<i32>} : memref<384x128xf32, #tpu.memory_space<vmem>>, vector<128x128xf32>,
    } else {
    }
    return
  }
  func.func @transform_0(%arg0: i32, %arg1: i32, %arg2: i32) -> (i32, i32, i32, i32) {
    %0 = arith.addi %arg1, %arg2 : i32
    %c0_i32 = arith.constant 0 : i32
    %c0_i32_0 = arith.constant 0 : i32
    %c0_i32_1 = arith.constant 0 : i32
    return %arg0, %0, %c0_i32, %c0_i32_0 : i32, i32, i32, i32
  }
  func.func @transform_1(%arg0: i32, %arg1: i32, %arg2: i32) -> (i32, i32, i32) {
    %c0_i32 = arith.constant 0 : i32
    %c0_i32_0 = arith.constant 0 : i32
    %c0_i32_1 = arith.constant 0 : i32
    %c0_i32_2 = arith.constant 0 : i32
    return %c0_i32, %c0_i32_0, %c0_i32_1 : i32, i32, i32
  }
  func.func @transform_2(%arg0: i32, %arg1: i32, %arg2: i32) -> (i32, i32) {
    %c0_i32 = arith.constant 0 : i32
    %c0_i32_0 = arith.constant 0 : i32
    %c0_i32_1 = arith.constant 0 : i32
    return %c0_i32, %c0_i32_0 : i32, i32
  }
  func.func @transform_3(%arg0: i32, %arg1: i32, %arg2: i32) -> (i32, i32, i32, i32) {
    %c0_i32 = arith.constant 0 : i32
    %c0_i32_0 = arith.constant 0 : i32
    %c0_i32_1 = arith.constant 0 : i32
    return %arg0, %arg1, %c0_i32, %c0_i32_0 : i32, i32, i32, i32
  }
}

</mosaic_0001>

<llo_original>
// kernel: upsample_forward.1
$region0: #{upsample_forward.1}
  #allocation0 [shape = 'u32[]', space=smem, size = 0x4, offset = 0x4, fixed_abs, tag = 'smem constant byte address 0x4 - core index']
  #allocation1 [shape = 'u32[144,128]{1,0:T(1,128)}', space=vmem, size = 0x12000, scoped, tag = 'internal scratch']
  #allocation2 [shape = 'f32[384,128]{1,0:T(8,128)}', space=vmem, size = 0x30000, scoped, tag = 'scratch operand']
  %s0 = inlined_call_operand.vmem [shape: f32[2,10,440,4], index: 0, kind: input, shape index: {}]
  %s1 = inlined_call_operand.vmem [shape: f32[27,4,128], index: 1, kind: input, shape index: {}]
  %s2 = inlined_call_operand.vmem [shape: f32[1,128], index: 2, kind: input, shape index: {}]
  %s3 = inlined_call_operand.vmem [shape: f32[2,8,384,128], index: 3, kind: output, shape index: {}]
  %s4 = sld [smem:[#allocation0]]
  $region73: #{upsample_forward.1} parent=0
    _
  %s6 = ssub.s32 1, %s4
  %s7 = scalar_select 0, %s6, %s4
  loop: start=0, step=1, limit=50
  $region2: #{upsample_forward.1} parent=0 // loop_pre_header
    _
  $region3: #{upsample_forward.1} parent=0 // loop_header
    %s9 = sphi 0, %s13
    %p10 = scmp.ge.s32.totalorder %s9, 50
    %s16 = sphi 0, %s35
    %s17 = sphi 0, %s31
    %s18 = sphi 0, %s27
    %s19 = sphi 0, %s16
    %s20 = sphi 0, %s17
    %s21 = sphi 0, %s18
    %s22 = sphi 0, %s19
    %s23 = sphi 0, %s20
    %s24 = sphi 0, %s21
    %s42 = sphi 0, %s44
    %s45 = sphi 0, %s42
    %s46 = sphi 0, %s45
    %s62 = sphi 0, %s46
    %s66 = sphi 0, %s66
    %s68 = sphi 0, %s66
    %s69 = sphi 0, %s68
    %s83 = sphi 0, %s69
    %s87 = sphi 0, %s87
    %s89 = sphi 0, %s87
    %s90 = sphi 0, %s89
    %s104 = sphi 0, %s90
    %s112 = sphi 0, %s114
    %s115 = sphi 0, %s112
    %s116 = sphi 0, %s115
    %s132 = sphi 0, %s116
  $region4: #{upsample_forward.1} parent=0 // loop_header_branch
    %12 = sbr.rel (%p10) target = $region8
  $region5: #{upsample_forward.1} parent=0 // loop_body
    %s14 = ssub.s32 %s9, 1
    %s15 = ssub.s32 %s9, 2
    %s25 = sadd.s32 1, %s18
    %p26 = scmp.ge.s32.totalorder %s25, 3
    %s27 = scalar_select %p26, 0, %s25
    %s28 = sadd.s32 1, %s17
    %s29 = scalar_select %p26, %s28, %s17
    %p30 = scmp.ge.s32.totalorder %s29, 8
    %s31 = scalar_select %p30, 0, %s29
    %s32 = sadd.s32 1, %s16
    %s33 = scalar_select %p30, %s32, %s16
    %p34 = scmp.ge.s32.totalorder %s33, 2
    %s35 = scalar_select %p34, 0, %s33
    %s36 = sadd.s32 %s17, %s18
    %s37 = sadd.s32 %s31, %s27
    %s38 = ssub.s32 %s16, %s35
    %s39 = ssub.s32 %s36, %s37
    %s40 = sor.u32 %s38, %s39
    %p41 = scmp.eq.s32.totalorder %s40, 0
    %s43 = sadd.s32 %s42, 1
    %s44 = scalar_select %p41, %s42, %s43
    %p47 = pneg %p41
    %p48 = scmp.eq.s32.totalorder %s9, 47
    %p49 = por %p47, %p48
    %p50 = scmp.ne.s32.totalorder %s42, %s45
    %p51 = scmp.eq.s32.totalorder %s9, 0
    %p52 = por %p50, %p51
    %p53 = scmp.ne.s32.totalorder %s42, %s45
    %p54 = scmp.eq.s32.totalorder %s14, 47
    %p55 = por %p53, %p54
    %p56 = scmp.ne.s32.totalorder %s45, %s46
    %p57 = scmp.eq.s32.totalorder %s14, 0
    %p58 = por %p56, %p57
    %p59 = scmp.ne.s32.totalorder %s45, %s46
    %p60 = scmp.eq.s32.totalorder %s15, 47
    %p61 = por %p59, %p60
    %p63 = scmp.ne.s32.totalorder %s46, %s62
    %p64 = scmp.eq.s32.totalorder %s15, 0
    %p65 = por %p63, %p64
    %s67 = sadd.s32 %s66, 1
    %p70 = scmp.eq.s32.totalorder %s9, 47
    %p71 = scmp.ne.s32.totalorder %s66, %s68
    %p72 = scmp.eq.s32.totalorder %s9, 0
    %p73 = por %p71, %p72
    %p74 = scmp.ne.s32.totalorder %s66, %s68
    %p75 = scmp.eq.s32.totalorder %s14, 47
    %p76 = por %p74, %p75
    %p77 = scmp.ne.s32.totalorder %s68, %s69
    %p78 = scmp.eq.s32.totalorder %s14, 0
    %p79 = por %p77, %p78
    %p80 = scmp.ne.s32.totalorder %s68, %s69
    %p81 = scmp.eq.s32.totalorder %s15, 47
    %p82 = por %p80, %p81
    %p84 = scmp.ne.s32.totalorder %s69, %s83
    %p85 = scmp.eq.s32.totalorder %s15, 0
    %p86 = por %p84, %p85
    %s88 = sadd.s32 %s87, 1
    %p91 = scmp.eq.s32.totalorder %s9, 47
    %p92 = scmp.ne.s32.totalorder %s87, %s89
    %p93 = scmp.eq.s32.totalorder %s9, 0
    %p94 = por %p92, %p93
    %p95 = scmp.ne.s32.totalorder %s87, %s89
    %p96 = scmp.eq.s32.totalorder %s14, 47
    %p97 = por %p95, %p96
    %p98 = scmp.ne.s32.totalorder %s89, %s90
    %p99 = scmp.eq.s32.totalorder %s14, 0
    %p100 = por %p98, %p99
    %p101 = scmp.ne.s32.totalorder %s89, %s90
    %p102 = scmp.eq.s32.totalorder %s15, 47
    %p103 = por %p101, %p102
    %p105 = scmp.ne.s32.totalorder %s90, %s104
    %p106 = scmp.eq.s32.totalorder %s15, 0
    %p107 = por %p105, %p106
    %s108 = ssub.s32 %s16, %s35
    %s109 = ssub.s32 %s17, %s31
    %s110 = sor.u32 %s108, %s109
    %p111 = scmp.eq.s32.totalorder %s110, 0
    %s113 = sadd.s32 %s112, 1
    %s114 = scalar_select %p111, %s112, %s113
    %p117 = pneg %p111
    %p118 = scmp.eq.s32.totalorder %s9, 47
    %p119 = por %p117, %p118
    %p120 = scmp.ne.s32.totalorder %s112, %s115
    %p121 = scmp.eq.s32.totalorder %s9, 0
    %p122 = por %p120, %p121
    %p123 = scmp.ne.s32.totalorder %s112, %s115
    %p124 = scmp.eq.s32.totalorder %s14, 47
    %p125 = por %p123, %p124
    %p126 = scmp.ne.s32.totalorder %s115, %s116
    %p127 = scmp.eq.s32.totalorder %s14, 0
    %p128 = por %p126, %p127
    %p129 = scmp.ne.s32.totalorder %s115, %s116
    %p130 = scmp.eq.s32.totalorder %s15, 47
    %p131 = por %p129, %p130
    %p133 = scmp.ne.s32.totalorder %s116, %s132
    %p134 = scmp.eq.s32.totalorder %s15, 0
    %p135 = por %p133, %p134
    %p136 = scmp.le.s32.totalorder 1, %s9
    %p137 = scmp.lt.s32.totalorder %s9, 49
    %p138 = pnand %p136, %p137
    %p139 = pneg %p138
    // Predicated region
    $region9: #{upsample_forward.1} parent=5 // pred_check
      _
    $region10: #{upsample_forward.1} parent=5 // pred_check_branch
      %141 = sbr.rel (%p138) target = $region12
    $region11: #{upsample_forward.1} parent=5 // pred_region
      %s142 = ssub.s32 %s9, 1
      // Predicated region
      $region13: #{upsample_forward.1} parent=11 // pred_check
        %p143 = pneg %p79
      $region14: #{upsample_forward.1} parent=11 // pred_check_branch
        %145 = sbr.rel (%p143) target = $region16
      $region15: #{upsample_forward.1} parent=11 // pred_region
        _
      $region16: #{upsample_forward.1} parent=11 // pred_fallthru
        _
      // Predicated region
      $region17: #{upsample_forward.1} parent=11 // pred_check
        %p146 = pneg %p100
      $region18: #{upsample_forward.1} parent=11 // pred_check_branch
        %148 = sbr.rel (%p146) target = $region20
      $region19: #{upsample_forward.1} parent=11 // pred_region
        _
      $region20: #{upsample_forward.1} parent=11 // pred_fallthru
        _
    $region12: #{upsample_forward.1} parent=5 // pred_fallthru
      _
    %p149 = scmp.lt.s32.totalorder %s9, 48
    // Predicated region
    $region21: #{upsample_forward.1} parent=5 // pred_check
      %p150 = pneg %p149
    $region22: #{upsample_forward.1} parent=5 // pred_check_branch
      %152 = sbr.rel (%p150) target = $region24
    $region23: #{upsample_forward.1} parent=5 // pred_region
      // Predicated region
      $region25: #{upsample_forward.1} parent=23 // pred_check
        %p153 = pneg %p52
      $region26: #{upsample_forward.1} parent=23 // pred_check_branch
        %155 = sbr.rel (%p153) target = $region28
      $region27: #{upsample_forward.1} parent=23 // pred_region
        %s156 = sadd.s32 %s17, %s18
        %p157 = scmp.lt.s32.totalorder %s16, 1
        %s158 = scalar_select %p157, %s16, 1
        %p159 = scmp.lt.s32.totalorder %s156, 9
        %s160 = scalar_select %p159, %s156, 9
        %s161 = smul.addr %s160, 55
        %s162 = smul.addr %s158, 550
        %s163 = sadd.s32 %s161, %s162
        %s164 = smul.addr %s163, 8
        %s165 = scalar_lea.vmem %s0, %s164
        %s166 = sadd.s32 %s17, %s18
      $region28: #{upsample_forward.1} parent=23 // pred_fallthru
        _
    $region24: #{upsample_forward.1} parent=5 // pred_fallthru
      _
    %p167 = scmp.le.s32.totalorder 1, %s9
    %p168 = scmp.lt.s32.totalorder %s9, 49
    %p169 = pnand %p167, %p168
    %p170 = pneg %p169
    // Predicated region
    $region29: #{upsample_forward.1} parent=5 // pred_check
      _
    $region30: #{upsample_forward.1} parent=5 // pred_check_branch
      %172 = sbr.rel (%p169) target = $region32
    $region31: #{upsample_forward.1} parent=5 // pred_region
      %s173 = ssub.s32 %s9, 1
      %s174 = sadd.s32 %s20, %s21
      %p175 = scmp.lt.s32.totalorder %s19, 1
      %s176 = scalar_select %p175, %s19, 1
      %p177 = scmp.lt.s32.totalorder %s174, 9
      %s178 = scalar_select %p177, %s174, 9
      %s179 = smul.addr %s178, 55
      %s180 = smul.addr %s176, 550
      %s181 = sadd.s32 %s179, %s180
      %s182 = smul.addr %s181, 8
      %s183 = scalar_lea.vmem %s0, %s182
      %p184 = pneg %p58
      %p185 = pneg %p55
      %p186 = pneg %p79
      %p187 = pneg %p76
      %p188 = pneg %p100
      %p189 = pneg %p97
      %p190 = pneg %p128
      %p191 = pneg %p125
      %p192 = scmp.lt.s32.totalorder %s19, 1
      %s193 = scalar_select %p192, %s19, 1
      %p194 = scmp.lt.s32.totalorder %s20, 7
      %s195 = scalar_select %p194, %s20, 7
      %s196 = smul.addr %s195, 48
      %s197 = smul.addr %s193, 384
      %s198 = sadd.s32 %s196, %s197
      %s199 = smul.addr %s198, 8
      %s200 = scalar_lea.vmem %s3, %s199
      %s201 = sadd.s32 %s20, %s21
      %p202 = scmp.lt.s32.totalorder %s19, 1
      %s203 = scalar_select %p202, %s19, 1
      %p204 = scmp.lt.s32.totalorder %s201, 9
      %s205 = scalar_select %p204, %s201, 9
      %s206 = smul.addr %s205, 55
      %s207 = smul.addr %s203, 550
      %s208 = sadd.s32 %s206, %s207
      %s209 = smul.addr %s208, 8
      %s210 = scalar_lea.vmem %s0, %s209
      %s211 = sadd.s32 %s20, %s21
      %p212 = scmp.lt.s32.totalorder %s19, 1
      %s213 = scalar_select %p212, %s19, 1
      %p214 = scmp.lt.s32.totalorder %s20, 7
      %s215 = scalar_select %p214, %s20, 7
      %s216 = smul.addr %s215, 48
      %s217 = smul.addr %s213, 384
      %s218 = sadd.s32 %s216, %s217
      %s219 = smul.addr %s218, 8
      %s220 = scalar_lea.vmem %s3, %s219
      %p221 = scmp.eq.s32.totalorder %s21, 0
      // Predicated region
      $region33: #{upsample_forward.1} parent=31 // pred_check
        %p222 = pneg %p221
      $region34: #{upsample_forward.1} parent=31 // pred_check_branch
        %224 = sbr.rel (%p222) target = $region36
      $region35: #{upsample_forward.1} parent=31 // pred_region
        %v225 = vld [vmem:[%s2] sm:$0x1]
        %v227 = vlaneseq
        %v228 = vshrl.u32 %v227, 7
        %v229 = vsub.s32 0, %v228
        %v230 = vrot.slane %v225, %v229
        %232 = vst [vmem:[#allocation2] sm:$0xff] %v230
        %233 = vst [vmem:[#allocation2 + $0x8] sm:$0xff] %v230
        %234 = vst [vmem:[#allocation2 + $0x10] sm:$0xff] %v230
        %235 = vst [vmem:[#allocation2 + $0x18] sm:$0xff] %v230
        %236 = vst [vmem:[#allocation2 + $0x20] sm:$0xff] %v230
        %237 = vst [vmem:[#allocation2 + $0x28] sm:$0xff] %v230
        %238 = vst [vmem:[#allocation2 + $0x30] sm:$0xff] %v230
        %239 = vst [vmem:[#allocation2 + $0x38] sm:$0xff] %v230
        %240 = vst [vmem:[#allocation2 + $0x40] sm:$0xff] %v230
        %241 = vst [vmem:[#allocation2 + $0x48] sm:$0xff] %v230
        %242 = vst [vmem:[#allocation2 + $0x50] sm:$0xff] %v230
        %243 = vst [vmem:[#allocation2 + $0x58] sm:$0xff] %v230
        %244 = vst [vmem:[#allocation2 + $0x60] sm:$0xff] %v230
        %245 = vst [vmem:[#allocation2 + $0x68] sm:$0xff] %v230
        %246 = vst [vmem:[#allocation2 + $0x70] sm:$0xff] %v230
        %247 = vst [vmem:[#allocation2 + $0x78] sm:$0xff] %v230
        %248 = vst [vmem:[#allocation2 + $0x80] sm:$0xff] %v230
        %249 = vst [vmem:[#allocation2 + $0x88] sm:$0xff] %v230
        %250 = vst [vmem:[#allocation2 + $0x90] sm:$0xff] %v230
        %251 = vst [vmem:[#allocation2 + $0x98] sm:$0xff] %v230
        %252 = vst [vmem:[#allocation2 + $0xa0] sm:$0xff] %v230
        %253 = vst [vmem:[#allocation2 + $0xa8] sm:$0xff] %v230
        %254 = vst [vmem:[#allocation2 + $0xb0] sm:$0xff] %v230
        %255 = vst [vmem:[#allocation2 + $0xb8] sm:$0xff] %v230
        %256 = vst [vmem:[#allocation2 + $0xc0] sm:$0xff] %v230
        %257 = vst [vmem:[#allocation2 + $0xc8] sm:$0xff] %v230
        %258 = vst [vmem:[#allocation2 + $0xd0] sm:$0xff] %v230
        %259 = vst [vmem:[#allocation2 + $0xd8] sm:$0xff] %v230
        %260 = vst [vmem:[#allocation2 + $0xe0] sm:$0xff] %v230
        %261 = vst [vmem:[#allocation2 + $0xe8] sm:$0xff] %v230
        %262 = vst [vmem:[#allocation2 + $0xf0] sm:$0xff] %v230
        %263 = vst [vmem:[#allocation2 + $0xf8] sm:$0xff] %v230
        %264 = vst [vmem:[#allocation2 + $0x100] sm:$0xff] %v230
        %265 = vst [vmem:[#allocation2 + $0x108] sm:$0xff] %v230
        %266 = vst [vmem:[#allocation2 + $0x110] sm:$0xff] %v230
        %267 = vst [vmem:[#allocation2 + $0x118] sm:$0xff] %v230
        %268 = vst [vmem:[#allocation2 + $0x120] sm:$0xff] %v230
        %269 = vst [vmem:[#allocation2 + $0x128] sm:$0xff] %v230
        %270 = vst [vmem:[#allocation2 + $0x130] sm:$0xff] %v230
        %271 = vst [vmem:[#allocation2 + $0x138] sm:$0xff] %v230
        %272 = vst [vmem:[#allocation2 + $0x140] sm:$0xff] %v230
        %273 = vst [vmem:[#allocation2 + $0x148] sm:$0xff] %v230
        %274 = vst [vmem:[#allocation2 + $0x150] sm:$0xff] %v230
        %275 = vst [vmem:[#allocation2 + $0x158] sm:$0xff] %v230
        %276 = vst [vmem:[#allocation2 + $0x160] sm:$0xff] %v230
        %277 = vst [vmem:[#allocation2 + $0x168] sm:$0xff] %v230
        %278 = vst [vmem:[#allocation2 + $0x170] sm:$0xff] %v230
        %279 = vst [vmem:[#allocation2 + $0x178] sm:$0xff] %v230
      $region36: #{upsample_forward.1} parent=31 // pred_fallthru
        _
      %v280 = vld [vmem:[#allocation2] sm:$0xff]
      %v281 = vld [vmem:[#allocation2 + $0x8] sm:$0xff]
      %v282 = vld [vmem:[#allocation2 + $0x10] sm:$0xff]
      %v283 = vld [vmem:[#allocation2 + $0x18] sm:$0xff]
      %v284 = vld [vmem:[#allocation2 + $0x20] sm:$0xff]
      %v285 = vld [vmem:[#allocation2 + $0x28] sm:$0xff]
      %v286 = vld [vmem:[#allocation2 + $0x30] sm:$0xff]
      %v287 = vld [vmem:[#allocation2 + $0x38] sm:$0xff]
      %v288 = vld [vmem:[#allocation2 + $0x40] sm:$0xff]
      %v289 = vld [vmem:[#allocation2 + $0x48] sm:$0xff]
      %v290 = vld [vmem:[#allocation2 + $0x50] sm:$0xff]
      %v291 = vld [vmem:[#allocation2 + $0x58] sm:$0xff]
      %v292 = vld [vmem:[#allocation2 + $0x60] sm:$0xff]
      %v293 = vld [vmem:[#allocation2 + $0x68] sm:$0xff]
      %v294 = vld [vmem:[#allocation2 + $0x70] sm:$0xff]
      %v295 = vld [vmem:[#allocation2 + $0x78] sm:$0xff]
      %v296 = vld [vmem:[%s210] sm:$0xff]
      %v297 = vld [vmem:[%s210 + $0x8] sm:$0xff]
      %v298 = vld [vmem:[%s210 + $0x10] sm:$0xff]
      %v299 = vld [vmem:[%s210 + $0x18] sm:$0xff]
      %v300 = vld [vmem:[%s210 + $0x20] sm:$0xff]
      %v301 = vld [vmem:[%s210 + $0x28] sm:$0xff]
      %v302 = vld [vmem:[%s210 + $0x30] sm:$0xff]
      %v303 = vld [vmem:[%s210 + $0x38] sm:$0xff]
      %v304 = vld [vmem:[%s210 + $0x40] sm:$0xff]
      %v305 = vld [vmem:[%s210 + $0x48] sm:$0xff]
      %v306 = vld [vmem:[%s210 + $0x50] sm:$0xff]
      %v307 = vld [vmem:[%s210 + $0x58] sm:$0xff]
      %v308 = vld [vmem:[%s210 + $0x60] sm:$0xff]
      %v309 = vld [vmem:[%s210 + $0x68] sm:$0xff]
      %v310 = vld [vmem:[%s210 + $0x70] sm:$0xff]
      %v311 = vld [vmem:[%s210 + $0x78] sm:$0xff]
      %s312 = smul.u32 %s21, 9
      %s313 = smul.u32 %s312, 4
      %s314 = scalar_lea.vmem %s1, %s313
      %v315 = vld [vmem:[%s314] sm:$0xf]
      %vm316 = vcmask 31744
      %v318 = vsel %vm316, %v296, 0
      %v321 = vsel %vm316, %v297, 0
      %v324 = vsel %vm316, %v298, 0
      %v327 = vsel %vm316, %v299, 0
      %v330 = vsel %vm316, %v300, 0
      %v333 = vsel %vm316, %v301, 0
      %v336 = vsel %vm316, %v302, 0
      %v339 = vsel %vm316, %v303, 0
      %v342 = vsel %vm316, %v304, 0
      %v345 = vsel %vm316, %v305, 0
      %v348 = vsel %vm316, %v306, 0
      %v351 = vsel %vm316, %v307, 0
      %v354 = vsel %vm316, %v308, 0
      %v357 = vsel %vm316, %v309, 0
      %v360 = vsel %vm316, %v310, 0
      %v363 = vsel %vm316, %v311, 0
      %vm365 = vcmask 1043456
      %v367 = vsel %vm365, %v315, 0
      %369 = vmatprep.subr.mxu0 0.0
      %370 = vmatpush1.msra.mxu0 %v367
      %371 = vmatprep.subr.mxu0 0.0
      %372 = vmatpush1.msra.mxu0 0.0
      %373 = vmatprep.subr.mxu0 0.0
      %374 = vmatpush1.msra.mxu0 0.0
      %375 = vmatprep.subr.mxu0 0.0
      %376 = vmatpush1.msra.mxu0 0.0
      %377 = vmatprep.subr.mxu0 0.0
      %378 = vmatpush1.msra.mxu0 0.0
      %379 = vmatprep.subr.mxu0 0.0
      %380 = vmatpush1.msra.mxu0 0.0
      %381 = vmatprep.subr.mxu0 0.0
      %382 = vmatpush1.msra.mxu0 0.0
      %383 = vmatprep.subr.mxu0 0.0
      %384 = vmatpush1.msra.mxu0 0.0
      %385 = vmatprep.subr.mxu0 0.0
      %386 = vmatpush1.msra.mxu0 0.0
      %387 = vmatprep.subr.mxu0 0.0
      %388 = vmatpush1.msra.mxu0 0.0
      %389 = vmatprep.subr.mxu0 0.0
      %390 = vmatpush1.msra.mxu0 0.0
      %391 = vmatprep.subr.mxu0 0.0
      %392 = vmatpush1.msra.mxu0 0.0
      %393 = vmatprep.subr.mxu0 0.0
      %394 = vmatpush1.msra.mxu0 0.0
      %395 = vmatprep.subr.mxu0 0.0
      %396 = vmatpush1.msra.mxu0 0.0
      %397 = vmatprep.subr.mxu0 0.0
      %398 = vmatpush1.msra.mxu0 0.0
      %399 = vmatprep.subr.mxu0 0.0
      %400 = vmatpush1.msra.mxu0 0.0
      %401 = vmatprep.subr.mxu0 0.0
      %402 = vmatpush1.msra.mxu0 0.0
      %403 = vmatprep.subr.mxu0 0.0
      %404 = vmatpush1.msra.mxu0 0.0
      %405 = vmatprep.subr.mxu0 0.0
      %406 = vmatpush1.msra.mxu0 0.0
      %407 = vmatprep.subr.mxu0 0.0
      %408 = vmatpush1.msra.mxu0 0.0
      %409 = vmatprep.subr.mxu0 0.0
      %410 = vmatpush1.msra.mxu0 0.0
      %411 = vmatprep.subr.mxu0 0.0
      %412 = vmatpush1.msra.mxu0 0.0
      %413 = vmatprep.subr.mxu0 0.0
      %414 = vmatpush1.msra.mxu0 0.0
      %415 = vmatprep.subr.mxu0 0.0
      %416 = vmatpush1.msra.mxu0 0.0
      %417 = vmatprep.subr.mxu0 0.0
      %418 = vmatpush1.msra.mxu0 0.0
      %419 = vmatprep.subr.mxu0 0.0
      %420 = vmatpush1.msra.mxu0 0.0
      %421 = vmatprep.subr.mxu0 0.0
      %422 = vmatpush1.msra.mxu0 0.0
      %423 = vmatprep.subr.mxu0 0.0
      %424 = vmatpush1.msra.mxu0 0.0
      %425 = vmatprep.subr.mxu0 0.0
      %426 = vmatpush1.msra.mxu0 0.0
      %427 = vmatprep.subr.mxu0 0.0
      %428 = vmatpush1.msra.mxu0 0.0
      %429 = vmatprep.subr.mxu0 0.0
      %430 = vmatpush1.msra.mxu0 0.0
      %431 = vmatprep.subr.mxu0 0.0
      %432 = vmatpush1.msra.mxu0 0.0
      %433 = vmatprep.mubr.f32.mxu0 0.0
      %434 = vmatmul.mubr.f32.gmra.mrb[0].mxu0 %v318
      %v435 = vpop.f32.mrb[0].mxu0
      %v436 = vadd.f32 0.0, %v435
      %v437 = vpop.f32.mrb[0].mxu0
      %438 = vmatprep.mubr.f32.mxu0 0.0
      %439 = vmatmul.mubr.f32.gmra.mrb[0].mxu0 %v321
      %v440 = vpop.f32.mrb[0].mxu0
      %v441 = vadd.f32 0.0, %v440
      %v442 = vpop.f32.mrb[0].mxu0
      %443 = vmatprep.mubr.f32.mxu0 0.0
      %444 = vmatmul.mubr.f32.gmra.mrb[0].mxu0 %v324
      %v445 = vpop.f32.mrb[0].mxu0
      %v446 = vadd.f32 0.0, %v445
      %v447 = vpop.f32.mrb[0].mxu0
      %448 = vmatprep.mubr.f32.mxu0 0.0
      %449 = vmatmul.mubr.f32.gmra.mrb[0].mxu0 %v327
      %v450 = vpop.f32.mrb[0].mxu0
      %v451 = vadd.f32 0.0, %v450
      %v452 = vpop.f32.mrb[0].mxu0
      %453 = vmatprep.mubr.f32.mxu0 0.0
      %454 = vmatmul.mubr.f32.gmra.mrb[0].mxu0 %v330
      %v455 = vpop.f32.mrb[0].mxu0
      %v456 = vadd.f32 0.0, %v455
      %v457 = vpop.f32.mrb[0].mxu0
      %458 = vmatprep.mubr.f32.mxu0 0.0
      %459 = vmatmul.mubr.f32.gmra.mrb[0].mxu0 %v333
      %v460 = vpop.f32.mrb[0].mxu0
      %v461 = vadd.f32 0.0, %v460
      %v462 = vpop.f32.mrb[0].mxu0
      %463 = vmatprep.mubr.f32.mxu0 0.0
      %464 = vmatmul.mubr.f32.gmra.mrb[0].mxu0 %v336
      %v465 = vpop.f32.mrb[0].mxu0
      %v466 = vadd.f32 0.0, %v465
      %v467 = vpop.f32.mrb[0].mxu0
      %468 = vmatprep.mubr.f32.mxu0 0.0
      %469 = vmatmul.mubr.f32.gmra.mrb[0].mxu0 %v339
      %v470 = vpop.f32.mrb[0].mxu0
      %v471 = vadd.f32 0.0, %v470
      %v472 = vpop.f32.mrb[0].mxu0
      %473 = vmatprep.mubr.f32.mxu0 0.0
      %474 = vmatmul.mubr.f32.gmra.mrb[0].mxu0 %v342
      %v475 = vpop.f32.mrb[0].mxu0
      %v476 = vadd.f32 0.0, %v475
      %v477 = vpop.f32.mrb[0].mxu0
      %478 = vmatprep.mubr.f32.mxu0 0.0
      %479 = vmatmul.mubr.f32.gmra.mrb[0].mxu0 %v345
      %v480 = vpop.f32.mrb[0].mxu0
      %v481 = vadd.f32 0.0, %v480
      %v482 = vpop.f32.mrb[0].mxu0
      %483 = vmatprep.mubr.f32.mxu0 0.0
      %484 = vmatmul.mubr.f32.gmra.mrb[0].mxu0 %v348
      %v485 = vpop.f32.mrb[0].mxu0
      %v486 = vadd.f32 0.0, %v485
      %v487 = vpop.f32.mrb[0].mxu0
      %488 = vmatprep.mubr.f32.mxu0 0.0
      %489 = vmatmul.mubr.f32.gmra.mrb[0].mxu0 %v351
      %v490 = vpop.f32.mrb[0].mxu0
      %v491 = vadd.f32 0.0, %v490
      %v492 = vpop.f32.mrb[0].mxu0
      %493 = vmatprep.mubr.f32.mxu0 0.0
      %494 = vmatmul.mubr.f32.gmra.mrb[0].mxu0 %v354
      %v495 = vpop.f32.mrb[0].mxu0
      %v496 = vadd.f32 0.0, %v495
      %v497 = vpop.f32.mrb[0].mxu0
      %498 = vmatprep.mubr.f32.mxu0 0.0
      %499 = vmatmul.mubr.f32.gmra.mrb[0].mxu0 %v357
      %v500 = vpop.f32.mrb[0].mxu0
      %v501 = vadd.f32 0.0, %v500
      %v502 = vpop.f32.mrb[0].mxu0
      %503 = vmatprep.mubr.f32.mxu0 0.0
      %504 = vmatmul.mubr.f32.gmra.mrb[0].mxu0 %v360
      %v505 = vpop.f32.mrb[0].mxu0
      %v506 = vadd.f32 0.0, %v505
      %v507 = vpop.f32.mrb[0].mxu0
      %508 = vmatprep.mubr.f32.mxu0 0.0
      %509 = vmatmul.mubr.f32.gmra.mrb[0].mxu0 %v363
      %v510 = vpop.f32.mrb[0].mxu0
      %v511 = vadd.f32 0.0, %v510
      %v512 = vpop.f32.mrb[0].mxu0
      %513 = vdwg.mxu0
      %v514 = vadd.f32 %v280, %v436
      %v515 = vadd.f32 %v281, %v441
      %v516 = vadd.f32 %v282, %v446
      %v517 = vadd.f32 %v283, %v451
      %v518 = vadd.f32 %v284, %v456
      %v519 = vadd.f32 %v285, %v461
      %v520 = vadd.f32 %v286, %v466
      %v521 = vadd.f32 %v287, %v471
      %v522 = vadd.f32 %v288, %v476
      %v523 = vadd.f32 %v289, %v481
      %v524 = vadd.f32 %v290, %v486
      %v525 = vadd.f32 %v291, %v491
      %v526 = vadd.f32 %v292, %v496
      %v527 = vadd.f32 %v293, %v501
      %v528 = vadd.f32 %v294, %v506
      %v529 = vadd.f32 %v295, %v511
      %v530 = vld [vmem:[%s210 + $0x1] sm:$0xff]
      %v531 = vld [vmem:[%s210 + $0x9] sm:$0xff]
      %v532 = vld [vmem:[%s210 + $0x11] sm:$0xff]
      %v533 = vld [vmem:[%s210 + $0x19] sm:$0xff]
      %v534 = vld [vmem:[%s210 + $0x21] sm:$0xff]
      %v535 = vld [vmem:[%s210 + $0x29] sm:$0xff]
      %v536 = vld [vmem:[%s210 + $0x31] sm:$0xff]
      %v537 = vld [vmem:[%s210 + $0x39] sm:$0xff]
      %v538 = vld [vmem:[%s210 + $0x41] sm:$0xff]
      %v539 = vld [vmem:[%s210 + $0x49] sm:$0xff]
      %v540 = vld [vmem:[%s210 + $0x51] sm:$0xff]
      %v541 = vld [vmem:[%s210 + $0x59] sm:$0xff]
      %v542 = vld [vmem:[%s210 + $0x61] sm:$0xff]
      %v543 = vld [vmem:[%s210 + $0x69] sm:$0xff]
      %v544 = vld [vmem:[%s210 + $0x71] sm:$0xff]
      %v545 = vld [vmem:[%s210 + $0x79] sm:$0xff]
      %s546 = sadd.s32 %s312, 1
      %s547 = smul.u32 %s546, 4
      %s548 = scalar_lea.vmem %s1, %s547
      %v549 = vld [vmem:[%s548] sm:$0xf]
      %v551 = vsel %vm316, %v530, 0
      %v554 = vsel %vm316, %v531, 0
      %v557 = vsel %vm316, %v532, 0
      %v560 = vsel %vm316, %v533, 0
      %v563 = vsel %vm316, %v534, 0
      %v566 = vsel %vm316, %v535, 0
      %v569 = vsel %vm316, %v536, 0
      %v572 = vsel %vm316, %v537, 0
      %v575 = vsel %vm316, %v538, 0
      %v578 = vsel %vm316, %v539, 0
      %v581 = vsel %vm316, %v540, 0
      %v584 = vsel %vm316, %v541, 0
      %v587 = vsel %vm316, %v542, 0
      %v590 = vsel %vm316, %v543, 0
      %v593 = vsel %vm316, %v544, 0
      %v596 = vsel %vm316, %v545, 0
      %v599 = vsel %vm365, %v549, 0
      %601 = vmatprep.subr.mxu0 0.0
      %602 = vmatpush1.msra.mxu0 %v599
      %603 = vmatprep.subr.mxu0 0.0
      %604 = vmatpush1.msra.mxu0 0.0
      %605 = vmatprep.subr.mxu0 0.0
      %606 = vmatpush1.msra.mxu0 0.0
      %607 = vmatprep.subr.mxu0 0.0
      %608 = vmatpush1.msra.mxu0 0.0
      %609 = vmatprep.subr.mxu0 0.0
      %610 = vmatpush1.msra.mxu0 0.0
      %611 = vmatprep.subr.mxu0 0.0
      %612 = vmatpush1.msra.mxu0 0.0
      %613 = vmatprep.subr.mxu0 0.0
      %614 = vmatpush1.msra.mxu0 0.0
      %615 = vmatprep.subr.mxu0 0.0
      %616 = vmatpush1.msra.mxu0 0.0
      %617 = vmatprep.subr.mxu0 0.0
      %618 = vmatpush1.msra.mxu0 0.0
      %619 = vmatprep.subr.mxu0 0.0
      %620 = vmatpush1.msra.mxu0 0.0
      %621 = vmatprep.subr.mxu0 0.0
      %622 = vmatpush1.msra.mxu0 0.0
      %623 = vmatprep.subr.mxu0 0.0
      %624 = vmatpush1.msra.mxu0 0.0
      %625 = vmatprep.subr.mxu0 0.0
      %626 = vmatpush1.msra.mxu0 0.0
      %627 = vmatprep.subr.mxu0 0.0
      %628 = vmatpush1.msra.mxu0 0.0
      %629 = vmatprep.subr.mxu0 0.0
      %630 = vmatpush1.msra.mxu0 0.0
      %631 = vmatprep.subr.mxu0 0.0
      %632 = vmatpush1.msra.mxu0 0.0
      %633 = vmatprep.subr.mxu0 0.0
      %634 = vmatpush1.msra.mxu0 0.0
      %635 = vmatprep.subr.mxu0 0.0
      %636 = vmatpush1.msra.mxu0 0.0
      %637 = vmatprep.subr.mxu0 0.0
      %638 = vmatpush1.msra.mxu0 0.0
      %639 = vmatprep.subr.mxu0 0.0
      %640 = vmatpush1.msra.mxu0 0.0
      %641 = vmatprep.subr.mxu0 0.0
      %642 = vmatpush1.msra.mxu0 0.0
      %643 = vmatprep.subr.mxu0 0.0
      %644 = vmatpush1.msra.mxu0 0.0
      %645 = vmatprep.subr.mxu0 0.0
      %646 = vmatpush1.msra.mxu0 0.0
      %647 = vmatprep.subr.mxu0 0.0
      %648 = vmatpush1.msra.mxu0 0.0
      %649 = vmatprep.subr.mxu0 0.0
      %650 = vmatpush1.msra.mxu0 0.0
      %651 = vmatprep.subr.mxu0 0.0
      %652 = vmatpush1.msra.mxu0 0.0
      %653 = vmatprep.subr.mxu0 0.0
      %654 = vmatpush1.msra.mxu0 0.0
      %655 = vmatprep.subr.mxu0 0.0
      %656 = vmatpush1.msra.mxu0 0.0
      %657 = vmatprep.subr.mxu0 0.0
      %658 = vmatpush1.msra.mxu0 0.0
      %659 = vmatprep.subr.mxu0 0.0
      %660 = vmatpush1.msra.mxu0 0.0
      %661 = vmatprep.subr.mxu0 0.0
      %662 = vmatpush1.msra.mxu0 0.0
      %663 = vmatprep.subr.mxu0 0.0
      %664 = vmatpush1.msra.mxu0 0.0
      %665 = vmatprep.mubr.f32.mxu0 0.0
      %666 = vmatmul.mubr.f32.gmra.mrb[0].mxu0 %v551
      %v667 = vpop.f32.mrb[0].mxu0
      %v668 = vadd.f32 0.0, %v667
      %v669 = vpop.f32.mrb[0].mxu0
      %670 = vmatprep.mubr.f32.mxu0 0.0
      %671 = vmatmul.mubr.f32.gmra.mrb[0].mxu0 %v554
      %v672 = vpop.f32.mrb[0].mxu0
      %v673 = vadd.f32 0.0, %v672
      %v674 = vpop.f32.mrb[0].mxu0
      %675 = vmatprep.mubr.f32.mxu0 0.0
      %676 = vmatmul.mubr.f32.gmra.mrb[0].mxu0 %v557
      %v677 = vpop.f32.mrb[0].mxu0
      %v678 = vadd.f32 0.0, %v677
      %v679 = vpop.f32.mrb[0].mxu0
      %680 = vmatprep.mubr.f32.mxu0 0.0
      %681 = vmatmul.mubr.f32.gmra.mrb[0].mxu0 %v560
      %v682 = vpop.f32.mrb[0].mxu0
      %v683 = vadd.f32 0.0, %v682
      %v684 = vpop.f32.mrb[0].mxu0
      %685 = vmatprep.mubr.f32.mxu0 0.0
      %686 = vmatmul.mubr.f32.gmra.mrb[0].mxu0 %v563
      %v687 = vpop.f32.mrb[0].mxu0
      %v688 = vadd.f32 0.0, %v687
      %v689 = vpop.f32.mrb[0].mxu0
      %690 = vmatprep.mubr.f32.mxu0 0.0
      %691 = vmatmul.mubr.f32.gmra.mrb[0].mxu0 %v566
      %v692 = vpop.f32.mrb[0].mxu0
      %v693 = vadd.f32 0.0, %v692
      %v694 = vpop.f32.mrb[0].mxu0
      %695 = vmatprep.mubr.f32.mxu0 0.0
      %696 = vmatmul.mubr.f32.gmra.mrb[0].mxu0 %v569
      %v697 = vpop.f32.mrb[0].mxu0
      %v698 = vadd.f32 0.0, %v697
      %v699 = vpop.f32.mrb[0].mxu0
      %700 = vmatprep.mubr.f32.mxu0 0.0
      %701 = vmatmul.mubr.f32.gmra.mrb[0].mxu0 %v572
      %v702 = vpop.f32.mrb[0].mxu0
      %v703 = vadd.f32 0.0, %v702
      %v704 = vpop.f32.mrb[0].mxu0
      %705 = vmatprep.mubr.f32.mxu0 0.0
      %706 = vmatmul.mubr.f32.gmra.mrb[0].mxu0 %v575
      %v707 = vpop.f32.mrb[0].mxu0
      %v708 = vadd.f32 0.0, %v707
      %v709 = vpop.f32.mrb[0].mxu0
      %710 = vmatprep.mubr.f32.mxu0 0.0
      %711 = vmatmul.mubr.f32.gmra.mrb[0].mxu0 %v578
      %v712 = vpop.f32.mrb[0].mxu0
      %v713 = vadd.f32 0.0, %v712
      %v714 = vpop.f32.mrb[0].mxu0
      %715 = vmatprep.mubr.f32.mxu0 0.0
      %716 = vmatmul.mubr.f32.gmra.mrb[0].mxu0 %v581
      %v717 = vpop.f32.mrb[0].mxu0
      %v718 = vadd.f32 0.0, %v717
      %v719 = vpop.f32.mrb[0].mxu0
      %720 = vmatprep.mubr.f32.mxu0 0.0
      %721 = vmatmul.mubr.f32.gmra.mrb[0].mxu0 %v584
      %v722 = vpop.f32.mrb[0].mxu0
      %v723 = vadd.f32 0.0, %v722
      %v724 = vpop.f32.mrb[0].mxu0
      %725 = vmatprep.mubr.f32.mxu0 0.0
      %726 = vmatmul.mubr.f32.gmra.mrb[0].mxu0 %v587
      %v727 = vpop.f32.mrb[0].mxu0
      %v728 = vadd.f32 0.0, %v727
      %v729 = vpop.f32.mrb[0].mxu0
      %730 = vmatprep.mubr.f32.mxu0 0.0
      %731 = vmatmul.mubr.f32.gmra.mrb[0].mxu0 %v590
      %v732 = vpop.f32.mrb[0].mxu0
      %v733 = vadd.f32 0.0, %v732
      %v734 = vpop.f32.mrb[0].mxu0
      %735 = vmatprep.mubr.f32.mxu0 0.0
      %736 = vmatmul.mubr.f32.gmra.mrb[0].mxu0 %v593
      %v737 = vpop.f32.mrb[0].mxu0
      %v738 = vadd.f32 0.0, %v737
      %v739 = vpop.f32.mrb[0].mxu0
      %740 = vmatprep.mubr.f32.mxu0 0.0
      %741 = vmatmul.mubr.f32.gmra.mrb[0].mxu0 %v596
      %v742 = vpop.f32.mrb[0].mxu0
      %v743 = vadd.f32 0.0, %v742
      %v744 = vpop.f32.mrb[0].mxu0
      %745 = vdwg.mxu0
      %v746 = vadd.f32 %v514, %v668
      %v747 = vadd.f32 %v515, %v673
      %v748 = vadd.f32 %v516, %v678
      %v749 = vadd.f32 %v517, %v683
      %v750 = vadd.f32 %v518, %v688
      %v751 = vadd.f32 %v519, %v693
      %v752 = vadd.f32 %v520, %v698
      %v753 = vadd.f32 %v521, %v703
      %v754 = vadd.f32 %v522, %v708
      %v755 = vadd.f32 %v523, %v713
      %v756 = vadd.f32 %v524, %v718
      %v757 = vadd.f32 %v525, %v723
      %v758 = vadd.f32 %v526, %v728
      %v759 = vadd.f32 %v527, %v733
      %v760 = vadd.f32 %v528, %v738
      %v761 = vadd.f32 %v529, %v743
      %v762 = vld [vmem:[%s210 + $0x2] sm:$0xff]
      %v763 = vld [vmem:[%s210 + $0xa] sm:$0xff]
      %v764 = vld [vmem:[%s210 + $0x12] sm:$0xff]
      %v765 = vld [vmem:[%s210 + $0x1a] sm:$0xff]
      %v766 = vld [vmem:[%s210 + $0x22] sm:$0xff]
      %v767 = vld [vmem:[%s210 + $0x2a] sm:$0xff]
      %v768 = vld [vmem:[%s210 + $0x32] sm:$0xff]
      %v769 = vld [vmem:[%s210 + $0x3a] sm:$0xff]
      %v770 = vld [vmem:[%s210 + $0x42] sm:$0xff]
      %v771 = vld [vmem:[%s210 + $0x4a] sm:$0xff]
      %v772 = vld [vmem:[%s210 + $0x52] sm:$0xff]
      %v773 = vld [vmem:[%s210 + $0x5a] sm:$0xff]
      %v774 = vld [vmem:[%s210 + $0x62] sm:$0xff]
      %v775 = vld [vmem:[%s210 + $0x6a] sm:$0xff]
      %v776 = vld [vmem:[%s210 + $0x72] sm:$0xff]
      %v777 = vld [vmem:[%s210 + $0x7a] sm:$0xff]
      %s778 = sadd.s32 %s312, 2
      %s779 = smul.u32 %s778, 4
      %s780 = scalar_lea.vmem %s1, %s779
      %v781 = vld [vmem:[%s780] sm:$0xf]
      %v783 = vsel %vm316, %v762, 0
      %v786 = vsel %vm316, %v763, 0
      %v789 = vsel %vm316, %v764, 0
      %v792 = vsel %vm316, %v765, 0
      %v795 = vsel %vm316, %v766, 0
      %v798 = vsel %vm316, %v767, 0
      %v801 = vsel %vm316, %v768, 0
      %v804 = vsel %vm316, %v769, 0
      %v807 = vsel %vm316, %v770, 0
      %v810 = vsel %vm316, %v771, 0
      %v813 = vsel %vm316, %v772, 0
      %v816 = vsel %vm316, %v773, 0
      %v819 = vsel %vm316, %v774, 0
      %v822 = vsel %vm316, %v775, 0
      %v825 = vsel %vm316, %v776, 0
      %v828 = vsel %vm316, %v777, 0
      %v831 = vsel %vm365, %v781, 0
      %833 = vmatprep.subr.mxu0 0.0
      %834 = vmatpush1.msra.mxu0 %v831
      %835 = vmatprep.subr.mxu0 0.0
      %836 = vmatpush1.msra.mxu0 0.0
      %837 = vmatprep.subr.mxu0 0.0
      %838 = vmatpush1.msra.mxu0 0.0
      %839 = vmatprep.subr.mxu0 0.0
      %840 = vmatpush1.msra.mxu0 0.0
      %841 = vmatprep.subr.mxu0 0.0
      %842 = vmatpush1.msra.mxu0 0.0
      %843 = vmatprep.subr.mxu0 0.0
      %844 = vmatpush1.msra.mxu0 0.0
      %845 = vmatprep.subr.mxu0 0.0
      %846 = vmatpush1.msra.mxu0 0.0
      %847 = vmatprep.subr.mxu0 0.0
      %848 = vmatpush1.msra.mxu0 0.0
      %849 = vmatprep.subr.mxu0 0.0
      %850 = vmatpush1.msra.mxu0 0.0
      %851 = vmatprep.subr.mxu0 0.0
      %852 = vmatpush1.msra.mxu0 0.0
      %853 = vmatprep.subr.mxu0 0.0
      %854 = vmatpush1.msra.mxu0 0.0
      %855 = vmatprep.subr.mxu0 0.0
      %856 = vmatpush1.msra.mxu0 0.0
      %857 = vmatprep.subr.mxu0 0.0
      %858 = vmatpush1.msra.mxu0 0.0
      %859 = vmatprep.subr.mxu0 0.0
      %860 = vmatpush1.msra.mxu0 0.0
      %861 = vmatprep.subr.mxu0 0.0
      %862 = vmatpush1.msra.mxu0 0.0
      %863 = vmatprep.subr.mxu0 0.0
      %864 = vmatpush1.msra.mxu0 0.0
      %865 = vmatprep.subr.mxu0 0.0
      %866 = vmatpush1.msra.mxu0 0.0
      %867 = vmatprep.subr.mxu0 0.0
      %868 = vmatpush1.msra.mxu0 0.0
      %869 = vmatprep.subr.mxu0 0.0
      %870 = vmatpush1.msra.mxu0 0.0
      %871 = vmatprep.subr.mxu0 0.0
      %872 = vmatpush1.msra.mxu0 0.0
      %873 = vmatprep.subr.mxu0 0.0
      %874 = vmatpush1.msra.mxu0 0.0
      %875 = vmatprep.subr.mxu0 0.0
      %876 = vmatpush1.msra.mxu0 0.0
      %877 = vmatprep.subr.mxu0 0.0
      %878 = vmatpush1.msra.mxu0 0.0
      %879 = vmatprep.subr.mxu0 0.0
      %880 = vmatpush1.msra.mxu0 0.0
      %881 = vmatprep.subr.mxu0 0.0
      %882 = vmatpush1.msra.mxu0 0.0
      %883 = vmatprep.subr.mxu0 0.0
      %884 = vmatpush1.msra.mxu0 0.0
      %885 = vmatprep.subr.mxu0 0.0
      %886 = vmatpush1.msra.mxu0 0.0
      %887 = vmatprep.subr.mxu0 0.0
      %888 = vmatpush1.msra.mxu0 0.0
      %889 = vmatprep.subr.mxu0 0.0
      %890 = vmatpush1.msra.mxu0 0.0
      %891 = vmatprep.subr.mxu0 0.0
      %892 = vmatpush1.msra.mxu0 0.0
      %893 = vmatprep.subr.mxu0 0.0
      %894 = vmatpush1.msra.mxu0 0.0
      %895 = vmatprep.subr.mxu0 0.0
      %896 = vmatpush1.msra.mxu0 0.0
      %897 = vmatprep.mubr.f32.mxu0 0.0
      %898 = vmatmul.mubr.f32.gmra.mrb[0].mxu0 %v783
      %v899 = vpop.f32.mrb[0].mxu0
      %v900 = vadd.f32 0.0, %v899
      %v901 = vpop.f32.mrb[0].mxu0
      %902 = vmatprep.mubr.f32.mxu0 0.0
      %903 = vmatmul.mubr.f32.gmra.mrb[0].mxu0 %v786
      %v904 = vpop.f32.mrb[0].mxu0
      %v905 = vadd.f32 0.0, %v904
      %v906 = vpop.f32.mrb[0].mxu0
      %907 = vmatprep.mubr.f32.mxu0 0.0
      %908 = vmatmul.mubr.f32.gmra.mrb[0].mxu0 %v789
      %v909 = vpop.f32.mrb[0].mxu0
      %v910 = vadd.f32 0.0, %v909
      %v911 = vpop.f32.mrb[0].mxu0
      %912 = vmatprep.mubr.f32.mxu0 0.0
      %913 = vmatmul.mubr.f32.gmra.mrb[0].mxu0 %v792
      %v914 = vpop.f32.mrb[0].mxu0
      %v915 = vadd.f32 0.0, %v914
      %v916 = vpop.f32.mrb[0].mxu0
      %917 = vmatprep.mubr.f32.mxu0 0.0
      %918 = vmatmul.mubr.f32.gmra.mrb[0].mxu0 %v795
      %v919 = vpop.f32.mrb[0].mxu0
      %v920 = vadd.f32 0.0, %v919
      %v921 = vpop.f32.mrb[0].mxu0
      %922 = vmatprep.mubr.f32.mxu0 0.0
      %923 = vmatmul.mubr.f32.gmra.mrb[0].mxu0 %v798
      %v924 = vpop.f32.mrb[0].mxu0
      %v925 = vadd.f32 0.0, %v924
      %v926 = vpop.f32.mrb[0].mxu0
      %927 = vmatprep.mubr.f32.mxu0 0.0
      %928 = vmatmul.mubr.f32.gmra.mrb[0].mxu0 %v801
      %v929 = vpop.f32.mrb[0].mxu0
      %v930 = vadd.f32 0.0, %v929
      %v931 = vpop.f32.mrb[0].mxu0
      %932 = vmatprep.mubr.f32.mxu0 0.0
      %933 = vmatmul.mubr.f32.gmra.mrb[0].mxu0 %v804
      %v934 = vpop.f32.mrb[0].mxu0
      %v935 = vadd.f32 0.0, %v934
      %v936 = vpop.f32.mrb[0].mxu0
      %937 = vmatprep.mubr.f32.mxu0 0.0
      %938 = vmatmul.mubr.f32.gmra.mrb[0].mxu0 %v807
      %v939 = vpop.f32.mrb[0].mxu0
      %v940 = vadd.f32 0.0, %v939
      %v941 = vpop.f32.mrb[0].mxu0
      %942 = vmatprep.mubr.f32.mxu0 0.0
      %943 = vmatmul.mubr.f32.gmra.mrb[0].mxu0 %v810
      %v944 = vpop.f32.mrb[0].mxu0
      %v945 = vadd.f32 0.0, %v944
      %v946 = vpop.f32.mrb[0].mxu0
      %947 = vmatprep.mubr.f32.mxu0 0.0
      %948 = vmatmul.mubr.f32.gmra.mrb[0].mxu0 %v813
      %v949 = vpop.f32.mrb[0].mxu0
      %v950 = vadd.f32 0.0, %v949
      %v951 = vpop.f32.mrb[0].mxu0
      %952 = vmatprep.mubr.f32.mxu0 0.0
      %953 = vmatmul.mubr.f32.gmra.mrb[0].mxu0 %v816
      %v954 = vpop.f32.mrb[0].mxu0
      %v955 = vadd.f32 0.0, %v954
      %v956 = vpop.f32.mrb[0].mxu0
      %957 = vmatprep.mubr.f32.mxu0 0.0
      %958 = vmatmul.mubr.f32.gmra.mrb[0].mxu0 %v819
      %v959 = vpop.f32.mrb[0].mxu0
      %v960 = vadd.f32 0.0, %v959
      %v961 = vpop.f32.mrb[0].mxu0
      %962 = vmatprep.mubr.f32.mxu0 0.0
      %963 = vmatmul.mubr.f32.gmra.mrb[0].mxu0 %v822
      %v964 = vpop.f32.mrb[0].mxu0
      %v965 = vadd.f32 0.0, %v964
      %v966 = vpop.f32.mrb[0].mxu0
      %967 = vmatprep.mubr.f32.mxu0 0.0
      %968 = vmatmul.mubr.f32.gmra.mrb[0].mxu0 %v825
      %v969 = vpop.f32.mrb[0].mxu0
      %v970 = vadd.f32 0.0, %v969
      %v971 = vpop.f32.mrb[0].mxu0
      %972 = vmatprep.mubr.f32.mxu0 0.0
      %973 = vmatmul.mubr.f32.gmra.mrb[0].mxu0 %v828
      %v974 = vpop.f32.mrb[0].mxu0
      %v975 = vadd.f32 0.0, %v974
      %v976 = vpop.f32.mrb[0].mxu0
      %977 = vdwg.mxu0
      %v978 = vadd.f32 %v746, %v900
      %v979 = vadd.f32 %v747, %v905
      %v980 = vadd.f32 %v748, %v910
      %v981 = vadd.f32 %v749, %v915
      %v982 = vadd.f32 %v750, %v920
      %v983 = vadd.f32 %v751, %v925
      %v984 = vadd.f32 %v752, %v930
      %v985 = vadd.f32 %v753, %v935
      %v986 = vadd.f32 %v754, %v940
      %v987 = vadd.f32 %v755, %v945
      %v988 = vadd.f32 %v756, %v950
      %v989 = vadd.f32 %v757, %v955
      %v990 = vadd.f32 %v758, %v960
      %v991 = vadd.f32 %v759, %v965
      %v992 = vadd.f32 %v760, %v970
      %v993 = vadd.f32 %v761, %v975
      %v994 = vld [vmem:[%s210 + $0x18] sm:$0xff]
      %v995 = vld [vmem:[%s210 + $0x20] sm:$0xff]
      %v996 = vld [vmem:[%s210 + $0x28] sm:$0xff]
      %v997 = vld [vmem:[%s210 + $0x30] sm:$0xff]
      %v998 = vld [vmem:[%s210 + $0x38] sm:$0xff]
      %v999 = vld [vmem:[%s210 + $0x40] sm:$0xff]
      %v1000 = vld [vmem:[%s210 + $0x48] sm:$0xff]
      %v1001 = vld [vmem:[%s210 + $0x50] sm:$0xff]
      %v1002 = vld [vmem:[%s210 + $0x58] sm:$0xff]
      %v1003 = vld [vmem:[%s210 + $0x60] sm:$0xff]
      %v1004 = vld [vmem:[%s210 + $0x68] sm:$0xff]
      %v1005 = vld [vmem:[%s210 + $0x70] sm:$0xff]
      %v1006 = vld [vmem:[%s210 + $0x78] sm:$0xff]
      %v1007 = vld [vmem:[%s210 + $0x80] sm:$0xff]
      %v1008 = vld [vmem:[%s210 + $0x88] sm:$0xff]
      %v1009 = vld [vmem:[%s210 + $0x90] sm:$0xff]
      %s1010 = sadd.s32 %s312, 3
      %s1011 = smul.u32 %s1010, 4
      %s1012 = scalar_lea.vmem %s1, %s1011
      %v1013 = vld [vmem:[%s1012] sm:$0xf]
      %v1015 = vsel %vm316, %v994, 0
      %v1018 = vsel %vm316, %v995, 0
      %v1021 = vsel %vm316, %v996, 0
      %v1024 = vsel %vm316, %v997, 0
      %v1027 = vsel %vm316, %v998, 0
      %v1030 = vsel %vm316, %v999, 0
      %v1033 = vsel %vm316, %v1000, 0
      %v1036 = vsel %vm316, %v1001, 0
      %v1039 = vsel %vm316, %v1002, 0
      %v1042 = vsel %vm316, %v1003, 0
      %v1045 = vsel %vm316, %v1004, 0
      %v1048 = vsel %vm316, %v1005, 0
      %v1051 = vsel %vm316, %v1006, 0
      %v1054 = vsel %vm316, %v1007, 0
      %v1057 = vsel %vm316, %v1008, 0
      %v1060 = vsel %vm316, %v1009, 0
      %v1063 = vsel %vm365, %v1013, 0
      %1065 = vmatprep.subr.mxu0 0.0
      %1066 = vmatpush1.msra.mxu0 %v1063
      %1067 = vmatprep.subr.mxu0 0.0
      %1068 = vmatpush1.msra.mxu0 0.0
      %1069 = vmatprep.subr.mxu0 0.0
      %1070 = vmatpush1.msra.mxu0 0.0
      %1071 = vmatprep.subr.mxu0 0.0
      %1072 = vmatpush1.msra.mxu0 0.0
      %1073 = vmatprep.subr.mxu0 0.0
      %1074 = vmatpush1.msra.mxu0 0.0
      %1075 = vmatprep.subr.mxu0 0.0
      %1076 = vmatpush1.msra.mxu0 0.0
      %1077 = vmatprep.subr.mxu0 0.0
      %1078 = vmatpush1.msra.mxu0 0.0
      %1079 = vmatprep.subr.mxu0 0.0
      %1080 = vmatpush1.msra.mxu0 0.0
      %1081 = vmatprep.subr.mxu0 0.0
      %1082 = vmatpush1.msra.mxu0 0.0
      %1083 = vmatprep.subr.mxu0 0.0
      %1084 = vmatpush1.msra.mxu0 0.0
      %1085 = vmatprep.subr.mxu0 0.0
      %1086 = vmatpush1.msra.mxu0 0.0
      %1087 = vmatprep.subr.mxu0 0.0
      %1088 = vmatpush1.msra.mxu0 0.0
      %1089 = vmatprep.subr.mxu0 0.0
      %1090 = vmatpush1.msra.mxu0 0.0
      %1091 = vmatprep.subr.mxu0 0.0
      %1092 = vmatpush1.msra.mxu0 0.0
      %1093 = vmatprep.subr.mxu0 0.0
      %1094 = vmatpush1.msra.mxu0 0.0
      %1095 = vmatprep.subr.mxu0 0.0
      %1096 = vmatpush1.msra.mxu0 0.0
      %1097 = vmatprep.subr.mxu0 0.0
      %1098 = vmatpush1.msra.mxu0 0.0
      %1099 = vmatprep.subr.mxu0 0.0
      %1100 = vmatpush1.msra.mxu0 0.0
      %1101 = vmatprep.subr.mxu0 0.0
      %1102 = vmatpush1.msra.mxu0 0.0
      %1103 = vmatprep.subr.mxu0 0.0
      %1104 = vmatpush1.msra.mxu0 0.0
      %1105 = vmatprep.subr.mxu0 0.0
      %1106 = vmatpush1.msra.mxu0 0.0
      %1107 = vmatprep.subr.mxu0 0.0
      %1108 = vmatpush1.msra.mxu0 0.0
      %1109 = vmatprep.subr.mxu0 0.0
      %1110 = vmatpush1.msra.mxu0 0.0
      %1111 = vmatprep.subr.mxu0 0.0
      %1112 = vmatpush1.msra.mxu0 0.0
      %1113 = vmatprep.subr.mxu0 0.0
      %1114 = vmatpush1.msra.mxu0 0.0
      %1115 = vmatprep.subr.mxu0 0.0
      %1116 = vmatpush1.msra.mxu0 0.0
      %1117 = vmatprep.subr.mxu0 0.0
      %1118 = vmatpush1.msra.mxu0 0.0
      %1119 = vmatprep.subr.mxu0 0.0
      %1120 = vmatpush1.msra.mxu0 0.0
      %1121 = vmatprep.subr.mxu0 0.0
      %1122 = vmatpush1.msra.mxu0 0.0
      %1123 = vmatprep.subr.mxu0 0.0
      %1124 = vmatpush1.msra.mxu0 0.0
      %1125 = vmatprep.subr.mxu0 0.0
      %1126 = vmatpush1.msra.mxu0 0.0
      %1127 = vmatprep.subr.mxu0 0.0
      %1128 = vmatpush1.msra.mxu0 0.0
      %1129 = vmatprep.mubr.f32.mxu0 0.0
      %1130 = vmatmul.mubr.f32.gmra.mrb[0].mxu0 %v1015
      %v1131 = vpop.f32.mrb[0].mxu0
      %v1132 = vadd.f32 0.0, %v1131
      %v1133 = vpop.f32.mrb[0].mxu0
      %1134 = vmatprep.mubr.f32.mxu0 0.0
      %1135 = vmatmul.mubr.f32.gmra.mrb[0].mxu0 %v1018
      %v1136 = vpop.f32.mrb[0].mxu0
      %v1137 = vadd.f32 0.0, %v1136
      %v1138 = vpop.f32.mrb[0].mxu0
      %1139 = vmatprep.mubr.f32.mxu0 0.0
      %1140 = vmatmul.mubr.f32.gmra.mrb[0].mxu0 %v1021
      %v1141 = vpop.f32.mrb[0].mxu0
      %v1142 = vadd.f32 0.0, %v1141
      %v1143 = vpop.f32.mrb[0].mxu0
      %1144 = vmatprep.mubr.f32.mxu0 0.0
      %1145 = vmatmul.mubr.f32.gmra.mrb[0].mxu0 %v1024
      %v1146 = vpop.f32.mrb[0].mxu0
      %v1147 = vadd.f32 0.0, %v1146
      %v1148 = vpop.f32.mrb[0].mxu0
      %1149 = vmatprep.mubr.f32.mxu0 0.0
      %1150 = vmatmul.mubr.f32.gmra.mrb[0].mxu0 %v1027
      %v1151 = vpop.f32.mrb[0].mxu0
      %v1152 = vadd.f32 0.0, %v1151
      %v1153 = vpop.f32.mrb[0].mxu0
      %1154 = vmatprep.mubr.f32.mxu0 0.0
      %1155 = vmatmul.mubr.f32.gmra.mrb[0].mxu0 %v1030
      %v1156 = vpop.f32.mrb[0].mxu0
      %v1157 = vadd.f32 0.0, %v1156
      %v1158 = vpop.f32.mrb[0].mxu0
      %1159 = vmatprep.mubr.f32.mxu0 0.0
      %1160 = vmatmul.mubr.f32.gmra.mrb[0].mxu0 %v1033
      %v1161 = vpop.f32.mrb[0].mxu0
      %v1162 = vadd.f32 0.0, %v1161
      %v1163 = vpop.f32.mrb[0].mxu0
      %1164 = vmatprep.mubr.f32.mxu0 0.0
      %1165 = vmatmul.mubr.f32.gmra.mrb[0].mxu0 %v1036
      %v1166 = vpop.f32.mrb[0].mxu0
      %v1167 = vadd.f32 0.0, %v1166
      %v1168 = vpop.f32.mrb[0].mxu0
      %1169 = vmatprep.mubr.f32.mxu0 0.0
      %1170 = vmatmul.mubr.f32.gmra.mrb[0].mxu0 %v1039
      %v1171 = vpop.f32.mrb[0].mxu0
      %v1172 = vadd.f32 0.0, %v1171
      %v1173 = vpop.f32.mrb[0].mxu0
      %1174 = vmatprep.mubr.f32.mxu0 0.0
      %1175 = vmatmul.mubr.f32.gmra.mrb[0].mxu0 %v1042
      %v1176 = vpop.f32.mrb[0].mxu0
      %v1177 = vadd.f32 0.0, %v1176
      %v1178 = vpop.f32.mrb[0].mxu0
      %1179 = vmatprep.mubr.f32.mxu0 0.0
      %1180 = vmatmul.mubr.f32.gmra.mrb[0].mxu0 %v1045
      %v1181 = vpop.f32.mrb[0].mxu0
      %v1182 = vadd.f32 0.0, %v1181
      %v1183 = vpop.f32.mrb[0].mxu0
      %1184 = vmatprep.mubr.f32.mxu0 0.0
      %1185 = vmatmul.mubr.f32.gmra.mrb[0].mxu0 %v1048
      %v1186 = vpop.f32.mrb[0].mxu0
      %v1187 = vadd.f32 0.0, %v1186
      %v1188 = vpop.f32.mrb[0].mxu0
      %1189 = vmatprep.mubr.f32.mxu0 0.0
      %1190 = vmatmul.mubr.f32.gmra.mrb[0].mxu0 %v1051
      %v1191 = vpop.f32.mrb[0].mxu0
      %v1192 = vadd.f32 0.0, %v1191
      %v1193 = vpop.f32.mrb[0].mxu0
      %1194 = vmatprep.mubr.f32.mxu0 0.0
      %1195 = vmatmul.mubr.f32.gmra.mrb[0].mxu0 %v1054
      %v1196 = vpop.f32.mrb[0].mxu0
      %v1197 = vadd.f32 0.0, %v1196
      %v1198 = vpop.f32.mrb[0].mxu0
      %1199 = vmatprep.mubr.f32.mxu0 0.0
      %1200 = vmatmul.mubr.f32.gmra.mrb[0].mxu0 %v1057
      %v1201 = vpop.f32.mrb[0].mxu0
      %v1202 = vadd.f32 0.0, %v1201
      %v1203 = vpop.f32.mrb[0].mxu0
      %1204 = vmatprep.mubr.f32.mxu0 0.0
      %1205 = vmatmul.mubr.f32.gmra.mrb[0].mxu0 %v1060
      %v1206 = vpop.f32.mrb[0].mxu0
      %v1207 = vadd.f32 0.0, %v1206
      %v1208 = vpop.f32.mrb[0].mxu0
      %1209 = vdwg.mxu0
      %v1210 = vadd.f32 %v978, %v1132
      %v1211 = vadd.f32 %v979, %v1137
      %v1212 = vadd.f32 %v980, %v1142
      %v1213 = vadd.f32 %v981, %v1147
      %v1214 = vadd.f32 %v982, %v1152
      %v1215 = vadd.f32 %v983, %v1157
      %v1216 = vadd.f32 %v984, %v1162
      %v1217 = vadd.f32 %v985, %v1167
      %v1218 = vadd.f32 %v986, %v1172
      %v1219 = vadd.f32 %v987, %v1177
      %v1220 = vadd.f32 %v988, %v1182
      %v1221 = vadd.f32 %v989, %v1187
      %v1222 = vadd.f32 %v990, %v1192
      %v1223 = vadd.f32 %v991, %v1197
      %v1224 = vadd.f32 %v992, %v1202
      %v1225 = vadd.f32 %v993, %v1207
      %v1226 = vld [vmem:[%s210 + $0x19] sm:$0xff]
      %v1227 = vld [vmem:[%s210 + $0x21] sm:$0xff]
      %v1228 = vld [vmem:[%s210 + $0x29] sm:$0xff]
      %v1229 = vld [vmem:[%s210 + $0x31] sm:$0xff]
      %v1230 = vld [vmem:[%s210 + $0x39] sm:$0xff]
      %v1231 = vld [vmem:[%s210 + $0x41] sm:$0xff]
      %v1232 = vld [vmem:[%s210 + $0x49] sm:$0xff]
      %v1233 = vld [vmem:[%s210 + $0x51] sm:$0xff]
      %v1234 = vld [vmem:[%s210 + $0x59] sm:$0xff]
      %v1235 = vld [vmem:[%s210 + $0x61] sm:$0xff]
      %v1236 = vld [vmem:[%s210 + $0x69] sm:$0xff]
      %v1237 = vld [vmem:[%s210 + $0x71] sm:$0xff]
      %v1238 = vld [vmem:[%s210 + $0x79] sm:$0xff]
      %v1239 = vld [vmem:[%s210 + $0x81] sm:$0xff]
      %v1240 = vld [vmem:[%s210 + $0x89] sm:$0xff]
      %v1241 = vld [vmem:[%s210 + $0x91] sm:$0xff]
      %s1242 = sadd.s32 %s312, 4
      %s1243 = smul.u32 %s1242, 4
      %s1244 = scalar_lea.vmem %s1, %s1243
      %v1245 = vld [vmem:[%s1244] sm:$0xf]
      %v1247 = vsel %vm316, %v1226, 0
      %v1250 = vsel %vm316, %v1227, 0
      %v1253 = vsel %vm316, %v1228, 0
      %v1256 = vsel %vm316, %v1229, 0
      %v1259 = vsel %vm316, %v1230, 0
      %v1262 = vsel %vm316, %v1231, 0
      %v1265 = vsel %vm316, %v1232, 0
      %v1268 = vsel %vm316, %v1233, 0
      %v1271 = vsel %vm316, %v1234, 0
      %v1274 = vsel %vm316, %v1235, 0
      %v1277 = vsel %vm316, %v1236, 0
      %v1280 = vsel %vm316, %v1237, 0
      %v1283 = vsel %vm316, %v1238, 0
      %v1286 = vsel %vm316, %v1239, 0
      %v1289 = vsel %vm316, %v1240, 0
      %v1292 = vsel %vm316, %v1241, 0
      %v1295 = vsel %vm365, %v1245, 0
      %1297 = vmatprep.subr.mxu0 0.0
      %1298 = vmatpush1.msra.mxu0 %v1295
      %1299 = vmatprep.subr.mxu0 0.0
      %1300 = vmatpush1.msra.mxu0 0.0
      %1301 = vmatprep.subr.mxu0 0.0
      %1302 = vmatpush1.msra.mxu0 0.0
      %1303 = vmatprep.subr.mxu0 0.0
      %1304 = vmatpush1.msra.mxu0 0.0
      %1305 = vmatprep.subr.mxu0 0.0
      %1306 = vmatpush1.msra.mxu0 0.0
      %1307 = vmatprep.subr.mxu0 0.0
      %1308 = vmatpush1.msra.mxu0 0.0
      %1309 = vmatprep.subr.mxu0 0.0
      %1310 = vmatpush1.msra.mxu0 0.0
      %1311 = vmatprep.subr.mxu0 0.0
      %1312 = vmatpush1.msra.mxu0 0.0
      %1313 = vmatprep.subr.mxu0 0.0
      %1314 = vmatpush1.msra.mxu0 0.0
      %1315 = vmatprep.subr.mxu0 0.0
      %1316 = vmatpush1.msra.mxu0 0.0
      %1317 = vmatprep.subr.mxu0 0.0
      %1318 = vmatpush1.msra.mxu0 0.0
      %1319 = vmatprep.subr.mxu0 0.0
      %1320 = vmatpush1.msra.mxu0 0.0
      %1321 = vmatprep.subr.mxu0 0.0
      %1322 = vmatpush1.msra.mxu0 0.0
      %1323 = vmatprep.subr.mxu0 0.0
      %1324 = vmatpush1.msra.mxu0 0.0
      %1325 = vmatprep.subr.mxu0 0.0
      %1326 = vmatpush1.msra.mxu0 0.0
      %1327 = vmatprep.subr.mxu0 0.0
      %1328 = vmatpush1.msra.mxu0 0.0
      %1329 = vmatprep.subr.mxu0 0.0
      %1330 = vmatpush1.msra.mxu0 0.0
      %1331 = vmatprep.subr.mxu0 0.0
      %1332 = vmatpush1.msra.mxu0 0.0
      %1333 = vmatprep.subr.mxu0 0.0
      %1334 = vmatpush1.msra.mxu0 0.0
      %1335 = vmatprep.subr.mxu0 0.0
      %1336 = vmatpush1.msra.mxu0 0.0
      %1337 = vmatprep.subr.mxu0 0.0
      %1338 = vmatpush1.msra.mxu0 0.0
      %1339 = vmatprep.subr.mxu0 0.0
      %1340 = vmatpush1.msra.mxu0 0.0
      %1341 = vmatprep.subr.mxu0 0.0
      %1342 = vmatpush1.msra.mxu0 0.0
      %1343 = vmatprep.subr.mxu0 0.0
      %1344 = vmatpush1.msra.mxu0 0.0
      %1345 = vmatprep.subr.mxu0 0.0
      %1346 = vmatpush1.msra.mxu0 0.0
      %1347 = vmatprep.subr.mxu0 0.0
      %1348 = vmatpush1.msra.mxu0 0.0
      %1349 = vmatprep.subr.mxu0 0.0
      %1350 = vmatpush1.msra.mxu0 0.0
      %1351 = vmatprep.subr.mxu0 0.0
      %1352 = vmatpush1.msra.mxu0 0.0
      %1353 = vmatprep.subr.mxu0 0.0
      %1354 = vmatpush1.msra.mxu0 0.0
      %1355 = vmatprep.subr.mxu0 0.0
      %1356 = vmatpush1.msra.mxu0 0.0
      %1357 = vmatprep.subr.mxu0 0.0
      %1358 = vmatpush1.msra.mxu0 0.0
      %1359 = vmatprep.subr.mxu0 0.0
      %1360 = vmatpush1.msra.mxu0 0.0
      %1361 = vmatprep.mubr.f32.mxu0 0.0
      %1362 = vmatmul.mubr.f32.gmra.mrb[0].mxu0 %v1247
      %v1363 = vpop.f32.mrb[0].mxu0
      %v1364 = vadd.f32 0.0, %v1363
      %v1365 = vpop.f32.mrb[0].mxu0
      %1366 = vmatprep.mubr.f32.mxu0 0.0
      %1367 = vmatmul.mubr.f32.gmra.mrb[0].mxu0 %v1250
      %v1368 = vpop.f32.mrb[0].mxu0
      %v1369 = vadd.f32 0.0, %v1368
      %v1370 = vpop.f32.mrb[0].mxu0
      %1371 = vmatprep.mubr.f32.mxu0 0.0
      %1372 = vmatmul.mubr.f32.gmra.mrb[0].mxu0 %v1253
      %v1373 = vpop.f32.mrb[0].mxu0
      %v1374 = vadd.f32 0.0, %v1373
      %v1375 = vpop.f32.mrb[0].mxu0
      %1376 = vmatprep.mubr.f32.mxu0 0.0
      %1377 = vmatmul.mubr.f32.gmra.mrb[0].mxu0 %v1256
      %v1378 = vpop.f32.mrb[0].mxu0
      %v1379 = vadd.f32 0.0, %v1378
      %v1380 = vpop.f32.mrb[0].mxu0
      %1381 = vmatprep.mubr.f32.mxu0 0.0
      %1382 = vmatmul.mubr.f32.gmra.mrb[0].mxu0 %v1259
      %v1383 = vpop.f32.mrb[0].mxu0
      %v1384 = vadd.f32 0.0, %v1383
      %v1385 = vpop.f32.mrb[0].mxu0
      %1386 = vmatprep.mubr.f32.mxu0 0.0
      %1387 = vmatmul.mubr.f32.gmra.mrb[0].mxu0 %v1262
      %v1388 = vpop.f32.mrb[0].mxu0
      %v1389 = vadd.f32 0.0, %v1388
      %v1390 = vpop.f32.mrb[0].mxu0
      %1391 = vmatprep.mubr.f32.mxu0 0.0
      %1392 = vmatmul.mubr.f32.gmra.mrb[0].mxu0 %v1265
      %v1393 = vpop.f32.mrb[0].mxu0
      %v1394 = vadd.f32 0.0, %v1393
      %v1395 = vpop.f32.mrb[0].mxu0
      %1396 = vmatprep.mubr.f32.mxu0 0.0
      %1397 = vmatmul.mubr.f32.gmra.mrb[0].mxu0 %v1268
      %v1398 = vpop.f32.mrb[0].mxu0
      %v1399 = vadd.f32 0.0, %v1398
      %v1400 = vpop.f32.mrb[0].mxu0
      %1401 = vmatprep.mubr.f32.mxu0 0.0
      %1402 = vmatmul.mubr.f32.gmra.mrb[0].mxu0 %v1271
      %v1403 = vpop.f32.mrb[0].mxu0
      %v1404 = vadd.f32 0.0, %v1403
      %v1405 = vpop.f32.mrb[0].mxu0
      %1406 = vmatprep.mubr.f32.mxu0 0.0
      %1407 = vmatmul.mubr.f32.gmra.mrb[0].mxu0 %v1274
      %v1408 = vpop.f32.mrb[0].mxu0
      %v1409 = vadd.f32 0.0, %v1408
      %v1410 = vpop.f32.mrb[0].mxu0
      %1411 = vmatprep.mubr.f32.mxu0 0.0
      %1412 = vmatmul.mubr.f32.gmra.mrb[0].mxu0 %v1277
      %v1413 = vpop.f32.mrb[0].mxu0
      %v1414 = vadd.f32 0.0, %v1413
      %v1415 = vpop.f32.mrb[0].mxu0
      %1416 = vmatprep.mubr.f32.mxu0 0.0
      %1417 = vmatmul.mubr.f32.gmra.mrb[0].mxu0 %v1280
      %v1418 = vpop.f32.mrb[0].mxu0
      %v1419 = vadd.f32 0.0, %v1418
      %v1420 = vpop.f32.mrb[0].mxu0
      %1421 = vmatprep.mubr.f32.mxu0 0.0
      %1422 = vmatmul.mubr.f32.gmra.mrb[0].mxu0 %v1283
      %v1423 = vpop.f32.mrb[0].mxu0
      %v1424 = vadd.f32 0.0, %v1423
      %v1425 = vpop.f32.mrb[0].mxu0
      %1426 = vmatprep.mubr.f32.mxu0 0.0
      %1427 = vmatmul.mubr.f32.gmra.mrb[0].mxu0 %v1286
      %v1428 = vpop.f32.mrb[0].mxu0
      %v1429 = vadd.f32 0.0, %v1428
      %v1430 = vpop.f32.mrb[0].mxu0
      %1431 = vmatprep.mubr.f32.mxu0 0.0
      %1432 = vmatmul.mubr.f32.gmra.mrb[0].mxu0 %v1289
      %v1433 = vpop.f32.mrb[0].mxu0
      %v1434 = vadd.f32 0.0, %v1433
      %v1435 = vpop.f32.mrb[0].mxu0
      %1436 = vmatprep.mubr.f32.mxu0 0.0
      %1437 = vmatmul.mubr.f32.gmra.mrb[0].mxu0 %v1292
      %v1438 = vpop.f32.mrb[0].mxu0
      %v1439 = vadd.f32 0.0, %v1438
      %v1440 = vpop.f32.mrb[0].mxu0
      %1441 = vdwg.mxu0
      %v1442 = vadd.f32 %v1210, %v1364
      %v1443 = vadd.f32 %v1211, %v1369
      %v1444 = vadd.f32 %v1212, %v1374
      %v1445 = vadd.f32 %v1213, %v1379
      %v1446 = vadd.f32 %v1214, %v1384
      %v1447 = vadd.f32 %v1215, %v1389
      %v1448 = vadd.f32 %v1216, %v1394
      %v1449 = vadd.f32 %v1217, %v1399
      %v1450 = vadd.f32 %v1218, %v1404
      %v1451 = vadd.f32 %v1219, %v1409
      %v1452 = vadd.f32 %v1220, %v1414
      %v1453 = vadd.f32 %v1221, %v1419
      %v1454 = vadd.f32 %v1222, %v1424
      %v1455 = vadd.f32 %v1223, %v1429
      %v1456 = vadd.f32 %v1224, %v1434
      %v1457 = vadd.f32 %v1225, %v1439
      %v1458 = vld [vmem:[%s210 + $0x1a] sm:$0xff]
      %v1459 = vld [vmem:[%s210 + $0x22] sm:$0xff]
      %v1460 = vld [vmem:[%s210 + $0x2a] sm:$0xff]
      %v1461 = vld [vmem:[%s210 + $0x32] sm:$0xff]
      %v1462 = vld [vmem:[%s210 + $0x3a] sm:$0xff]
      %v1463 = vld [vmem:[%s210 + $0x42] sm:$0xff]
      %v1464 = vld [vmem:[%s210 + $0x4a] sm:$0xff]
      %v1465 = vld [vmem:[%s210 + $0x52] sm:$0xff]
      %v1466 = vld [vmem:[%s210 + $0x5a] sm:$0xff]
      %v1467 = vld [vmem:[%s210 + $0x62] sm:$0xff]
      %v1468 = vld [vmem:[%s210 + $0x6a] sm:$0xff]
      %v1469 = vld [vmem:[%s210 + $0x72] sm:$0xff]
      %v1470 = vld [vmem:[%s210 + $0x7a] sm:$0xff]
      %v1471 = vld [vmem:[%s210 + $0x82] sm:$0xff]
      %v1472 = vld [vmem:[%s210 + $0x8a] sm:$0xff]
      %v1473 = vld [vmem:[%s210 + $0x92] sm:$0xff]
      %s1474 = sadd.s32 %s312, 5
      %s1475 = smul.u32 %s1474, 4
      %s1476 = scalar_lea.vmem %s1, %s1475
      %v1477 = vld [vmem:[%s1476] sm:$0xf]
      %v1479 = vsel %vm316, %v1458, 0
      %v1482 = vsel %vm316, %v1459, 0
      %v1485 = vsel %vm316, %v1460, 0
      %v1488 = vsel %vm316, %v1461, 0
      %v1491 = vsel %vm316, %v1462, 0
      %v1494 = vsel %vm316, %v1463, 0
      %v1497 = vsel %vm316, %v1464, 0
      %v1500 = vsel %vm316, %v1465, 0
      %v1503 = vsel %vm316, %v1466, 0
      %v1506 = vsel %vm316, %v1467, 0
      %v1509 = vsel %vm316, %v1468, 0
      %v1512 = vsel %vm316, %v1469, 0
      %v1515 = vsel %vm316, %v1470, 0
      %v1518 = vsel %vm316, %v1471, 0
      %v1521 = vsel %vm316, %v1472, 0
      %v1524 = vsel %vm316, %v1473, 0
      %v1527 = vsel %vm365, %v1477, 0
      %1529 = vmatprep.subr.mxu0 0.0
      %1530 = vmatpush1.msra.mxu0 %v1527
      %1531 = vmatprep.subr.mxu0 0.0
      %1532 = vmatpush1.msra.mxu0 0.0
      %1533 = vmatprep.subr.mxu0 0.0
      %1534 = vmatpush1.msra.mxu0 0.0
      %1535 = vmatprep.subr.mxu0 0.0
      %1536 = vmatpush1.msra.mxu0 0.0
      %1537 = vmatprep.subr.mxu0 0.0
      %1538 = vmatpush1.msra.mxu0 0.0
      %1539 = vmatprep.subr.mxu0 0.0
      %1540 = vmatpush1.msra.mxu0 0.0
      %1541 = vmatprep.subr.mxu0 0.0
      %1542 = vmatpush1.msra.mxu0 0.0
      %1543 = vmatprep.subr.mxu0 0.0
      %1544 = vmatpush1.msra.mxu0 0.0
      %1545 = vmatprep.subr.mxu0 0.0
      %1546 = vmatpush1.msra.mxu0 0.0
      %1547 = vmatprep.subr.mxu0 0.0
      %1548 = vmatpush1.msra.mxu0 0.0
      %1549 = vmatprep.subr.mxu0 0.0
      %1550 = vmatpush1.msra.mxu0 0.0
      %1551 = vmatprep.subr.mxu0 0.0
      %1552 = vmatpush1.msra.mxu0 0.0
      %1553 = vmatprep.subr.mxu0 0.0
      %1554 = vmatpush1.msra.mxu0 0.0
      %1555 = vmatprep.subr.mxu0 0.0
      %1556 = vmatpush1.msra.mxu0 0.0
      %1557 = vmatprep.subr.mxu0 0.0
      %1558 = vmatpush1.msra.mxu0 0.0
      %1559 = vmatprep.subr.mxu0 0.0
      %1560 = vmatpush1.msra.mxu0 0.0
      %1561 = vmatprep.subr.mxu0 0.0
      %1562 = vmatpush1.msra.mxu0 0.0
      %1563 = vmatprep.subr.mxu0 0.0
      %1564 = vmatpush1.msra.mxu0 0.0
      %1565 = vmatprep.subr.mxu0 0.0
      %1566 = vmatpush1.msra.mxu0 0.0
      %1567 = vmatprep.subr.mxu0 0.0
      %1568 = vmatpush1.msra.mxu0 0.0
      %1569 = vmatprep.subr.mxu0 0.0
      %1570 = vmatpush1.msra.mxu0 0.0
      %1571 = vmatprep.subr.mxu0 0.0
      %1572 = vmatpush1.msra.mxu0 0.0
      %1573 = vmatprep.subr.mxu0 0.0
      %1574 = vmatpush1.msra.mxu0 0.0
      %1575 = vmatprep.subr.mxu0 0.0
      %1576 = vmatpush1.msra.mxu0 0.0
      %1577 = vmatprep.subr.mxu0 0.0
      %1578 = vmatpush1.msra.mxu0 0.0
      %1579 = vmatprep.subr.mxu0 0.0
      %1580 = vmatpush1.msra.mxu0 0.0
      %1581 = vmatprep.subr.mxu0 0.0
      %1582 = vmatpush1.msra.mxu0 0.0
      %1583 = vmatprep.subr.mxu0 0.0
      %1584 = vmatpush1.msra.mxu0 0.0
      %1585 = vmatprep.subr.mxu0 0.0
      %1586 = vmatpush1.msra.mxu0 0.0
      %1587 = vmatprep.subr.mxu0 0.0
      %1588 = vmatpush1.msra.mxu0 0.0
      %1589 = vmatprep.subr.mxu0 0.0
      %1590 = vmatpush1.msra.mxu0 0.0
      %1591 = vmatprep.subr.mxu0 0.0
      %1592 = vmatpush1.msra.mxu0 0.0
      %1593 = vmatprep.mubr.f32.mxu0 0.0
      %1594 = vmatmul.mubr.f32.gmra.mrb[0].mxu0 %v1479
      %v1595 = vpop.f32.mrb[0].mxu0
      %v1596 = vadd.f32 0.0, %v1595
      %v1597 = vpop.f32.mrb[0].mxu0
      %1598 = vmatprep.mubr.f32.mxu0 0.0
      %1599 = vmatmul.mubr.f32.gmra.mrb[0].mxu0 %v1482
      %v1600 = vpop.f32.mrb[0].mxu0
      %v1601 = vadd.f32 0.0, %v1600
      %v1602 = vpop.f32.mrb[0].mxu0
      %1603 = vmatprep.mubr.f32.mxu0 0.0
      %1604 = vmatmul.mubr.f32.gmra.mrb[0].mxu0 %v1485
      %v1605 = vpop.f32.mrb[0].mxu0
      %v1606 = vadd.f32 0.0, %v1605
      %v1607 = vpop.f32.mrb[0].mxu0
      %1608 = vmatprep.mubr.f32.mxu0 0.0
      %1609 = vmatmul.mubr.f32.gmra.mrb[0].mxu0 %v1488
      %v1610 = vpop.f32.mrb[0].mxu0
      %v1611 = vadd.f32 0.0, %v1610
      %v1612 = vpop.f32.mrb[0].mxu0
      %1613 = vmatprep.mubr.f32.mxu0 0.0
      %1614 = vmatmul.mubr.f32.gmra.mrb[0].mxu0 %v1491
      %v1615 = vpop.f32.mrb[0].mxu0
      %v1616 = vadd.f32 0.0, %v1615
      %v1617 = vpop.f32.mrb[0].mxu0
      %1618 = vmatprep.mubr.f32.mxu0 0.0
      %1619 = vmatmul.mubr.f32.gmra.mrb[0].mxu0 %v1494
      %v1620 = vpop.f32.mrb[0].mxu0
      %v1621 = vadd.f32 0.0, %v1620
      %v1622 = vpop.f32.mrb[0].mxu0
      %1623 = vmatprep.mubr.f32.mxu0 0.0
      %1624 = vmatmul.mubr.f32.gmra.mrb[0].mxu0 %v1497
      %v1625 = vpop.f32.mrb[0].mxu0
      %v1626 = vadd.f32 0.0, %v1625
      %v1627 = vpop.f32.mrb[0].mxu0
      %1628 = vmatprep.mubr.f32.mxu0 0.0
      %1629 = vmatmul.mubr.f32.gmra.mrb[0].mxu0 %v1500
      %v1630 = vpop.f32.mrb[0].mxu0
      %v1631 = vadd.f32 0.0, %v1630
      %v1632 = vpop.f32.mrb[0].mxu0
      %1633 = vmatprep.mubr.f32.mxu0 0.0
      %1634 = vmatmul.mubr.f32.gmra.mrb[0].mxu0 %v1503
      %v1635 = vpop.f32.mrb[0].mxu0
      %v1636 = vadd.f32 0.0, %v1635
      %v1637 = vpop.f32.mrb[0].mxu0
      %1638 = vmatprep.mubr.f32.mxu0 0.0
      %1639 = vmatmul.mubr.f32.gmra.mrb[0].mxu0 %v1506
      %v1640 = vpop.f32.mrb[0].mxu0
      %v1641 = vadd.f32 0.0, %v1640
      %v1642 = vpop.f32.mrb[0].mxu0
      %1643 = vmatprep.mubr.f32.mxu0 0.0
      %1644 = vmatmul.mubr.f32.gmra.mrb[0].mxu0 %v1509
      %v1645 = vpop.f32.mrb[0].mxu0
      %v1646 = vadd.f32 0.0, %v1645
      %v1647 = vpop.f32.mrb[0].mxu0
      %1648 = vmatprep.mubr.f32.mxu0 0.0
      %1649 = vmatmul.mubr.f32.gmra.mrb[0].mxu0 %v1512
      %v1650 = vpop.f32.mrb[0].mxu0
      %v1651 = vadd.f32 0.0, %v1650
      %v1652 = vpop.f32.mrb[0].mxu0
      %1653 = vmatprep.mubr.f32.mxu0 0.0
      %1654 = vmatmul.mubr.f32.gmra.mrb[0].mxu0 %v1515
      %v1655 = vpop.f32.mrb[0].mxu0
      %v1656 = vadd.f32 0.0, %v1655
      %v1657 = vpop.f32.mrb[0].mxu0
      %1658 = vmatprep.mubr.f32.mxu0 0.0
      %1659 = vmatmul.mubr.f32.gmra.mrb[0].mxu0 %v1518
      %v1660 = vpop.f32.mrb[0].mxu0
      %v1661 = vadd.f32 0.0, %v1660
      %v1662 = vpop.f32.mrb[0].mxu0
      %1663 = vmatprep.mubr.f32.mxu0 0.0
      %1664 = vmatmul.mubr.f32.gmra.mrb[0].mxu0 %v1521
      %v1665 = vpop.f32.mrb[0].mxu0
      %v1666 = vadd.f32 0.0, %v1665
      %v1667 = vpop.f32.mrb[0].mxu0
      %1668 = vmatprep.mubr.f32.mxu0 0.0
      %1669 = vmatmul.mubr.f32.gmra.mrb[0].mxu0 %v1524
      %v1670 = vpop.f32.mrb[0].mxu0
      %v1671 = vadd.f32 0.0, %v1670
      %v1672 = vpop.f32.mrb[0].mxu0
      %1673 = vdwg.mxu0
      %v1674 = vadd.f32 %v1442, %v1596
      %v1675 = vadd.f32 %v1443, %v1601
      %v1676 = vadd.f32 %v1444, %v1606
      %v1677 = vadd.f32 %v1445, %v1611
      %v1678 = vadd.f32 %v1446, %v1616
      %v1679 = vadd.f32 %v1447, %v1621
      %v1680 = vadd.f32 %v1448, %v1626
      %v1681 = vadd.f32 %v1449, %v1631
      %v1682 = vadd.f32 %v1450, %v1636
      %v1683 = vadd.f32 %v1451, %v1641
      %v1684 = vadd.f32 %v1452, %v1646
      %v1685 = vadd.f32 %v1453, %v1651
      %v1686 = vadd.f32 %v1454, %v1656
      %v1687 = vadd.f32 %v1455, %v1661
      %v1688 = vadd.f32 %v1456, %v1666
      %v1689 = vadd.f32 %v1457, %v1671
      %v1690 = vld [vmem:[%s210 + $0x30] sm:$0xff]
      %v1691 = vld [vmem:[%s210 + $0x38] sm:$0xff]
      %v1692 = vld [vmem:[%s210 + $0x40] sm:$0xff]
      %v1693 = vld [vmem:[%s210 + $0x48] sm:$0xff]
      %v1694 = vld [vmem:[%s210 + $0x50] sm:$0xff]
      %v1695 = vld [vmem:[%s210 + $0x58] sm:$0xff]
      %v1696 = vld [vmem:[%s210 + $0x60] sm:$0xff]
      %v1697 = vld [vmem:[%s210 + $0x68] sm:$0xff]
      %v1698 = vld [vmem:[%s210 + $0x70] sm:$0xff]
      %v1699 = vld [vmem:[%s210 + $0x78] sm:$0xff]
      %v1700 = vld [vmem:[%s210 + $0x80] sm:$0xff]
      %v1701 = vld [vmem:[%s210 + $0x88] sm:$0xff]
      %v1702 = vld [vmem:[%s210 + $0x90] sm:$0xff]
      %v1703 = vld [vmem:[%s210 + $0x98] sm:$0xff]
      %v1704 = vld [vmem:[%s210 + $0xa0] sm:$0xff]
      %v1705 = vld [vmem:[%s210 + $0xa8] sm:$0xff]
      %s1706 = sadd.s32 %s312, 6
      %s1707 = smul.u32 %s1706, 4
      %s1708 = scalar_lea.vmem %s1, %s1707
      %v1709 = vld [vmem:[%s1708] sm:$0xf]
      %v1711 = vsel %vm316, %v1690, 0
      %v1714 = vsel %vm316, %v1691, 0
      %v1717 = vsel %vm316, %v1692, 0
      %v1720 = vsel %vm316, %v1693, 0
      %v1723 = vsel %vm316, %v1694, 0
      %v1726 = vsel %vm316, %v1695, 0
      %v1729 = vsel %vm316, %v1696, 0
      %v1732 = vsel %vm316, %v1697, 0
      %v1735 = vsel %vm316, %v1698, 0
      %v1738 = vsel %vm316, %v1699, 0
      %v1741 = vsel %vm316, %v1700, 0
      %v1744 = vsel %vm316, %v1701, 0
      %v1747 = vsel %vm316, %v1702, 0
      %v1750 = vsel %vm316, %v1703, 0
      %v1753 = vsel %vm316, %v1704, 0
      %v1756 = vsel %vm316, %v1705, 0
      %v1759 = vsel %vm365, %v1709, 0
      %1761 = vmatprep.subr.mxu0 0.0
      %1762 = vmatpush1.msra.mxu0 %v1759
      %1763 = vmatprep.subr.mxu0 0.0
      %1764 = vmatpush1.msra.mxu0 0.0
      %1765 = vmatprep.subr.mxu0 0.0
      %1766 = vmatpush1.msra.mxu0 0.0
      %1767 = vmatprep.subr.mxu0 0.0
      %1768 = vmatpush1.msra.mxu0 0.0
      %1769 = vmatprep.subr.mxu0 0.0
      %1770 = vmatpush1.msra.mxu0 0.0
      %1771 = vmatprep.subr.mxu0 0.0
      %1772 = vmatpush1.msra.mxu0 0.0
      %1773 = vmatprep.subr.mxu0 0.0
      %1774 = vmatpush1.msra.mxu0 0.0
      %1775 = vmatprep.subr.mxu0 0.0
      %1776 = vmatpush1.msra.mxu0 0.0
      %1777 = vmatprep.subr.mxu0 0.0
      %1778 = vmatpush1.msra.mxu0 0.0
      %1779 = vmatprep.subr.mxu0 0.0
      %1780 = vmatpush1.msra.mxu0 0.0
      %1781 = vmatprep.subr.mxu0 0.0
      %1782 = vmatpush1.msra.mxu0 0.0
      %1783 = vmatprep.subr.mxu0 0.0
      %1784 = vmatpush1.msra.mxu0 0.0
      %1785 = vmatprep.subr.mxu0 0.0
      %1786 = vmatpush1.msra.mxu0 0.0
      %1787 = vmatprep.subr.mxu0 0.0
      %1788 = vmatpush1.msra.mxu0 0.0
      %1789 = vmatprep.subr.mxu0 0.0
      %1790 = vmatpush1.msra.mxu0 0.0
      %1791 = vmatprep.subr.mxu0 0.0
      %1792 = vmatpush1.msra.mxu0 0.0
      %1793 = vmatprep.subr.mxu0 0.0
      %1794 = vmatpush1.msra.mxu0 0.0
      %1795 = vmatprep.subr.mxu0 0.0
      %1796 = vmatpush1.msra.mxu0 0.0
      %1797 = vmatprep.subr.mxu0 0.0
      %1798 = vmatpush1.msra.mxu0 0.0
      %1799 = vmatprep.subr.mxu0 0.0
      %1800 = vmatpush1.msra.mxu0 0.0
      %1801 = vmatprep.subr.mxu0 0.0
      %1802 = vmatpush1.msra.mxu0 0.0
      %1803 = vmatprep.subr.mxu0 0.0
      %1804 = vmatpush1.msra.mxu0 0.0
      %1805 = vmatprep.subr.mxu0 0.0
      %1806 = vmatpush1.msra.mxu0 0.0
      %1807 = vmatprep.subr.mxu0 0.0
      %1808 = vmatpush1.msra.mxu0 0.0
      %1809 = vmatprep.subr.mxu0 0.0
      %1810 = vmatpush1.msra.mxu0 0.0
      %1811 = vmatprep.subr.mxu0 0.0
      %1812 = vmatpush1.msra.mxu0 0.0
      %1813 = vmatprep.subr.mxu0 0.0
      %1814 = vmatpush1.msra.mxu0 0.0
      %1815 = vmatprep.subr.mxu0 0.0
      %1816 = vmatpush1.msra.mxu0 0.0
      %1817 = vmatprep.subr.mxu0 0.0
      %1818 = vmatpush1.msra.mxu0 0.0
      %1819 = vmatprep.subr.mxu0 0.0
      %1820 = vmatpush1.msra.mxu0 0.0
      %1821 = vmatprep.subr.mxu0 0.0
      %1822 = vmatpush1.msra.mxu0 0.0
      %1823 = vmatprep.subr.mxu0 0.0
      %1824 = vmatpush1.msra.mxu0 0.0
      %1825 = vmatprep.mubr.f32.mxu0 0.0
      %1826 = vmatmul.mubr.f32.gmra.mrb[0].mxu0 %v1711
      %v1827 = vpop.f32.mrb[0].mxu0
      %v1828 = vadd.f32 0.0, %v1827
      %v1829 = vpop.f32.mrb[0].mxu0
      %1830 = vmatprep.mubr.f32.mxu0 0.0
      %1831 = vmatmul.mubr.f32.gmra.mrb[0].mxu0 %v1714
      %v1832 = vpop.f32.mrb[0].mxu0
      %v1833 = vadd.f32 0.0, %v1832
      %v1834 = vpop.f32.mrb[0].mxu0
      %1835 = vmatprep.mubr.f32.mxu0 0.0
      %1836 = vmatmul.mubr.f32.gmra.mrb[0].mxu0 %v1717
      %v1837 = vpop.f32.mrb[0].mxu0
      %v1838 = vadd.f32 0.0, %v1837
      %v1839 = vpop.f32.mrb[0].mxu0
      %1840 = vmatprep.mubr.f32.mxu0 0.0
      %1841 = vmatmul.mubr.f32.gmra.mrb[0].mxu0 %v1720
      %v1842 = vpop.f32.mrb[0].mxu0
      %v1843 = vadd.f32 0.0, %v1842
      %v1844 = vpop.f32.mrb[0].mxu0
      %1845 = vmatprep.mubr.f32.mxu0 0.0
      %1846 = vmatmul.mubr.f32.gmra.mrb[0].mxu0 %v1723
      %v1847 = vpop.f32.mrb[0].mxu0
      %v1848 = vadd.f32 0.0, %v1847
      %v1849 = vpop.f32.mrb[0].mxu0
      %1850 = vmatprep.mubr.f32.mxu0 0.0
      %1851 = vmatmul.mubr.f32.gmra.mrb[0].mxu0 %v1726
      %v1852 = vpop.f32.mrb[0].mxu0
      %v1853 = vadd.f32 0.0, %v1852
      %v1854 = vpop.f32.mrb[0].mxu0
      %1855 = vmatprep.mubr.f32.mxu0 0.0
      %1856 = vmatmul.mubr.f32.gmra.mrb[0].mxu0 %v1729
      %v1857 = vpop.f32.mrb[0].mxu0
      %v1858 = vadd.f32 0.0, %v1857
      %v1859 = vpop.f32.mrb[0].mxu0
      %1860 = vmatprep.mubr.f32.mxu0 0.0
      %1861 = vmatmul.mubr.f32.gmra.mrb[0].mxu0 %v1732
      %v1862 = vpop.f32.mrb[0].mxu0
      %v1863 = vadd.f32 0.0, %v1862
      %v1864 = vpop.f32.mrb[0].mxu0
      %1865 = vmatprep.mubr.f32.mxu0 0.0
      %1866 = vmatmul.mubr.f32.gmra.mrb[0].mxu0 %v1735
      %v1867 = vpop.f32.mrb[0].mxu0
      %v1868 = vadd.f32 0.0, %v1867
      %v1869 = vpop.f32.mrb[0].mxu0
      %1870 = vmatprep.mubr.f32.mxu0 0.0
      %1871 = vmatmul.mubr.f32.gmra.mrb[0].mxu0 %v1738
      %v1872 = vpop.f32.mrb[0].mxu0
      %v1873 = vadd.f32 0.0, %v1872
      %v1874 = vpop.f32.mrb[0].mxu0
      %1875 = vmatprep.mubr.f32.mxu0 0.0
      %1876 = vmatmul.mubr.f32.gmra.mrb[0].mxu0 %v1741
      %v1877 = vpop.f32.mrb[0].mxu0
      %v1878 = vadd.f32 0.0, %v1877
      %v1879 = vpop.f32.mrb[0].mxu0
      %1880 = vmatprep.mubr.f32.mxu0 0.0
      %1881 = vmatmul.mubr.f32.gmra.mrb[0].mxu0 %v1744
      %v1882 = vpop.f32.mrb[0].mxu0
      %v1883 = vadd.f32 0.0, %v1882
      %v1884 = vpop.f32.mrb[0].mxu0
      %1885 = vmatprep.mubr.f32.mxu0 0.0
      %1886 = vmatmul.mubr.f32.gmra.mrb[0].mxu0 %v1747
      %v1887 = vpop.f32.mrb[0].mxu0
      %v1888 = vadd.f32 0.0, %v1887
      %v1889 = vpop.f32.mrb[0].mxu0
      %1890 = vmatprep.mubr.f32.mxu0 0.0
      %1891 = vmatmul.mubr.f32.gmra.mrb[0].mxu0 %v1750
      %v1892 = vpop.f32.mrb[0].mxu0
      %v1893 = vadd.f32 0.0, %v1892
      %v1894 = vpop.f32.mrb[0].mxu0
      %1895 = vmatprep.mubr.f32.mxu0 0.0
      %1896 = vmatmul.mubr.f32.gmra.mrb[0].mxu0 %v1753
      %v1897 = vpop.f32.mrb[0].mxu0
      %v1898 = vadd.f32 0.0, %v1897
      %v1899 = vpop.f32.mrb[0].mxu0
      %1900 = vmatprep.mubr.f32.mxu0 0.0
      %1901 = vmatmul.mubr.f32.gmra.mrb[0].mxu0 %v1756
      %v1902 = vpop.f32.mrb[0].mxu0
      %v1903 = vadd.f32 0.0, %v1902
      %v1904 = vpop.f32.mrb[0].mxu0
      %1905 = vdwg.mxu0
      %v1906 = vadd.f32 %v1674, %v1828
      %v1907 = vadd.f32 %v1675, %v1833
      %v1908 = vadd.f32 %v1676, %v1838
      %v1909 = vadd.f32 %v1677, %v1843
      %v1910 = vadd.f32 %v1678, %v1848
      %v1911 = vadd.f32 %v1679, %v1853
      %v1912 = vadd.f32 %v1680, %v1858
      %v1913 = vadd.f32 %v1681, %v1863
      %v1914 = vadd.f32 %v1682, %v1868
      %v1915 = vadd.f32 %v1683, %v1873
      %v1916 = vadd.f32 %v1684, %v1878
      %v1917 = vadd.f32 %v1685, %v1883
      %v1918 = vadd.f32 %v1686, %v1888
      %v1919 = vadd.f32 %v1687, %v1893
      %v1920 = vadd.f32 %v1688, %v1898
      %v1921 = vadd.f32 %v1689, %v1903
      %v1922 = vld [vmem:[%s210 + $0x31] sm:$0xff]
      %v1923 = vld [vmem:[%s210 + $0x39] sm:$0xff]
      %v1924 = vld [vmem:[%s210 + $0x41] sm:$0xff]
      %v1925 = vld [vmem:[%s210 + $0x49] sm:$0xff]
      %v1926 = vld [vmem:[%s210 + $0x51] sm:$0xff]
      %v1927 = vld [vmem:[%s210 + $0x59] sm:$0xff]
      %v1928 = vld [vmem:[%s210 + $0x61] sm:$0xff]
      %v1929 = vld [vmem:[%s210 + $0x69] sm:$0xff]
      %v1930 = vld [vmem:[%s210 + $0x71] sm:$0xff]
      %v1931 = vld [vmem:[%s210 + $0x79] sm:$0xff]
      %v1932 = vld [vmem:[%s210 + $0x81] sm:$0xff]
      %v1933 = vld [vmem:[%s210 + $0x89] sm:$0xff]
      %v1934 = vld [vmem:[%s210 + $0x91] sm:$0xff]
      %v1935 = vld [vmem:[%s210 + $0x99] sm:$0xff]
      %v1936 = vld [vmem:[%s210 + $0xa1] sm:$0xff]
      %v1937 = vld [vmem:[%s210 + $0xa9] sm:$0xff]
      %s1938 = sadd.s32 %s312, 7
      %s1939 = smul.u32 %s1938, 4
      %s1940 = scalar_lea.vmem %s1, %s1939
      %v1941 = vld [vmem:[%s1940] sm:$0xf]
      %v1943 = vsel %vm316, %v1922, 0
      %v1946 = vsel %vm316, %v1923, 0
      %v1949 = vsel %vm316, %v1924, 0
      %v1952 = vsel %vm316, %v1925, 0
      %v1955 = vsel %vm316, %v1926, 0
      %v1958 = vsel %vm316, %v1927, 0
      %v1961 = vsel %vm316, %v1928, 0
      %v1964 = vsel %vm316, %v1929, 0
      %v1967 = vsel %vm316, %v1930, 0
      %v1970 = vsel %vm316, %v1931, 0
      %v1973 = vsel %vm316, %v1932, 0
      %v1976 = vsel %vm316, %v1933, 0
      %v1979 = vsel %vm316, %v1934, 0
      %v1982 = vsel %vm316, %v1935, 0
      %v1985 = vsel %vm316, %v1936, 0
      %v1988 = vsel %vm316, %v1937, 0
      %v1991 = vsel %vm365, %v1941, 0
      %1993 = vmatprep.subr.mxu0 0.0
      %1994 = vmatpush1.msra.mxu0 %v1991
      %1995 = vmatprep.subr.mxu0 0.0
      %1996 = vmatpush1.msra.mxu0 0.0
      %1997 = vmatprep.subr.mxu0 0.0
      %1998 = vmatpush1.msra.mxu0 0.0
      %1999 = vmatprep.subr.mxu0 0.0
      %2000 = vmatpush1.msra.mxu0 0.0
      %2001 = vmatprep.subr.mxu0 0.0
      %2002 = vmatpush1.msra.mxu0 0.0
      %2003 = vmatprep.subr.mxu0 0.0
      %2004 = vmatpush1.msra.mxu0 0.0
      %2005 = vmatprep.subr.mxu0 0.0
      %2006 = vmatpush1.msra.mxu0 0.0
      %2007 = vmatprep.subr.mxu0 0.0
      %2008 = vmatpush1.msra.mxu0 0.0
      %2009 = vmatprep.subr.mxu0 0.0
      %2010 = vmatpush1.msra.mxu0 0.0
      %2011 = vmatprep.subr.mxu0 0.0
      %2012 = vmatpush1.msra.mxu0 0.0
      %2013 = vmatprep.subr.mxu0 0.0
      %2014 = vmatpush1.msra.mxu0 0.0
      %2015 = vmatprep.subr.mxu0 0.0
      %2016 = vmatpush1.msra.mxu0 0.0
      %2017 = vmatprep.subr.mxu0 0.0
      %2018 = vmatpush1.msra.mxu0 0.0
      %2019 = vmatprep.subr.mxu0 0.0
      %2020 = vmatpush1.msra.mxu0 0.0
      %2021 = vmatprep.subr.mxu0 0.0
      %2022 = vmatpush1.msra.mxu0 0.0
      %2023 = vmatprep.subr.mxu0 0.0
      %2024 = vmatpush1.msra.mxu0 0.0
      %2025 = vmatprep.subr.mxu0 0.0
      %2026 = vmatpush1.msra.mxu0 0.0
      %2027 = vmatprep.subr.mxu0 0.0
      %2028 = vmatpush1.msra.mxu0 0.0
      %2029 = vmatprep.subr.mxu0 0.0
      %2030 = vmatpush1.msra.mxu0 0.0
      %2031 = vmatprep.subr.mxu0 0.0
      %2032 = vmatpush1.msra.mxu0 0.0
      %2033 = vmatprep.subr.mxu0 0.0
      %2034 = vmatpush1.msra.mxu0 0.0
      %2035 = vmatprep.subr.mxu0 0.0
      %2036 = vmatpush1.msra.mxu0 0.0
      %2037 = vmatprep.subr.mxu0 0.0
      %2038 = vmatpush1.msra.mxu0 0.0
      %2039 = vmatprep.subr.mxu0 0.0
      %2040 = vmatpush1.msra.mxu0 0.0
      %2041 = vmatprep.subr.mxu0 0.0
      %2042 = vmatpush1.msra.mxu0 0.0
      %2043 = vmatprep.subr.mxu0 0.0
      %2044 = vmatpush1.msra.mxu0 0.0
      %2045 = vmatprep.subr.mxu0 0.0
      %2046 = vmatpush1.msra.mxu0 0.0
      %2047 = vmatprep.subr.mxu0 0.0
      %2048 = vmatpush1.msra.mxu0 0.0
      %2049 = vmatprep.subr.mxu0 0.0
      %2050 = vmatpush1.msra.mxu0 0.0
      %2051 = vmatprep.subr.mxu0 0.0
      %2052 = vmatpush1.msra.mxu0 0.0
      %2053 = vmatprep.subr.mxu0 0.0
      %2054 = vmatpush1.msra.mxu0 0.0
      %2055 = vmatprep.subr.mxu0 0.0
      %2056 = vmatpush1.msra.mxu0 0.0
      %2057 = vmatprep.mubr.f32.mxu0 0.0
      %2058 = vmatmul.mubr.f32.gmra.mrb[0].mxu0 %v1943
      %v2059 = vpop.f32.mrb[0].mxu0
      %v2060 = vadd.f32 0.0, %v2059
      %v2061 = vpop.f32.mrb[0].mxu0
      %2062 = vmatprep.mubr.f32.mxu0 0.0
      %2063 = vmatmul.mubr.f32.gmra.mrb[0].mxu0 %v1946
      %v2064 = vpop.f32.mrb[0].mxu0
      %v2065 = vadd.f32 0.0, %v2064
      %v2066 = vpop.f32.mrb[0].mxu0
      %2067 = vmatprep.mubr.f32.mxu0 0.0
      %2068 = vmatmul.mubr.f32.gmra.mrb[0].mxu0 %v1949
      %v2069 = vpop.f32.mrb[0].mxu0
      %v2070 = vadd.f32 0.0, %v2069
      %v2071 = vpop.f32.mrb[0].mxu0
      %2072 = vmatprep.mubr.f32.mxu0 0.0
      %2073 = vmatmul.mubr.f32.gmra.mrb[0].mxu0 %v1952
      %v2074 = vpop.f32.mrb[0].mxu0
      %v2075 = vadd.f32 0.0, %v2074
      %v2076 = vpop.f32.mrb[0].mxu0
      %2077 = vmatprep.mubr.f32.mxu0 0.0
      %2078 = vmatmul.mubr.f32.gmra.mrb[0].mxu0 %v1955
      %v2079 = vpop.f32.mrb[0].mxu0
      %v2080 = vadd.f32 0.0, %v2079
      %v2081 = vpop.f32.mrb[0].mxu0
      %2082 = vmatprep.mubr.f32.mxu0 0.0
      %2083 = vmatmul.mubr.f32.gmra.mrb[0].mxu0 %v1958
      %v2084 = vpop.f32.mrb[0].mxu0
      %v2085 = vadd.f32 0.0, %v2084
      %v2086 = vpop.f32.mrb[0].mxu0
      %2087 = vmatprep.mubr.f32.mxu0 0.0
      %2088 = vmatmul.mubr.f32.gmra.mrb[0].mxu0 %v1961
      %v2089 = vpop.f32.mrb[0].mxu0
      %v2090 = vadd.f32 0.0, %v2089
      %v2091 = vpop.f32.mrb[0].mxu0
      %2092 = vmatprep.mubr.f32.mxu0 0.0
      %2093 = vmatmul.mubr.f32.gmra.mrb[0].mxu0 %v1964
      %v2094 = vpop.f32.mrb[0].mxu0
      %v2095 = vadd.f32 0.0, %v2094
      %v2096 = vpop.f32.mrb[0].mxu0
      %2097 = vmatprep.mubr.f32.mxu0 0.0
      %2098 = vmatmul.mubr.f32.gmra.mrb[0].mxu0 %v1967
      %v2099 = vpop.f32.mrb[0].mxu0
      %v2100 = vadd.f32 0.0, %v2099
      %v2101 = vpop.f32.mrb[0].mxu0
      %2102 = vmatprep.mubr.f32.mxu0 0.0
      %2103 = vmatmul.mubr.f32.gmra.mrb[0].mxu0 %v1970
      %v2104 = vpop.f32.mrb[0].mxu0
      %v2105 = vadd.f32 0.0, %v2104
      %v2106 = vpop.f32.mrb[0].mxu0
      %2107 = vmatprep.mubr.f32.mxu0 0.0
      %2108 = vmatmul.mubr.f32.gmra.mrb[0].mxu0 %v1973
      %v2109 = vpop.f32.mrb[0].mxu0
      %v2110 = vadd.f32 0.0, %v2109
      %v2111 = vpop.f32.mrb[0].mxu0
      %2112 = vmatprep.mubr.f32.mxu0 0.0
      %2113 = vmatmul.mubr.f32.gmra.mrb[0].mxu0 %v1976
      %v2114 = vpop.f32.mrb[0].mxu0
      %v2115 = vadd.f32 0.0, %v2114
      %v2116 = vpop.f32.mrb[0].mxu0
      %2117 = vmatprep.mubr.f32.mxu0 0.0
      %2118 = vmatmul.mubr.f32.gmra.mrb[0].mxu0 %v1979
      %v2119 = vpop.f32.mrb[0].mxu0
      %v2120 = vadd.f32 0.0, %v2119
      %v2121 = vpop.f32.mrb[0].mxu0
      %2122 = vmatprep.mubr.f32.mxu0 0.0
      %2123 = vmatmul.mubr.f32.gmra.mrb[0].mxu0 %v1982
      %v2124 = vpop.f32.mrb[0].mxu0
      %v2125 = vadd.f32 0.0, %v2124
      %v2126 = vpop.f32.mrb[0].mxu0
      %2127 = vmatprep.mubr.f32.mxu0 0.0
      %2128 = vmatmul.mubr.f32.gmra.mrb[0].mxu0 %v1985
      %v2129 = vpop.f32.mrb[0].mxu0
      %v2130 = vadd.f32 0.0, %v2129
      %v2131 = vpop.f32.mrb[0].mxu0
      %2132 = vmatprep.mubr.f32.mxu0 0.0
      %2133 = vmatmul.mubr.f32.gmra.mrb[0].mxu0 %v1988
      %v2134 = vpop.f32.mrb[0].mxu0
      %v2135 = vadd.f32 0.0, %v2134
      %v2136 = vpop.f32.mrb[0].mxu0
      %2137 = vdwg.mxu0
      %v2138 = vadd.f32 %v1906, %v2060
      %v2139 = vadd.f32 %v1907, %v2065
      %v2140 = vadd.f32 %v1908, %v2070
      %v2141 = vadd.f32 %v1909, %v2075
      %v2142 = vadd.f32 %v1910, %v2080
      %v2143 = vadd.f32 %v1911, %v2085
      %v2144 = vadd.f32 %v1912, %v2090
      %v2145 = vadd.f32 %v1913, %v2095
      %v2146 = vadd.f32 %v1914, %v2100
      %v2147 = vadd.f32 %v1915, %v2105
      %v2148 = vadd.f32 %v1916, %v2110
      %v2149 = vadd.f32 %v1917, %v2115
      %v2150 = vadd.f32 %v1918, %v2120
      %v2151 = vadd.f32 %v1919, %v2125
      %v2152 = vadd.f32 %v1920, %v2130
      %v2153 = vadd.f32 %v1921, %v2135
      %v2154 = vld [vmem:[%s210 + $0x32] sm:$0xff]
      %v2155 = vld [vmem:[%s210 + $0x3a] sm:$0xff]
      %v2156 = vld [vmem:[%s210 + $0x42] sm:$0xff]
      %v2157 = vld [vmem:[%s210 + $0x4a] sm:$0xff]
      %v2158 = vld [vmem:[%s210 + $0x52] sm:$0xff]
      %v2159 = vld [vmem:[%s210 + $0x5a] sm:$0xff]
      %v2160 = vld [vmem:[%s210 + $0x62] sm:$0xff]
      %v2161 = vld [vmem:[%s210 + $0x6a] sm:$0xff]
      %v2162 = vld [vmem:[%s210 + $0x72] sm:$0xff]
      %v2163 = vld [vmem:[%s210 + $0x7a] sm:$0xff]
      %v2164 = vld [vmem:[%s210 + $0x82] sm:$0xff]
      %v2165 = vld [vmem:[%s210 + $0x8a] sm:$0xff]
      %v2166 = vld [vmem:[%s210 + $0x92] sm:$0xff]
      %v2167 = vld [vmem:[%s210 + $0x9a] sm:$0xff]
      %v2168 = vld [vmem:[%s210 + $0xa2] sm:$0xff]
      %v2169 = vld [vmem:[%s210 + $0xaa] sm:$0xff]
      %s2170 = sadd.s32 %s312, 8
      %s2171 = smul.u32 %s2170, 4
      %s2172 = scalar_lea.vmem %s1, %s2171
      %v2173 = vld [vmem:[%s2172] sm:$0xf]
      %v2175 = vsel %vm316, %v2154, 0
      %v2178 = vsel %vm316, %v2155, 0
      %v2181 = vsel %vm316, %v2156, 0
      %v2184 = vsel %vm316, %v2157, 0
      %v2187 = vsel %vm316, %v2158, 0
      %v2190 = vsel %vm316, %v2159, 0
      %v2193 = vsel %vm316, %v2160, 0
      %v2196 = vsel %vm316, %v2161, 0
      %v2199 = vsel %vm316, %v2162, 0
      %v2202 = vsel %vm316, %v2163, 0
      %v2205 = vsel %vm316, %v2164, 0
      %v2208 = vsel %vm316, %v2165, 0
      %v2211 = vsel %vm316, %v2166, 0
      %v2214 = vsel %vm316, %v2167, 0
      %v2217 = vsel %vm316, %v2168, 0
      %v2220 = vsel %vm316, %v2169, 0
      %v2223 = vsel %vm365, %v2173, 0
      %2225 = vmatprep.subr.mxu0 0.0
      %2226 = vmatpush1.msra.mxu0 %v2223
      %2227 = vmatprep.subr.mxu0 0.0
      %2228 = vmatpush1.msra.mxu0 0.0
      %2229 = vmatprep.subr.mxu0 0.0
      %2230 = vmatpush1.msra.mxu0 0.0
      %2231 = vmatprep.subr.mxu0 0.0
      %2232 = vmatpush1.msra.mxu0 0.0
      %2233 = vmatprep.subr.mxu0 0.0
      %2234 = vmatpush1.msra.mxu0 0.0
      %2235 = vmatprep.subr.mxu0 0.0
      %2236 = vmatpush1.msra.mxu0 0.0
      %2237 = vmatprep.subr.mxu0 0.0
      %2238 = vmatpush1.msra.mxu0 0.0
      %2239 = vmatprep.subr.mxu0 0.0
      %2240 = vmatpush1.msra.mxu0 0.0
      %2241 = vmatprep.subr.mxu0 0.0
      %2242 = vmatpush1.msra.mxu0 0.0
      %2243 = vmatprep.subr.mxu0 0.0
      %2244 = vmatpush1.msra.mxu0 0.0
      %2245 = vmatprep.subr.mxu0 0.0
      %2246 = vmatpush1.msra.mxu0 0.0
      %2247 = vmatprep.subr.mxu0 0.0
      %2248 = vmatpush1.msra.mxu0 0.0
      %2249 = vmatprep.subr.mxu0 0.0
      %2250 = vmatpush1.msra.mxu0 0.0
      %2251 = vmatprep.subr.mxu0 0.0
      %2252 = vmatpush1.msra.mxu0 0.0
      %2253 = vmatprep.subr.mxu0 0.0
      %2254 = vmatpush1.msra.mxu0 0.0
      %2255 = vmatprep.subr.mxu0 0.0
      %2256 = vmatpush1.msra.mxu0 0.0
      %2257 = vmatprep.subr.mxu0 0.0
      %2258 = vmatpush1.msra.mxu0 0.0
      %2259 = vmatprep.subr.mxu0 0.0
      %2260 = vmatpush1.msra.mxu0 0.0
      %2261 = vmatprep.subr.mxu0 0.0
      %2262 = vmatpush1.msra.mxu0 0.0
      %2263 = vmatprep.subr.mxu0 0.0
      %2264 = vmatpush1.msra.mxu0 0.0
      %2265 = vmatprep.subr.mxu0 0.0
      %2266 = vmatpush1.msra.mxu0 0.0
      %2267 = vmatprep.subr.mxu0 0.0
      %2268 = vmatpush1.msra.mxu0 0.0
      %2269 = vmatprep.subr.mxu0 0.0
      %2270 = vmatpush1.msra.mxu0 0.0
      %2271 = vmatprep.subr.mxu0 0.0
      %2272 = vmatpush1.msra.mxu0 0.0
      %2273 = vmatprep.subr.mxu0 0.0
      %2274 = vmatpush1.msra.mxu0 0.0
      %2275 = vmatprep.subr.mxu0 0.0
      %2276 = vmatpush1.msra.mxu0 0.0
      %2277 = vmatprep.subr.mxu0 0.0
      %2278 = vmatpush1.msra.mxu0 0.0
      %2279 = vmatprep.subr.mxu0 0.0
      %2280 = vmatpush1.msra.mxu0 0.0
      %2281 = vmatprep.subr.mxu0 0.0
      %2282 = vmatpush1.msra.mxu0 0.0
      %2283 = vmatprep.subr.mxu0 0.0
      %2284 = vmatpush1.msra.mxu0 0.0
      %2285 = vmatprep.subr.mxu0 0.0
      %2286 = vmatpush1.msra.mxu0 0.0
      %2287 = vmatprep.subr.mxu0 0.0
      %2288 = vmatpush1.msra.mxu0 0.0
      %2289 = vmatprep.mubr.f32.mxu0 0.0
      %2290 = vmatmul.mubr.f32.gmra.mrb[0].mxu0 %v2175
      %v2291 = vpop.f32.mrb[0].mxu0
      %v2292 = vadd.f32 0.0, %v2291
      %v2293 = vpop.f32.mrb[0].mxu0
      %2294 = vmatprep.mubr.f32.mxu0 0.0
      %2295 = vmatmul.mubr.f32.gmra.mrb[0].mxu0 %v2178
      %v2296 = vpop.f32.mrb[0].mxu0
      %v2297 = vadd.f32 0.0, %v2296
      %v2298 = vpop.f32.mrb[0].mxu0
      %2299 = vmatprep.mubr.f32.mxu0 0.0
      %2300 = vmatmul.mubr.f32.gmra.mrb[0].mxu0 %v2181
      %v2301 = vpop.f32.mrb[0].mxu0
      %v2302 = vadd.f32 0.0, %v2301
      %v2303 = vpop.f32.mrb[0].mxu0
      %2304 = vmatprep.mubr.f32.mxu0 0.0
      %2305 = vmatmul.mubr.f32.gmra.mrb[0].mxu0 %v2184
      %v2306 = vpop.f32.mrb[0].mxu0
      %v2307 = vadd.f32 0.0, %v2306
      %v2308 = vpop.f32.mrb[0].mxu0
      %2309 = vmatprep.mubr.f32.mxu0 0.0
      %2310 = vmatmul.mubr.f32.gmra.mrb[0].mxu0 %v2187
      %v2311 = vpop.f32.mrb[0].mxu0
      %v2312 = vadd.f32 0.0, %v2311
      %v2313 = vpop.f32.mrb[0].mxu0
      %2314 = vmatprep.mubr.f32.mxu0 0.0
      %2315 = vmatmul.mubr.f32.gmra.mrb[0].mxu0 %v2190
      %v2316 = vpop.f32.mrb[0].mxu0
      %v2317 = vadd.f32 0.0, %v2316
      %v2318 = vpop.f32.mrb[0].mxu0
      %2319 = vmatprep.mubr.f32.mxu0 0.0
      %2320 = vmatmul.mubr.f32.gmra.mrb[0].mxu0 %v2193
      %v2321 = vpop.f32.mrb[0].mxu0
      %v2322 = vadd.f32 0.0, %v2321
      %v2323 = vpop.f32.mrb[0].mxu0
      %2324 = vmatprep.mubr.f32.mxu0 0.0
      %2325 = vmatmul.mubr.f32.gmra.mrb[0].mxu0 %v2196
      %v2326 = vpop.f32.mrb[0].mxu0
      %v2327 = vadd.f32 0.0, %v2326
      %v2328 = vpop.f32.mrb[0].mxu0
      %2329 = vmatprep.mubr.f32.mxu0 0.0
      %2330 = vmatmul.mubr.f32.gmra.mrb[0].mxu0 %v2199
      %v2331 = vpop.f32.mrb[0].mxu0
      %v2332 = vadd.f32 0.0, %v2331
      %v2333 = vpop.f32.mrb[0].mxu0
      %2334 = vmatprep.mubr.f32.mxu0 0.0
      %2335 = vmatmul.mubr.f32.gmra.mrb[0].mxu0 %v2202
      %v2336 = vpop.f32.mrb[0].mxu0
      %v2337 = vadd.f32 0.0, %v2336
      %v2338 = vpop.f32.mrb[0].mxu0
      %2339 = vmatprep.mubr.f32.mxu0 0.0
      %2340 = vmatmul.mubr.f32.gmra.mrb[0].mxu0 %v2205
      %v2341 = vpop.f32.mrb[0].mxu0
      %v2342 = vadd.f32 0.0, %v2341
      %v2343 = vpop.f32.mrb[0].mxu0
      %2344 = vmatprep.mubr.f32.mxu0 0.0
      %2345 = vmatmul.mubr.f32.gmra.mrb[0].mxu0 %v2208
      %v2346 = vpop.f32.mrb[0].mxu0
      %v2347 = vadd.f32 0.0, %v2346
      %v2348 = vpop.f32.mrb[0].mxu0
      %2349 = vmatprep.mubr.f32.mxu0 0.0
      %2350 = vmatmul.mubr.f32.gmra.mrb[0].mxu0 %v2211
      %v2351 = vpop.f32.mrb[0].mxu0
      %v2352 = vadd.f32 0.0, %v2351
      %v2353 = vpop.f32.mrb[0].mxu0
      %2354 = vmatprep.mubr.f32.mxu0 0.0
      %2355 = vmatmul.mubr.f32.gmra.mrb[0].mxu0 %v2214
      %v2356 = vpop.f32.mrb[0].mxu0
      %v2357 = vadd.f32 0.0, %v2356
      %v2358 = vpop.f32.mrb[0].mxu0
      %2359 = vmatprep.mubr.f32.mxu0 0.0
      %2360 = vmatmul.mubr.f32.gmra.mrb[0].mxu0 %v2217
      %v2361 = vpop.f32.mrb[0].mxu0
      %v2362 = vadd.f32 0.0, %v2361
      %v2363 = vpop.f32.mrb[0].mxu0
      %2364 = vmatprep.mubr.f32.mxu0 0.0
      %2365 = vmatmul.mubr.f32.gmra.mrb[0].mxu0 %v2220
      %v2366 = vpop.f32.mrb[0].mxu0
      %v2367 = vadd.f32 0.0, %v2366
      %v2368 = vpop.f32.mrb[0].mxu0
      %2369 = vdwg.mxu0
      %v2370 = vadd.f32 %v2138, %v2292
      %v2371 = vadd.f32 %v2139, %v2297
      %v2372 = vadd.f32 %v2140, %v2302
      %v2373 = vadd.f32 %v2141, %v2307
      %v2374 = vadd.f32 %v2142, %v2312
      %v2375 = vadd.f32 %v2143, %v2317
      %v2376 = vadd.f32 %v2144, %v2322
      %v2377 = vadd.f32 %v2145, %v2327
      %v2378 = vadd.f32 %v2146, %v2332
      %v2379 = vadd.f32 %v2147, %v2337
      %v2380 = vadd.f32 %v2148, %v2342
      %v2381 = vadd.f32 %v2149, %v2347
      %v2382 = vadd.f32 %v2150, %v2352
      %v2383 = vadd.f32 %v2151, %v2357
      %v2384 = vadd.f32 %v2152, %v2362
      %v2385 = vadd.f32 %v2153, %v2367
      %p2386 = scmp.eq.s32.totalorder %s21, 2
      // Predicated region
      $region37: #{upsample_forward.1} parent=31 // pred_check
        %p2387 = pneg %p2386
      $region38: #{upsample_forward.1} parent=31 // pred_check_branch
        %2389 = sbr.rel (%p2387) target = $region40
      $region39: #{upsample_forward.1} parent=31 // pred_region
        %2390 = vst [vmem:[%s220] sm:$0xff] %v2370
        %2391 = vst [vmem:[%s220 + $0x8] sm:$0xff] %v2371
        %2392 = vst [vmem:[%s220 + $0x10] sm:$0xff] %v2372
        %2393 = vst [vmem:[%s220 + $0x18] sm:$0xff] %v2373
        %2394 = vst [vmem:[%s220 + $0x20] sm:$0xff] %v2374
        %2395 = vst [vmem:[%s220 + $0x28] sm:$0xff] %v2375
        %2396 = vst [vmem:[%s220 + $0x30] sm:$0xff] %v2376
        %2397 = vst [vmem:[%s220 + $0x38] sm:$0xff] %v2377
        %2398 = vst [vmem:[%s220 + $0x40] sm:$0xff] %v2378
        %2399 = vst [vmem:[%s220 + $0x48] sm:$0xff] %v2379
        %2400 = vst [vmem:[%s220 + $0x50] sm:$0xff] %v2380
        %2401 = vst [vmem:[%s220 + $0x58] sm:$0xff] %v2381
        %2402 = vst [vmem:[%s220 + $0x60] sm:$0xff] %v2382
        %2403 = vst [vmem:[%s220 + $0x68] sm:$0xff] %v2383
        %2404 = vst [vmem:[%s220 + $0x70] sm:$0xff] %v2384
        %2405 = vst [vmem:[%s220 + $0x78] sm:$0xff] %v2385
      $region40: #{upsample_forward.1} parent=31 // pred_fallthru
        _
      %p2406 = scmp.lt.s32.totalorder %s21, 2
      // Predicated region
      $region41: #{upsample_forward.1} parent=31 // pred_check
        %p2407 = pneg %p2406
      $region42: #{upsample_forward.1} parent=31 // pred_check_branch
        %2409 = sbr.rel (%p2407) target = $region44
      $region43: #{upsample_forward.1} parent=31 // pred_region
        %2410 = vst [vmem:[#allocation2] sm:$0xff] %v2370
        %2411 = vst [vmem:[#allocation2 + $0x8] sm:$0xff] %v2371
        %2412 = vst [vmem:[#allocation2 + $0x10] sm:$0xff] %v2372
        %2413 = vst [vmem:[#allocation2 + $0x18] sm:$0xff] %v2373
        %2414 = vst [vmem:[#allocation2 + $0x20] sm:$0xff] %v2374
        %2415 = vst [vmem:[#allocation2 + $0x28] sm:$0xff] %v2375
        %2416 = vst [vmem:[#allocation2 + $0x30] sm:$0xff] %v2376
        %2417 = vst [vmem:[#allocation2 + $0x38] sm:$0xff] %v2377
        %2418 = vst [vmem:[#allocation2 + $0x40] sm:$0xff] %v2378
        %2419 = vst [vmem:[#allocation2 + $0x48] sm:$0xff] %v2379
        %2420 = vst [vmem:[#allocation2 + $0x50] sm:$0xff] %v2380
        %2421 = vst [vmem:[#allocation2 + $0x58] sm:$0xff] %v2381
        %2422 = vst [vmem:[#allocation2 + $0x60] sm:$0xff] %v2382
        %2423 = vst [vmem:[#allocation2 + $0x68] sm:$0xff] %v2383
        %2424 = vst [vmem:[#allocation2 + $0x70] sm:$0xff] %v2384
        %2425 = vst [vmem:[#allocation2 + $0x78] sm:$0xff] %v2385
      $region44: #{upsample_forward.1} parent=31 // pred_fallthru
        _
      %v2426 = vld [vmem:[#allocation2 + $0x80] sm:$0xff]
      %v2427 = vld [vmem:[#allocation2 + $0x88] sm:$0xff]
      %v2428 = vld [vmem:[#allocation2 + $0x90] sm:$0xff]
      %v2429 = vld [vmem:[#allocation2 + $0x98] sm:$0xff]
      %v2430 = vld [vmem:[#allocation2 + $0xa0] sm:$0xff]
      %v2431 = vld [vmem:[#allocation2 + $0xa8] sm:$0xff]
      %v2432 = vld [vmem:[#allocation2 + $0xb0] sm:$0xff]
      %v2433 = vld [vmem:[#allocation2 + $0xb8] sm:$0xff]
      %v2434 = vld [vmem:[#allocation2 + $0xc0] sm:$0xff]
      %v2435 = vld [vmem:[#allocation2 + $0xc8] sm:$0xff]
      %v2436 = vld [vmem:[#allocation2 + $0xd0] sm:$0xff]
      %v2437 = vld [vmem:[#allocation2 + $0xd8] sm:$0xff]
      %v2438 = vld [vmem:[#allocation2 + $0xe0] sm:$0xff]
      %v2439 = vld [vmem:[#allocation2 + $0xe8] sm:$0xff]
      %v2440 = vld [vmem:[#allocation2 + $0xf0] sm:$0xff]
      %v2441 = vld [vmem:[#allocation2 + $0xf8] sm:$0xff]
      %v2442 = vld [vmem:[%s210 + $0x80] sm:$0xff]
      %v2443 = vld [vmem:[%s210 + $0x88] sm:$0xff]
      %v2444 = vld [vmem:[%s210 + $0x90] sm:$0xff]
      %v2445 = vld [vmem:[%s210 + $0x98] sm:$0xff]
      %v2446 = vld [vmem:[%s210 + $0xa0] sm:$0xff]
      %v2447 = vld [vmem:[%s210 + $0xa8] sm:$0xff]
      %v2448 = vld [vmem:[%s210 + $0xb0] sm:$0xff]
      %v2449 = vld [vmem:[%s210 + $0xb8] sm:$0xff]
      %v2450 = vld [vmem:[%s210 + $0xc0] sm:$0xff]
      %v2451 = vld [vmem:[%s210 + $0xc8] sm:$0xff]
      %v2452 = vld [vmem:[%s210 + $0xd0] sm:$0xff]
      %v2453 = vld [vmem:[%s210 + $0xd8] sm:$0xff]
      %v2454 = vld [vmem:[%s210 + $0xe0] sm:$0xff]
      %v2455 = vld [vmem:[%s210 + $0xe8] sm:$0xff]
      %v2456 = vld [vmem:[%s210 + $0xf0] sm:$0xff]
      %v2457 = vld [vmem:[%s210 + $0xf8] sm:$0xff]
      %v2458 = vld [vmem:[%s314] sm:$0xf]
      %v2460 = vsel %vm316, %v2442, 0
      %v2463 = vsel %vm316, %v2443, 0
      %v2466 = vsel %vm316, %v2444, 0
      %v2469 = vsel %vm316, %v2445, 0
      %v2472 = vsel %vm316, %v2446, 0
      %v2475 = vsel %vm316, %v2447, 0
      %v2478 = vsel %vm316, %v2448, 0
      %v2481 = vsel %vm316, %v2449, 0
      %v2484 = vsel %vm316, %v2450, 0
      %v2487 = vsel %vm316, %v2451, 0
      %v2490 = vsel %vm316, %v2452, 0
      %v2493 = vsel %vm316, %v2453, 0
      %v2496 = vsel %vm316, %v2454, 0
      %v2499 = vsel %vm316, %v2455, 0
      %v2502 = vsel %vm316, %v2456, 0
      %v2505 = vsel %vm316, %v2457, 0
      %v2508 = vsel %vm365, %v2458, 0
      %2510 = vmatprep.subr.mxu0 0.0
      %2511 = vmatpush1.msra.mxu0 %v2508
      %2512 = vmatprep.subr.mxu0 0.0
      %2513 = vmatpush1.msra.mxu0 0.0
      %2514 = vmatprep.subr.mxu0 0.0
      %2515 = vmatpush1.msra.mxu0 0.0
      %2516 = vmatprep.subr.mxu0 0.0
      %2517 = vmatpush1.msra.mxu0 0.0
      %2518 = vmatprep.subr.mxu0 0.0
      %2519 = vmatpush1.msra.mxu0 0.0
      %2520 = vmatprep.subr.mxu0 0.0
      %2521 = vmatpush1.msra.mxu0 0.0
      %2522 = vmatprep.subr.mxu0 0.0
      %2523 = vmatpush1.msra.mxu0 0.0
      %2524 = vmatprep.subr.mxu0 0.0
      %2525 = vmatpush1.msra.mxu0 0.0
      %2526 = vmatprep.subr.mxu0 0.0
      %2527 = vmatpush1.msra.mxu0 0.0
      %2528 = vmatprep.subr.mxu0 0.0
      %2529 = vmatpush1.msra.mxu0 0.0
      %2530 = vmatprep.subr.mxu0 0.0
      %2531 = vmatpush1.msra.mxu0 0.0
      %2532 = vmatprep.subr.mxu0 0.0
      %2533 = vmatpush1.msra.mxu0 0.0
      %2534 = vmatprep.subr.mxu0 0.0
      %2535 = vmatpush1.msra.mxu0 0.0
      %2536 = vmatprep.subr.mxu0 0.0
      %2537 = vmatpush1.msra.mxu0 0.0
      %2538 = vmatprep.subr.mxu0 0.0
      %2539 = vmatpush1.msra.mxu0 0.0
      %2540 = vmatprep.subr.mxu0 0.0
      %2541 = vmatpush1.msra.mxu0 0.0
      %2542 = vmatprep.subr.mxu0 0.0
      %2543 = vmatpush1.msra.mxu0 0.0
      %2544 = vmatprep.subr.mxu0 0.0
      %2545 = vmatpush1.msra.mxu0 0.0
      %2546 = vmatprep.subr.mxu0 0.0
      %2547 = vmatpush1.msra.mxu0 0.0
      %2548 = vmatprep.subr.mxu0 0.0
      %2549 = vmatpush1.msra.mxu0 0.0
      %2550 = vmatprep.subr.mxu0 0.0
      %2551 = vmatpush1.msra.mxu0 0.0
      %2552 = vmatprep.subr.mxu0 0.0
      %2553 = vmatpush1.msra.mxu0 0.0
      %2554 = vmatprep.subr.mxu0 0.0
      %2555 = vmatpush1.msra.mxu0 0.0
      %2556 = vmatprep.subr.mxu0 0.0
      %2557 = vmatpush1.msra.mxu0 0.0
      %2558 = vmatprep.subr.mxu0 0.0
      %2559 = vmatpush1.msra.mxu0 0.0
      %2560 = vmatprep.subr.mxu0 0.0
      %2561 = vmatpush1.msra.mxu0 0.0
      %2562 = vmatprep.subr.mxu0 0.0
      %2563 = vmatpush1.msra.mxu0 0.0
      %2564 = vmatprep.subr.mxu0 0.0
      %2565 = vmatpush1.msra.mxu0 0.0
      %2566 = vmatprep.subr.mxu0 0.0
      %2567 = vmatpush1.msra.mxu0 0.0
      %2568 = vmatprep.subr.mxu0 0.0
      %2569 = vmatpush1.msra.mxu0 0.0
      %2570 = vmatprep.subr.mxu0 0.0
      %2571 = vmatpush1.msra.mxu0 0.0
      %2572 = vmatprep.subr.mxu0 0.0
      %2573 = vmatpush1.msra.mxu0 0.0
      %2574 = vmatprep.mubr.f32.mxu0 0.0
      %2575 = vmatmul.mubr.f32.gmra.mrb[0].mxu0 %v2460
      %v2576 = vpop.f32.mrb[0].mxu0
      %v2577 = vadd.f32 0.0, %v2576
      %v2578 = vpop.f32.mrb[0].mxu0
      %2579 = vmatprep.mubr.f32.mxu0 0.0
      %2580 = vmatmul.mubr.f32.gmra.mrb[0].mxu0 %v2463
      %v2581 = vpop.f32.mrb[0].mxu0
      %v2582 = vadd.f32 0.0, %v2581
      %v2583 = vpop.f32.mrb[0].mxu0
      %2584 = vmatprep.mubr.f32.mxu0 0.0
      %2585 = vmatmul.mubr.f32.gmra.mrb[0].mxu0 %v2466
      %v2586 = vpop.f32.mrb[0].mxu0
      %v2587 = vadd.f32 0.0, %v2586
      %v2588 = vpop.f32.mrb[0].mxu0
      %2589 = vmatprep.mubr.f32.mxu0 0.0
      %2590 = vmatmul.mubr.f32.gmra.mrb[0].mxu0 %v2469
      %v2591 = vpop.f32.mrb[0].mxu0
      %v2592 = vadd.f32 0.0, %v2591
      %v2593 = vpop.f32.mrb[0].mxu0
      %2594 = vmatprep.mubr.f32.mxu0 0.0
      %2595 = vmatmul.mubr.f32.gmra.mrb[0].mxu0 %v2472
      %v2596 = vpop.f32.mrb[0].mxu0
      %v2597 = vadd.f32 0.0, %v2596
      %v2598 = vpop.f32.mrb[0].mxu0
      %2599 = vmatprep.mubr.f32.mxu0 0.0
      %2600 = vmatmul.mubr.f32.gmra.mrb[0].mxu0 %v2475
      %v2601 = vpop.f32.mrb[0].mxu0
      %v2602 = vadd.f32 0.0, %v2601
      %v2603 = vpop.f32.mrb[0].mxu0
      %2604 = vmatprep.mubr.f32.mxu0 0.0
      %2605 = vmatmul.mubr.f32.gmra.mrb[0].mxu0 %v2478
      %v2606 = vpop.f32.mrb[0].mxu0
      %v2607 = vadd.f32 0.0, %v2606
      %v2608 = vpop.f32.mrb[0].mxu0
      %2609 = vmatprep.mubr.f32.mxu0 0.0
      %2610 = vmatmul.mubr.f32.gmra.mrb[0].mxu0 %v2481
      %v2611 = vpop.f32.mrb[0].mxu0
      %v2612 = vadd.f32 0.0, %v2611
      %v2613 = vpop.f32.mrb[0].mxu0
      %2614 = vmatprep.mubr.f32.mxu0 0.0
      %2615 = vmatmul.mubr.f32.gmra.mrb[0].mxu0 %v2484
      %v2616 = vpop.f32.mrb[0].mxu0
      %v2617 = vadd.f32 0.0, %v2616
      %v2618 = vpop.f32.mrb[0].mxu0
      %2619 = vmatprep.mubr.f32.mxu0 0.0
      %2620 = vmatmul.mubr.f32.gmra.mrb[0].mxu0 %v2487
      %v2621 = vpop.f32.mrb[0].mxu0
      %v2622 = vadd.f32 0.0, %v2621
      %v2623 = vpop.f32.mrb[0].mxu0
      %2624 = vmatprep.mubr.f32.mxu0 0.0
      %2625 = vmatmul.mubr.f32.gmra.mrb[0].mxu0 %v2490
      %v2626 = vpop.f32.mrb[0].mxu0
      %v2627 = vadd.f32 0.0, %v2626
      %v2628 = vpop.f32.mrb[0].mxu0
      %2629 = vmatprep.mubr.f32.mxu0 0.0
      %2630 = vmatmul.mubr.f32.gmra.mrb[0].mxu0 %v2493
      %v2631 = vpop.f32.mrb[0].mxu0
      %v2632 = vadd.f32 0.0, %v2631
      %v2633 = vpop.f32.mrb[0].mxu0
      %2634 = vmatprep.mubr.f32.mxu0 0.0
      %2635 = vmatmul.mubr.f32.gmra.mrb[0].mxu0 %v2496
      %v2636 = vpop.f32.mrb[0].mxu0
      %v2637 = vadd.f32 0.0, %v2636
      %v2638 = vpop.f32.mrb[0].mxu0
      %2639 = vmatprep.mubr.f32.mxu0 0.0
      %2640 = vmatmul.mubr.f32.gmra.mrb[0].mxu0 %v2499
      %v2641 = vpop.f32.mrb[0].mxu0
      %v2642 = vadd.f32 0.0, %v2641
      %v2643 = vpop.f32.mrb[0].mxu0
      %2644 = vmatprep.mubr.f32.mxu0 0.0
      %2645 = vmatmul.mubr.f32.gmra.mrb[0].mxu0 %v2502
      %v2646 = vpop.f32.mrb[0].mxu0
      %v2647 = vadd.f32 0.0, %v2646
      %v2648 = vpop.f32.mrb[0].mxu0
      %2649 = vmatprep.mubr.f32.mxu0 0.0
      %2650 = vmatmul.mubr.f32.gmra.mrb[0].mxu0 %v2505
      %v2651 = vpop.f32.mrb[0].mxu0
      %v2652 = vadd.f32 0.0, %v2651
      %v2653 = vpop.f32.mrb[0].mxu0
      %2654 = vdwg.mxu0
      %v2655 = vadd.f32 %v2426, %v2577
      %v2656 = vadd.f32 %v2427, %v2582
      %v2657 = vadd.f32 %v2428, %v2587
      %v2658 = vadd.f32 %v2429, %v2592
      %v2659 = vadd.f32 %v2430, %v2597
      %v2660 = vadd.f32 %v2431, %v2602
      %v2661 = vadd.f32 %v2432, %v2607
      %v2662 = vadd.f32 %v2433, %v2612
      %v2663 = vadd.f32 %v2434, %v2617
      %v2664 = vadd.f32 %v2435, %v2622
      %v2665 = vadd.f32 %v2436, %v2627
      %v2666 = vadd.f32 %v2437, %v2632
      %v2667 = vadd.f32 %v2438, %v2637
      %v2668 = vadd.f32 %v2439, %v2642
      %v2669 = vadd.f32 %v2440, %v2647
      %v2670 = vadd.f32 %v2441, %v2652
      %v2671 = vld [vmem:[%s210 + $0x81] sm:$0xff]
      %v2672 = vld [vmem:[%s210 + $0x89] sm:$0xff]
      %v2673 = vld [vmem:[%s210 + $0x91] sm:$0xff]
      %v2674 = vld [vmem:[%s210 + $0x99] sm:$0xff]
      %v2675 = vld [vmem:[%s210 + $0xa1] sm:$0xff]
      %v2676 = vld [vmem:[%s210 + $0xa9] sm:$0xff]
      %v2677 = vld [vmem:[%s210 + $0xb1] sm:$0xff]
      %v2678 = vld [vmem:[%s210 + $0xb9] sm:$0xff]
      %v2679 = vld [vmem:[%s210 + $0xc1] sm:$0xff]
      %v2680 = vld [vmem:[%s210 + $0xc9] sm:$0xff]
      %v2681 = vld [vmem:[%s210 + $0xd1] sm:$0xff]
      %v2682 = vld [vmem:[%s210 + $0xd9] sm:$0xff]
      %v2683 = vld [vmem:[%s210 + $0xe1] sm:$0xff]
      %v2684 = vld [vmem:[%s210 + $0xe9] sm:$0xff]
      %v2685 = vld [vmem:[%s210 + $0xf1] sm:$0xff]
      %v2686 = vld [vmem:[%s210 + $0xf9] sm:$0xff]
      %v2687 = vld [vmem:[%s548] sm:$0xf]
      %v2689 = vsel %vm316, %v2671, 0
      %v2692 = vsel %vm316, %v2672, 0
      %v2695 = vsel %vm316, %v2673, 0
      %v2698 = vsel %vm316, %v2674, 0
      %v2701 = vsel %vm316, %v2675, 0
      %v2704 = vsel %vm316, %v2676, 0
      %v2707 = vsel %vm316, %v2677, 0
      %v2710 = vsel %vm316, %v2678, 0
      %v2713 = vsel %vm316, %v2679, 0
      %v2716 = vsel %vm316, %v2680, 0
      %v2719 = vsel %vm316, %v2681, 0
      %v2722 = vsel %vm316, %v2682, 0
      %v2725 = vsel %vm316, %v2683, 0
      %v2728 = vsel %vm316, %v2684, 0
      %v2731 = vsel %vm316, %v2685, 0
      %v2734 = vsel %vm316, %v2686, 0
      %v2737 = vsel %vm365, %v2687, 0
      %2739 = vmatprep.subr.mxu0 0.0
      %2740 = vmatpush1.msra.mxu0 %v2737
      %2741 = vmatprep.subr.mxu0 0.0
      %2742 = vmatpush1.msra.mxu0 0.0
      %2743 = vmatprep.subr.mxu0 0.0
      %2744 = vmatpush1.msra.mxu0 0.0
      %2745 = vmatprep.subr.mxu0 0.0
      %2746 = vmatpush1.msra.mxu0 0.0
      %2747 = vmatprep.subr.mxu0 0.0
      %2748 = vmatpush1.msra.mxu0 0.0
      %2749 = vmatprep.subr.mxu0 0.0
      %2750 = vmatpush1.msra.mxu0 0.0
      %2751 = vmatprep.subr.mxu0 0.0
      %2752 = vmatpush1.msra.mxu0 0.0
      %2753 = vmatprep.subr.mxu0 0.0
      %2754 = vmatpush1.msra.mxu0 0.0
      %2755 = vmatprep.subr.mxu0 0.0
      %2756 = vmatpush1.msra.mxu0 0.0
      %2757 = vmatprep.subr.mxu0 0.0
      %2758 = vmatpush1.msra.mxu0 0.0
      %2759 = vmatprep.subr.mxu0 0.0
      %2760 = vmatpush1.msra.mxu0 0.0
      %2761 = vmatprep.subr.mxu0 0.0
      %2762 = vmatpush1.msra.mxu0 0.0
      %2763 = vmatprep.subr.mxu0 0.0
      %2764 = vmatpush1.msra.mxu0 0.0
      %2765 = vmatprep.subr.mxu0 0.0
      %2766 = vmatpush1.msra.mxu0 0.0
      %2767 = vmatprep.subr.mxu0 0.0
      %2768 = vmatpush1.msra.mxu0 0.0
      %2769 = vmatprep.subr.mxu0 0.0
      %2770 = vmatpush1.msra.mxu0 0.0
      %2771 = vmatprep.subr.mxu0 0.0
      %2772 = vmatpush1.msra.mxu0 0.0
      %2773 = vmatprep.subr.mxu0 0.0
      %2774 = vmatpush1.msra.mxu0 0.0
      %2775 = vmatprep.subr.mxu0 0.0
      %2776 = vmatpush1.msra.mxu0 0.0
      %2777 = vmatprep.subr.mxu0 0.0
      %2778 = vmatpush1.msra.mxu0 0.0
      %2779 = vmatprep.subr.mxu0 0.0
      %2780 = vmatpush1.msra.mxu0 0.0
      %2781 = vmatprep.subr.mxu0 0.0
      %2782 = vmatpush1.msra.mxu0 0.0
      %2783 = vmatprep.subr.mxu0 0.0
      %2784 = vmatpush1.msra.mxu0 0.0
      %2785 = vmatprep.subr.mxu0 0.0
      %2786 = vmatpush1.msra.mxu0 0.0
      %2787 = vmatprep.subr.mxu0 0.0
      %2788 = vmatpush1.msra.mxu0 0.0
      %2789 = vmatprep.subr.mxu0 0.0
      %2790 = vmatpush1.msra.mxu0 0.0
      %2791 = vmatprep.subr.mxu0 0.0
      %2792 = vmatpush1.msra.mxu0 0.0
      %2793 = vmatprep.subr.mxu0 0.0
      %2794 = vmatpush1.msra.mxu0 0.0
      %2795 = vmatprep.subr.mxu0 0.0
      %2796 = vmatpush1.msra.mxu0 0.0
      %2797 = vmatprep.subr.mxu0 0.0
      %2798 = vmatpush1.msra.mxu0 0.0
      %2799 = vmatprep.subr.mxu0 0.0
      %2800 = vmatpush1.msra.mxu0 0.0
      %2801 = vmatprep.subr.mxu0 0.0
      %2802 = vmatpush1.msra.mxu0 0.0
      %2803 = vmatprep.mubr.f32.mxu0 0.0
      %2804 = vmatmul.mubr.f32.gmra.mrb[0].mxu0 %v2689
      %v2805 = vpop.f32.mrb[0].mxu0
      %v2806 = vadd.f32 0.0, %v2805
      %v2807 = vpop.f32.mrb[0].mxu0
      %2808 = vmatprep.mubr.f32.mxu0 0.0
      %2809 = vmatmul.mubr.f32.gmra.mrb[0].mxu0 %v2692
      %v2810 = vpop.f32.mrb[0].mxu0
      %v2811 = vadd.f32 0.0, %v2810
      %v2812 = vpop.f32.mrb[0].mxu0
      %2813 = vmatprep.mubr.f32.mxu0 0.0
      %2814 = vmatmul.mubr.f32.gmra.mrb[0].mxu0 %v2695
      %v2815 = vpop.f32.mrb[0].mxu0
      %v2816 = vadd.f32 0.0, %v2815
      %v2817 = vpop.f32.mrb[0].mxu0
      %2818 = vmatprep.mubr.f32.mxu0 0.0
      %2819 = vmatmul.mubr.f32.gmra.mrb[0].mxu0 %v2698
      %v2820 = vpop.f32.mrb[0].mxu0
      %v2821 = vadd.f32 0.0, %v2820
      %v2822 = vpop.f32.mrb[0].mxu0
      %2823 = vmatprep.mubr.f32.mxu0 0.0
      %2824 = vmatmul.mubr.f32.gmra.mrb[0].mxu0 %v2701
      %v2825 = vpop.f32.mrb[0].mxu0
      %v2826 = vadd.f32 0.0, %v2825
      %v2827 = vpop.f32.mrb[0].mxu0
      %2828 = vmatprep.mubr.f32.mxu0 0.0
      %2829 = vmatmul.mubr.f32.gmra.mrb[0].mxu0 %v2704
      %v2830 = vpop.f32.mrb[0].mxu0
      %v2831 = vadd.f32 0.0, %v2830
      %v2832 = vpop.f32.mrb[0].mxu0
      %2833 = vmatprep.mubr.f32.mxu0 0.0
      %2834 = vmatmul.mubr.f32.gmra.mrb[0].mxu0 %v2707
      %v2835 = vpop.f32.mrb[0].mxu0
      %v2836 = vadd.f32 0.0, %v2835
      %v2837 = vpop.f32.mrb[0].mxu0
      %2838 = vmatprep.mubr.f32.mxu0 0.0
      %2839 = vmatmul.mubr.f32.gmra.mrb[0].mxu0 %v2710
      %v2840 = vpop.f32.mrb[0].mxu0
      %v2841 = vadd.f32 0.0, %v2840
      %v2842 = vpop.f32.mrb[0].mxu0
      %2843 = vmatprep.mubr.f32.mxu0 0.0
      %2844 = vmatmul.mubr.f32.gmra.mrb[0].mxu0 %v2713
      %v2845 = vpop.f32.mrb[0].mxu0
      %v2846 = vadd.f32 0.0, %v2845
      %v2847 = vpop.f32.mrb[0].mxu0
      %2848 = vmatprep.mubr.f32.mxu0 0.0
      %2849 = vmatmul.mubr.f32.gmra.mrb[0].mxu0 %v2716
      %v2850 = vpop.f32.mrb[0].mxu0
      %v2851 = vadd.f32 0.0, %v2850
      %v2852 = vpop.f32.mrb[0].mxu0
      %2853 = vmatprep.mubr.f32.mxu0 0.0
      %2854 = vmatmul.mubr.f32.gmra.mrb[0].mxu0 %v2719
      %v2855 = vpop.f32.mrb[0].mxu0
      %v2856 = vadd.f32 0.0, %v2855
      %v2857 = vpop.f32.mrb[0].mxu0
      %2858 = vmatprep.mubr.f32.mxu0 0.0
      %2859 = vmatmul.mubr.f32.gmra.mrb[0].mxu0 %v2722
      %v2860 = vpop.f32.mrb[0].mxu0
      %v2861 = vadd.f32 0.0, %v2860
      %v2862 = vpop.f32.mrb[0].mxu0
      %2863 = vmatprep.mubr.f32.mxu0 0.0
      %2864 = vmatmul.mubr.f32.gmra.mrb[0].mxu0 %v2725
      %v2865 = vpop.f32.mrb[0].mxu0
      %v2866 = vadd.f32 0.0, %v2865
      %v2867 = vpop.f32.mrb[0].mxu0
      %2868 = vmatprep.mubr.f32.mxu0 0.0
      %2869 = vmatmul.mubr.f32.gmra.mrb[0].mxu0 %v2728
      %v2870 = vpop.f32.mrb[0].mxu0
      %v2871 = vadd.f32 0.0, %v2870
      %v2872 = vpop.f32.mrb[0].mxu0
      %2873 = vmatprep.mubr.f32.mxu0 0.0
      %2874 = vmatmul.mubr.f32.gmra.mrb[0].mxu0 %v2731
      %v2875 = vpop.f32.mrb[0].mxu0
      %v2876 = vadd.f32 0.0, %v2875
      %v2877 = vpop.f32.mrb[0].mxu0
      %2878 = vmatprep.mubr.f32.mxu0 0.0
      %2879 = vmatmul.mubr.f32.gmra.mrb[0].mxu0 %v2734
      %v2880 = vpop.f32.mrb[0].mxu0
      %v2881 = vadd.f32 0.0, %v2880
      %v2882 = vpop.f32.mrb[0].mxu0
      %2883 = vdwg.mxu0
      %v2884 = vadd.f32 %v2655, %v2806
      %v2885 = vadd.f32 %v2656, %v2811
      %v2886 = vadd.f32 %v2657, %v2816
      %v2887 = vadd.f32 %v2658, %v2821
      %v2888 = vadd.f32 %v2659, %v2826
      %v2889 = vadd.f32 %v2660, %v2831
      %v2890 = vadd.f32 %v2661, %v2836
      %v2891 = vadd.f32 %v2662, %v2841
      %v2892 = vadd.f32 %v2663, %v2846
      %v2893 = vadd.f32 %v2664, %v2851
      %v2894 = vadd.f32 %v2665, %v2856
      %v2895 = vadd.f32 %v2666, %v2861
      %v2896 = vadd.f32 %v2667, %v2866
      %v2897 = vadd.f32 %v2668, %v2871
      %v2898 = vadd.f32 %v2669, %v2876
      %v2899 = vadd.f32 %v2670, %v2881
      %v2900 = vld [vmem:[%s210 + $0x82] sm:$0xff]
      %v2901 = vld [vmem:[%s210 + $0x8a] sm:$0xff]
      %v2902 = vld [vmem:[%s210 + $0x92] sm:$0xff]
      %v2903 = vld [vmem:[%s210 + $0x9a] sm:$0xff]
      %v2904 = vld [vmem:[%s210 + $0xa2] sm:$0xff]
      %v2905 = vld [vmem:[%s210 + $0xaa] sm:$0xff]
      %v2906 = vld [vmem:[%s210 + $0xb2] sm:$0xff]
      %v2907 = vld [vmem:[%s210 + $0xba] sm:$0xff]
      %v2908 = vld [vmem:[%s210 + $0xc2] sm:$0xff]
      %v2909 = vld [vmem:[%s210 + $0xca] sm:$0xff]
      %v2910 = vld [vmem:[%s210 + $0xd2] sm:$0xff]
      %v2911 = vld [vmem:[%s210 + $0xda] sm:$0xff]
      %v2912 = vld [vmem:[%s210 + $0xe2] sm:$0xff]
      %v2913 = vld [vmem:[%s210 + $0xea] sm:$0xff]
      %v2914 = vld [vmem:[%s210 + $0xf2] sm:$0xff]
      %v2915 = vld [vmem:[%s210 + $0xfa] sm:$0xff]
      %v2916 = vld [vmem:[%s780] sm:$0xf]
      %v2918 = vsel %vm316, %v2900, 0
      %v2921 = vsel %vm316, %v2901, 0
      %v2924 = vsel %vm316, %v2902, 0
      %v2927 = vsel %vm316, %v2903, 0
      %v2930 = vsel %vm316, %v2904, 0
      %v2933 = vsel %vm316, %v2905, 0
      %v2936 = vsel %vm316, %v2906, 0
      %v2939 = vsel %vm316, %v2907, 0
      %v2942 = vsel %vm316, %v2908, 0
      %v2945 = vsel %vm316, %v2909, 0
      %v2948 = vsel %vm316, %v2910, 0
      %v2951 = vsel %vm316, %v2911, 0
      %v2954 = vsel %vm316, %v2912, 0
      %v2957 = vsel %vm316, %v2913, 0
      %v2960 = vsel %vm316, %v2914, 0
      %v2963 = vsel %vm316, %v2915, 0
      %v2966 = vsel %vm365, %v2916, 0
      %2968 = vmatprep.subr.mxu0 0.0
      %2969 = vmatpush1.msra.mxu0 %v2966
      %2970 = vmatprep.subr.mxu0 0.0
      %2971 = vmatpush1.msra.mxu0 0.0
      %2972 = vmatprep.subr.mxu0 0.0
      %2973 = vmatpush1.msra.mxu0 0.0
      %2974 = vmatprep.subr.mxu0 0.0
      %2975 = vmatpush1.msra.mxu0 0.0
      %2976 = vmatprep.subr.mxu0 0.0
      %2977 = vmatpush1.msra.mxu0 0.0
      %2978 = vmatprep.subr.mxu0 0.0
      %2979 = vmatpush1.msra.mxu0 0.0
      %2980 = vmatprep.subr.mxu0 0.0
      %2981 = vmatpush1.msra.mxu0 0.0
      %2982 = vmatprep.subr.mxu0 0.0
      %2983 = vmatpush1.msra.mxu0 0.0
      %2984 = vmatprep.subr.mxu0 0.0
      %2985 = vmatpush1.msra.mxu0 0.0
      %2986 = vmatprep.subr.mxu0 0.0
      %2987 = vmatpush1.msra.mxu0 0.0
      %2988 = vmatprep.subr.mxu0 0.0
      %2989 = vmatpush1.msra.mxu0 0.0
      %2990 = vmatprep.subr.mxu0 0.0
      %2991 = vmatpush1.msra.mxu0 0.0
      %2992 = vmatprep.subr.mxu0 0.0
      %2993 = vmatpush1.msra.mxu0 0.0
      %2994 = vmatprep.subr.mxu0 0.0
      %2995 = vmatpush1.msra.mxu0 0.0
      %2996 = vmatprep.subr.mxu0 0.0
      %2997 = vmatpush1.msra.mxu0 0.0
      %2998 = vmatprep.subr.mxu0 0.0
      %2999 = vmatpush1.msra.mxu0 0.0
      %3000 = vmatprep.subr.mxu0 0.0
      %3001 = vmatpush1.msra.mxu0 0.0
      %3002 = vmatprep.subr.mxu0 0.0
      %3003 = vmatpush1.msra.mxu0 0.0
      %3004 = vmatprep.subr.mxu0 0.0
      %3005 = vmatpush1.msra.mxu0 0.0
      %3006 = vmatprep.subr.mxu0 0.0
      %3007 = vmatpush1.msra.mxu0 0.0
      %3008 = vmatprep.subr.mxu0 0.0
      %3009 = vmatpush1.msra.mxu0 0.0
      %3010 = vmatprep.subr.mxu0 0.0
      %3011 = vmatpush1.msra.mxu0 0.0
      %3012 = vmatprep.subr.mxu0 0.0
      %3013 = vmatpush1.msra.mxu0 0.0
      %3014 = vmatprep.subr.mxu0 0.0
      %3015 = vmatpush1.msra.mxu0 0.0
      %3016 = vmatprep.subr.mxu0 0.0
      %3017 = vmatpush1.msra.mxu0 0.0
      %3018 = vmatprep.subr.mxu0 0.0
      %3019 = vmatpush1.msra.mxu0 0.0
      %3020 = vmatprep.subr.mxu0 0.0
      %3021 = vmatpush1.msra.mxu0 0.0
      %3022 = vmatprep.subr.mxu0 0.0
      %3023 = vmatpush1.msra.mxu0 0.0
      %3024 = vmatprep.subr.mxu0 0.0
      %3025 = vmatpush1.msra.mxu0 0.0
      %3026 = vmatprep.subr.mxu0 0.0
      %3027 = vmatpush1.msra.mxu0 0.0
      %3028 = vmatprep.subr.mxu0 0.0
      %3029 = vmatpush1.msra.mxu0 0.0
      %3030 = vmatprep.subr.mxu0 0.0
      %3031 = vmatpush1.msra.mxu0 0.0
      %3032 = vmatprep.mubr.f32.mxu0 0.0
      %3033 = vmatmul.mubr.f32.gmra.mrb[0].mxu0 %v2918
      %v3034 = vpop.f32.mrb[0].mxu0
      %v3035 = vadd.f32 0.0, %v3034
      %v3036 = vpop.f32.mrb[0].mxu0
      %3037 = vmatprep.mubr.f32.mxu0 0.0
      %3038 = vmatmul.mubr.f32.gmra.mrb[0].mxu0 %v2921
      %v3039 = vpop.f32.mrb[0].mxu0
      %v3040 = vadd.f32 0.0, %v3039
      %v3041 = vpop.f32.mrb[0].mxu0
      %3042 = vmatprep.mubr.f32.mxu0 0.0
      %3043 = vmatmul.mubr.f32.gmra.mrb[0].mxu0 %v2924
      %v3044 = vpop.f32.mrb[0].mxu0
      %v3045 = vadd.f32 0.0, %v3044
      %v3046 = vpop.f32.mrb[0].mxu0
      %3047 = vmatprep.mubr.f32.mxu0 0.0
      %3048 = vmatmul.mubr.f32.gmra.mrb[0].mxu0 %v2927
      %v3049 = vpop.f32.mrb[0].mxu0
      %v3050 = vadd.f32 0.0, %v3049
      %v3051 = vpop.f32.mrb[0].mxu0
      %3052 = vmatprep.mubr.f32.mxu0 0.0
      %3053 = vmatmul.mubr.f32.gmra.mrb[0].mxu0 %v2930
      %v3054 = vpop.f32.mrb[0].mxu0
      %v3055 = vadd.f32 0.0, %v3054
      %v3056 = vpop.f32.mrb[0].mxu0
      %3057 = vmatprep.mubr.f32.mxu0 0.0
      %3058 = vmatmul.mubr.f32.gmra.mrb[0].mxu0 %v2933
      %v3059 = vpop.f32.mrb[0].mxu0
      %v3060 = vadd.f32 0.0, %v3059
      %v3061 = vpop.f32.mrb[0].mxu0
      %3062 = vmatprep.mubr.f32.mxu0 0.0
      %3063 = vmatmul.mubr.f32.gmra.mrb[0].mxu0 %v2936
      %v3064 = vpop.f32.mrb[0].mxu0
      %v3065 = vadd.f32 0.0, %v3064
      %v3066 = vpop.f32.mrb[0].mxu0
      %3067 = vmatprep.mubr.f32.mxu0 0.0
      %3068 = vmatmul.mubr.f32.gmra.mrb[0].mxu0 %v2939
      %v3069 = vpop.f32.mrb[0].mxu0
      %v3070 = vadd.f32 0.0, %v3069
      %v3071 = vpop.f32.mrb[0].mxu0
      %3072 = vmatprep.mubr.f32.mxu0 0.0
      %3073 = vmatmul.mubr.f32.gmra.mrb[0].mxu0 %v2942
      %v3074 = vpop.f32.mrb[0].mxu0
      %v3075 = vadd.f32 0.0, %v3074
      %v3076 = vpop.f32.mrb[0].mxu0
      %3077 = vmatprep.mubr.f32.mxu0 0.0
      %3078 = vmatmul.mubr.f32.gmra.mrb[0].mxu0 %v2945
      %v3079 = vpop.f32.mrb[0].mxu0
      %v3080 = vadd.f32 0.0, %v3079
      %v3081 = vpop.f32.mrb[0].mxu0
      %3082 = vmatprep.mubr.f32.mxu0 0.0
      %3083 = vmatmul.mubr.f32.gmra.mrb[0].mxu0 %v2948
      %v3084 = vpop.f32.mrb[0].mxu0
      %v3085 = vadd.f32 0.0, %v3084
      %v3086 = vpop.f32.mrb[0].mxu0
      %3087 = vmatprep.mubr.f32.mxu0 0.0
      %3088 = vmatmul.mubr.f32.gmra.mrb[0].mxu0 %v2951
      %v3089 = vpop.f32.mrb[0].mxu0
      %v3090 = vadd.f32 0.0, %v3089
      %v3091 = vpop.f32.mrb[0].mxu0
      %3092 = vmatprep.mubr.f32.mxu0 0.0
      %3093 = vmatmul.mubr.f32.gmra.mrb[0].mxu0 %v2954
      %v3094 = vpop.f32.mrb[0].mxu0
      %v3095 = vadd.f32 0.0, %v3094
      %v3096 = vpop.f32.mrb[0].mxu0
      %3097 = vmatprep.mubr.f32.mxu0 0.0
      %3098 = vmatmul.mubr.f32.gmra.mrb[0].mxu0 %v2957
      %v3099 = vpop.f32.mrb[0].mxu0
      %v3100 = vadd.f32 0.0, %v3099
      %v3101 = vpop.f32.mrb[0].mxu0
      %3102 = vmatprep.mubr.f32.mxu0 0.0
      %3103 = vmatmul.mubr.f32.gmra.mrb[0].mxu0 %v2960
      %v3104 = vpop.f32.mrb[0].mxu0
      %v3105 = vadd.f32 0.0, %v3104
      %v3106 = vpop.f32.mrb[0].mxu0
      %3107 = vmatprep.mubr.f32.mxu0 0.0
      %3108 = vmatmul.mubr.f32.gmra.mrb[0].mxu0 %v2963
      %v3109 = vpop.f32.mrb[0].mxu0
      %v3110 = vadd.f32 0.0, %v3109
      %v3111 = vpop.f32.mrb[0].mxu0
      %3112 = vdwg.mxu0
      %v3113 = vadd.f32 %v2884, %v3035
      %v3114 = vadd.f32 %v2885, %v3040
      %v3115 = vadd.f32 %v2886, %v3045
      %v3116 = vadd.f32 %v2887, %v3050
      %v3117 = vadd.f32 %v2888, %v3055
      %v3118 = vadd.f32 %v2889, %v3060
      %v3119 = vadd.f32 %v2890, %v3065
      %v3120 = vadd.f32 %v2891, %v3070
      %v3121 = vadd.f32 %v2892, %v3075
      %v3122 = vadd.f32 %v2893, %v3080
      %v3123 = vadd.f32 %v2894, %v3085
      %v3124 = vadd.f32 %v2895, %v3090
      %v3125 = vadd.f32 %v2896, %v3095
      %v3126 = vadd.f32 %v2897, %v3100
      %v3127 = vadd.f32 %v2898, %v3105
      %v3128 = vadd.f32 %v2899, %v3110
      %v3129 = vld [vmem:[%s210 + $0x98] sm:$0xff]
      %v3130 = vld [vmem:[%s210 + $0xa0] sm:$0xff]
      %v3131 = vld [vmem:[%s210 + $0xa8] sm:$0xff]
      %v3132 = vld [vmem:[%s210 + $0xb0] sm:$0xff]
      %v3133 = vld [vmem:[%s210 + $0xb8] sm:$0xff]
      %v3134 = vld [vmem:[%s210 + $0xc0] sm:$0xff]
      %v3135 = vld [vmem:[%s210 + $0xc8] sm:$0xff]
      %v3136 = vld [vmem:[%s210 + $0xd0] sm:$0xff]
      %v3137 = vld [vmem:[%s210 + $0xd8] sm:$0xff]
      %v3138 = vld [vmem:[%s210 + $0xe0] sm:$0xff]
      %v3139 = vld [vmem:[%s210 + $0xe8] sm:$0xff]
      %v3140 = vld [vmem:[%s210 + $0xf0] sm:$0xff]
      %v3141 = vld [vmem:[%s210 + $0xf8] sm:$0xff]
      %v3142 = vld [vmem:[%s210 + $0x100] sm:$0xff]
      %v3143 = vld [vmem:[%s210 + $0x108] sm:$0xff]
      %v3144 = vld [vmem:[%s210 + $0x110] sm:$0xff]
      %v3145 = vld [vmem:[%s1012] sm:$0xf]
      %v3147 = vsel %vm316, %v3129, 0
      %v3150 = vsel %vm316, %v3130, 0
      %v3153 = vsel %vm316, %v3131, 0
      %v3156 = vsel %vm316, %v3132, 0
      %v3159 = vsel %vm316, %v3133, 0
      %v3162 = vsel %vm316, %v3134, 0
      %v3165 = vsel %vm316, %v3135, 0
      %v3168 = vsel %vm316, %v3136, 0
      %v3171 = vsel %vm316, %v3137, 0
      %v3174 = vsel %vm316, %v3138, 0
      %v3177 = vsel %vm316, %v3139, 0
      %v3180 = vsel %vm316, %v3140, 0
      %v3183 = vsel %vm316, %v3141, 0
      %v3186 = vsel %vm316, %v3142, 0
      %v3189 = vsel %vm316, %v3143, 0
      %v3192 = vsel %vm316, %v3144, 0
      %v3195 = vsel %vm365, %v3145, 0
      %3197 = vmatprep.subr.mxu0 0.0
      %3198 = vmatpush1.msra.mxu0 %v3195
      %3199 = vmatprep.subr.mxu0 0.0
      %3200 = vmatpush1.msra.mxu0 0.0
      %3201 = vmatprep.subr.mxu0 0.0
      %3202 = vmatpush1.msra.mxu0 0.0
      %3203 = vmatprep.subr.mxu0 0.0
      %3204 = vmatpush1.msra.mxu0 0.0
      %3205 = vmatprep.subr.mxu0 0.0
      %3206 = vmatpush1.msra.mxu0 0.0
      %3207 = vmatprep.subr.mxu0 0.0
      %3208 = vmatpush1.msra.mxu0 0.0
      %3209 = vmatprep.subr.mxu0 0.0
      %3210 = vmatpush1.msra.mxu0 0.0
      %3211 = vmatprep.subr.mxu0 0.0
      %3212 = vmatpush1.msra.mxu0 0.0
      %3213 = vmatprep.subr.mxu0 0.0
      %3214 = vmatpush1.msra.mxu0 0.0
      %3215 = vmatprep.subr.mxu0 0.0
      %3216 = vmatpush1.msra.mxu0 0.0
      %3217 = vmatprep.subr.mxu0 0.0
      %3218 = vmatpush1.msra.mxu0 0.0
      %3219 = vmatprep.subr.mxu0 0.0
      %3220 = vmatpush1.msra.mxu0 0.0
      %3221 = vmatprep.subr.mxu0 0.0
      %3222 = vmatpush1.msra.mxu0 0.0
      %3223 = vmatprep.subr.mxu0 0.0
      %3224 = vmatpush1.msra.mxu0 0.0
      %3225 = vmatprep.subr.mxu0 0.0
      %3226 = vmatpush1.msra.mxu0 0.0
      %3227 = vmatprep.subr.mxu0 0.0
      %3228 = vmatpush1.msra.mxu0 0.0
      %3229 = vmatprep.subr.mxu0 0.0
      %3230 = vmatpush1.msra.mxu0 0.0
      %3231 = vmatprep.subr.mxu0 0.0
      %3232 = vmatpush1.msra.mxu0 0.0
      %3233 = vmatprep.subr.mxu0 0.0
      %3234 = vmatpush1.msra.mxu0 0.0
      %3235 = vmatprep.subr.mxu0 0.0
      %3236 = vmatpush1.msra.mxu0 0.0
      %3237 = vmatprep.subr.mxu0 0.0
      %3238 = vmatpush1.msra.mxu0 0.0
      %3239 = vmatprep.subr.mxu0 0.0
      %3240 = vmatpush1.msra.mxu0 0.0
      %3241 = vmatprep.subr.mxu0 0.0
      %3242 = vmatpush1.msra.mxu0 0.0
      %3243 = vmatprep.subr.mxu0 0.0
      %3244 = vmatpush1.msra.mxu0 0.0
      %3245 = vmatprep.subr.mxu0 0.0
      %3246 = vmatpush1.msra.mxu0 0.0
      %3247 = vmatprep.subr.mxu0 0.0
      %3248 = vmatpush1.msra.mxu0 0.0
      %3249 = vmatprep.subr.mxu0 0.0
      %3250 = vmatpush1.msra.mxu0 0.0
      %3251 = vmatprep.subr.mxu0 0.0
      %3252 = vmatpush1.msra.mxu0 0.0
      %3253 = vmatprep.subr.mxu0 0.0
      %3254 = vmatpush1.msra.mxu0 0.0
      %3255 = vmatprep.subr.mxu0 0.0
      %3256 = vmatpush1.msra.mxu0 0.0
      %3257 = vmatprep.subr.mxu0 0.0
      %3258 = vmatpush1.msra.mxu0 0.0
      %3259 = vmatprep.subr.mxu0 0.0
      %3260 = vmatpush1.msra.mxu0 0.0
      %3261 = vmatprep.mubr.f32.mxu0 0.0
      %3262 = vmatmul.mubr.f32.gmra.mrb[0].mxu0 %v3147
      %v3263 = vpop.f32.mrb[0].mxu0
      %v3264 = vadd.f32 0.0, %v3263
      %v3265 = vpop.f32.mrb[0].mxu0
      %3266 = vmatprep.mubr.f32.mxu0 0.0
      %3267 = vmatmul.mubr.f32.gmra.mrb[0].mxu0 %v3150
      %v3268 = vpop.f32.mrb[0].mxu0
      %v3269 = vadd.f32 0.0, %v3268
      %v3270 = vpop.f32.mrb[0].mxu0
      %3271 = vmatprep.mubr.f32.mxu0 0.0
      %3272 = vmatmul.mubr.f32.gmra.mrb[0].mxu0 %v3153
      %v3273 = vpop.f32.mrb[0].mxu0
      %v3274 = vadd.f32 0.0, %v3273
      %v3275 = vpop.f32.mrb[0].mxu0
      %3276 = vmatprep.mubr.f32.mxu0 0.0
      %3277 = vmatmul.mubr.f32.gmra.mrb[0].mxu0 %v3156
      %v3278 = vpop.f32.mrb[0].mxu0
      %v3279 = vadd.f32 0.0, %v3278
      %v3280 = vpop.f32.mrb[0].mxu0
      %3281 = vmatprep.mubr.f32.mxu0 0.0
      %3282 = vmatmul.mubr.f32.gmra.mrb[0].mxu0 %v3159
      %v3283 = vpop.f32.mrb[0].mxu0
      %v3284 = vadd.f32 0.0, %v3283
      %v3285 = vpop.f32.mrb[0].mxu0
      %3286 = vmatprep.mubr.f32.mxu0 0.0
      %3287 = vmatmul.mubr.f32.gmra.mrb[0].mxu0 %v3162
      %v3288 = vpop.f32.mrb[0].mxu0
      %v3289 = vadd.f32 0.0, %v3288
      %v3290 = vpop.f32.mrb[0].mxu0
      %3291 = vmatprep.mubr.f32.mxu0 0.0
      %3292 = vmatmul.mubr.f32.gmra.mrb[0].mxu0 %v3165
      %v3293 = vpop.f32.mrb[0].mxu0
      %v3294 = vadd.f32 0.0, %v3293
      %v3295 = vpop.f32.mrb[0].mxu0
      %3296 = vmatprep.mubr.f32.mxu0 0.0
      %3297 = vmatmul.mubr.f32.gmra.mrb[0].mxu0 %v3168
      %v3298 = vpop.f32.mrb[0].mxu0
      %v3299 = vadd.f32 0.0, %v3298
      %v3300 = vpop.f32.mrb[0].mxu0
      %3301 = vmatprep.mubr.f32.mxu0 0.0
      %3302 = vmatmul.mubr.f32.gmra.mrb[0].mxu0 %v3171
      %v3303 = vpop.f32.mrb[0].mxu0
      %v3304 = vadd.f32 0.0, %v3303
      %v3305 = vpop.f32.mrb[0].mxu0
      %3306 = vmatprep.mubr.f32.mxu0 0.0
      %3307 = vmatmul.mubr.f32.gmra.mrb[0].mxu0 %v3174
      %v3308 = vpop.f32.mrb[0].mxu0
      %v3309 = vadd.f32 0.0, %v3308
      %v3310 = vpop.f32.mrb[0].mxu0
      %3311 = vmatprep.mubr.f32.mxu0 0.0
      %3312 = vmatmul.mubr.f32.gmra.mrb[0].mxu0 %v3177
      %v3313 = vpop.f32.mrb[0].mxu0
      %v3314 = vadd.f32 0.0, %v3313
      %v3315 = vpop.f32.mrb[0].mxu0
      %3316 = vmatprep.mubr.f32.mxu0 0.0
      %3317 = vmatmul.mubr.f32.gmra.mrb[0].mxu0 %v3180
      %v3318 = vpop.f32.mrb[0].mxu0
      %v3319 = vadd.f32 0.0, %v3318
      %v3320 = vpop.f32.mrb[0].mxu0
      %3321 = vmatprep.mubr.f32.mxu0 0.0
      %3322 = vmatmul.mubr.f32.gmra.mrb[0].mxu0 %v3183
      %v3323 = vpop.f32.mrb[0].mxu0
      %v3324 = vadd.f32 0.0, %v3323
      %v3325 = vpop.f32.mrb[0].mxu0
      %3326 = vmatprep.mubr.f32.mxu0 0.0
      %3327 = vmatmul.mubr.f32.gmra.mrb[0].mxu0 %v3186
      %v3328 = vpop.f32.mrb[0].mxu0
      %v3329 = vadd.f32 0.0, %v3328
      %v3330 = vpop.f32.mrb[0].mxu0
      %3331 = vmatprep.mubr.f32.mxu0 0.0
      %3332 = vmatmul.mubr.f32.gmra.mrb[0].mxu0 %v3189
      %v3333 = vpop.f32.mrb[0].mxu0
      %v3334 = vadd.f32 0.0, %v3333
      %v3335 = vpop.f32.mrb[0].mxu0
      %3336 = vmatprep.mubr.f32.mxu0 0.0
      %3337 = vmatmul.mubr.f32.gmra.mrb[0].mxu0 %v3192
      %v3338 = vpop.f32.mrb[0].mxu0
      %v3339 = vadd.f32 0.0, %v3338
      %v3340 = vpop.f32.mrb[0].mxu0
      %3341 = vdwg.mxu0
      %v3342 = vadd.f32 %v3113, %v3264
      %v3343 = vadd.f32 %v3114, %v3269
      %v3344 = vadd.f32 %v3115, %v3274
      %v3345 = vadd.f32 %v3116, %v3279
      %v3346 = vadd.f32 %v3117, %v3284
      %v3347 = vadd.f32 %v3118, %v3289
      %v3348 = vadd.f32 %v3119, %v3294
      %v3349 = vadd.f32 %v3120, %v3299
      %v3350 = vadd.f32 %v3121, %v3304
      %v3351 = vadd.f32 %v3122, %v3309
      %v3352 = vadd.f32 %v3123, %v3314
      %v3353 = vadd.f32 %v3124, %v3319
      %v3354 = vadd.f32 %v3125, %v3324
      %v3355 = vadd.f32 %v3126, %v3329
      %v3356 = vadd.f32 %v3127, %v3334
      %v3357 = vadd.f32 %v3128, %v3339
      %v3358 = vld [vmem:[%s210 + $0x99] sm:$0xff]
      %v3359 = vld [vmem:[%s210 + $0xa1] sm:$0xff]
      %v3360 = vld [vmem:[%s210 + $0xa9] sm:$0xff]
      %v3361 = vld [vmem:[%s210 + $0xb1] sm:$0xff]
      %v3362 = vld [vmem:[%s210 + $0xb9] sm:$0xff]
      %v3363 = vld [vmem:[%s210 + $0xc1] sm:$0xff]
      %v3364 = vld [vmem:[%s210 + $0xc9] sm:$0xff]
      %v3365 = vld [vmem:[%s210 + $0xd1] sm:$0xff]
      %v3366 = vld [vmem:[%s210 + $0xd9] sm:$0xff]
      %v3367 = vld [vmem:[%s210 + $0xe1] sm:$0xff]
      %v3368 = vld [vmem:[%s210 + $0xe9] sm:$0xff]
      %v3369 = vld [vmem:[%s210 + $0xf1] sm:$0xff]
      %v3370 = vld [vmem:[%s210 + $0xf9] sm:$0xff]
      %v3371 = vld [vmem:[%s210 + $0x101] sm:$0xff]
      %v3372 = vld [vmem:[%s210 + $0x109] sm:$0xff]
      %v3373 = vld [vmem:[%s210 + $0x111] sm:$0xff]
      %v3374 = vld [vmem:[%s1244] sm:$0xf]
      %v3376 = vsel %vm316, %v3358, 0
      %v3379 = vsel %vm316, %v3359, 0
      %v3382 = vsel %vm316, %v3360, 0
      %v3385 = vsel %vm316, %v3361, 0
      %v3388 = vsel %vm316, %v3362, 0
      %v3391 = vsel %vm316, %v3363, 0
      %v3394 = vsel %vm316, %v3364, 0
      %v3397 = vsel %vm316, %v3365, 0
      %v3400 = vsel %vm316, %v3366, 0
      %v3403 = vsel %vm316, %v3367, 0
      %v3406 = vsel %vm316, %v3368, 0
      %v3409 = vsel %vm316, %v3369, 0
      %v3412 = vsel %vm316, %v3370, 0
      %v3415 = vsel %vm316, %v3371, 0
      %v3418 = vsel %vm316, %v3372, 0
      %v3421 = vsel %vm316, %v3373, 0
      %v3424 = vsel %vm365, %v3374, 0
      %3426 = vmatprep.subr.mxu0 0.0
      %3427 = vmatpush1.msra.mxu0 %v3424
      %3428 = vmatprep.subr.mxu0 0.0
      %3429 = vmatpush1.msra.mxu0 0.0
      %3430 = vmatprep.subr.mxu0 0.0
      %3431 = vmatpush1.msra.mxu0 0.0
      %3432 = vmatprep.subr.mxu0 0.0
      %3433 = vmatpush1.msra.mxu0 0.0
      %3434 = vmatprep.subr.mxu0 0.0
      %3435 = vmatpush1.msra.mxu0 0.0
      %3436 = vmatprep.subr.mxu0 0.0
      %3437 = vmatpush1.msra.mxu0 0.0
      %3438 = vmatprep.subr.mxu0 0.0
      %3439 = vmatpush1.msra.mxu0 0.0
      %3440 = vmatprep.subr.mxu0 0.0
      %3441 = vmatpush1.msra.mxu0 0.0
      %3442 = vmatprep.subr.mxu0 0.0
      %3443 = vmatpush1.msra.mxu0 0.0
      %3444 = vmatprep.subr.mxu0 0.0
      %3445 = vmatpush1.msra.mxu0 0.0
      %3446 = vmatprep.subr.mxu0 0.0
      %3447 = vmatpush1.msra.mxu0 0.0
      %3448 = vmatprep.subr.mxu0 0.0
      %3449 = vmatpush1.msra.mxu0 0.0
      %3450 = vmatprep.subr.mxu0 0.0
      %3451 = vmatpush1.msra.mxu0 0.0
      %3452 = vmatprep.subr.mxu0 0.0
      %3453 = vmatpush1.msra.mxu0 0.0
      %3454 = vmatprep.subr.mxu0 0.0
      %3455 = vmatpush1.msra.mxu0 0.0
      %3456 = vmatprep.subr.mxu0 0.0
      %3457 = vmatpush1.msra.mxu0 0.0
      %3458 = vmatprep.subr.mxu0 0.0
      %3459 = vmatpush1.msra.mxu0 0.0
      %3460 = vmatprep.subr.mxu0 0.0
      %3461 = vmatpush1.msra.mxu0 0.0
      %3462 = vmatprep.subr.mxu0 0.0
      %3463 = vmatpush1.msra.mxu0 0.0
      %3464 = vmatprep.subr.mxu0 0.0
      %3465 = vmatpush1.msra.mxu0 0.0
      %3466 = vmatprep.subr.mxu0 0.0
      %3467 = vmatpush1.msra.mxu0 0.0
      %3468 = vmatprep.subr.mxu0 0.0
      %3469 = vmatpush1.msra.mxu0 0.0
      %3470 = vmatprep.subr.mxu0 0.0
      %3471 = vmatpush1.msra.mxu0 0.0
      %3472 = vmatprep.subr.mxu0 0.0
      %3473 = vmatpush1.msra.mxu0 0.0
      %3474 = vmatprep.subr.mxu0 0.0
      %3475 = vmatpush1.msra.mxu0 0.0
      %3476 = vmatprep.subr.mxu0 0.0
      %3477 = vmatpush1.msra.mxu0 0.0
      %3478 = vmatprep.subr.mxu0 0.0
      %3479 = vmatpush1.msra.mxu0 0.0
      %3480 = vmatprep.subr.mxu0 0.0
      %3481 = vmatpush1.msra.mxu0 0.0
      %3482 = vmatprep.subr.mxu0 0.0
      %3483 = vmatpush1.msra.mxu0 0.0
      %3484 = vmatprep.subr.mxu0 0.0
      %3485 = vmatpush1.msra.mxu0 0.0
      %3486 = vmatprep.subr.mxu0 0.0
      %3487 = vmatpush1.msra.mxu0 0.0
      %3488 = vmatprep.subr.mxu0 0.0
      %3489 = vmatpush1.msra.mxu0 0.0
      %3490 = vmatprep.mubr.f32.mxu0 0.0
      %3491 = vmatmul.mubr.f32.gmra.mrb[0].mxu0 %v3376
      %v3492 = vpop.f32.mrb[0].mxu0
      %v3493 = vadd.f32 0.0, %v3492
      %v3494 = vpop.f32.mrb[0].mxu0
      %3495 = vmatprep.mubr.f32.mxu0 0.0
      %3496 = vmatmul.mubr.f32.gmra.mrb[0].mxu0 %v3379
      %v3497 = vpop.f32.mrb[0].mxu0
      %v3498 = vadd.f32 0.0, %v3497
      %v3499 = vpop.f32.mrb[0].mxu0
      %3500 = vmatprep.mubr.f32.mxu0 0.0
      %3501 = vmatmul.mubr.f32.gmra.mrb[0].mxu0 %v3382
      %v3502 = vpop.f32.mrb[0].mxu0
      %v3503 = vadd.f32 0.0, %v3502
      %v3504 = vpop.f32.mrb[0].mxu0
      %3505 = vmatprep.mubr.f32.mxu0 0.0
      %3506 = vmatmul.mubr.f32.gmra.mrb[0].mxu0 %v3385
      %v3507 = vpop.f32.mrb[0].mxu0
      %v3508 = vadd.f32 0.0, %v3507
      %v3509 = vpop.f32.mrb[0].mxu0
      %3510 = vmatprep.mubr.f32.mxu0 0.0
      %3511 = vmatmul.mubr.f32.gmra.mrb[0].mxu0 %v3388
      %v3512 = vpop.f32.mrb[0].mxu0
      %v3513 = vadd.f32 0.0, %v3512
      %v3514 = vpop.f32.mrb[0].mxu0
      %3515 = vmatprep.mubr.f32.mxu0 0.0
      %3516 = vmatmul.mubr.f32.gmra.mrb[0].mxu0 %v3391
      %v3517 = vpop.f32.mrb[0].mxu0
      %v3518 = vadd.f32 0.0, %v3517
      %v3519 = vpop.f32.mrb[0].mxu0
      %3520 = vmatprep.mubr.f32.mxu0 0.0
      %3521 = vmatmul.mubr.f32.gmra.mrb[0].mxu0 %v3394
      %v3522 = vpop.f32.mrb[0].mxu0
      %v3523 = vadd.f32 0.0, %v3522
      %v3524 = vpop.f32.mrb[0].mxu0
      %3525 = vmatprep.mubr.f32.mxu0 0.0
      %3526 = vmatmul.mubr.f32.gmra.mrb[0].mxu0 %v3397
      %v3527 = vpop.f32.mrb[0].mxu0
      %v3528 = vadd.f32 0.0, %v3527
      %v3529 = vpop.f32.mrb[0].mxu0
      %3530 = vmatprep.mubr.f32.mxu0 0.0
      %3531 = vmatmul.mubr.f32.gmra.mrb[0].mxu0 %v3400
      %v3532 = vpop.f32.mrb[0].mxu0
      %v3533 = vadd.f32 0.0, %v3532
      %v3534 = vpop.f32.mrb[0].mxu0
      %3535 = vmatprep.mubr.f32.mxu0 0.0
      %3536 = vmatmul.mubr.f32.gmra.mrb[0].mxu0 %v3403
      %v3537 = vpop.f32.mrb[0].mxu0
      %v3538 = vadd.f32 0.0, %v3537
      %v3539 = vpop.f32.mrb[0].mxu0
      %3540 = vmatprep.mubr.f32.mxu0 0.0
      %3541 = vmatmul.mubr.f32.gmra.mrb[0].mxu0 %v3406
      %v3542 = vpop.f32.mrb[0].mxu0
      %v3543 = vadd.f32 0.0, %v3542
      %v3544 = vpop.f32.mrb[0].mxu0
      %3545 = vmatprep.mubr.f32.mxu0 0.0
      %3546 = vmatmul.mubr.f32.gmra.mrb[0].mxu0 %v3409
      %v3547 = vpop.f32.mrb[0].mxu0
      %v3548 = vadd.f32 0.0, %v3547
      %v3549 = vpop.f32.mrb[0].mxu0
      %3550 = vmatprep.mubr.f32.mxu0 0.0
      %3551 = vmatmul.mubr.f32.gmra.mrb[0].mxu0 %v3412
      %v3552 = vpop.f32.mrb[0].mxu0
      %v3553 = vadd.f32 0.0, %v3552
      %v3554 = vpop.f32.mrb[0].mxu0
      %3555 = vmatprep.mubr.f32.mxu0 0.0
      %3556 = vmatmul.mubr.f32.gmra.mrb[0].mxu0 %v3415
      %v3557 = vpop.f32.mrb[0].mxu0
      %v3558 = vadd.f32 0.0, %v3557
      %v3559 = vpop.f32.mrb[0].mxu0
      %3560 = vmatprep.mubr.f32.mxu0 0.0
      %3561 = vmatmul.mubr.f32.gmra.mrb[0].mxu0 %v3418
      %v3562 = vpop.f32.mrb[0].mxu0
      %v3563 = vadd.f32 0.0, %v3562
      %v3564 = vpop.f32.mrb[0].mxu0
      %3565 = vmatprep.mubr.f32.mxu0 0.0
      %3566 = vmatmul.mubr.f32.gmra.mrb[0].mxu0 %v3421
      %v3567 = vpop.f32.mrb[0].mxu0
      %v3568 = vadd.f32 0.0, %v3567
      %v3569 = vpop.f32.mrb[0].mxu0
      %3570 = vdwg.mxu0
      %v3571 = vadd.f32 %v3342, %v3493
      %v3572 = vadd.f32 %v3343, %v3498
      %v3573 = vadd.f32 %v3344, %v3503
      %v3574 = vadd.f32 %v3345, %v3508
      %v3575 = vadd.f32 %v3346, %v3513
      %v3576 = vadd.f32 %v3347, %v3518
      %v3577 = vadd.f32 %v3348, %v3523
      %v3578 = vadd.f32 %v3349, %v3528
      %v3579 = vadd.f32 %v3350, %v3533
      %v3580 = vadd.f32 %v3351, %v3538
      %v3581 = vadd.f32 %v3352, %v3543
      %v3582 = vadd.f32 %v3353, %v3548
      %v3583 = vadd.f32 %v3354, %v3553
      %v3584 = vadd.f32 %v3355, %v3558
      %v3585 = vadd.f32 %v3356, %v3563
      %v3586 = vadd.f32 %v3357, %v3568
      %v3587 = vld [vmem:[%s210 + $0x9a] sm:$0xff]
      %v3588 = vld [vmem:[%s210 + $0xa2] sm:$0xff]
      %v3589 = vld [vmem:[%s210 + $0xaa] sm:$0xff]
      %v3590 = vld [vmem:[%s210 + $0xb2] sm:$0xff]
      %v3591 = vld [vmem:[%s210 + $0xba] sm:$0xff]
      %v3592 = vld [vmem:[%s210 + $0xc2] sm:$0xff]
      %v3593 = vld [vmem:[%s210 + $0xca] sm:$0xff]
      %v3594 = vld [vmem:[%s210 + $0xd2] sm:$0xff]
      %v3595 = vld [vmem:[%s210 + $0xda] sm:$0xff]
      %v3596 = vld [vmem:[%s210 + $0xe2] sm:$0xff]
      %v3597 = vld [vmem:[%s210 + $0xea] sm:$0xff]
      %v3598 = vld [vmem:[%s210 + $0xf2] sm:$0xff]
      %v3599 = vld [vmem:[%s210 + $0xfa] sm:$0xff]
      %v3600 = vld [vmem:[%s210 + $0x102] sm:$0xff]
      %v3601 = vld [vmem:[%s210 + $0x10a] sm:$0xff]
      %v3602 = vld [vmem:[%s210 + $0x112] sm:$0xff]
      %v3603 = vld [vmem:[%s1476] sm:$0xf]
      %v3605 = vsel %vm316, %v3587, 0
      %v3608 = vsel %vm316, %v3588, 0
      %v3611 = vsel %vm316, %v3589, 0
      %v3614 = vsel %vm316, %v3590, 0
      %v3617 = vsel %vm316, %v3591, 0
      %v3620 = vsel %vm316, %v3592, 0
      %v3623 = vsel %vm316, %v3593, 0
      %v3626 = vsel %vm316, %v3594, 0
      %v3629 = vsel %vm316, %v3595, 0
      %v3632 = vsel %vm316, %v3596, 0
      %v3635 = vsel %vm316, %v3597, 0
      %v3638 = vsel %vm316, %v3598, 0
      %v3641 = vsel %vm316, %v3599, 0
      %v3644 = vsel %vm316, %v3600, 0
      %v3647 = vsel %vm316, %v3601, 0
      %v3650 = vsel %vm316, %v3602, 0
      %v3653 = vsel %vm365, %v3603, 0
      %3655 = vmatprep.subr.mxu0 0.0
      %3656 = vmatpush1.msra.mxu0 %v3653
      %3657 = vmatprep.subr.mxu0 0.0
      %3658 = vmatpush1.msra.mxu0 0.0
      %3659 = vmatprep.subr.mxu0 0.0
      %3660 = vmatpush1.msra.mxu0 0.0
      %3661 = vmatprep.subr.mxu0 0.0
      %3662 = vmatpush1.msra.mxu0 0.0
      %3663 = vmatprep.subr.mxu0 0.0
      %3664 = vmatpush1.msra.mxu0 0.0
      %3665 = vmatprep.subr.mxu0 0.0
      %3666 = vmatpush1.msra.mxu0 0.0
      %3667 = vmatprep.subr.mxu0 0.0
      %3668 = vmatpush1.msra.mxu0 0.0
      %3669 = vmatprep.subr.mxu0 0.0
      %3670 = vmatpush1.msra.mxu0 0.0
      %3671 = vmatprep.subr.mxu0 0.0
      %3672 = vmatpush1.msra.mxu0 0.0
      %3673 = vmatprep.subr.mxu0 0.0
      %3674 = vmatpush1.msra.mxu0 0.0
      %3675 = vmatprep.subr.mxu0 0.0
      %3676 = vmatpush1.msra.mxu0 0.0
      %3677 = vmatprep.subr.mxu0 0.0
      %3678 = vmatpush1.msra.mxu0 0.0
      %3679 = vmatprep.subr.mxu0 0.0
      %3680 = vmatpush1.msra.mxu0 0.0
      %3681 = vmatprep.subr.mxu0 0.0
      %3682 = vmatpush1.msra.mxu0 0.0
      %3683 = vmatprep.subr.mxu0 0.0
      %3684 = vmatpush1.msra.mxu0 0.0
      %3685 = vmatprep.subr.mxu0 0.0
      %3686 = vmatpush1.msra.mxu0 0.0
      %3687 = vmatprep.subr.mxu0 0.0
      %3688 = vmatpush1.msra.mxu0 0.0
      %3689 = vmatprep.subr.mxu0 0.0
      %3690 = vmatpush1.msra.mxu0 0.0
      %3691 = vmatprep.subr.mxu0 0.0
      %3692 = vmatpush1.msra.mxu0 0.0
      %3693 = vmatprep.subr.mxu0 0.0
      %3694 = vmatpush1.msra.mxu0 0.0
      %3695 = vmatprep.subr.mxu0 0.0
      %3696 = vmatpush1.msra.mxu0 0.0
      %3697 = vmatprep.subr.mxu0 0.0
      %3698 = vmatpush1.msra.mxu0 0.0
      %3699 = vmatprep.subr.mxu0 0.0
      %3700 = vmatpush1.msra.mxu0 0.0
      %3701 = vmatprep.subr.mxu0 0.0
      %3702 = vmatpush1.msra.mxu0 0.0
      %3703 = vmatprep.subr.mxu0 0.0
      %3704 = vmatpush1.msra.mxu0 0.0
      %3705 = vmatprep.subr.mxu0 0.0
      %3706 = vmatpush1.msra.mxu0 0.0
      %3707 = vmatprep.subr.mxu0 0.0
      %3708 = vmatpush1.msra.mxu0 0.0
      %3709 = vmatprep.subr.mxu0 0.0
      %3710 = vmatpush1.msra.mxu0 0.0
      %3711 = vmatprep.subr.mxu0 0.0
      %3712 = vmatpush1.msra.mxu0 0.0
      %3713 = vmatprep.subr.mxu0 0.0
      %3714 = vmatpush1.msra.mxu0 0.0
      %3715 = vmatprep.subr.mxu0 0.0
      %3716 = vmatpush1.msra.mxu0 0.0
      %3717 = vmatprep.subr.mxu0 0.0
      %3718 = vmatpush1.msra.mxu0 0.0
      %3719 = vmatprep.mubr.f32.mxu0 0.0
      %3720 = vmatmul.mubr.f32.gmra.mrb[0].mxu0 %v3605
      %v3721 = vpop.f32.mrb[0].mxu0
      %v3722 = vadd.f32 0.0, %v3721
      %v3723 = vpop.f32.mrb[0].mxu0
      %3724 = vmatprep.mubr.f32.mxu0 0.0
      %3725 = vmatmul.mubr.f32.gmra.mrb[0].mxu0 %v3608
      %v3726 = vpop.f32.mrb[0].mxu0
      %v3727 = vadd.f32 0.0, %v3726
      %v3728 = vpop.f32.mrb[0].mxu0
      %3729 = vmatprep.mubr.f32.mxu0 0.0
      %3730 = vmatmul.mubr.f32.gmra.mrb[0].mxu0 %v3611
      %v3731 = vpop.f32.mrb[0].mxu0
      %v3732 = vadd.f32 0.0, %v3731
      %v3733 = vpop.f32.mrb[0].mxu0
      %3734 = vmatprep.mubr.f32.mxu0 0.0
      %3735 = vmatmul.mubr.f32.gmra.mrb[0].mxu0 %v3614
      %v3736 = vpop.f32.mrb[0].mxu0
      %v3737 = vadd.f32 0.0, %v3736
      %v3738 = vpop.f32.mrb[0].mxu0
      %3739 = vmatprep.mubr.f32.mxu0 0.0
      %3740 = vmatmul.mubr.f32.gmra.mrb[0].mxu0 %v3617
      %v3741 = vpop.f32.mrb[0].mxu0
      %v3742 = vadd.f32 0.0, %v3741
      %v3743 = vpop.f32.mrb[0].mxu0
      %3744 = vmatprep.mubr.f32.mxu0 0.0
      %3745 = vmatmul.mubr.f32.gmra.mrb[0].mxu0 %v3620
      %v3746 = vpop.f32.mrb[0].mxu0
      %v3747 = vadd.f32 0.0, %v3746
      %v3748 = vpop.f32.mrb[0].mxu0
      %3749 = vmatprep.mubr.f32.mxu0 0.0
      %3750 = vmatmul.mubr.f32.gmra.mrb[0].mxu0 %v3623
      %v3751 = vpop.f32.mrb[0].mxu0
      %v3752 = vadd.f32 0.0, %v3751
      %v3753 = vpop.f32.mrb[0].mxu0
      %3754 = vmatprep.mubr.f32.mxu0 0.0
      %3755 = vmatmul.mubr.f32.gmra.mrb[0].mxu0 %v3626
      %v3756 = vpop.f32.mrb[0].mxu0
      %v3757 = vadd.f32 0.0, %v3756
      %v3758 = vpop.f32.mrb[0].mxu0
      %3759 = vmatprep.mubr.f32.mxu0 0.0
      %3760 = vmatmul.mubr.f32.gmra.mrb[0].mxu0 %v3629
      %v3761 = vpop.f32.mrb[0].mxu0
      %v3762 = vadd.f32 0.0, %v3761
      %v3763 = vpop.f32.mrb[0].mxu0
      %3764 = vmatprep.mubr.f32.mxu0 0.0
      %3765 = vmatmul.mubr.f32.gmra.mrb[0].mxu0 %v3632
      %v3766 = vpop.f32.mrb[0].mxu0
      %v3767 = vadd.f32 0.0, %v3766
      %v3768 = vpop.f32.mrb[0].mxu0
      %3769 = vmatprep.mubr.f32.mxu0 0.0
      %3770 = vmatmul.mubr.f32.gmra.mrb[0].mxu0 %v3635
      %v3771 = vpop.f32.mrb[0].mxu0
      %v3772 = vadd.f32 0.0, %v3771
      %v3773 = vpop.f32.mrb[0].mxu0
      %3774 = vmatprep.mubr.f32.mxu0 0.0
      %3775 = vmatmul.mubr.f32.gmra.mrb[0].mxu0 %v3638
      %v3776 = vpop.f32.mrb[0].mxu0
      %v3777 = vadd.f32 0.0, %v3776
      %v3778 = vpop.f32.mrb[0].mxu0
      %3779 = vmatprep.mubr.f32.mxu0 0.0
      %3780 = vmatmul.mubr.f32.gmra.mrb[0].mxu0 %v3641
      %v3781 = vpop.f32.mrb[0].mxu0
      %v3782 = vadd.f32 0.0, %v3781
      %v3783 = vpop.f32.mrb[0].mxu0
      %3784 = vmatprep.mubr.f32.mxu0 0.0
      %3785 = vmatmul.mubr.f32.gmra.mrb[0].mxu0 %v3644
      %v3786 = vpop.f32.mrb[0].mxu0
      %v3787 = vadd.f32 0.0, %v3786
      %v3788 = vpop.f32.mrb[0].mxu0
      %3789 = vmatprep.mubr.f32.mxu0 0.0
      %3790 = vmatmul.mubr.f32.gmra.mrb[0].mxu0 %v3647
      %v3791 = vpop.f32.mrb[0].mxu0
      %v3792 = vadd.f32 0.0, %v3791
      %v3793 = vpop.f32.mrb[0].mxu0
      %3794 = vmatprep.mubr.f32.mxu0 0.0
      %3795 = vmatmul.mubr.f32.gmra.mrb[0].mxu0 %v3650
      %v3796 = vpop.f32.mrb[0].mxu0
      %v3797 = vadd.f32 0.0, %v3796
      %v3798 = vpop.f32.mrb[0].mxu0
      %3799 = vdwg.mxu0
      %v3800 = vadd.f32 %v3571, %v3722
      %v3801 = vadd.f32 %v3572, %v3727
      %v3802 = vadd.f32 %v3573, %v3732
      %v3803 = vadd.f32 %v3574, %v3737
      %v3804 = vadd.f32 %v3575, %v3742
      %v3805 = vadd.f32 %v3576, %v3747
      %v3806 = vadd.f32 %v3577, %v3752
      %v3807 = vadd.f32 %v3578, %v3757
      %v3808 = vadd.f32 %v3579, %v3762
      %v3809 = vadd.f32 %v3580, %v3767
      %v3810 = vadd.f32 %v3581, %v3772
      %v3811 = vadd.f32 %v3582, %v3777
      %v3812 = vadd.f32 %v3583, %v3782
      %v3813 = vadd.f32 %v3584, %v3787
      %v3814 = vadd.f32 %v3585, %v3792
      %v3815 = vadd.f32 %v3586, %v3797
      %v3816 = vld [vmem:[%s210 + $0xb0] sm:$0xff]
      %v3817 = vld [vmem:[%s210 + $0xb8] sm:$0xff]
      %v3818 = vld [vmem:[%s210 + $0xc0] sm:$0xff]
      %v3819 = vld [vmem:[%s210 + $0xc8] sm:$0xff]
      %v3820 = vld [vmem:[%s210 + $0xd0] sm:$0xff]
      %v3821 = vld [vmem:[%s210 + $0xd8] sm:$0xff]
      %v3822 = vld [vmem:[%s210 + $0xe0] sm:$0xff]
      %v3823 = vld [vmem:[%s210 + $0xe8] sm:$0xff]
      %v3824 = vld [vmem:[%s210 + $0xf0] sm:$0xff]
      %v3825 = vld [vmem:[%s210 + $0xf8] sm:$0xff]
      %v3826 = vld [vmem:[%s210 + $0x100] sm:$0xff]
      %v3827 = vld [vmem:[%s210 + $0x108] sm:$0xff]
      %v3828 = vld [vmem:[%s210 + $0x110] sm:$0xff]
      %v3829 = vld [vmem:[%s210 + $0x118] sm:$0xff]
      %v3830 = vld [vmem:[%s210 + $0x120] sm:$0xff]
      %v3831 = vld [vmem:[%s210 + $0x128] sm:$0xff]
      %v3832 = vld [vmem:[%s1708] sm:$0xf]
      %v3834 = vsel %vm316, %v3816, 0
      %v3837 = vsel %vm316, %v3817, 0
      %v3840 = vsel %vm316, %v3818, 0
      %v3843 = vsel %vm316, %v3819, 0
      %v3846 = vsel %vm316, %v3820, 0
      %v3849 = vsel %vm316, %v3821, 0
      %v3852 = vsel %vm316, %v3822, 0
      %v3855 = vsel %vm316, %v3823, 0
      %v3858 = vsel %vm316, %v3824, 0
      %v3861 = vsel %vm316, %v3825, 0
      %v3864 = vsel %vm316, %v3826, 0
      %v3867 = vsel %vm316, %v3827, 0
      %v3870 = vsel %vm316, %v3828, 0
      %v3873 = vsel %vm316, %v3829, 0
      %v3876 = vsel %vm316, %v3830, 0
      %v3879 = vsel %vm316, %v3831, 0
      %v3882 = vsel %vm365, %v3832, 0
      %3884 = vmatprep.subr.mxu0 0.0
      %3885 = vmatpush1.msra.mxu0 %v3882
      %3886 = vmatprep.subr.mxu0 0.0
      %3887 = vmatpush1.msra.mxu0 0.0
      %3888 = vmatprep.subr.mxu0 0.0
      %3889 = vmatpush1.msra.mxu0 0.0
      %3890 = vmatprep.subr.mxu0 0.0
      %3891 = vmatpush1.msra.mxu0 0.0
      %3892 = vmatprep.subr.mxu0 0.0
      %3893 = vmatpush1.msra.mxu0 0.0
      %3894 = vmatprep.subr.mxu0 0.0
      %3895 = vmatpush1.msra.mxu0 0.0
      %3896 = vmatprep.subr.mxu0 0.0
      %3897 = vmatpush1.msra.mxu0 0.0
      %3898 = vmatprep.subr.mxu0 0.0
      %3899 = vmatpush1.msra.mxu0 0.0
      %3900 = vmatprep.subr.mxu0 0.0
      %3901 = vmatpush1.msra.mxu0 0.0
      %3902 = vmatprep.subr.mxu0 0.0
      %3903 = vmatpush1.msra.mxu0 0.0
      %3904 = vmatprep.subr.mxu0 0.0
      %3905 = vmatpush1.msra.mxu0 0.0
      %3906 = vmatprep.subr.mxu0 0.0
      %3907 = vmatpush1.msra.mxu0 0.0
      %3908 = vmatprep.subr.mxu0 0.0
      %3909 = vmatpush1.msra.mxu0 0.0
      %3910 = vmatprep.subr.mxu0 0.0
      %3911 = vmatpush1.msra.mxu0 0.0
      %3912 = vmatprep.subr.mxu0 0.0
      %3913 = vmatpush1.msra.mxu0 0.0
      %3914 = vmatprep.subr.mxu0 0.0
      %3915 = vmatpush1.msra.mxu0 0.0
      %3916 = vmatprep.subr.mxu0 0.0
      %3917 = vmatpush1.msra.mxu0 0.0
      %3918 = vmatprep.subr.mxu0 0.0
      %3919 = vmatpush1.msra.mxu0 0.0
      %3920 = vmatprep.subr.mxu0 0.0
      %3921 = vmatpush1.msra.mxu0 0.0
      %3922 = vmatprep.subr.mxu0 0.0
      %3923 = vmatpush1.msra.mxu0 0.0
      %3924 = vmatprep.subr.mxu0 0.0
      %3925 = vmatpush1.msra.mxu0 0.0
      %3926 = vmatprep.subr.mxu0 0.0
      %3927 = vmatpush1.msra.mxu0 0.0
      %3928 = vmatprep.subr.mxu0 0.0
      %3929 = vmatpush1.msra.mxu0 0.0
      %3930 = vmatprep.subr.mxu0 0.0
      %3931 = vmatpush1.msra.mxu0 0.0
      %3932 = vmatprep.subr.mxu0 0.0
      %3933 = vmatpush1.msra.mxu0 0.0
      %3934 = vmatprep.subr.mxu0 0.0
      %3935 = vmatpush1.msra.mxu0 0.0
      %3936 = vmatprep.subr.mxu0 0.0
      %3937 = vmatpush1.msra.mxu0 0.0
      %3938 = vmatprep.subr.mxu0 0.0
      %3939 = vmatpush1.msra.mxu0 0.0
      %3940 = vmatprep.subr.mxu0 0.0
      %3941 = vmatpush1.msra.mxu0 0.0
      %3942 = vmatprep.subr.mxu0 0.0
      %3943 = vmatpush1.msra.mxu0 0.0
      %3944 = vmatprep.subr.mxu0 0.0
      %3945 = vmatpush1.msra.mxu0 0.0
      %3946 = vmatprep.subr.mxu0 0.0
      %3947 = vmatpush1.msra.mxu0 0.0
      %3948 = vmatprep.mubr.f32.mxu0 0.0
      %3949 = vmatmul.mubr.f32.gmra.mrb[0].mxu0 %v3834
      %v3950 = vpop.f32.mrb[0].mxu0
      %v3951 = vadd.f32 0.0, %v3950
      %v3952 = vpop.f32.mrb[0].mxu0
      %3953 = vmatprep.mubr.f32.mxu0 0.0
      %3954 = vmatmul.mubr.f32.gmra.mrb[0].mxu0 %v3837
      %v3955 = vpop.f32.mrb[0].mxu0
      %v3956 = vadd.f32 0.0, %v3955
      %v3957 = vpop.f32.mrb[0].mxu0
      %3958 = vmatprep.mubr.f32.mxu0 0.0
      %3959 = vmatmul.mubr.f32.gmra.mrb[0].mxu0 %v3840
      %v3960 = vpop.f32.mrb[0].mxu0
      %v3961 = vadd.f32 0.0, %v3960
      %v3962 = vpop.f32.mrb[0].mxu0
      %3963 = vmatprep.mubr.f32.mxu0 0.0
      %3964 = vmatmul.mubr.f32.gmra.mrb[0].mxu0 %v3843
      %v3965 = vpop.f32.mrb[0].mxu0
      %v3966 = vadd.f32 0.0, %v3965
      %v3967 = vpop.f32.mrb[0].mxu0
      %3968 = vmatprep.mubr.f32.mxu0 0.0
      %3969 = vmatmul.mubr.f32.gmra.mrb[0].mxu0 %v3846
      %v3970 = vpop.f32.mrb[0].mxu0
      %v3971 = vadd.f32 0.0, %v3970
      %v3972 = vpop.f32.mrb[0].mxu0
      %3973 = vmatprep.mubr.f32.mxu0 0.0
      %3974 = vmatmul.mubr.f32.gmra.mrb[0].mxu0 %v3849
      %v3975 = vpop.f32.mrb[0].mxu0
      %v3976 = vadd.f32 0.0, %v3975
      %v3977 = vpop.f32.mrb[0].mxu0
      %3978 = vmatprep.mubr.f32.mxu0 0.0
      %3979 = vmatmul.mubr.f32.gmra.mrb[0].mxu0 %v3852
      %v3980 = vpop.f32.mrb[0].mxu0
      %v3981 = vadd.f32 0.0, %v3980
      %v3982 = vpop.f32.mrb[0].mxu0
      %3983 = vmatprep.mubr.f32.mxu0 0.0
      %3984 = vmatmul.mubr.f32.gmra.mrb[0].mxu0 %v3855
      %v3985 = vpop.f32.mrb[0].mxu0
      %v3986 = vadd.f32 0.0, %v3985
      %v3987 = vpop.f32.mrb[0].mxu0
      %3988 = vmatprep.mubr.f32.mxu0 0.0
      %3989 = vmatmul.mubr.f32.gmra.mrb[0].mxu0 %v3858
      %v3990 = vpop.f32.mrb[0].mxu0
      %v3991 = vadd.f32 0.0, %v3990
      %v3992 = vpop.f32.mrb[0].mxu0
      %3993 = vmatprep.mubr.f32.mxu0 0.0
      %3994 = vmatmul.mubr.f32.gmra.mrb[0].mxu0 %v3861
      %v3995 = vpop.f32.mrb[0].mxu0
      %v3996 = vadd.f32 0.0, %v3995
      %v3997 = vpop.f32.mrb[0].mxu0
      %3998 = vmatprep.mubr.f32.mxu0 0.0
      %3999 = vmatmul.mubr.f32.gmra.mrb[0].mxu0 %v3864
      %v4000 = vpop.f32.mrb[0].mxu0
      %v4001 = vadd.f32 0.0, %v4000
      %v4002 = vpop.f32.mrb[0].mxu0
      %4003 = vmatprep.mubr.f32.mxu0 0.0
      %4004 = vmatmul.mubr.f32.gmra.mrb[0].mxu0 %v3867
      %v4005 = vpop.f32.mrb[0].mxu0
      %v4006 = vadd.f32 0.0, %v4005
      %v4007 = vpop.f32.mrb[0].mxu0
      %4008 = vmatprep.mubr.f32.mxu0 0.0
      %4009 = vmatmul.mubr.f32.gmra.mrb[0].mxu0 %v3870
      %v4010 = vpop.f32.mrb[0].mxu0
      %v4011 = vadd.f32 0.0, %v4010
      %v4012 = vpop.f32.mrb[0].mxu0
      %4013 = vmatprep.mubr.f32.mxu0 0.0
      %4014 = vmatmul.mubr.f32.gmra.mrb[0].mxu0 %v3873
      %v4015 = vpop.f32.mrb[0].mxu0
      %v4016 = vadd.f32 0.0, %v4015
      %v4017 = vpop.f32.mrb[0].mxu0
      %4018 = vmatprep.mubr.f32.mxu0 0.0
      %4019 = vmatmul.mubr.f32.gmra.mrb[0].mxu0 %v3876
      %v4020 = vpop.f32.mrb[0].mxu0
      %v4021 = vadd.f32 0.0, %v4020
      %v4022 = vpop.f32.mrb[0].mxu0
      %4023 = vmatprep.mubr.f32.mxu0 0.0
      %4024 = vmatmul.mubr.f32.gmra.mrb[0].mxu0 %v3879
      %v4025 = vpop.f32.mrb[0].mxu0
      %v4026 = vadd.f32 0.0, %v4025
      %v4027 = vpop.f32.mrb[0].mxu0
      %4028 = vdwg.mxu0
      %v4029 = vadd.f32 %v3800, %v3951
      %v4030 = vadd.f32 %v3801, %v3956
      %v4031 = vadd.f32 %v3802, %v3961
      %v4032 = vadd.f32 %v3803, %v3966
      %v4033 = vadd.f32 %v3804, %v3971
      %v4034 = vadd.f32 %v3805, %v3976
      %v4035 = vadd.f32 %v3806, %v3981
      %v4036 = vadd.f32 %v3807, %v3986
      %v4037 = vadd.f32 %v3808, %v3991
      %v4038 = vadd.f32 %v3809, %v3996
      %v4039 = vadd.f32 %v3810, %v4001
      %v4040 = vadd.f32 %v3811, %v4006
      %v4041 = vadd.f32 %v3812, %v4011
      %v4042 = vadd.f32 %v3813, %v4016
      %v4043 = vadd.f32 %v3814, %v4021
      %v4044 = vadd.f32 %v3815, %v4026
      %v4045 = vld [vmem:[%s210 + $0xb1] sm:$0xff]
      %v4046 = vld [vmem:[%s210 + $0xb9] sm:$0xff]
      %v4047 = vld [vmem:[%s210 + $0xc1] sm:$0xff]
      %v4048 = vld [vmem:[%s210 + $0xc9] sm:$0xff]
      %v4049 = vld [vmem:[%s210 + $0xd1] sm:$0xff]
      %v4050 = vld [vmem:[%s210 + $0xd9] sm:$0xff]
      %v4051 = vld [vmem:[%s210 + $0xe1] sm:$0xff]
      %v4052 = vld [vmem:[%s210 + $0xe9] sm:$0xff]
      %v4053 = vld [vmem:[%s210 + $0xf1] sm:$0xff]
      %v4054 = vld [vmem:[%s210 + $0xf9] sm:$0xff]
      %v4055 = vld [vmem:[%s210 + $0x101] sm:$0xff]
      %v4056 = vld [vmem:[%s210 + $0x109] sm:$0xff]
      %v4057 = vld [vmem:[%s210 + $0x111] sm:$0xff]
      %v4058 = vld [vmem:[%s210 + $0x119] sm:$0xff]
      %v4059 = vld [vmem:[%s210 + $0x121] sm:$0xff]
      %v4060 = vld [vmem:[%s210 + $0x129] sm:$0xff]
      %v4061 = vld [vmem:[%s1940] sm:$0xf]
      %v4063 = vsel %vm316, %v4045, 0
      %v4066 = vsel %vm316, %v4046, 0
      %v4069 = vsel %vm316, %v4047, 0
      %v4072 = vsel %vm316, %v4048, 0
      %v4075 = vsel %vm316, %v4049, 0
      %v4078 = vsel %vm316, %v4050, 0
      %v4081 = vsel %vm316, %v4051, 0
      %v4084 = vsel %vm316, %v4052, 0
      %v4087 = vsel %vm316, %v4053, 0
      %v4090 = vsel %vm316, %v4054, 0
      %v4093 = vsel %vm316, %v4055, 0
      %v4096 = vsel %vm316, %v4056, 0
      %v4099 = vsel %vm316, %v4057, 0
      %v4102 = vsel %vm316, %v4058, 0
      %v4105 = vsel %vm316, %v4059, 0
      %v4108 = vsel %vm316, %v4060, 0
      %v4111 = vsel %vm365, %v4061, 0
      %4113 = vmatprep.subr.mxu0 0.0
      %4114 = vmatpush1.msra.mxu0 %v4111
      %4115 = vmatprep.subr.mxu0 0.0
      %4116 = vmatpush1.msra.mxu0 0.0
      %4117 = vmatprep.subr.mxu0 0.0
      %4118 = vmatpush1.msra.mxu0 0.0
      %4119 = vmatprep.subr.mxu0 0.0
      %4120 = vmatpush1.msra.mxu0 0.0
      %4121 = vmatprep.subr.mxu0 0.0
      %4122 = vmatpush1.msra.mxu0 0.0
      %4123 = vmatprep.subr.mxu0 0.0
      %4124 = vmatpush1.msra.mxu0 0.0
      %4125 = vmatprep.subr.mxu0 0.0
      %4126 = vmatpush1.msra.mxu0 0.0
      %4127 = vmatprep.subr.mxu0 0.0
      %4128 = vmatpush1.msra.mxu0 0.0
      %4129 = vmatprep.subr.mxu0 0.0
      %4130 = vmatpush1.msra.mxu0 0.0
      %4131 = vmatprep.subr.mxu0 0.0
      %4132 = vmatpush1.msra.mxu0 0.0
      %4133 = vmatprep.subr.mxu0 0.0
      %4134 = vmatpush1.msra.mxu0 0.0
      %4135 = vmatprep.subr.mxu0 0.0
      %4136 = vmatpush1.msra.mxu0 0.0
      %4137 = vmatprep.subr.mxu0 0.0
      %4138 = vmatpush1.msra.mxu0 0.0
      %4139 = vmatprep.subr.mxu0 0.0
      %4140 = vmatpush1.msra.mxu0 0.0
      %4141 = vmatprep.subr.mxu0 0.0
      %4142 = vmatpush1.msra.mxu0 0.0
      %4143 = vmatprep.subr.mxu0 0.0
      %4144 = vmatpush1.msra.mxu0 0.0
      %4145 = vmatprep.subr.mxu0 0.0
      %4146 = vmatpush1.msra.mxu0 0.0
      %4147 = vmatprep.subr.mxu0 0.0
      %4148 = vmatpush1.msra.mxu0 0.0
      %4149 = vmatprep.subr.mxu0 0.0
      %4150 = vmatpush1.msra.mxu0 0.0
      %4151 = vmatprep.subr.mxu0 0.0
      %4152 = vmatpush1.msra.mxu0 0.0
      %4153 = vmatprep.subr.mxu0 0.0
      %4154 = vmatpush1.msra.mxu0 0.0
      %4155 = vmatprep.subr.mxu0 0.0
      %4156 = vmatpush1.msra.mxu0 0.0
      %4157 = vmatprep.subr.mxu0 0.0
      %4158 = vmatpush1.msra.mxu0 0.0
      %4159 = vmatprep.subr.mxu0 0.0
      %4160 = vmatpush1.msra.mxu0 0.0
      %4161 = vmatprep.subr.mxu0 0.0
      %4162 = vmatpush1.msra.mxu0 0.0
      %4163 = vmatprep.subr.mxu0 0.0
      %4164 = vmatpush1.msra.mxu0 0.0
      %4165 = vmatprep.subr.mxu0 0.0
      %4166 = vmatpush1.msra.mxu0 0.0
      %4167 = vmatprep.subr.mxu0 0.0
      %4168 = vmatpush1.msra.mxu0 0.0
      %4169 = vmatprep.subr.mxu0 0.0
      %4170 = vmatpush1.msra.mxu0 0.0
      %4171 = vmatprep.subr.mxu0 0.0
      %4172 = vmatpush1.msra.mxu0 0.0
      %4173 = vmatprep.subr.mxu0 0.0
      %4174 = vmatpush1.msra.mxu0 0.0
      %4175 = vmatprep.subr.mxu0 0.0
      %4176 = vmatpush1.msra.mxu0 0.0
      %4177 = vmatprep.mubr.f32.mxu0 0.0
      %4178 = vmatmul.mubr.f32.gmra.mrb[0].mxu0 %v4063
      %v4179 = vpop.f32.mrb[0].mxu0
      %v4180 = vadd.f32 0.0, %v4179
      %v4181 = vpop.f32.mrb[0].mxu0
      %4182 = vmatprep.mubr.f32.mxu0 0.0
      %4183 = vmatmul.mubr.f32.gmra.mrb[0].mxu0 %v4066
      %v4184 = vpop.f32.mrb[0].mxu0
      %v4185 = vadd.f32 0.0, %v4184
      %v4186 = vpop.f32.mrb[0].mxu0
      %4187 = vmatprep.mubr.f32.mxu0 0.0
      %4188 = vmatmul.mubr.f32.gmra.mrb[0].mxu0 %v4069
      %v4189 = vpop.f32.mrb[0].mxu0
      %v4190 = vadd.f32 0.0, %v4189
      %v4191 = vpop.f32.mrb[0].mxu0
      %4192 = vmatprep.mubr.f32.mxu0 0.0
      %4193 = vmatmul.mubr.f32.gmra.mrb[0].mxu0 %v4072
      %v4194 = vpop.f32.mrb[0].mxu0
      %v4195 = vadd.f32 0.0, %v4194
      %v4196 = vpop.f32.mrb[0].mxu0
      %4197 = vmatprep.mubr.f32.mxu0 0.0
      %4198 = vmatmul.mubr.f32.gmra.mrb[0].mxu0 %v4075
      %v4199 = vpop.f32.mrb[0].mxu0
      %v4200 = vadd.f32 0.0, %v4199
      %v4201 = vpop.f32.mrb[0].mxu0
      %4202 = vmatprep.mubr.f32.mxu0 0.0
      %4203 = vmatmul.mubr.f32.gmra.mrb[0].mxu0 %v4078
      %v4204 = vpop.f32.mrb[0].mxu0
      %v4205 = vadd.f32 0.0, %v4204
      %v4206 = vpop.f32.mrb[0].mxu0
      %4207 = vmatprep.mubr.f32.mxu0 0.0
      %4208 = vmatmul.mubr.f32.gmra.mrb[0].mxu0 %v4081
      %v4209 = vpop.f32.mrb[0].mxu0
      %v4210 = vadd.f32 0.0, %v4209
      %v4211 = vpop.f32.mrb[0].mxu0
      %4212 = vmatprep.mubr.f32.mxu0 0.0
      %4213 = vmatmul.mubr.f32.gmra.mrb[0].mxu0 %v4084
      %v4214 = vpop.f32.mrb[0].mxu0
      %v4215 = vadd.f32 0.0, %v4214
      %v4216 = vpop.f32.mrb[0].mxu0
      %4217 = vmatprep.mubr.f32.mxu0 0.0
      %4218 = vmatmul.mubr.f32.gmra.mrb[0].mxu0 %v4087
      %v4219 = vpop.f32.mrb[0].mxu0
      %v4220 = vadd.f32 0.0, %v4219
      %v4221 = vpop.f32.mrb[0].mxu0
      %4222 = vmatprep.mubr.f32.mxu0 0.0
      %4223 = vmatmul.mubr.f32.gmra.mrb[0].mxu0 %v4090
      %v4224 = vpop.f32.mrb[0].mxu0
      %v4225 = vadd.f32 0.0, %v4224
      %v4226 = vpop.f32.mrb[0].mxu0
      %4227 = vmatprep.mubr.f32.mxu0 0.0
      %4228 = vmatmul.mubr.f32.gmra.mrb[0].mxu0 %v4093
      %v4229 = vpop.f32.mrb[0].mxu0
      %v4230 = vadd.f32 0.0, %v4229
      %v4231 = vpop.f32.mrb[0].mxu0
      %4232 = vmatprep.mubr.f32.mxu0 0.0
      %4233 = vmatmul.mubr.f32.gmra.mrb[0].mxu0 %v4096
      %v4234 = vpop.f32.mrb[0].mxu0
      %v4235 = vadd.f32 0.0, %v4234
      %v4236 = vpop.f32.mrb[0].mxu0
      %4237 = vmatprep.mubr.f32.mxu0 0.0
      %4238 = vmatmul.mubr.f32.gmra.mrb[0].mxu0 %v4099
      %v4239 = vpop.f32.mrb[0].mxu0
      %v4240 = vadd.f32 0.0, %v4239
      %v4241 = vpop.f32.mrb[0].mxu0
      %4242 = vmatprep.mubr.f32.mxu0 0.0
      %4243 = vmatmul.mubr.f32.gmra.mrb[0].mxu0 %v4102
      %v4244 = vpop.f32.mrb[0].mxu0
      %v4245 = vadd.f32 0.0, %v4244
      %v4246 = vpop.f32.mrb[0].mxu0
      %4247 = vmatprep.mubr.f32.mxu0 0.0
      %4248 = vmatmul.mubr.f32.gmra.mrb[0].mxu0 %v4105
      %v4249 = vpop.f32.mrb[0].mxu0
      %v4250 = vadd.f32 0.0, %v4249
      %v4251 = vpop.f32.mrb[0].mxu0
      %4252 = vmatprep.mubr.f32.mxu0 0.0
      %4253 = vmatmul.mubr.f32.gmra.mrb[0].mxu0 %v4108
      %v4254 = vpop.f32.mrb[0].mxu0
      %v4255 = vadd.f32 0.0, %v4254
      %v4256 = vpop.f32.mrb[0].mxu0
      %4257 = vdwg.mxu0
      %v4258 = vadd.f32 %v4029, %v4180
      %v4259 = vadd.f32 %v4030, %v4185
      %v4260 = vadd.f32 %v4031, %v4190
      %v4261 = vadd.f32 %v4032, %v4195
      %v4262 = vadd.f32 %v4033, %v4200
      %v4263 = vadd.f32 %v4034, %v4205
      %v4264 = vadd.f32 %v4035, %v4210
      %v4265 = vadd.f32 %v4036, %v4215
      %v4266 = vadd.f32 %v4037, %v4220
      %v4267 = vadd.f32 %v4038, %v4225
      %v4268 = vadd.f32 %v4039, %v4230
      %v4269 = vadd.f32 %v4040, %v4235
      %v4270 = vadd.f32 %v4041, %v4240
      %v4271 = vadd.f32 %v4042, %v4245
      %v4272 = vadd.f32 %v4043, %v4250
      %v4273 = vadd.f32 %v4044, %v4255
      %v4274 = vld [vmem:[%s210 + $0xb2] sm:$0xff]
      %v4275 = vld [vmem:[%s210 + $0xba] sm:$0xff]
      %v4276 = vld [vmem:[%s210 + $0xc2] sm:$0xff]
      %v4277 = vld [vmem:[%s210 + $0xca] sm:$0xff]
      %v4278 = vld [vmem:[%s210 + $0xd2] sm:$0xff]
      %v4279 = vld [vmem:[%s210 + $0xda] sm:$0xff]
      %v4280 = vld [vmem:[%s210 + $0xe2] sm:$0xff]
      %v4281 = vld [vmem:[%s210 + $0xea] sm:$0xff]
      %v4282 = vld [vmem:[%s210 + $0xf2] sm:$0xff]
      %v4283 = vld [vmem:[%s210 + $0xfa] sm:$0xff]
      %v4284 = vld [vmem:[%s210 + $0x102] sm:$0xff]
      %v4285 = vld [vmem:[%s210 + $0x10a] sm:$0xff]
      %v4286 = vld [vmem:[%s210 + $0x112] sm:$0xff]
      %v4287 = vld [vmem:[%s210 + $0x11a] sm:$0xff]
      %v4288 = vld [vmem:[%s210 + $0x122] sm:$0xff]
      %v4289 = vld [vmem:[%s210 + $0x12a] sm:$0xff]
      %v4290 = vld [vmem:[%s2172] sm:$0xf]
      %v4292 = vsel %vm316, %v4274, 0
      %v4295 = vsel %vm316, %v4275, 0
      %v4298 = vsel %vm316, %v4276, 0
      %v4301 = vsel %vm316, %v4277, 0
      %v4304 = vsel %vm316, %v4278, 0
      %v4307 = vsel %vm316, %v4279, 0
      %v4310 = vsel %vm316, %v4280, 0
      %v4313 = vsel %vm316, %v4281, 0
      %v4316 = vsel %vm316, %v4282, 0
      %v4319 = vsel %vm316, %v4283, 0
      %v4322 = vsel %vm316, %v4284, 0
      %v4325 = vsel %vm316, %v4285, 0
      %v4328 = vsel %vm316, %v4286, 0
      %v4331 = vsel %vm316, %v4287, 0
      %v4334 = vsel %vm316, %v4288, 0
      %v4337 = vsel %vm316, %v4289, 0
      %v4340 = vsel %vm365, %v4290, 0
      %4342 = vmatprep.subr.mxu0 0.0
      %4343 = vmatpush1.msra.mxu0 %v4340
      %4344 = vmatprep.subr.mxu0 0.0
      %4345 = vmatpush1.msra.mxu0 0.0
      %4346 = vmatprep.subr.mxu0 0.0
      %4347 = vmatpush1.msra.mxu0 0.0
      %4348 = vmatprep.subr.mxu0 0.0
      %4349 = vmatpush1.msra.mxu0 0.0
      %4350 = vmatprep.subr.mxu0 0.0
      %4351 = vmatpush1.msra.mxu0 0.0
      %4352 = vmatprep.subr.mxu0 0.0
      %4353 = vmatpush1.msra.mxu0 0.0
      %4354 = vmatprep.subr.mxu0 0.0
      %4355 = vmatpush1.msra.mxu0 0.0
      %4356 = vmatprep.subr.mxu0 0.0
      %4357 = vmatpush1.msra.mxu0 0.0
      %4358 = vmatprep.subr.mxu0 0.0
      %4359 = vmatpush1.msra.mxu0 0.0
      %4360 = vmatprep.subr.mxu0 0.0
      %4361 = vmatpush1.msra.mxu0 0.0
      %4362 = vmatprep.subr.mxu0 0.0
      %4363 = vmatpush1.msra.mxu0 0.0
      %4364 = vmatprep.subr.mxu0 0.0
      %4365 = vmatpush1.msra.mxu0 0.0
      %4366 = vmatprep.subr.mxu0 0.0
      %4367 = vmatpush1.msra.mxu0 0.0
      %4368 = vmatprep.subr.mxu0 0.0
      %4369 = vmatpush1.msra.mxu0 0.0
      %4370 = vmatprep.subr.mxu0 0.0
      %4371 = vmatpush1.msra.mxu0 0.0
      %4372 = vmatprep.subr.mxu0 0.0
      %4373 = vmatpush1.msra.mxu0 0.0
      %4374 = vmatprep.subr.mxu0 0.0
      %4375 = vmatpush1.msra.mxu0 0.0
      %4376 = vmatprep.subr.mxu0 0.0
      %4377 = vmatpush1.msra.mxu0 0.0
      %4378 = vmatprep.subr.mxu0 0.0
      %4379 = vmatpush1.msra.mxu0 0.0
      %4380 = vmatprep.subr.mxu0 0.0
      %4381 = vmatpush1.msra.mxu0 0.0
      %4382 = vmatprep.subr.mxu0 0.0
      %4383 = vmatpush1.msra.mxu0 0.0
      %4384 = vmatprep.subr.mxu0 0.0
      %4385 = vmatpush1.msra.mxu0 0.0
      %4386 = vmatprep.subr.mxu0 0.0
      %4387 = vmatpush1.msra.mxu0 0.0
      %4388 = vmatprep.subr.mxu0 0.0
      %4389 = vmatpush1.msra.mxu0 0.0
      %4390 = vmatprep.subr.mxu0 0.0
      %4391 = vmatpush1.msra.mxu0 0.0
      %4392 = vmatprep.subr.mxu0 0.0
      %4393 = vmatpush1.msra.mxu0 0.0
      %4394 = vmatprep.subr.mxu0 0.0
      %4395 = vmatpush1.msra.mxu0 0.0
      %4396 = vmatprep.subr.mxu0 0.0
      %4397 = vmatpush1.msra.mxu0 0.0
      %4398 = vmatprep.subr.mxu0 0.0
      %4399 = vmatpush1.msra.mxu0 0.0
      %4400 = vmatprep.subr.mxu0 0.0
      %4401 = vmatpush1.msra.mxu0 0.0
      %4402 = vmatprep.subr.mxu0 0.0
      %4403 = vmatpush1.msra.mxu0 0.0
      %4404 = vmatprep.subr.mxu0 0.0
      %4405 = vmatpush1.msra.mxu0 0.0
      %4406 = vmatprep.mubr.f32.mxu0 0.0
      %4407 = vmatmul.mubr.f32.gmra.mrb[0].mxu0 %v4292
      %v4408 = vpop.f32.mrb[0].mxu0
      %v4409 = vadd.f32 0.0, %v4408
      %v4410 = vpop.f32.mrb[0].mxu0
      %4411 = vmatprep.mubr.f32.mxu0 0.0
      %4412 = vmatmul.mubr.f32.gmra.mrb[0].mxu0 %v4295
      %v4413 = vpop.f32.mrb[0].mxu0
      %v4414 = vadd.f32 0.0, %v4413
      %v4415 = vpop.f32.mrb[0].mxu0
      %4416 = vmatprep.mubr.f32.mxu0 0.0
      %4417 = vmatmul.mubr.f32.gmra.mrb[0].mxu0 %v4298
      %v4418 = vpop.f32.mrb[0].mxu0
      %v4419 = vadd.f32 0.0, %v4418
      %v4420 = vpop.f32.mrb[0].mxu0
      %4421 = vmatprep.mubr.f32.mxu0 0.0
      %4422 = vmatmul.mubr.f32.gmra.mrb[0].mxu0 %v4301
      %v4423 = vpop.f32.mrb[0].mxu0
      %v4424 = vadd.f32 0.0, %v4423
      %v4425 = vpop.f32.mrb[0].mxu0
      %4426 = vmatprep.mubr.f32.mxu0 0.0
      %4427 = vmatmul.mubr.f32.gmra.mrb[0].mxu0 %v4304
      %v4428 = vpop.f32.mrb[0].mxu0
      %v4429 = vadd.f32 0.0, %v4428
      %v4430 = vpop.f32.mrb[0].mxu0
      %4431 = vmatprep.mubr.f32.mxu0 0.0
      %4432 = vmatmul.mubr.f32.gmra.mrb[0].mxu0 %v4307
      %v4433 = vpop.f32.mrb[0].mxu0
      %v4434 = vadd.f32 0.0, %v4433
      %v4435 = vpop.f32.mrb[0].mxu0
      %4436 = vmatprep.mubr.f32.mxu0 0.0
      %4437 = vmatmul.mubr.f32.gmra.mrb[0].mxu0 %v4310
      %v4438 = vpop.f32.mrb[0].mxu0
      %v4439 = vadd.f32 0.0, %v4438
      %v4440 = vpop.f32.mrb[0].mxu0
      %4441 = vmatprep.mubr.f32.mxu0 0.0
      %4442 = vmatmul.mubr.f32.gmra.mrb[0].mxu0 %v4313
      %v4443 = vpop.f32.mrb[0].mxu0
      %v4444 = vadd.f32 0.0, %v4443
      %v4445 = vpop.f32.mrb[0].mxu0
      %4446 = vmatprep.mubr.f32.mxu0 0.0
      %4447 = vmatmul.mubr.f32.gmra.mrb[0].mxu0 %v4316
      %v4448 = vpop.f32.mrb[0].mxu0
      %v4449 = vadd.f32 0.0, %v4448
      %v4450 = vpop.f32.mrb[0].mxu0
      %4451 = vmatprep.mubr.f32.mxu0 0.0
      %4452 = vmatmul.mubr.f32.gmra.mrb[0].mxu0 %v4319
      %v4453 = vpop.f32.mrb[0].mxu0
      %v4454 = vadd.f32 0.0, %v4453
      %v4455 = vpop.f32.mrb[0].mxu0
      %4456 = vmatprep.mubr.f32.mxu0 0.0
      %4457 = vmatmul.mubr.f32.gmra.mrb[0].mxu0 %v4322
      %v4458 = vpop.f32.mrb[0].mxu0
      %v4459 = vadd.f32 0.0, %v4458
      %v4460 = vpop.f32.mrb[0].mxu0
      %4461 = vmatprep.mubr.f32.mxu0 0.0
      %4462 = vmatmul.mubr.f32.gmra.mrb[0].mxu0 %v4325
      %v4463 = vpop.f32.mrb[0].mxu0
      %v4464 = vadd.f32 0.0, %v4463
      %v4465 = vpop.f32.mrb[0].mxu0
      %4466 = vmatprep.mubr.f32.mxu0 0.0
      %4467 = vmatmul.mubr.f32.gmra.mrb[0].mxu0 %v4328
      %v4468 = vpop.f32.mrb[0].mxu0
      %v4469 = vadd.f32 0.0, %v4468
      %v4470 = vpop.f32.mrb[0].mxu0
      %4471 = vmatprep.mubr.f32.mxu0 0.0
      %4472 = vmatmul.mubr.f32.gmra.mrb[0].mxu0 %v4331
      %v4473 = vpop.f32.mrb[0].mxu0
      %v4474 = vadd.f32 0.0, %v4473
      %v4475 = vpop.f32.mrb[0].mxu0
      %4476 = vmatprep.mubr.f32.mxu0 0.0
      %4477 = vmatmul.mubr.f32.gmra.mrb[0].mxu0 %v4334
      %v4478 = vpop.f32.mrb[0].mxu0
      %v4479 = vadd.f32 0.0, %v4478
      %v4480 = vpop.f32.mrb[0].mxu0
      %4481 = vmatprep.mubr.f32.mxu0 0.0
      %4482 = vmatmul.mubr.f32.gmra.mrb[0].mxu0 %v4337
      %v4483 = vpop.f32.mrb[0].mxu0
      %v4484 = vadd.f32 0.0, %v4483
      %v4485 = vpop.f32.mrb[0].mxu0
      %4486 = vdwg.mxu0
      %v4487 = vadd.f32 %v4258, %v4409
      %v4488 = vadd.f32 %v4259, %v4414
      %v4489 = vadd.f32 %v4260, %v4419
      %v4490 = vadd.f32 %v4261, %v4424
      %v4491 = vadd.f32 %v4262, %v4429
      %v4492 = vadd.f32 %v4263, %v4434
      %v4493 = vadd.f32 %v4264, %v4439
      %v4494 = vadd.f32 %v4265, %v4444
      %v4495 = vadd.f32 %v4266, %v4449
      %v4496 = vadd.f32 %v4267, %v4454
      %v4497 = vadd.f32 %v4268, %v4459
      %v4498 = vadd.f32 %v4269, %v4464
      %v4499 = vadd.f32 %v4270, %v4469
      %v4500 = vadd.f32 %v4271, %v4474
      %v4501 = vadd.f32 %v4272, %v4479
      %v4502 = vadd.f32 %v4273, %v4484
      // Predicated region
      $region45: #{upsample_forward.1} parent=31 // pred_check
        %p4503 = pneg %p2386
      $region46: #{upsample_forward.1} parent=31 // pred_check_branch
        %4505 = sbr.rel (%p4503) target = $region48
      $region47: #{upsample_forward.1} parent=31 // pred_region
        %4506 = vst [vmem:[%s220 + $0x80] sm:$0xff] %v4487
        %4507 = vst [vmem:[%s220 + $0x88] sm:$0xff] %v4488
        %4508 = vst [vmem:[%s220 + $0x90] sm:$0xff] %v4489
        %4509 = vst [vmem:[%s220 + $0x98] sm:$0xff] %v4490
        %4510 = vst [vmem:[%s220 + $0xa0] sm:$0xff] %v4491
        %4511 = vst [vmem:[%s220 + $0xa8] sm:$0xff] %v4492
        %4512 = vst [vmem:[%s220 + $0xb0] sm:$0xff] %v4493
        %4513 = vst [vmem:[%s220 + $0xb8] sm:$0xff] %v4494
        %4514 = vst [vmem:[%s220 + $0xc0] sm:$0xff] %v4495
        %4515 = vst [vmem:[%s220 + $0xc8] sm:$0xff] %v4496
        %4516 = vst [vmem:[%s220 + $0xd0] sm:$0xff] %v4497
        %4517 = vst [vmem:[%s220 + $0xd8] sm:$0xff] %v4498
        %4518 = vst [vmem:[%s220 + $0xe0] sm:$0xff] %v4499
        %4519 = vst [vmem:[%s220 + $0xe8] sm:$0xff] %v4500
        %4520 = vst [vmem:[%s220 + $0xf0] sm:$0xff] %v4501
        %4521 = vst [vmem:[%s220 + $0xf8] sm:$0xff] %v4502
      $region48: #{upsample_forward.1} parent=31 // pred_fallthru
        _
      // Predicated region
      $region49: #{upsample_forward.1} parent=31 // pred_check
        %p4522 = pneg %p2406
      $region50: #{upsample_forward.1} parent=31 // pred_check_branch
        %4524 = sbr.rel (%p4522) target = $region52
      $region51: #{upsample_forward.1} parent=31 // pred_region
        %4525 = vst [vmem:[#allocation2 + $0x80] sm:$0xff] %v4487
        %4526 = vst [vmem:[#allocation2 + $0x88] sm:$0xff] %v4488
        %4527 = vst [vmem:[#allocation2 + $0x90] sm:$0xff] %v4489
        %4528 = vst [vmem:[#allocation2 + $0x98] sm:$0xff] %v4490
        %4529 = vst [vmem:[#allocation2 + $0xa0] sm:$0xff] %v4491
        %4530 = vst [vmem:[#allocation2 + $0xa8] sm:$0xff] %v4492
        %4531 = vst [vmem:[#allocation2 + $0xb0] sm:$0xff] %v4493
        %4532 = vst [vmem:[#allocation2 + $0xb8] sm:$0xff] %v4494
        %4533 = vst [vmem:[#allocation2 + $0xc0] sm:$0xff] %v4495
        %4534 = vst [vmem:[#allocation2 + $0xc8] sm:$0xff] %v4496
        %4535 = vst [vmem:[#allocation2 + $0xd0] sm:$0xff] %v4497
        %4536 = vst [vmem:[#allocation2 + $0xd8] sm:$0xff] %v4498
        %4537 = vst [vmem:[#allocation2 + $0xe0] sm:$0xff] %v4499
        %4538 = vst [vmem:[#allocation2 + $0xe8] sm:$0xff] %v4500
        %4539 = vst [vmem:[#allocation2 + $0xf0] sm:$0xff] %v4501
        %4540 = vst [vmem:[#allocation2 + $0xf8] sm:$0xff] %v4502
      $region52: #{upsample_forward.1} parent=31 // pred_fallthru
        _
      %v4541 = vld [vmem:[#allocation2 + $0x100] sm:$0xff]
      %v4542 = vld [vmem:[#allocation2 + $0x108] sm:$0xff]
      %v4543 = vld [vmem:[#allocation2 + $0x110] sm:$0xff]
      %v4544 = vld [vmem:[#allocation2 + $0x118] sm:$0xff]
      %v4545 = vld [vmem:[#allocation2 + $0x120] sm:$0xff]
      %v4546 = vld [vmem:[#allocation2 + $0x128] sm:$0xff]
      %v4547 = vld [vmem:[#allocation2 + $0x130] sm:$0xff]
      %v4548 = vld [vmem:[#allocation2 + $0x138] sm:$0xff]
      %v4549 = vld [vmem:[#allocation2 + $0x140] sm:$0xff]
      %v4550 = vld [vmem:[#allocation2 + $0x148] sm:$0xff]
      %v4551 = vld [vmem:[#allocation2 + $0x150] sm:$0xff]
      %v4552 = vld [vmem:[#allocation2 + $0x158] sm:$0xff]
      %v4553 = vld [vmem:[#allocation2 + $0x160] sm:$0xff]
      %v4554 = vld [vmem:[#allocation2 + $0x168] sm:$0xff]
      %v4555 = vld [vmem:[#allocation2 + $0x170] sm:$0xff]
      %v4556 = vld [vmem:[#allocation2 + $0x178] sm:$0xff]
      %v4557 = vld [vmem:[%s210 + $0x100] sm:$0xff]
      %v4558 = vld [vmem:[%s210 + $0x108] sm:$0xff]
      %v4559 = vld [vmem:[%s210 + $0x110] sm:$0xff]
      %v4560 = vld [vmem:[%s210 + $0x118] sm:$0xff]
      %v4561 = vld [vmem:[%s210 + $0x120] sm:$0xff]
      %v4562 = vld [vmem:[%s210 + $0x128] sm:$0xff]
      %v4563 = vld [vmem:[%s210 + $0x130] sm:$0xff]
      %v4564 = vld [vmem:[%s210 + $0x138] sm:$0xff]
      %v4565 = vld [vmem:[%s210 + $0x140] sm:$0xff]
      %v4566 = vld [vmem:[%s210 + $0x148] sm:$0xff]
      %v4567 = vld [vmem:[%s210 + $0x150] sm:$0xff]
      %v4568 = vld [vmem:[%s210 + $0x158] sm:$0xff]
      %v4569 = vld [vmem:[%s210 + $0x160] sm:$0xff]
      %v4570 = vld [vmem:[%s210 + $0x168] sm:$0xff]
      %v4571 = vld [vmem:[%s210 + $0x170] sm:$0xff]
      %v4572 = vld [vmem:[%s210 + $0x178] sm:$0xff]
      %v4573 = vld [vmem:[%s314] sm:$0xf]
      %v4575 = vsel %vm316, %v4557, 0
      %v4578 = vsel %vm316, %v4558, 0
      %v4581 = vsel %vm316, %v4559, 0
      %v4584 = vsel %vm316, %v4560, 0
      %v4587 = vsel %vm316, %v4561, 0
      %v4590 = vsel %vm316, %v4562, 0
      %v4593 = vsel %vm316, %v4563, 0
      %v4596 = vsel %vm316, %v4564, 0
      %v4599 = vsel %vm316, %v4565, 0
      %v4602 = vsel %vm316, %v4566, 0
      %v4605 = vsel %vm316, %v4567, 0
      %v4608 = vsel %vm316, %v4568, 0
      %v4611 = vsel %vm316, %v4569, 0
      %v4614 = vsel %vm316, %v4570, 0
      %v4617 = vsel %vm316, %v4571, 0
      %v4620 = vsel %vm316, %v4572, 0
      %v4623 = vsel %vm365, %v4573, 0
      %4625 = vmatprep.subr.mxu0 0.0
      %4626 = vmatpush1.msra.mxu0 %v4623
      %4627 = vmatprep.subr.mxu0 0.0
      %4628 = vmatpush1.msra.mxu0 0.0
      %4629 = vmatprep.subr.mxu0 0.0
      %4630 = vmatpush1.msra.mxu0 0.0
      %4631 = vmatprep.subr.mxu0 0.0
      %4632 = vmatpush1.msra.mxu0 0.0
      %4633 = vmatprep.subr.mxu0 0.0
      %4634 = vmatpush1.msra.mxu0 0.0
      %4635 = vmatprep.subr.mxu0 0.0
      %4636 = vmatpush1.msra.mxu0 0.0
      %4637 = vmatprep.subr.mxu0 0.0
      %4638 = vmatpush1.msra.mxu0 0.0
      %4639 = vmatprep.subr.mxu0 0.0
      %4640 = vmatpush1.msra.mxu0 0.0
      %4641 = vmatprep.subr.mxu0 0.0
      %4642 = vmatpush1.msra.mxu0 0.0
      %4643 = vmatprep.subr.mxu0 0.0
      %4644 = vmatpush1.msra.mxu0 0.0
      %4645 = vmatprep.subr.mxu0 0.0
      %4646 = vmatpush1.msra.mxu0 0.0
      %4647 = vmatprep.subr.mxu0 0.0
      %4648 = vmatpush1.msra.mxu0 0.0
      %4649 = vmatprep.subr.mxu0 0.0
      %4650 = vmatpush1.msra.mxu0 0.0
      %4651 = vmatprep.subr.mxu0 0.0
      %4652 = vmatpush1.msra.mxu0 0.0
      %4653 = vmatprep.subr.mxu0 0.0
      %4654 = vmatpush1.msra.mxu0 0.0
      %4655 = vmatprep.subr.mxu0 0.0
      %4656 = vmatpush1.msra.mxu0 0.0
      %4657 = vmatprep.subr.mxu0 0.0
      %4658 = vmatpush1.msra.mxu0 0.0
      %4659 = vmatprep.subr.mxu0 0.0
      %4660 = vmatpush1.msra.mxu0 0.0
      %4661 = vmatprep.subr.mxu0 0.0
      %4662 = vmatpush1.msra.mxu0 0.0
      %4663 = vmatprep.subr.mxu0 0.0
      %4664 = vmatpush1.msra.mxu0 0.0
      %4665 = vmatprep.subr.mxu0 0.0
      %4666 = vmatpush1.msra.mxu0 0.0
      %4667 = vmatprep.subr.mxu0 0.0
      %4668 = vmatpush1.msra.mxu0 0.0
      %4669 = vmatprep.subr.mxu0 0.0
      %4670 = vmatpush1.msra.mxu0 0.0
      %4671 = vmatprep.subr.mxu0 0.0
      %4672 = vmatpush1.msra.mxu0 0.0
      %4673 = vmatprep.subr.mxu0 0.0
      %4674 = vmatpush1.msra.mxu0 0.0
      %4675 = vmatprep.subr.mxu0 0.0
      %4676 = vmatpush1.msra.mxu0 0.0
      %4677 = vmatprep.subr.mxu0 0.0
      %4678 = vmatpush1.msra.mxu0 0.0
      %4679 = vmatprep.subr.mxu0 0.0
      %4680 = vmatpush1.msra.mxu0 0.0
      %4681 = vmatprep.subr.mxu0 0.0
      %4682 = vmatpush1.msra.mxu0 0.0
      %4683 = vmatprep.subr.mxu0 0.0
      %4684 = vmatpush1.msra.mxu0 0.0
      %4685 = vmatprep.subr.mxu0 0.0
      %4686 = vmatpush1.msra.mxu0 0.0
      %4687 = vmatprep.subr.mxu0 0.0
      %4688 = vmatpush1.msra.mxu0 0.0
      %4689 = vmatprep.mubr.f32.mxu0 0.0
      %4690 = vmatmul.mubr.f32.gmra.mrb[0].mxu0 %v4575
      %v4691 = vpop.f32.mrb[0].mxu0
      %v4692 = vadd.f32 0.0, %v4691
      %v4693 = vpop.f32.mrb[0].mxu0
      %4694 = vmatprep.mubr.f32.mxu0 0.0
      %4695 = vmatmul.mubr.f32.gmra.mrb[0].mxu0 %v4578
      %v4696 = vpop.f32.mrb[0].mxu0
      %v4697 = vadd.f32 0.0, %v4696
      %v4698 = vpop.f32.mrb[0].mxu0
      %4699 = vmatprep.mubr.f32.mxu0 0.0
      %4700 = vmatmul.mubr.f32.gmra.mrb[0].mxu0 %v4581
      %v4701 = vpop.f32.mrb[0].mxu0
      %v4702 = vadd.f32 0.0, %v4701
      %v4703 = vpop.f32.mrb[0].mxu0
      %4704 = vmatprep.mubr.f32.mxu0 0.0
      %4705 = vmatmul.mubr.f32.gmra.mrb[0].mxu0 %v4584
      %v4706 = vpop.f32.mrb[0].mxu0
      %v4707 = vadd.f32 0.0, %v4706
      %v4708 = vpop.f32.mrb[0].mxu0
      %4709 = vmatprep.mubr.f32.mxu0 0.0
      %4710 = vmatmul.mubr.f32.gmra.mrb[0].mxu0 %v4587
      %v4711 = vpop.f32.mrb[0].mxu0
      %v4712 = vadd.f32 0.0, %v4711
      %v4713 = vpop.f32.mrb[0].mxu0
      %4714 = vmatprep.mubr.f32.mxu0 0.0
      %4715 = vmatmul.mubr.f32.gmra.mrb[0].mxu0 %v4590
      %v4716 = vpop.f32.mrb[0].mxu0
      %v4717 = vadd.f32 0.0, %v4716
      %v4718 = vpop.f32.mrb[0].mxu0
      %4719 = vmatprep.mubr.f32.mxu0 0.0
      %4720 = vmatmul.mubr.f32.gmra.mrb[0].mxu0 %v4593
      %v4721 = vpop.f32.mrb[0].mxu0
      %v4722 = vadd.f32 0.0, %v4721
      %v4723 = vpop.f32.mrb[0].mxu0
      %4724 = vmatprep.mubr.f32.mxu0 0.0
      %4725 = vmatmul.mubr.f32.gmra.mrb[0].mxu0 %v4596
      %v4726 = vpop.f32.mrb[0].mxu0
      %v4727 = vadd.f32 0.0, %v4726
      %v4728 = vpop.f32.mrb[0].mxu0
      %4729 = vmatprep.mubr.f32.mxu0 0.0
      %4730 = vmatmul.mubr.f32.gmra.mrb[0].mxu0 %v4599
      %v4731 = vpop.f32.mrb[0].mxu0
      %v4732 = vadd.f32 0.0, %v4731
      %v4733 = vpop.f32.mrb[0].mxu0
      %4734 = vmatprep.mubr.f32.mxu0 0.0
      %4735 = vmatmul.mubr.f32.gmra.mrb[0].mxu0 %v4602
      %v4736 = vpop.f32.mrb[0].mxu0
      %v4737 = vadd.f32 0.0, %v4736
      %v4738 = vpop.f32.mrb[0].mxu0
      %4739 = vmatprep.mubr.f32.mxu0 0.0
      %4740 = vmatmul.mubr.f32.gmra.mrb[0].mxu0 %v4605
      %v4741 = vpop.f32.mrb[0].mxu0
      %v4742 = vadd.f32 0.0, %v4741
      %v4743 = vpop.f32.mrb[0].mxu0
      %4744 = vmatprep.mubr.f32.mxu0 0.0
      %4745 = vmatmul.mubr.f32.gmra.mrb[0].mxu0 %v4608
      %v4746 = vpop.f32.mrb[0].mxu0
      %v4747 = vadd.f32 0.0, %v4746
      %v4748 = vpop.f32.mrb[0].mxu0
      %4749 = vmatprep.mubr.f32.mxu0 0.0
      %4750 = vmatmul.mubr.f32.gmra.mrb[0].mxu0 %v4611
      %v4751 = vpop.f32.mrb[0].mxu0
      %v4752 = vadd.f32 0.0, %v4751
      %v4753 = vpop.f32.mrb[0].mxu0
      %4754 = vmatprep.mubr.f32.mxu0 0.0
      %4755 = vmatmul.mubr.f32.gmra.mrb[0].mxu0 %v4614
      %v4756 = vpop.f32.mrb[0].mxu0
      %v4757 = vadd.f32 0.0, %v4756
      %v4758 = vpop.f32.mrb[0].mxu0
      %4759 = vmatprep.mubr.f32.mxu0 0.0
      %4760 = vmatmul.mubr.f32.gmra.mrb[0].mxu0 %v4617
      %v4761 = vpop.f32.mrb[0].mxu0
      %v4762 = vadd.f32 0.0, %v4761
      %v4763 = vpop.f32.mrb[0].mxu0
      %4764 = vmatprep.mubr.f32.mxu0 0.0
      %4765 = vmatmul.mubr.f32.gmra.mrb[0].mxu0 %v4620
      %v4766 = vpop.f32.mrb[0].mxu0
      %v4767 = vadd.f32 0.0, %v4766
      %v4768 = vpop.f32.mrb[0].mxu0
      %4769 = vdwg.mxu0
      %v4770 = vadd.f32 %v4541, %v4692
      %v4771 = vadd.f32 %v4542, %v4697
      %v4772 = vadd.f32 %v4543, %v4702
      %v4773 = vadd.f32 %v4544, %v4707
      %v4774 = vadd.f32 %v4545, %v4712
      %v4775 = vadd.f32 %v4546, %v4717
      %v4776 = vadd.f32 %v4547, %v4722
      %v4777 = vadd.f32 %v4548, %v4727
      %v4778 = vadd.f32 %v4549, %v4732
      %v4779 = vadd.f32 %v4550, %v4737
      %v4780 = vadd.f32 %v4551, %v4742
      %v4781 = vadd.f32 %v4552, %v4747
      %v4782 = vadd.f32 %v4553, %v4752
      %v4783 = vadd.f32 %v4554, %v4757
      %v4784 = vadd.f32 %v4555, %v4762
      %v4785 = vadd.f32 %v4556, %v4767
      %v4786 = vld [vmem:[%s210 + $0x101] sm:$0xff]
      %v4787 = vld [vmem:[%s210 + $0x109] sm:$0xff]
      %v4788 = vld [vmem:[%s210 + $0x111] sm:$0xff]
      %v4789 = vld [vmem:[%s210 + $0x119] sm:$0xff]
      %v4790 = vld [vmem:[%s210 + $0x121] sm:$0xff]
      %v4791 = vld [vmem:[%s210 + $0x129] sm:$0xff]
      %v4792 = vld [vmem:[%s210 + $0x131] sm:$0xff]
      %v4793 = vld [vmem:[%s210 + $0x139] sm:$0xff]
      %v4794 = vld [vmem:[%s210 + $0x141] sm:$0xff]
      %v4795 = vld [vmem:[%s210 + $0x149] sm:$0xff]
      %v4796 = vld [vmem:[%s210 + $0x151] sm:$0xff]
      %v4797 = vld [vmem:[%s210 + $0x159] sm:$0xff]
      %v4798 = vld [vmem:[%s210 + $0x161] sm:$0xff]
      %v4799 = vld [vmem:[%s210 + $0x169] sm:$0xff]
      %v4800 = vld [vmem:[%s210 + $0x171] sm:$0xff]
      %v4801 = vld [vmem:[%s210 + $0x179] sm:$0xff]
      %v4802 = vld [vmem:[%s548] sm:$0xf]
      %v4804 = vsel %vm316, %v4786, 0
      %v4807 = vsel %vm316, %v4787, 0
      %v4810 = vsel %vm316, %v4788, 0
      %v4813 = vsel %vm316, %v4789, 0
      %v4816 = vsel %vm316, %v4790, 0
      %v4819 = vsel %vm316, %v4791, 0
      %v4822 = vsel %vm316, %v4792, 0
      %v4825 = vsel %vm316, %v4793, 0
      %v4828 = vsel %vm316, %v4794, 0
      %v4831 = vsel %vm316, %v4795, 0
      %v4834 = vsel %vm316, %v4796, 0
      %v4837 = vsel %vm316, %v4797, 0
      %v4840 = vsel %vm316, %v4798, 0
      %v4843 = vsel %vm316, %v4799, 0
      %v4846 = vsel %vm316, %v4800, 0
      %v4849 = vsel %vm316, %v4801, 0
      %v4852 = vsel %vm365, %v4802, 0
      %4854 = vmatprep.subr.mxu0 0.0
      %4855 = vmatpush1.msra.mxu0 %v4852
      %4856 = vmatprep.subr.mxu0 0.0
      %4857 = vmatpush1.msra.mxu0 0.0
      %4858 = vmatprep.subr.mxu0 0.0
      %4859 = vmatpush1.msra.mxu0 0.0
      %4860 = vmatprep.subr.mxu0 0.0
      %4861 = vmatpush1.msra.mxu0 0.0
      %4862 = vmatprep.subr.mxu0 0.0
      %4863 = vmatpush1.msra.mxu0 0.0
      %4864 = vmatprep.subr.mxu0 0.0
      %4865 = vmatpush1.msra.mxu0 0.0
      %4866 = vmatprep.subr.mxu0 0.0
      %4867 = vmatpush1.msra.mxu0 0.0
      %4868 = vmatprep.subr.mxu0 0.0
      %4869 = vmatpush1.msra.mxu0 0.0
      %4870 = vmatprep.subr.mxu0 0.0
      %4871 = vmatpush1.msra.mxu0 0.0
      %4872 = vmatprep.subr.mxu0 0.0
      %4873 = vmatpush1.msra.mxu0 0.0
      %4874 = vmatprep.subr.mxu0 0.0
      %4875 = vmatpush1.msra.mxu0 0.0
      %4876 = vmatprep.subr.mxu0 0.0
      %4877 = vmatpush1.msra.mxu0 0.0
      %4878 = vmatprep.subr.mxu0 0.0
      %4879 = vmatpush1.msra.mxu0 0.0
      %4880 = vmatprep.subr.mxu0 0.0
      %4881 = vmatpush1.msra.mxu0 0.0
      %4882 = vmatprep.subr.mxu0 0.0
      %4883 = vmatpush1.msra.mxu0 0.0
      %4884 = vmatprep.subr.mxu0 0.0
      %4885 = vmatpush1.msra.mxu0 0.0
      %4886 = vmatprep.subr.mxu0 0.0
      %4887 = vmatpush1.msra.mxu0 0.0
      %4888 = vmatprep.subr.mxu0 0.0
      %4889 = vmatpush1.msra.mxu0 0.0
      %4890 = vmatprep.subr.mxu0 0.0
      %4891 = vmatpush1.msra.mxu0 0.0
      %4892 = vmatprep.subr.mxu0 0.0
      %4893 = vmatpush1.msra.mxu0 0.0
      %4894 = vmatprep.subr.mxu0 0.0
      %4895 = vmatpush1.msra.mxu0 0.0
      %4896 = vmatprep.subr.mxu0 0.0
      %4897 = vmatpush1.msra.mxu0 0.0
      %4898 = vmatprep.subr.mxu0 0.0
      %4899 = vmatpush1.msra.mxu0 0.0
      %4900 = vmatprep.subr.mxu0 0.0
      %4901 = vmatpush1.msra.mxu0 0.0
      %4902 = vmatprep.subr.mxu0 0.0
      %4903 = vmatpush1.msra.mxu0 0.0
      %4904 = vmatprep.subr.mxu0 0.0
      %4905 = vmatpush1.msra.mxu0 0.0
      %4906 = vmatprep.subr.mxu0 0.0
      %4907 = vmatpush1.msra.mxu0 0.0
      %4908 = vmatprep.subr.mxu0 0.0
      %4909 = vmatpush1.msra.mxu0 0.0
      %4910 = vmatprep.subr.mxu0 0.0
      %4911 = vmatpush1.msra.mxu0 0.0
      %4912 = vmatprep.subr.mxu0 0.0
      %4913 = vmatpush1.msra.mxu0 0.0
      %4914 = vmatprep.subr.mxu0 0.0
      %4915 = vmatpush1.msra.mxu0 0.0
      %4916 = vmatprep.subr.mxu0 0.0
      %4917 = vmatpush1.msra.mxu0 0.0
      %4918 = vmatprep.mubr.f32.mxu0 0.0
      %4919 = vmatmul.mubr.f32.gmra.mrb[0].mxu0 %v4804
      %v4920 = vpop.f32.mrb[0].mxu0
      %v4921 = vadd.f32 0.0, %v4920
      %v4922 = vpop.f32.mrb[0].mxu0
      %4923 = vmatprep.mubr.f32.mxu0 0.0
      %4924 = vmatmul.mubr.f32.gmra.mrb[0].mxu0 %v4807
      %v4925 = vpop.f32.mrb[0].mxu0
      %v4926 = vadd.f32 0.0, %v4925
      %v4927 = vpop.f32.mrb[0].mxu0
      %4928 = vmatprep.mubr.f32.mxu0 0.0
      %4929 = vmatmul.mubr.f32.gmra.mrb[0].mxu0 %v4810
      %v4930 = vpop.f32.mrb[0].mxu0
      %v4931 = vadd.f32 0.0, %v4930
      %v4932 = vpop.f32.mrb[0].mxu0
      %4933 = vmatprep.mubr.f32.mxu0 0.0
      %4934 = vmatmul.mubr.f32.gmra.mrb[0].mxu0 %v4813
      %v4935 = vpop.f32.mrb[0].mxu0
      %v4936 = vadd.f32 0.0, %v4935
      %v4937 = vpop.f32.mrb[0].mxu0
      %4938 = vmatprep.mubr.f32.mxu0 0.0
      %4939 = vmatmul.mubr.f32.gmra.mrb[0].mxu0 %v4816
      %v4940 = vpop.f32.mrb[0].mxu0
      %v4941 = vadd.f32 0.0, %v4940
      %v4942 = vpop.f32.mrb[0].mxu0
      %4943 = vmatprep.mubr.f32.mxu0 0.0
      %4944 = vmatmul.mubr.f32.gmra.mrb[0].mxu0 %v4819
      %v4945 = vpop.f32.mrb[0].mxu0
      %v4946 = vadd.f32 0.0, %v4945
      %v4947 = vpop.f32.mrb[0].mxu0
      %4948 = vmatprep.mubr.f32.mxu0 0.0
      %4949 = vmatmul.mubr.f32.gmra.mrb[0].mxu0 %v4822
      %v4950 = vpop.f32.mrb[0].mxu0
      %v4951 = vadd.f32 0.0, %v4950
      %v4952 = vpop.f32.mrb[0].mxu0
      %4953 = vmatprep.mubr.f32.mxu0 0.0
      %4954 = vmatmul.mubr.f32.gmra.mrb[0].mxu0 %v4825
      %v4955 = vpop.f32.mrb[0].mxu0
      %v4956 = vadd.f32 0.0, %v4955
      %v4957 = vpop.f32.mrb[0].mxu0
      %4958 = vmatprep.mubr.f32.mxu0 0.0
      %4959 = vmatmul.mubr.f32.gmra.mrb[0].mxu0 %v4828
      %v4960 = vpop.f32.mrb[0].mxu0
      %v4961 = vadd.f32 0.0, %v4960
      %v4962 = vpop.f32.mrb[0].mxu0
      %4963 = vmatprep.mubr.f32.mxu0 0.0
      %4964 = vmatmul.mubr.f32.gmra.mrb[0].mxu0 %v4831
      %v4965 = vpop.f32.mrb[0].mxu0
      %v4966 = vadd.f32 0.0, %v4965
      %v4967 = vpop.f32.mrb[0].mxu0
      %4968 = vmatprep.mubr.f32.mxu0 0.0
      %4969 = vmatmul.mubr.f32.gmra.mrb[0].mxu0 %v4834
      %v4970 = vpop.f32.mrb[0].mxu0
      %v4971 = vadd.f32 0.0, %v4970
      %v4972 = vpop.f32.mrb[0].mxu0
      %4973 = vmatprep.mubr.f32.mxu0 0.0
      %4974 = vmatmul.mubr.f32.gmra.mrb[0].mxu0 %v4837
      %v4975 = vpop.f32.mrb[0].mxu0
      %v4976 = vadd.f32 0.0, %v4975
      %v4977 = vpop.f32.mrb[0].mxu0
      %4978 = vmatprep.mubr.f32.mxu0 0.0
      %4979 = vmatmul.mubr.f32.gmra.mrb[0].mxu0 %v4840
      %v4980 = vpop.f32.mrb[0].mxu0
      %v4981 = vadd.f32 0.0, %v4980
      %v4982 = vpop.f32.mrb[0].mxu0
      %4983 = vmatprep.mubr.f32.mxu0 0.0
      %4984 = vmatmul.mubr.f32.gmra.mrb[0].mxu0 %v4843
      %v4985 = vpop.f32.mrb[0].mxu0
      %v4986 = vadd.f32 0.0, %v4985
      %v4987 = vpop.f32.mrb[0].mxu0
      %4988 = vmatprep.mubr.f32.mxu0 0.0
      %4989 = vmatmul.mubr.f32.gmra.mrb[0].mxu0 %v4846
      %v4990 = vpop.f32.mrb[0].mxu0
      %v4991 = vadd.f32 0.0, %v4990
      %v4992 = vpop.f32.mrb[0].mxu0
      %4993 = vmatprep.mubr.f32.mxu0 0.0
      %4994 = vmatmul.mubr.f32.gmra.mrb[0].mxu0 %v4849
      %v4995 = vpop.f32.mrb[0].mxu0
      %v4996 = vadd.f32 0.0, %v4995
      %v4997 = vpop.f32.mrb[0].mxu0
      %4998 = vdwg.mxu0
      %v4999 = vadd.f32 %v4770, %v4921
      %v5000 = vadd.f32 %v4771, %v4926
      %v5001 = vadd.f32 %v4772, %v4931
      %v5002 = vadd.f32 %v4773, %v4936
      %v5003 = vadd.f32 %v4774, %v4941
      %v5004 = vadd.f32 %v4775, %v4946
      %v5005 = vadd.f32 %v4776, %v4951
      %v5006 = vadd.f32 %v4777, %v4956
      %v5007 = vadd.f32 %v4778, %v4961
      %v5008 = vadd.f32 %v4779, %v4966
      %v5009 = vadd.f32 %v4780, %v4971
      %v5010 = vadd.f32 %v4781, %v4976
      %v5011 = vadd.f32 %v4782, %v4981
      %v5012 = vadd.f32 %v4783, %v4986
      %v5013 = vadd.f32 %v4784, %v4991
      %v5014 = vadd.f32 %v4785, %v4996
      %v5015 = vld [vmem:[%s210 + $0x102] sm:$0xff]
      %v5016 = vld [vmem:[%s210 + $0x10a] sm:$0xff]
      %v5017 = vld [vmem:[%s210 + $0x112] sm:$0xff]
      %v5018 = vld [vmem:[%s210 + $0x11a] sm:$0xff]
      %v5019 = vld [vmem:[%s210 + $0x122] sm:$0xff]
      %v5020 = vld [vmem:[%s210 + $0x12a] sm:$0xff]
      %v5021 = vld [vmem:[%s210 + $0x132] sm:$0xff]
      %v5022 = vld [vmem:[%s210 + $0x13a] sm:$0xff]
      %v5023 = vld [vmem:[%s210 + $0x142] sm:$0xff]
      %v5024 = vld [vmem:[%s210 + $0x14a] sm:$0xff]
      %v5025 = vld [vmem:[%s210 + $0x152] sm:$0xff]
      %v5026 = vld [vmem:[%s210 + $0x15a] sm:$0xff]
      %v5027 = vld [vmem:[%s210 + $0x162] sm:$0xff]
      %v5028 = vld [vmem:[%s210 + $0x16a] sm:$0xff]
      %v5029 = vld [vmem:[%s210 + $0x172] sm:$0xff]
      %v5030 = vld [vmem:[%s210 + $0x17a] sm:$0xff]
      %v5031 = vld [vmem:[%s780] sm:$0xf]
      %v5033 = vsel %vm316, %v5015, 0
      %v5036 = vsel %vm316, %v5016, 0
      %v5039 = vsel %vm316, %v5017, 0
      %v5042 = vsel %vm316, %v5018, 0
      %v5045 = vsel %vm316, %v5019, 0
      %v5048 = vsel %vm316, %v5020, 0
      %v5051 = vsel %vm316, %v5021, 0
      %v5054 = vsel %vm316, %v5022, 0
      %v5057 = vsel %vm316, %v5023, 0
      %v5060 = vsel %vm316, %v5024, 0
      %v5063 = vsel %vm316, %v5025, 0
      %v5066 = vsel %vm316, %v5026, 0
      %v5069 = vsel %vm316, %v5027, 0
      %v5072 = vsel %vm316, %v5028, 0
      %v5075 = vsel %vm316, %v5029, 0
      %v5078 = vsel %vm316, %v5030, 0
      %v5081 = vsel %vm365, %v5031, 0
      %5083 = vmatprep.subr.mxu0 0.0
      %5084 = vmatpush1.msra.mxu0 %v5081
      %5085 = vmatprep.subr.mxu0 0.0
      %5086 = vmatpush1.msra.mxu0 0.0
      %5087 = vmatprep.subr.mxu0 0.0
      %5088 = vmatpush1.msra.mxu0 0.0
      %5089 = vmatprep.subr.mxu0 0.0
      %5090 = vmatpush1.msra.mxu0 0.0
      %5091 = vmatprep.subr.mxu0 0.0
      %5092 = vmatpush1.msra.mxu0 0.0
      %5093 = vmatprep.subr.mxu0 0.0
      %5094 = vmatpush1.msra.mxu0 0.0
      %5095 = vmatprep.subr.mxu0 0.0
      %5096 = vmatpush1.msra.mxu0 0.0
      %5097 = vmatprep.subr.mxu0 0.0
      %5098 = vmatpush1.msra.mxu0 0.0
      %5099 = vmatprep.subr.mxu0 0.0
      %5100 = vmatpush1.msra.mxu0 0.0
      %5101 = vmatprep.subr.mxu0 0.0
      %5102 = vmatpush1.msra.mxu0 0.0
      %5103 = vmatprep.subr.mxu0 0.0
      %5104 = vmatpush1.msra.mxu0 0.0
      %5105 = vmatprep.subr.mxu0 0.0
      %5106 = vmatpush1.msra.mxu0 0.0
      %5107 = vmatprep.subr.mxu0 0.0
      %5108 = vmatpush1.msra.mxu0 0.0
      %5109 = vmatprep.subr.mxu0 0.0
      %5110 = vmatpush1.msra.mxu0 0.0
      %5111 = vmatprep.subr.mxu0 0.0
      %5112 = vmatpush1.msra.mxu0 0.0
      %5113 = vmatprep.subr.mxu0 0.0
      %5114 = vmatpush1.msra.mxu0 0.0
      %5115 = vmatprep.subr.mxu0 0.0
      %5116 = vmatpush1.msra.mxu0 0.0
      %5117 = vmatprep.subr.mxu0 0.0
      %5118 = vmatpush1.msra.mxu0 0.0
      %5119 = vmatprep.subr.mxu0 0.0
      %5120 = vmatpush1.msra.mxu0 0.0
      %5121 = vmatprep.subr.mxu0 0.0
      %5122 = vmatpush1.msra.mxu0 0.0
      %5123 = vmatprep.subr.mxu0 0.0
      %5124 = vmatpush1.msra.mxu0 0.0
      %5125 = vmatprep.subr.mxu0 0.0
      %5126 = vmatpush1.msra.mxu0 0.0
      %5127 = vmatprep.subr.mxu0 0.0
      %5128 = vmatpush1.msra.mxu0 0.0
      %5129 = vmatprep.subr.mxu0 0.0
      %5130 = vmatpush1.msra.mxu0 0.0
      %5131 = vmatprep.subr.mxu0 0.0
      %5132 = vmatpush1.msra.mxu0 0.0
      %5133 = vmatprep.subr.mxu0 0.0
      %5134 = vmatpush1.msra.mxu0 0.0
      %5135 = vmatprep.subr.mxu0 0.0
      %5136 = vmatpush1.msra.mxu0 0.0
      %5137 = vmatprep.subr.mxu0 0.0
      %5138 = vmatpush1.msra.mxu0 0.0
      %5139 = vmatprep.subr.mxu0 0.0
      %5140 = vmatpush1.msra.mxu0 0.0
      %5141 = vmatprep.subr.mxu0 0.0
      %5142 = vmatpush1.msra.mxu0 0.0
      %5143 = vmatprep.subr.mxu0 0.0
      %5144 = vmatpush1.msra.mxu0 0.0
      %5145 = vmatprep.subr.mxu0 0.0
      %5146 = vmatpush1.msra.mxu0 0.0
      %5147 = vmatprep.mubr.f32.mxu0 0.0
      %5148 = vmatmul.mubr.f32.gmra.mrb[0].mxu0 %v5033
      %v5149 = vpop.f32.mrb[0].mxu0
      %v5150 = vadd.f32 0.0, %v5149
      %v5151 = vpop.f32.mrb[0].mxu0
      %5152 = vmatprep.mubr.f32.mxu0 0.0
      %5153 = vmatmul.mubr.f32.gmra.mrb[0].mxu0 %v5036
      %v5154 = vpop.f32.mrb[0].mxu0
      %v5155 = vadd.f32 0.0, %v5154
      %v5156 = vpop.f32.mrb[0].mxu0
      %5157 = vmatprep.mubr.f32.mxu0 0.0
      %5158 = vmatmul.mubr.f32.gmra.mrb[0].mxu0 %v5039
      %v5159 = vpop.f32.mrb[0].mxu0
      %v5160 = vadd.f32 0.0, %v5159
      %v5161 = vpop.f32.mrb[0].mxu0
      %5162 = vmatprep.mubr.f32.mxu0 0.0
      %5163 = vmatmul.mubr.f32.gmra.mrb[0].mxu0 %v5042
      %v5164 = vpop.f32.mrb[0].mxu0
      %v5165 = vadd.f32 0.0, %v5164
      %v5166 = vpop.f32.mrb[0].mxu0
      %5167 = vmatprep.mubr.f32.mxu0 0.0
      %5168 = vmatmul.mubr.f32.gmra.mrb[0].mxu0 %v5045
      %v5169 = vpop.f32.mrb[0].mxu0
      %v5170 = vadd.f32 0.0, %v5169
      %v5171 = vpop.f32.mrb[0].mxu0
      %5172 = vmatprep.mubr.f32.mxu0 0.0
      %5173 = vmatmul.mubr.f32.gmra.mrb[0].mxu0 %v5048
      %v5174 = vpop.f32.mrb[0].mxu0
      %v5175 = vadd.f32 0.0, %v5174
      %v5176 = vpop.f32.mrb[0].mxu0
      %5177 = vmatprep.mubr.f32.mxu0 0.0
      %5178 = vmatmul.mubr.f32.gmra.mrb[0].mxu0 %v5051
      %v5179 = vpop.f32.mrb[0].mxu0
      %v5180 = vadd.f32 0.0, %v5179
      %v5181 = vpop.f32.mrb[0].mxu0
      %5182 = vmatprep.mubr.f32.mxu0 0.0
      %5183 = vmatmul.mubr.f32.gmra.mrb[0].mxu0 %v5054
      %v5184 = vpop.f32.mrb[0].mxu0
      %v5185 = vadd.f32 0.0, %v5184
      %v5186 = vpop.f32.mrb[0].mxu0
      %5187 = vmatprep.mubr.f32.mxu0 0.0
      %5188 = vmatmul.mubr.f32.gmra.mrb[0].mxu0 %v5057
      %v5189 = vpop.f32.mrb[0].mxu0
      %v5190 = vadd.f32 0.0, %v5189
      %v5191 = vpop.f32.mrb[0].mxu0
      %5192 = vmatprep.mubr.f32.mxu0 0.0
      %5193 = vmatmul.mubr.f32.gmra.mrb[0].mxu0 %v5060
      %v5194 = vpop.f32.mrb[0].mxu0
      %v5195 = vadd.f32 0.0, %v5194
      %v5196 = vpop.f32.mrb[0].mxu0
      %5197 = vmatprep.mubr.f32.mxu0 0.0
      %5198 = vmatmul.mubr.f32.gmra.mrb[0].mxu0 %v5063
      %v5199 = vpop.f32.mrb[0].mxu0
      %v5200 = vadd.f32 0.0, %v5199
      %v5201 = vpop.f32.mrb[0].mxu0
      %5202 = vmatprep.mubr.f32.mxu0 0.0
      %5203 = vmatmul.mubr.f32.gmra.mrb[0].mxu0 %v5066
      %v5204 = vpop.f32.mrb[0].mxu0
      %v5205 = vadd.f32 0.0, %v5204
      %v5206 = vpop.f32.mrb[0].mxu0
      %5207 = vmatprep.mubr.f32.mxu0 0.0
      %5208 = vmatmul.mubr.f32.gmra.mrb[0].mxu0 %v5069
      %v5209 = vpop.f32.mrb[0].mxu0
      %v5210 = vadd.f32 0.0, %v5209
      %v5211 = vpop.f32.mrb[0].mxu0
      %5212 = vmatprep.mubr.f32.mxu0 0.0
      %5213 = vmatmul.mubr.f32.gmra.mrb[0].mxu0 %v5072
      %v5214 = vpop.f32.mrb[0].mxu0
      %v5215 = vadd.f32 0.0, %v5214
      %v5216 = vpop.f32.mrb[0].mxu0
      %5217 = vmatprep.mubr.f32.mxu0 0.0
      %5218 = vmatmul.mubr.f32.gmra.mrb[0].mxu0 %v5075
      %v5219 = vpop.f32.mrb[0].mxu0
      %v5220 = vadd.f32 0.0, %v5219
      %v5221 = vpop.f32.mrb[0].mxu0
      %5222 = vmatprep.mubr.f32.mxu0 0.0
      %5223 = vmatmul.mubr.f32.gmra.mrb[0].mxu0 %v5078
      %v5224 = vpop.f32.mrb[0].mxu0
      %v5225 = vadd.f32 0.0, %v5224
      %v5226 = vpop.f32.mrb[0].mxu0
      %5227 = vdwg.mxu0
      %v5228 = vadd.f32 %v4999, %v5150
      %v5229 = vadd.f32 %v5000, %v5155
      %v5230 = vadd.f32 %v5001, %v5160
      %v5231 = vadd.f32 %v5002, %v5165
      %v5232 = vadd.f32 %v5003, %v5170
      %v5233 = vadd.f32 %v5004, %v5175
      %v5234 = vadd.f32 %v5005, %v5180
      %v5235 = vadd.f32 %v5006, %v5185
      %v5236 = vadd.f32 %v5007, %v5190
      %v5237 = vadd.f32 %v5008, %v5195
      %v5238 = vadd.f32 %v5009, %v5200
      %v5239 = vadd.f32 %v5010, %v5205
      %v5240 = vadd.f32 %v5011, %v5210
      %v5241 = vadd.f32 %v5012, %v5215
      %v5242 = vadd.f32 %v5013, %v5220
      %v5243 = vadd.f32 %v5014, %v5225
      %v5244 = vld [vmem:[%s210 + $0x118] sm:$0xff]
      %v5245 = vld [vmem:[%s210 + $0x120] sm:$0xff]
      %v5246 = vld [vmem:[%s210 + $0x128] sm:$0xff]
      %v5247 = vld [vmem:[%s210 + $0x130] sm:$0xff]
      %v5248 = vld [vmem:[%s210 + $0x138] sm:$0xff]
      %v5249 = vld [vmem:[%s210 + $0x140] sm:$0xff]
      %v5250 = vld [vmem:[%s210 + $0x148] sm:$0xff]
      %v5251 = vld [vmem:[%s210 + $0x150] sm:$0xff]
      %v5252 = vld [vmem:[%s210 + $0x158] sm:$0xff]
      %v5253 = vld [vmem:[%s210 + $0x160] sm:$0xff]
      %v5254 = vld [vmem:[%s210 + $0x168] sm:$0xff]
      %v5255 = vld [vmem:[%s210 + $0x170] sm:$0xff]
      %v5256 = vld [vmem:[%s210 + $0x178] sm:$0xff]
      %v5257 = vld [vmem:[%s210 + $0x180] sm:$0xff]
      %v5258 = vld [vmem:[%s210 + $0x188] sm:$0xff]
      %v5259 = vld [vmem:[%s210 + $0x190] sm:$0xff]
      %v5260 = vld [vmem:[%s1012] sm:$0xf]
      %v5262 = vsel %vm316, %v5244, 0
      %v5265 = vsel %vm316, %v5245, 0
      %v5268 = vsel %vm316, %v5246, 0
      %v5271 = vsel %vm316, %v5247, 0
      %v5274 = vsel %vm316, %v5248, 0
      %v5277 = vsel %vm316, %v5249, 0
      %v5280 = vsel %vm316, %v5250, 0
      %v5283 = vsel %vm316, %v5251, 0
      %v5286 = vsel %vm316, %v5252, 0
      %v5289 = vsel %vm316, %v5253, 0
      %v5292 = vsel %vm316, %v5254, 0
      %v5295 = vsel %vm316, %v5255, 0
      %v5298 = vsel %vm316, %v5256, 0
      %v5301 = vsel %vm316, %v5257, 0
      %v5304 = vsel %vm316, %v5258, 0
      %v5307 = vsel %vm316, %v5259, 0
      %v5310 = vsel %vm365, %v5260, 0
      %5312 = vmatprep.subr.mxu0 0.0
      %5313 = vmatpush1.msra.mxu0 %v5310
      %5314 = vmatprep.subr.mxu0 0.0
      %5315 = vmatpush1.msra.mxu0 0.0
      %5316 = vmatprep.subr.mxu0 0.0
      %5317 = vmatpush1.msra.mxu0 0.0
      %5318 = vmatprep.subr.mxu0 0.0
      %5319 = vmatpush1.msra.mxu0 0.0
      %5320 = vmatprep.subr.mxu0 0.0
      %5321 = vmatpush1.msra.mxu0 0.0
      %5322 = vmatprep.subr.mxu0 0.0
      %5323 = vmatpush1.msra.mxu0 0.0
      %5324 = vmatprep.subr.mxu0 0.0
      %5325 = vmatpush1.msra.mxu0 0.0
      %5326 = vmatprep.subr.mxu0 0.0
      %5327 = vmatpush1.msra.mxu0 0.0
      %5328 = vmatprep.subr.mxu0 0.0
      %5329 = vmatpush1.msra.mxu0 0.0
      %5330 = vmatprep.subr.mxu0 0.0
      %5331 = vmatpush1.msra.mxu0 0.0
      %5332 = vmatprep.subr.mxu0 0.0
      %5333 = vmatpush1.msra.mxu0 0.0
      %5334 = vmatprep.subr.mxu0 0.0
      %5335 = vmatpush1.msra.mxu0 0.0
      %5336 = vmatprep.subr.mxu0 0.0
      %5337 = vmatpush1.msra.mxu0 0.0
      %5338 = vmatprep.subr.mxu0 0.0
      %5339 = vmatpush1.msra.mxu0 0.0
      %5340 = vmatprep.subr.mxu0 0.0
      %5341 = vmatpush1.msra.mxu0 0.0
      %5342 = vmatprep.subr.mxu0 0.0
      %5343 = vmatpush1.msra.mxu0 0.0
      %5344 = vmatprep.subr.mxu0 0.0
      %5345 = vmatpush1.msra.mxu0 0.0
      %5346 = vmatprep.subr.mxu0 0.0
      %5347 = vmatpush1.msra.mxu0 0.0
      %5348 = vmatprep.subr.mxu0 0.0
      %5349 = vmatpush1.msra.mxu0 0.0
      %5350 = vmatprep.subr.mxu0 0.0
      %5351 = vmatpush1.msra.mxu0 0.0
      %5352 = vmatprep.subr.mxu0 0.0
      %5353 = vmatpush1.msra.mxu0 0.0
      %5354 = vmatprep.subr.mxu0 0.0
      %5355 = vmatpush1.msra.mxu0 0.0
      %5356 = vmatprep.subr.mxu0 0.0
      %5357 = vmatpush1.msra.mxu0 0.0
      %5358 = vmatprep.subr.mxu0 0.0
      %5359 = vmatpush1.msra.mxu0 0.0
      %5360 = vmatprep.subr.mxu0 0.0
      %5361 = vmatpush1.msra.mxu0 0.0
      %5362 = vmatprep.subr.mxu0 0.0
      %5363 = vmatpush1.msra.mxu0 0.0
      %5364 = vmatprep.subr.mxu0 0.0
      %5365 = vmatpush1.msra.mxu0 0.0
      %5366 = vmatprep.subr.mxu0 0.0
      %5367 = vmatpush1.msra.mxu0 0.0
      %5368 = vmatprep.subr.mxu0 0.0
      %5369 = vmatpush1.msra.mxu0 0.0
      %5370 = vmatprep.subr.mxu0 0.0
      %5371 = vmatpush1.msra.mxu0 0.0
      %5372 = vmatprep.subr.mxu0 0.0
      %5373 = vmatpush1.msra.mxu0 0.0
      %5374 = vmatprep.subr.mxu0 0.0
      %5375 = vmatpush1.msra.mxu0 0.0
      %5376 = vmatprep.mubr.f32.mxu0 0.0
      %5377 = vmatmul.mubr.f32.gmra.mrb[0].mxu0 %v5262
      %v5378 = vpop.f32.mrb[0].mxu0
      %v5379 = vadd.f32 0.0, %v5378
      %v5380 = vpop.f32.mrb[0].mxu0
      %5381 = vmatprep.mubr.f32.mxu0 0.0
      %5382 = vmatmul.mubr.f32.gmra.mrb[0].mxu0 %v5265
      %v5383 = vpop.f32.mrb[0].mxu0
      %v5384 = vadd.f32 0.0, %v5383
      %v5385 = vpop.f32.mrb[0].mxu0
      %5386 = vmatprep.mubr.f32.mxu0 0.0
      %5387 = vmatmul.mubr.f32.gmra.mrb[0].mxu0 %v5268
      %v5388 = vpop.f32.mrb[0].mxu0
      %v5389 = vadd.f32 0.0, %v5388
      %v5390 = vpop.f32.mrb[0].mxu0
      %5391 = vmatprep.mubr.f32.mxu0 0.0
      %5392 = vmatmul.mubr.f32.gmra.mrb[0].mxu0 %v5271
      %v5393 = vpop.f32.mrb[0].mxu0
      %v5394 = vadd.f32 0.0, %v5393
      %v5395 = vpop.f32.mrb[0].mxu0
      %5396 = vmatprep.mubr.f32.mxu0 0.0
      %5397 = vmatmul.mubr.f32.gmra.mrb[0].mxu0 %v5274
      %v5398 = vpop.f32.mrb[0].mxu0
      %v5399 = vadd.f32 0.0, %v5398
      %v5400 = vpop.f32.mrb[0].mxu0
      %5401 = vmatprep.mubr.f32.mxu0 0.0
      %5402 = vmatmul.mubr.f32.gmra.mrb[0].mxu0 %v5277
      %v5403 = vpop.f32.mrb[0].mxu0
      %v5404 = vadd.f32 0.0, %v5403
      %v5405 = vpop.f32.mrb[0].mxu0
      %5406 = vmatprep.mubr.f32.mxu0 0.0
      %5407 = vmatmul.mubr.f32.gmra.mrb[0].mxu0 %v5280
      %v5408 = vpop.f32.mrb[0].mxu0
      %v5409 = vadd.f32 0.0, %v5408
      %v5410 = vpop.f32.mrb[0].mxu0
      %5411 = vmatprep.mubr.f32.mxu0 0.0
      %5412 = vmatmul.mubr.f32.gmra.mrb[0].mxu0 %v5283
      %v5413 = vpop.f32.mrb[0].mxu0
      %v5414 = vadd.f32 0.0, %v5413
      %v5415 = vpop.f32.mrb[0].mxu0
      %5416 = vmatprep.mubr.f32.mxu0 0.0
      %5417 = vmatmul.mubr.f32.gmra.mrb[0].mxu0 %v5286
      %v5418 = vpop.f32.mrb[0].mxu0
      %v5419 = vadd.f32 0.0, %v5418
      %v5420 = vpop.f32.mrb[0].mxu0
      %5421 = vmatprep.mubr.f32.mxu0 0.0
      %5422 = vmatmul.mubr.f32.gmra.mrb[0].mxu0 %v5289
      %v5423 = vpop.f32.mrb[0].mxu0
      %v5424 = vadd.f32 0.0, %v5423
      %v5425 = vpop.f32.mrb[0].mxu0
      %5426 = vmatprep.mubr.f32.mxu0 0.0
      %5427 = vmatmul.mubr.f32.gmra.mrb[0].mxu0 %v5292
      %v5428 = vpop.f32.mrb[0].mxu0
      %v5429 = vadd.f32 0.0, %v5428
      %v5430 = vpop.f32.mrb[0].mxu0
      %5431 = vmatprep.mubr.f32.mxu0 0.0
      %5432 = vmatmul.mubr.f32.gmra.mrb[0].mxu0 %v5295
      %v5433 = vpop.f32.mrb[0].mxu0
      %v5434 = vadd.f32 0.0, %v5433
      %v5435 = vpop.f32.mrb[0].mxu0
      %5436 = vmatprep.mubr.f32.mxu0 0.0
      %5437 = vmatmul.mubr.f32.gmra.mrb[0].mxu0 %v5298
      %v5438 = vpop.f32.mrb[0].mxu0
      %v5439 = vadd.f32 0.0, %v5438
      %v5440 = vpop.f32.mrb[0].mxu0
      %5441 = vmatprep.mubr.f32.mxu0 0.0
      %5442 = vmatmul.mubr.f32.gmra.mrb[0].mxu0 %v5301
      %v5443 = vpop.f32.mrb[0].mxu0
      %v5444 = vadd.f32 0.0, %v5443
      %v5445 = vpop.f32.mrb[0].mxu0
      %5446 = vmatprep.mubr.f32.mxu0 0.0
      %5447 = vmatmul.mubr.f32.gmra.mrb[0].mxu0 %v5304
      %v5448 = vpop.f32.mrb[0].mxu0
      %v5449 = vadd.f32 0.0, %v5448
      %v5450 = vpop.f32.mrb[0].mxu0
      %5451 = vmatprep.mubr.f32.mxu0 0.0
      %5452 = vmatmul.mubr.f32.gmra.mrb[0].mxu0 %v5307
      %v5453 = vpop.f32.mrb[0].mxu0
      %v5454 = vadd.f32 0.0, %v5453
      %v5455 = vpop.f32.mrb[0].mxu0
      %5456 = vdwg.mxu0
      %v5457 = vadd.f32 %v5228, %v5379
      %v5458 = vadd.f32 %v5229, %v5384
      %v5459 = vadd.f32 %v5230, %v5389
      %v5460 = vadd.f32 %v5231, %v5394
      %v5461 = vadd.f32 %v5232, %v5399
      %v5462 = vadd.f32 %v5233, %v5404
      %v5463 = vadd.f32 %v5234, %v5409
      %v5464 = vadd.f32 %v5235, %v5414
      %v5465 = vadd.f32 %v5236, %v5419
      %v5466 = vadd.f32 %v5237, %v5424
      %v5467 = vadd.f32 %v5238, %v5429
      %v5468 = vadd.f32 %v5239, %v5434
      %v5469 = vadd.f32 %v5240, %v5439
      %v5470 = vadd.f32 %v5241, %v5444
      %v5471 = vadd.f32 %v5242, %v5449
      %v5472 = vadd.f32 %v5243, %v5454
      %v5473 = vld [vmem:[%s210 + $0x119] sm:$0xff]
      %v5474 = vld [vmem:[%s210 + $0x121] sm:$0xff]
      %v5475 = vld [vmem:[%s210 + $0x129] sm:$0xff]
      %v5476 = vld [vmem:[%s210 + $0x131] sm:$0xff]
      %v5477 = vld [vmem:[%s210 + $0x139] sm:$0xff]
      %v5478 = vld [vmem:[%s210 + $0x141] sm:$0xff]
      %v5479 = vld [vmem:[%s210 + $0x149] sm:$0xff]
      %v5480 = vld [vmem:[%s210 + $0x151] sm:$0xff]
      %v5481 = vld [vmem:[%s210 + $0x159] sm:$0xff]
      %v5482 = vld [vmem:[%s210 + $0x161] sm:$0xff]
      %v5483 = vld [vmem:[%s210 + $0x169] sm:$0xff]
      %v5484 = vld [vmem:[%s210 + $0x171] sm:$0xff]
      %v5485 = vld [vmem:[%s210 + $0x179] sm:$0xff]
      %v5486 = vld [vmem:[%s210 + $0x181] sm:$0xff]
      %v5487 = vld [vmem:[%s210 + $0x189] sm:$0xff]
      %v5488 = vld [vmem:[%s210 + $0x191] sm:$0xff]
      %v5489 = vld [vmem:[%s1244] sm:$0xf]
      %v5491 = vsel %vm316, %v5473, 0
      %v5494 = vsel %vm316, %v5474, 0
      %v5497 = vsel %vm316, %v5475, 0
      %v5500 = vsel %vm316, %v5476, 0
      %v5503 = vsel %vm316, %v5477, 0
      %v5506 = vsel %vm316, %v5478, 0
      %v5509 = vsel %vm316, %v5479, 0
      %v5512 = vsel %vm316, %v5480, 0
      %v5515 = vsel %vm316, %v5481, 0
      %v5518 = vsel %vm316, %v5482, 0
      %v5521 = vsel %vm316, %v5483, 0
      %v5524 = vsel %vm316, %v5484, 0
      %v5527 = vsel %vm316, %v5485, 0
      %v5530 = vsel %vm316, %v5486, 0
      %v5533 = vsel %vm316, %v5487, 0
      %v5536 = vsel %vm316, %v5488, 0
      %v5539 = vsel %vm365, %v5489, 0
      %5541 = vmatprep.subr.mxu0 0.0
      %5542 = vmatpush1.msra.mxu0 %v5539
      %5543 = vmatprep.subr.mxu0 0.0
      %5544 = vmatpush1.msra.mxu0 0.0
      %5545 = vmatprep.subr.mxu0 0.0
      %5546 = vmatpush1.msra.mxu0 0.0
      %5547 = vmatprep.subr.mxu0 0.0
      %5548 = vmatpush1.msra.mxu0 0.0
      %5549 = vmatprep.subr.mxu0 0.0
      %5550 = vmatpush1.msra.mxu0 0.0
      %5551 = vmatprep.subr.mxu0 0.0
      %5552 = vmatpush1.msra.mxu0 0.0
      %5553 = vmatprep.subr.mxu0 0.0
      %5554 = vmatpush1.msra.mxu0 0.0
      %5555 = vmatprep.subr.mxu0 0.0
      %5556 = vmatpush1.msra.mxu0 0.0
      %5557 = vmatprep.subr.mxu0 0.0
      %5558 = vmatpush1.msra.mxu0 0.0
      %5559 = vmatprep.subr.mxu0 0.0
      %5560 = vmatpush1.msra.mxu0 0.0
      %5561 = vmatprep.subr.mxu0 0.0
      %5562 = vmatpush1.msra.mxu0 0.0
      %5563 = vmatprep.subr.mxu0 0.0
      %5564 = vmatpush1.msra.mxu0 0.0
      %5565 = vmatprep.subr.mxu0 0.0
      %5566 = vmatpush1.msra.mxu0 0.0
      %5567 = vmatprep.subr.mxu0 0.0
      %5568 = vmatpush1.msra.mxu0 0.0
      %5569 = vmatprep.subr.mxu0 0.0
      %5570 = vmatpush1.msra.mxu0 0.0
      %5571 = vmatprep.subr.mxu0 0.0
      %5572 = vmatpush1.msra.mxu0 0.0
      %5573 = vmatprep.subr.mxu0 0.0
      %5574 = vmatpush1.msra.mxu0 0.0
      %5575 = vmatprep.subr.mxu0 0.0
      %5576 = vmatpush1.msra.mxu0 0.0
      %5577 = vmatprep.subr.mxu0 0.0
      %5578 = vmatpush1.msra.mxu0 0.0
      %5579 = vmatprep.subr.mxu0 0.0
      %5580 = vmatpush1.msra.mxu0 0.0
      %5581 = vmatprep.subr.mxu0 0.0
      %5582 = vmatpush1.msra.mxu0 0.0
      %5583 = vmatprep.subr.mxu0 0.0
      %5584 = vmatpush1.msra.mxu0 0.0
      %5585 = vmatprep.subr.mxu0 0.0
      %5586 = vmatpush1.msra.mxu0 0.0
      %5587 = vmatprep.subr.mxu0 0.0
      %5588 = vmatpush1.msra.mxu0 0.0
      %5589 = vmatprep.subr.mxu0 0.0
      %5590 = vmatpush1.msra.mxu0 0.0
      %5591 = vmatprep.subr.mxu0 0.0
      %5592 = vmatpush1.msra.mxu0 0.0
      %5593 = vmatprep.subr.mxu0 0.0
      %5594 = vmatpush1.msra.mxu0 0.0
      %5595 = vmatprep.subr.mxu0 0.0
      %5596 = vmatpush1.msra.mxu0 0.0
      %5597 = vmatprep.subr.mxu0 0.0
      %5598 = vmatpush1.msra.mxu0 0.0
      %5599 = vmatprep.subr.mxu0 0.0
      %5600 = vmatpush1.msra.mxu0 0.0
      %5601 = vmatprep.subr.mxu0 0.0
      %5602 = vmatpush1.msra.mxu0 0.0
      %5603 = vmatprep.subr.mxu0 0.0
      %5604 = vmatpush1.msra.mxu0 0.0
      %5605 = vmatprep.mubr.f32.mxu0 0.0
      %5606 = vmatmul.mubr.f32.gmra.mrb[0].mxu0 %v5491
      %v5607 = vpop.f32.mrb[0].mxu0
      %v5608 = vadd.f32 0.0, %v5607
      %v5609 = vpop.f32.mrb[0].mxu0
      %5610 = vmatprep.mubr.f32.mxu0 0.0
      %5611 = vmatmul.mubr.f32.gmra.mrb[0].mxu0 %v5494
      %v5612 = vpop.f32.mrb[0].mxu0
      %v5613 = vadd.f32 0.0, %v5612
      %v5614 = vpop.f32.mrb[0].mxu0
      %5615 = vmatprep.mubr.f32.mxu0 0.0
      %5616 = vmatmul.mubr.f32.gmra.mrb[0].mxu0 %v5497
      %v5617 = vpop.f32.mrb[0].mxu0
      %v5618 = vadd.f32 0.0, %v5617
      %v5619 = vpop.f32.mrb[0].mxu0
      %5620 = vmatprep.mubr.f32.mxu0 0.0
      %5621 = vmatmul.mubr.f32.gmra.mrb[0].mxu0 %v5500
      %v5622 = vpop.f32.mrb[0].mxu0
      %v5623 = vadd.f32 0.0, %v5622
      %v5624 = vpop.f32.mrb[0].mxu0
      %5625 = vmatprep.mubr.f32.mxu0 0.0
      %5626 = vmatmul.mubr.f32.gmra.mrb[0].mxu0 %v5503
      %v5627 = vpop.f32.mrb[0].mxu0
      %v5628 = vadd.f32 0.0, %v5627
      %v5629 = vpop.f32.mrb[0].mxu0
      %5630 = vmatprep.mubr.f32.mxu0 0.0
      %5631 = vmatmul.mubr.f32.gmra.mrb[0].mxu0 %v5506
      %v5632 = vpop.f32.mrb[0].mxu0
      %v5633 = vadd.f32 0.0, %v5632
      %v5634 = vpop.f32.mrb[0].mxu0
      %5635 = vmatprep.mubr.f32.mxu0 0.0
      %5636 = vmatmul.mubr.f32.gmra.mrb[0].mxu0 %v5509
      %v5637 = vpop.f32.mrb[0].mxu0
      %v5638 = vadd.f32 0.0, %v5637
      %v5639 = vpop.f32.mrb[0].mxu0
      %5640 = vmatprep.mubr.f32.mxu0 0.0
      %5641 = vmatmul.mubr.f32.gmra.mrb[0].mxu0 %v5512
      %v5642 = vpop.f32.mrb[0].mxu0
      %v5643 = vadd.f32 0.0, %v5642
      %v5644 = vpop.f32.mrb[0].mxu0
      %5645 = vmatprep.mubr.f32.mxu0 0.0
      %5646 = vmatmul.mubr.f32.gmra.mrb[0].mxu0 %v5515
      %v5647 = vpop.f32.mrb[0].mxu0
      %v5648 = vadd.f32 0.0, %v5647
      %v5649 = vpop.f32.mrb[0].mxu0
      %5650 = vmatprep.mubr.f32.mxu0 0.0
      %5651 = vmatmul.mubr.f32.gmra.mrb[0].mxu0 %v5518
      %v5652 = vpop.f32.mrb[0].mxu0
      %v5653 = vadd.f32 0.0, %v5652
      %v5654 = vpop.f32.mrb[0].mxu0
      %5655 = vmatprep.mubr.f32.mxu0 0.0
      %5656 = vmatmul.mubr.f32.gmra.mrb[0].mxu0 %v5521
      %v5657 = vpop.f32.mrb[0].mxu0
      %v5658 = vadd.f32 0.0, %v5657
      %v5659 = vpop.f32.mrb[0].mxu0
      %5660 = vmatprep.mubr.f32.mxu0 0.0
      %5661 = vmatmul.mubr.f32.gmra.mrb[0].mxu0 %v5524
      %v5662 = vpop.f32.mrb[0].mxu0
      %v5663 = vadd.f32 0.0, %v5662
      %v5664 = vpop.f32.mrb[0].mxu0
      %5665 = vmatprep.mubr.f32.mxu0 0.0
      %5666 = vmatmul.mubr.f32.gmra.mrb[0].mxu0 %v5527
      %v5667 = vpop.f32.mrb[0].mxu0
      %v5668 = vadd.f32 0.0, %v5667
      %v5669 = vpop.f32.mrb[0].mxu0
      %5670 = vmatprep.mubr.f32.mxu0 0.0
      %5671 = vmatmul.mubr.f32.gmra.mrb[0].mxu0 %v5530
      %v5672 = vpop.f32.mrb[0].mxu0
      %v5673 = vadd.f32 0.0, %v5672
      %v5674 = vpop.f32.mrb[0].mxu0
      %5675 = vmatprep.mubr.f32.mxu0 0.0
      %5676 = vmatmul.mubr.f32.gmra.mrb[0].mxu0 %v5533
      %v5677 = vpop.f32.mrb[0].mxu0
      %v5678 = vadd.f32 0.0, %v5677
      %v5679 = vpop.f32.mrb[0].mxu0
      %5680 = vmatprep.mubr.f32.mxu0 0.0
      %5681 = vmatmul.mubr.f32.gmra.mrb[0].mxu0 %v5536
      %v5682 = vpop.f32.mrb[0].mxu0
      %v5683 = vadd.f32 0.0, %v5682
      %v5684 = vpop.f32.mrb[0].mxu0
      %5685 = vdwg.mxu0
      %v5686 = vadd.f32 %v5457, %v5608
      %v5687 = vadd.f32 %v5458, %v5613
      %v5688 = vadd.f32 %v5459, %v5618
      %v5689 = vadd.f32 %v5460, %v5623
      %v5690 = vadd.f32 %v5461, %v5628
      %v5691 = vadd.f32 %v5462, %v5633
      %v5692 = vadd.f32 %v5463, %v5638
      %v5693 = vadd.f32 %v5464, %v5643
      %v5694 = vadd.f32 %v5465, %v5648
      %v5695 = vadd.f32 %v5466, %v5653
      %v5696 = vadd.f32 %v5467, %v5658
      %v5697 = vadd.f32 %v5468, %v5663
      %v5698 = vadd.f32 %v5469, %v5668
      %v5699 = vadd.f32 %v5470, %v5673
      %v5700 = vadd.f32 %v5471, %v5678
      %v5701 = vadd.f32 %v5472, %v5683
      %v5702 = vld [vmem:[%s210 + $0x11a] sm:$0xff]
      %v5703 = vld [vmem:[%s210 + $0x122] sm:$0xff]
      %v5704 = vld [vmem:[%s210 + $0x12a] sm:$0xff]
      %v5705 = vld [vmem:[%s210 + $0x132] sm:$0xff]
      %v5706 = vld [vmem:[%s210 + $0x13a] sm:$0xff]
      %v5707 = vld [vmem:[%s210 + $0x142] sm:$0xff]
      %v5708 = vld [vmem:[%s210 + $0x14a] sm:$0xff]
      %v5709 = vld [vmem:[%s210 + $0x152] sm:$0xff]
      %v5710 = vld [vmem:[%s210 + $0x15a] sm:$0xff]
      %v5711 = vld [vmem:[%s210 + $0x162] sm:$0xff]
      %v5712 = vld [vmem:[%s210 + $0x16a] sm:$0xff]
      %v5713 = vld [vmem:[%s210 + $0x172] sm:$0xff]
      %v5714 = vld [vmem:[%s210 + $0x17a] sm:$0xff]
      %v5715 = vld [vmem:[%s210 + $0x182] sm:$0xff]
      %v5716 = vld [vmem:[%s210 + $0x18a] sm:$0xff]
      %v5717 = vld [vmem:[%s210 + $0x192] sm:$0xff]
      %v5718 = vld [vmem:[%s1476] sm:$0xf]
      %v5720 = vsel %vm316, %v5702, 0
      %v5723 = vsel %vm316, %v5703, 0
      %v5726 = vsel %vm316, %v5704, 0
      %v5729 = vsel %vm316, %v5705, 0
      %v5732 = vsel %vm316, %v5706, 0
      %v5735 = vsel %vm316, %v5707, 0
      %v5738 = vsel %vm316, %v5708, 0
      %v5741 = vsel %vm316, %v5709, 0
      %v5744 = vsel %vm316, %v5710, 0
      %v5747 = vsel %vm316, %v5711, 0
      %v5750 = vsel %vm316, %v5712, 0
      %v5753 = vsel %vm316, %v5713, 0
      %v5756 = vsel %vm316, %v5714, 0
      %v5759 = vsel %vm316, %v5715, 0
      %v5762 = vsel %vm316, %v5716, 0
      %v5765 = vsel %vm316, %v5717, 0
      %v5768 = vsel %vm365, %v5718, 0
      %5770 = vmatprep.subr.mxu0 0.0
      %5771 = vmatpush1.msra.mxu0 %v5768
      %5772 = vmatprep.subr.mxu0 0.0
      %5773 = vmatpush1.msra.mxu0 0.0
      %5774 = vmatprep.subr.mxu0 0.0
      %5775 = vmatpush1.msra.mxu0 0.0
      %5776 = vmatprep.subr.mxu0 0.0
      %5777 = vmatpush1.msra.mxu0 0.0
      %5778 = vmatprep.subr.mxu0 0.0
      %5779 = vmatpush1.msra.mxu0 0.0
      %5780 = vmatprep.subr.mxu0 0.0
      %5781 = vmatpush1.msra.mxu0 0.0
      %5782 = vmatprep.subr.mxu0 0.0
      %5783 = vmatpush1.msra.mxu0 0.0
      %5784 = vmatprep.subr.mxu0 0.0
      %5785 = vmatpush1.msra.mxu0 0.0
      %5786 = vmatprep.subr.mxu0 0.0
      %5787 = vmatpush1.msra.mxu0 0.0
      %5788 = vmatprep.subr.mxu0 0.0
      %5789 = vmatpush1.msra.mxu0 0.0
      %5790 = vmatprep.subr.mxu0 0.0
      %5791 = vmatpush1.msra.mxu0 0.0
      %5792 = vmatprep.subr.mxu0 0.0
      %5793 = vmatpush1.msra.mxu0 0.0
      %5794 = vmatprep.subr.mxu0 0.0
      %5795 = vmatpush1.msra.mxu0 0.0
      %5796 = vmatprep.subr.mxu0 0.0
      %5797 = vmatpush1.msra.mxu0 0.0
      %5798 = vmatprep.subr.mxu0 0.0
      %5799 = vmatpush1.msra.mxu0 0.0
      %5800 = vmatprep.subr.mxu0 0.0
      %5801 = vmatpush1.msra.mxu0 0.0
      %5802 = vmatprep.subr.mxu0 0.0
      %5803 = vmatpush1.msra.mxu0 0.0
      %5804 = vmatprep.subr.mxu0 0.0
      %5805 = vmatpush1.msra.mxu0 0.0
      %5806 = vmatprep.subr.mxu0 0.0
      %5807 = vmatpush1.msra.mxu0 0.0
      %5808 = vmatprep.subr.mxu0 0.0
      %5809 = vmatpush1.msra.mxu0 0.0
      %5810 = vmatprep.subr.mxu0 0.0
      %5811 = vmatpush1.msra.mxu0 0.0
      %5812 = vmatprep.subr.mxu0 0.0
      %5813 = vmatpush1.msra.mxu0 0.0
      %5814 = vmatprep.subr.mxu0 0.0
      %5815 = vmatpush1.msra.mxu0 0.0
      %5816 = vmatprep.subr.mxu0 0.0
      %5817 = vmatpush1.msra.mxu0 0.0
      %5818 = vmatprep.subr.mxu0 0.0
      %5819 = vmatpush1.msra.mxu0 0.0
      %5820 = vmatprep.subr.mxu0 0.0
      %5821 = vmatpush1.msra.mxu0 0.0
      %5822 = vmatprep.subr.mxu0 0.0
      %5823 = vmatpush1.msra.mxu0 0.0
      %5824 = vmatprep.subr.mxu0 0.0
      %5825 = vmatpush1.msra.mxu0 0.0
      %5826 = vmatprep.subr.mxu0 0.0
      %5827 = vmatpush1.msra.mxu0 0.0
      %5828 = vmatprep.subr.mxu0 0.0
      %5829 = vmatpush1.msra.mxu0 0.0
      %5830 = vmatprep.subr.mxu0 0.0
      %5831 = vmatpush1.msra.mxu0 0.0
      %5832 = vmatprep.subr.mxu0 0.0
      %5833 = vmatpush1.msra.mxu0 0.0
      %5834 = vmatprep.mubr.f32.mxu0 0.0
      %5835 = vmatmul.mubr.f32.gmra.mrb[0].mxu0 %v5720
      %v5836 = vpop.f32.mrb[0].mxu0
      %v5837 = vadd.f32 0.0, %v5836
      %v5838 = vpop.f32.mrb[0].mxu0
      %5839 = vmatprep.mubr.f32.mxu0 0.0
      %5840 = vmatmul.mubr.f32.gmra.mrb[0].mxu0 %v5723
      %v5841 = vpop.f32.mrb[0].mxu0
      %v5842 = vadd.f32 0.0, %v5841
      %v5843 = vpop.f32.mrb[0].mxu0
      %5844 = vmatprep.mubr.f32.mxu0 0.0
      %5845 = vmatmul.mubr.f32.gmra.mrb[0].mxu0 %v5726
      %v5846 = vpop.f32.mrb[0].mxu0
      %v5847 = vadd.f32 0.0, %v5846
      %v5848 = vpop.f32.mrb[0].mxu0
      %5849 = vmatprep.mubr.f32.mxu0 0.0
      %5850 = vmatmul.mubr.f32.gmra.mrb[0].mxu0 %v5729
      %v5851 = vpop.f32.mrb[0].mxu0
      %v5852 = vadd.f32 0.0, %v5851
      %v5853 = vpop.f32.mrb[0].mxu0
      %5854 = vmatprep.mubr.f32.mxu0 0.0
      %5855 = vmatmul.mubr.f32.gmra.mrb[0].mxu0 %v5732
      %v5856 = vpop.f32.mrb[0].mxu0
      %v5857 = vadd.f32 0.0, %v5856
      %v5858 = vpop.f32.mrb[0].mxu0
      %5859 = vmatprep.mubr.f32.mxu0 0.0
      %5860 = vmatmul.mubr.f32.gmra.mrb[0].mxu0 %v5735
      %v5861 = vpop.f32.mrb[0].mxu0
      %v5862 = vadd.f32 0.0, %v5861
      %v5863 = vpop.f32.mrb[0].mxu0
      %5864 = vmatprep.mubr.f32.mxu0 0.0
      %5865 = vmatmul.mubr.f32.gmra.mrb[0].mxu0 %v5738
      %v5866 = vpop.f32.mrb[0].mxu0
      %v5867 = vadd.f32 0.0, %v5866
      %v5868 = vpop.f32.mrb[0].mxu0
      %5869 = vmatprep.mubr.f32.mxu0 0.0
      %5870 = vmatmul.mubr.f32.gmra.mrb[0].mxu0 %v5741
      %v5871 = vpop.f32.mrb[0].mxu0
      %v5872 = vadd.f32 0.0, %v5871
      %v5873 = vpop.f32.mrb[0].mxu0
      %5874 = vmatprep.mubr.f32.mxu0 0.0
      %5875 = vmatmul.mubr.f32.gmra.mrb[0].mxu0 %v5744
      %v5876 = vpop.f32.mrb[0].mxu0
      %v5877 = vadd.f32 0.0, %v5876
      %v5878 = vpop.f32.mrb[0].mxu0
      %5879 = vmatprep.mubr.f32.mxu0 0.0
      %5880 = vmatmul.mubr.f32.gmra.mrb[0].mxu0 %v5747
      %v5881 = vpop.f32.mrb[0].mxu0
      %v5882 = vadd.f32 0.0, %v5881
      %v5883 = vpop.f32.mrb[0].mxu0
      %5884 = vmatprep.mubr.f32.mxu0 0.0
      %5885 = vmatmul.mubr.f32.gmra.mrb[0].mxu0 %v5750
      %v5886 = vpop.f32.mrb[0].mxu0
      %v5887 = vadd.f32 0.0, %v5886
      %v5888 = vpop.f32.mrb[0].mxu0
      %5889 = vmatprep.mubr.f32.mxu0 0.0
      %5890 = vmatmul.mubr.f32.gmra.mrb[0].mxu0 %v5753
      %v5891 = vpop.f32.mrb[0].mxu0
      %v5892 = vadd.f32 0.0, %v5891
      %v5893 = vpop.f32.mrb[0].mxu0
      %5894 = vmatprep.mubr.f32.mxu0 0.0
      %5895 = vmatmul.mubr.f32.gmra.mrb[0].mxu0 %v5756
      %v5896 = vpop.f32.mrb[0].mxu0
      %v5897 = vadd.f32 0.0, %v5896
      %v5898 = vpop.f32.mrb[0].mxu0
      %5899 = vmatprep.mubr.f32.mxu0 0.0
      %5900 = vmatmul.mubr.f32.gmra.mrb[0].mxu0 %v5759
      %v5901 = vpop.f32.mrb[0].mxu0
      %v5902 = vadd.f32 0.0, %v5901
      %v5903 = vpop.f32.mrb[0].mxu0
      %5904 = vmatprep.mubr.f32.mxu0 0.0
      %5905 = vmatmul.mubr.f32.gmra.mrb[0].mxu0 %v5762
      %v5906 = vpop.f32.mrb[0].mxu0
      %v5907 = vadd.f32 0.0, %v5906
      %v5908 = vpop.f32.mrb[0].mxu0
      %5909 = vmatprep.mubr.f32.mxu0 0.0
      %5910 = vmatmul.mubr.f32.gmra.mrb[0].mxu0 %v5765
      %v5911 = vpop.f32.mrb[0].mxu0
      %v5912 = vadd.f32 0.0, %v5911
      %v5913 = vpop.f32.mrb[0].mxu0
      %5914 = vdwg.mxu0
      %v5915 = vadd.f32 %v5686, %v5837
      %v5916 = vadd.f32 %v5687, %v5842
      %v5917 = vadd.f32 %v5688, %v5847
      %v5918 = vadd.f32 %v5689, %v5852
      %v5919 = vadd.f32 %v5690, %v5857
      %v5920 = vadd.f32 %v5691, %v5862
      %v5921 = vadd.f32 %v5692, %v5867
      %v5922 = vadd.f32 %v5693, %v5872
      %v5923 = vadd.f32 %v5694, %v5877
      %v5924 = vadd.f32 %v5695, %v5882
      %v5925 = vadd.f32 %v5696, %v5887
      %v5926 = vadd.f32 %v5697, %v5892
      %v5927 = vadd.f32 %v5698, %v5897
      %v5928 = vadd.f32 %v5699, %v5902
      %v5929 = vadd.f32 %v5700, %v5907
      %v5930 = vadd.f32 %v5701, %v5912
      %v5931 = vld [vmem:[%s210 + $0x130] sm:$0xff]
      %v5932 = vld [vmem:[%s210 + $0x138] sm:$0xff]
      %v5933 = vld [vmem:[%s210 + $0x140] sm:$0xff]
      %v5934 = vld [vmem:[%s210 + $0x148] sm:$0xff]
      %v5935 = vld [vmem:[%s210 + $0x150] sm:$0xff]
      %v5936 = vld [vmem:[%s210 + $0x158] sm:$0xff]
      %v5937 = vld [vmem:[%s210 + $0x160] sm:$0xff]
      %v5938 = vld [vmem:[%s210 + $0x168] sm:$0xff]
      %v5939 = vld [vmem:[%s210 + $0x170] sm:$0xff]
      %v5940 = vld [vmem:[%s210 + $0x178] sm:$0xff]
      %v5941 = vld [vmem:[%s210 + $0x180] sm:$0xff]
      %v5942 = vld [vmem:[%s210 + $0x188] sm:$0xff]
      %v5943 = vld [vmem:[%s210 + $0x190] sm:$0xff]
      %v5944 = vld [vmem:[%s210 + $0x198] sm:$0xff]
      %v5945 = vld [vmem:[%s210 + $0x1a0] sm:$0xff]
      %v5946 = vld [vmem:[%s210 + $0x1a8] sm:$0xff]
      %v5947 = vld [vmem:[%s1708] sm:$0xf]
      %v5949 = vsel %vm316, %v5931, 0
      %v5952 = vsel %vm316, %v5932, 0
      %v5955 = vsel %vm316, %v5933, 0
      %v5958 = vsel %vm316, %v5934, 0
      %v5961 = vsel %vm316, %v5935, 0
      %v5964 = vsel %vm316, %v5936, 0
      %v5967 = vsel %vm316, %v5937, 0
      %v5970 = vsel %vm316, %v5938, 0
      %v5973 = vsel %vm316, %v5939, 0
      %v5976 = vsel %vm316, %v5940, 0
      %v5979 = vsel %vm316, %v5941, 0
      %v5982 = vsel %vm316, %v5942, 0
      %v5985 = vsel %vm316, %v5943, 0
      %v5988 = vsel %vm316, %v5944, 0
      %v5991 = vsel %vm316, %v5945, 0
      %v5994 = vsel %vm316, %v5946, 0
      %v5997 = vsel %vm365, %v5947, 0
      %5999 = vmatprep.subr.mxu0 0.0
      %6000 = vmatpush1.msra.mxu0 %v5997
      %6001 = vmatprep.subr.mxu0 0.0
      %6002 = vmatpush1.msra.mxu0 0.0
      %6003 = vmatprep.subr.mxu0 0.0
      %6004 = vmatpush1.msra.mxu0 0.0
      %6005 = vmatprep.subr.mxu0 0.0
      %6006 = vmatpush1.msra.mxu0 0.0
      %6007 = vmatprep.subr.mxu0 0.0
      %6008 = vmatpush1.msra.mxu0 0.0
      %6009 = vmatprep.subr.mxu0 0.0
      %6010 = vmatpush1.msra.mxu0 0.0
      %6011 = vmatprep.subr.mxu0 0.0
      %6012 = vmatpush1.msra.mxu0 0.0
      %6013 = vmatprep.subr.mxu0 0.0
      %6014 = vmatpush1.msra.mxu0 0.0
      %6015 = vmatprep.subr.mxu0 0.0
      %6016 = vmatpush1.msra.mxu0 0.0
      %6017 = vmatprep.subr.mxu0 0.0
      %6018 = vmatpush1.msra.mxu0 0.0
      %6019 = vmatprep.subr.mxu0 0.0
      %6020 = vmatpush1.msra.mxu0 0.0
      %6021 = vmatprep.subr.mxu0 0.0
      %6022 = vmatpush1.msra.mxu0 0.0
      %6023 = vmatprep.subr.mxu0 0.0
      %6024 = vmatpush1.msra.mxu0 0.0
      %6025 = vmatprep.subr.mxu0 0.0
      %6026 = vmatpush1.msra.mxu0 0.0
      %6027 = vmatprep.subr.mxu0 0.0
      %6028 = vmatpush1.msra.mxu0 0.0
      %6029 = vmatprep.subr.mxu0 0.0
      %6030 = vmatpush1.msra.mxu0 0.0
      %6031 = vmatprep.subr.mxu0 0.0
      %6032 = vmatpush1.msra.mxu0 0.0
      %6033 = vmatprep.subr.mxu0 0.0
      %6034 = vmatpush1.msra.mxu0 0.0
      %6035 = vmatprep.subr.mxu0 0.0
      %6036 = vmatpush1.msra.mxu0 0.0
      %6037 = vmatprep.subr.mxu0 0.0
      %6038 = vmatpush1.msra.mxu0 0.0
      %6039 = vmatprep.subr.mxu0 0.0
      %6040 = vmatpush1.msra.mxu0 0.0
      %6041 = vmatprep.subr.mxu0 0.0
      %6042 = vmatpush1.msra.mxu0 0.0
      %6043 = vmatprep.subr.mxu0 0.0
      %6044 = vmatpush1.msra.mxu0 0.0
      %6045 = vmatprep.subr.mxu0 0.0
      %6046 = vmatpush1.msra.mxu0 0.0
      %6047 = vmatprep.subr.mxu0 0.0
      %6048 = vmatpush1.msra.mxu0 0.0
      %6049 = vmatprep.subr.mxu0 0.0
      %6050 = vmatpush1.msra.mxu0 0.0
      %6051 = vmatprep.subr.mxu0 0.0
      %6052 = vmatpush1.msra.mxu0 0.0
      %6053 = vmatprep.subr.mxu0 0.0
      %6054 = vmatpush1.msra.mxu0 0.0
      %6055 = vmatprep.subr.mxu0 0.0
      %6056 = vmatpush1.msra.mxu0 0.0
      %6057 = vmatprep.subr.mxu0 0.0
      %6058 = vmatpush1.msra.mxu0 0.0
      %6059 = vmatprep.subr.mxu0 0.0
      %6060 = vmatpush1.msra.mxu0 0.0
      %6061 = vmatprep.subr.mxu0 0.0
      %6062 = vmatpush1.msra.mxu0 0.0
      %6063 = vmatprep.mubr.f32.mxu0 0.0
      %6064 = vmatmul.mubr.f32.gmra.mrb[0].mxu0 %v5949
      %v6065 = vpop.f32.mrb[0].mxu0
      %v6066 = vadd.f32 0.0, %v6065
      %v6067 = vpop.f32.mrb[0].mxu0
      %6068 = vmatprep.mubr.f32.mxu0 0.0
      %6069 = vmatmul.mubr.f32.gmra.mrb[0].mxu0 %v5952
      %v6070 = vpop.f32.mrb[0].mxu0
      %v6071 = vadd.f32 0.0, %v6070
      %v6072 = vpop.f32.mrb[0].mxu0
      %6073 = vmatprep.mubr.f32.mxu0 0.0
      %6074 = vmatmul.mubr.f32.gmra.mrb[0].mxu0 %v5955
      %v6075 = vpop.f32.mrb[0].mxu0
      %v6076 = vadd.f32 0.0, %v6075
      %v6077 = vpop.f32.mrb[0].mxu0
      %6078 = vmatprep.mubr.f32.mxu0 0.0
      %6079 = vmatmul.mubr.f32.gmra.mrb[0].mxu0 %v5958
      %v6080 = vpop.f32.mrb[0].mxu0
      %v6081 = vadd.f32 0.0, %v6080
      %v6082 = vpop.f32.mrb[0].mxu0
      %6083 = vmatprep.mubr.f32.mxu0 0.0
      %6084 = vmatmul.mubr.f32.gmra.mrb[0].mxu0 %v5961
      %v6085 = vpop.f32.mrb[0].mxu0
      %v6086 = vadd.f32 0.0, %v6085
      %v6087 = vpop.f32.mrb[0].mxu0
      %6088 = vmatprep.mubr.f32.mxu0 0.0
      %6089 = vmatmul.mubr.f32.gmra.mrb[0].mxu0 %v5964
      %v6090 = vpop.f32.mrb[0].mxu0
      %v6091 = vadd.f32 0.0, %v6090
      %v6092 = vpop.f32.mrb[0].mxu0
      %6093 = vmatprep.mubr.f32.mxu0 0.0
      %6094 = vmatmul.mubr.f32.gmra.mrb[0].mxu0 %v5967
      %v6095 = vpop.f32.mrb[0].mxu0
      %v6096 = vadd.f32 0.0, %v6095
      %v6097 = vpop.f32.mrb[0].mxu0
      %6098 = vmatprep.mubr.f32.mxu0 0.0
      %6099 = vmatmul.mubr.f32.gmra.mrb[0].mxu0 %v5970
      %v6100 = vpop.f32.mrb[0].mxu0
      %v6101 = vadd.f32 0.0, %v6100
      %v6102 = vpop.f32.mrb[0].mxu0
      %6103 = vmatprep.mubr.f32.mxu0 0.0
      %6104 = vmatmul.mubr.f32.gmra.mrb[0].mxu0 %v5973
      %v6105 = vpop.f32.mrb[0].mxu0
      %v6106 = vadd.f32 0.0, %v6105
      %v6107 = vpop.f32.mrb[0].mxu0
      %6108 = vmatprep.mubr.f32.mxu0 0.0
      %6109 = vmatmul.mubr.f32.gmra.mrb[0].mxu0 %v5976
      %v6110 = vpop.f32.mrb[0].mxu0
      %v6111 = vadd.f32 0.0, %v6110
      %v6112 = vpop.f32.mrb[0].mxu0
      %6113 = vmatprep.mubr.f32.mxu0 0.0
      %6114 = vmatmul.mubr.f32.gmra.mrb[0].mxu0 %v5979
      %v6115 = vpop.f32.mrb[0].mxu0
      %v6116 = vadd.f32 0.0, %v6115
      %v6117 = vpop.f32.mrb[0].mxu0
      %6118 = vmatprep.mubr.f32.mxu0 0.0
      %6119 = vmatmul.mubr.f32.gmra.mrb[0].mxu0 %v5982
      %v6120 = vpop.f32.mrb[0].mxu0
      %v6121 = vadd.f32 0.0, %v6120
      %v6122 = vpop.f32.mrb[0].mxu0
      %6123 = vmatprep.mubr.f32.mxu0 0.0
      %6124 = vmatmul.mubr.f32.gmra.mrb[0].mxu0 %v5985
      %v6125 = vpop.f32.mrb[0].mxu0
      %v6126 = vadd.f32 0.0, %v6125
      %v6127 = vpop.f32.mrb[0].mxu0
      %6128 = vmatprep.mubr.f32.mxu0 0.0
      %6129 = vmatmul.mubr.f32.gmra.mrb[0].mxu0 %v5988
      %v6130 = vpop.f32.mrb[0].mxu0
      %v6131 = vadd.f32 0.0, %v6130
      %v6132 = vpop.f32.mrb[0].mxu0
      %6133 = vmatprep.mubr.f32.mxu0 0.0
      %6134 = vmatmul.mubr.f32.gmra.mrb[0].mxu0 %v5991
      %v6135 = vpop.f32.mrb[0].mxu0
      %v6136 = vadd.f32 0.0, %v6135
      %v6137 = vpop.f32.mrb[0].mxu0
      %6138 = vmatprep.mubr.f32.mxu0 0.0
      %6139 = vmatmul.mubr.f32.gmra.mrb[0].mxu0 %v5994
      %v6140 = vpop.f32.mrb[0].mxu0
      %v6141 = vadd.f32 0.0, %v6140
      %v6142 = vpop.f32.mrb[0].mxu0
      %6143 = vdwg.mxu0
      %v6144 = vadd.f32 %v5915, %v6066
      %v6145 = vadd.f32 %v5916, %v6071
      %v6146 = vadd.f32 %v5917, %v6076
      %v6147 = vadd.f32 %v5918, %v6081
      %v6148 = vadd.f32 %v5919, %v6086
      %v6149 = vadd.f32 %v5920, %v6091
      %v6150 = vadd.f32 %v5921, %v6096
      %v6151 = vadd.f32 %v5922, %v6101
      %v6152 = vadd.f32 %v5923, %v6106
      %v6153 = vadd.f32 %v5924, %v6111
      %v6154 = vadd.f32 %v5925, %v6116
      %v6155 = vadd.f32 %v5926, %v6121
      %v6156 = vadd.f32 %v5927, %v6126
      %v6157 = vadd.f32 %v5928, %v6131
      %v6158 = vadd.f32 %v5929, %v6136
      %v6159 = vadd.f32 %v5930, %v6141
      %v6160 = vld [vmem:[%s210 + $0x131] sm:$0xff]
      %v6161 = vld [vmem:[%s210 + $0x139] sm:$0xff]
      %v6162 = vld [vmem:[%s210 + $0x141] sm:$0xff]
      %v6163 = vld [vmem:[%s210 + $0x149] sm:$0xff]
      %v6164 = vld [vmem:[%s210 + $0x151] sm:$0xff]
      %v6165 = vld [vmem:[%s210 + $0x159] sm:$0xff]
      %v6166 = vld [vmem:[%s210 + $0x161] sm:$0xff]
      %v6167 = vld [vmem:[%s210 + $0x169] sm:$0xff]
      %v6168 = vld [vmem:[%s210 + $0x171] sm:$0xff]
      %v6169 = vld [vmem:[%s210 + $0x179] sm:$0xff]
      %v6170 = vld [vmem:[%s210 + $0x181] sm:$0xff]
      %v6171 = vld [vmem:[%s210 + $0x189] sm:$0xff]
      %v6172 = vld [vmem:[%s210 + $0x191] sm:$0xff]
      %v6173 = vld [vmem:[%s210 + $0x199] sm:$0xff]
      %v6174 = vld [vmem:[%s210 + $0x1a1] sm:$0xff]
      %v6175 = vld [vmem:[%s210 + $0x1a9] sm:$0xff]
      %v6176 = vld [vmem:[%s1940] sm:$0xf]
      %v6178 = vsel %vm316, %v6160, 0
      %v6181 = vsel %vm316, %v6161, 0
      %v6184 = vsel %vm316, %v6162, 0
      %v6187 = vsel %vm316, %v6163, 0
      %v6190 = vsel %vm316, %v6164, 0
      %v6193 = vsel %vm316, %v6165, 0
      %v6196 = vsel %vm316, %v6166, 0
      %v6199 = vsel %vm316, %v6167, 0
      %v6202 = vsel %vm316, %v6168, 0
      %v6205 = vsel %vm316, %v6169, 0
      %v6208 = vsel %vm316, %v6170, 0
      %v6211 = vsel %vm316, %v6171, 0
      %v6214 = vsel %vm316, %v6172, 0
      %v6217 = vsel %vm316, %v6173, 0
      %v6220 = vsel %vm316, %v6174, 0
      %v6223 = vsel %vm316, %v6175, 0
      %v6226 = vsel %vm365, %v6176, 0
      %6228 = vmatprep.subr.mxu0 0.0
      %6229 = vmatpush1.msra.mxu0 %v6226
      %6230 = vmatprep.subr.mxu0 0.0
      %6231 = vmatpush1.msra.mxu0 0.0
      %6232 = vmatprep.subr.mxu0 0.0
      %6233 = vmatpush1.msra.mxu0 0.0
      %6234 = vmatprep.subr.mxu0 0.0
      %6235 = vmatpush1.msra.mxu0 0.0
      %6236 = vmatprep.subr.mxu0 0.0
      %6237 = vmatpush1.msra.mxu0 0.0
      %6238 = vmatprep.subr.mxu0 0.0
      %6239 = vmatpush1.msra.mxu0 0.0
      %6240 = vmatprep.subr.mxu0 0.0
      %6241 = vmatpush1.msra.mxu0 0.0
      %6242 = vmatprep.subr.mxu0 0.0
      %6243 = vmatpush1.msra.mxu0 0.0
      %6244 = vmatprep.subr.mxu0 0.0
      %6245 = vmatpush1.msra.mxu0 0.0
      %6246 = vmatprep.subr.mxu0 0.0
      %6247 = vmatpush1.msra.mxu0 0.0
      %6248 = vmatprep.subr.mxu0 0.0
      %6249 = vmatpush1.msra.mxu0 0.0
      %6250 = vmatprep.subr.mxu0 0.0
      %6251 = vmatpush1.msra.mxu0 0.0
      %6252 = vmatprep.subr.mxu0 0.0
      %6253 = vmatpush1.msra.mxu0 0.0
      %6254 = vmatprep.subr.mxu0 0.0
      %6255 = vmatpush1.msra.mxu0 0.0
      %6256 = vmatprep.subr.mxu0 0.0
      %6257 = vmatpush1.msra.mxu0 0.0
      %6258 = vmatprep.subr.mxu0 0.0
      %6259 = vmatpush1.msra.mxu0 0.0
      %6260 = vmatprep.subr.mxu0 0.0
      %6261 = vmatpush1.msra.mxu0 0.0
      %6262 = vmatprep.subr.mxu0 0.0
      %6263 = vmatpush1.msra.mxu0 0.0
      %6264 = vmatprep.subr.mxu0 0.0
      %6265 = vmatpush1.msra.mxu0 0.0
      %6266 = vmatprep.subr.mxu0 0.0
      %6267 = vmatpush1.msra.mxu0 0.0
      %6268 = vmatprep.subr.mxu0 0.0
      %6269 = vmatpush1.msra.mxu0 0.0
      %6270 = vmatprep.subr.mxu0 0.0
      %6271 = vmatpush1.msra.mxu0 0.0
      %6272 = vmatprep.subr.mxu0 0.0
      %6273 = vmatpush1.msra.mxu0 0.0
      %6274 = vmatprep.subr.mxu0 0.0
      %6275 = vmatpush1.msra.mxu0 0.0
      %6276 = vmatprep.subr.mxu0 0.0
      %6277 = vmatpush1.msra.mxu0 0.0
      %6278 = vmatprep.subr.mxu0 0.0
      %6279 = vmatpush1.msra.mxu0 0.0
      %6280 = vmatprep.subr.mxu0 0.0
      %6281 = vmatpush1.msra.mxu0 0.0
      %6282 = vmatprep.subr.mxu0 0.0
      %6283 = vmatpush1.msra.mxu0 0.0
      %6284 = vmatprep.subr.mxu0 0.0
      %6285 = vmatpush1.msra.mxu0 0.0
      %6286 = vmatprep.subr.mxu0 0.0
      %6287 = vmatpush1.msra.mxu0 0.0
      %6288 = vmatprep.subr.mxu0 0.0
      %6289 = vmatpush1.msra.mxu0 0.0
      %6290 = vmatprep.subr.mxu0 0.0
      %6291 = vmatpush1.msra.mxu0 0.0
      %6292 = vmatprep.mubr.f32.mxu0 0.0
      %6293 = vmatmul.mubr.f32.gmra.mrb[0].mxu0 %v6178
      %v6294 = vpop.f32.mrb[0].mxu0
      %v6295 = vadd.f32 0.0, %v6294
      %v6296 = vpop.f32.mrb[0].mxu0
      %6297 = vmatprep.mubr.f32.mxu0 0.0
      %6298 = vmatmul.mubr.f32.gmra.mrb[0].mxu0 %v6181
      %v6299 = vpop.f32.mrb[0].mxu0
      %v6300 = vadd.f32 0.0, %v6299
      %v6301 = vpop.f32.mrb[0].mxu0
      %6302 = vmatprep.mubr.f32.mxu0 0.0
      %6303 = vmatmul.mubr.f32.gmra.mrb[0].mxu0 %v6184
      %v6304 = vpop.f32.mrb[0].mxu0
      %v6305 = vadd.f32 0.0, %v6304
      %v6306 = vpop.f32.mrb[0].mxu0
      %6307 = vmatprep.mubr.f32.mxu0 0.0
      %6308 = vmatmul.mubr.f32.gmra.mrb[0].mxu0 %v6187
      %v6309 = vpop.f32.mrb[0].mxu0
      %v6310 = vadd.f32 0.0, %v6309
      %v6311 = vpop.f32.mrb[0].mxu0
      %6312 = vmatprep.mubr.f32.mxu0 0.0
      %6313 = vmatmul.mubr.f32.gmra.mrb[0].mxu0 %v6190
      %v6314 = vpop.f32.mrb[0].mxu0
      %v6315 = vadd.f32 0.0, %v6314
      %v6316 = vpop.f32.mrb[0].mxu0
      %6317 = vmatprep.mubr.f32.mxu0 0.0
      %6318 = vmatmul.mubr.f32.gmra.mrb[0].mxu0 %v6193
      %v6319 = vpop.f32.mrb[0].mxu0
      %v6320 = vadd.f32 0.0, %v6319
      %v6321 = vpop.f32.mrb[0].mxu0
      %6322 = vmatprep.mubr.f32.mxu0 0.0
      %6323 = vmatmul.mubr.f32.gmra.mrb[0].mxu0 %v6196
      %v6324 = vpop.f32.mrb[0].mxu0
      %v6325 = vadd.f32 0.0, %v6324
      %v6326 = vpop.f32.mrb[0].mxu0
      %6327 = vmatprep.mubr.f32.mxu0 0.0
      %6328 = vmatmul.mubr.f32.gmra.mrb[0].mxu0 %v6199
      %v6329 = vpop.f32.mrb[0].mxu0
      %v6330 = vadd.f32 0.0, %v6329
      %v6331 = vpop.f32.mrb[0].mxu0
      %6332 = vmatprep.mubr.f32.mxu0 0.0
      %6333 = vmatmul.mubr.f32.gmra.mrb[0].mxu0 %v6202
      %v6334 = vpop.f32.mrb[0].mxu0
      %v6335 = vadd.f32 0.0, %v6334
      %v6336 = vpop.f32.mrb[0].mxu0
      %6337 = vmatprep.mubr.f32.mxu0 0.0
      %6338 = vmatmul.mubr.f32.gmra.mrb[0].mxu0 %v6205
      %v6339 = vpop.f32.mrb[0].mxu0
      %v6340 = vadd.f32 0.0, %v6339
      %v6341 = vpop.f32.mrb[0].mxu0
      %6342 = vmatprep.mubr.f32.mxu0 0.0
      %6343 = vmatmul.mubr.f32.gmra.mrb[0].mxu0 %v6208
      %v6344 = vpop.f32.mrb[0].mxu0
      %v6345 = vadd.f32 0.0, %v6344
      %v6346 = vpop.f32.mrb[0].mxu0
      %6347 = vmatprep.mubr.f32.mxu0 0.0
      %6348 = vmatmul.mubr.f32.gmra.mrb[0].mxu0 %v6211
      %v6349 = vpop.f32.mrb[0].mxu0
      %v6350 = vadd.f32 0.0, %v6349
      %v6351 = vpop.f32.mrb[0].mxu0
      %6352 = vmatprep.mubr.f32.mxu0 0.0
      %6353 = vmatmul.mubr.f32.gmra.mrb[0].mxu0 %v6214
      %v6354 = vpop.f32.mrb[0].mxu0
      %v6355 = vadd.f32 0.0, %v6354
      %v6356 = vpop.f32.mrb[0].mxu0
      %6357 = vmatprep.mubr.f32.mxu0 0.0
      %6358 = vmatmul.mubr.f32.gmra.mrb[0].mxu0 %v6217
      %v6359 = vpop.f32.mrb[0].mxu0
      %v6360 = vadd.f32 0.0, %v6359
      %v6361 = vpop.f32.mrb[0].mxu0
      %6362 = vmatprep.mubr.f32.mxu0 0.0
      %6363 = vmatmul.mubr.f32.gmra.mrb[0].mxu0 %v6220
      %v6364 = vpop.f32.mrb[0].mxu0
      %v6365 = vadd.f32 0.0, %v6364
      %v6366 = vpop.f32.mrb[0].mxu0
      %6367 = vmatprep.mubr.f32.mxu0 0.0
      %6368 = vmatmul.mubr.f32.gmra.mrb[0].mxu0 %v6223
      %v6369 = vpop.f32.mrb[0].mxu0
      %v6370 = vadd.f32 0.0, %v6369
      %v6371 = vpop.f32.mrb[0].mxu0
      %6372 = vdwg.mxu0
      %v6373 = vadd.f32 %v6144, %v6295
      %v6374 = vadd.f32 %v6145, %v6300
      %v6375 = vadd.f32 %v6146, %v6305
      %v6376 = vadd.f32 %v6147, %v6310
      %v6377 = vadd.f32 %v6148, %v6315
      %v6378 = vadd.f32 %v6149, %v6320
      %v6379 = vadd.f32 %v6150, %v6325
      %v6380 = vadd.f32 %v6151, %v6330
      %v6381 = vadd.f32 %v6152, %v6335
      %v6382 = vadd.f32 %v6153, %v6340
      %v6383 = vadd.f32 %v6154, %v6345
      %v6384 = vadd.f32 %v6155, %v6350
      %v6385 = vadd.f32 %v6156, %v6355
      %v6386 = vadd.f32 %v6157, %v6360
      %v6387 = vadd.f32 %v6158, %v6365
      %v6388 = vadd.f32 %v6159, %v6370
      %v6389 = vld [vmem:[%s210 + $0x132] sm:$0xff]
      %v6390 = vld [vmem:[%s210 + $0x13a] sm:$0xff]
      %v6391 = vld [vmem:[%s210 + $0x142] sm:$0xff]
      %v6392 = vld [vmem:[%s210 + $0x14a] sm:$0xff]
      %v6393 = vld [vmem:[%s210 + $0x152] sm:$0xff]
      %v6394 = vld [vmem:[%s210 + $0x15a] sm:$0xff]
      %v6395 = vld [vmem:[%s210 + $0x162] sm:$0xff]
      %v6396 = vld [vmem:[%s210 + $0x16a] sm:$0xff]
      %v6397 = vld [vmem:[%s210 + $0x172] sm:$0xff]
      %v6398 = vld [vmem:[%s210 + $0x17a] sm:$0xff]
      %v6399 = vld [vmem:[%s210 + $0x182] sm:$0xff]
      %v6400 = vld [vmem:[%s210 + $0x18a] sm:$0xff]
      %v6401 = vld [vmem:[%s210 + $0x192] sm:$0xff]
      %v6402 = vld [vmem:[%s210 + $0x19a] sm:$0xff]
      %v6403 = vld [vmem:[%s210 + $0x1a2] sm:$0xff]
      %v6404 = vld [vmem:[%s210 + $0x1aa] sm:$0xff]
      %v6405 = vld [vmem:[%s2172] sm:$0xf]
      %v6407 = vsel %vm316, %v6389, 0
      %v6410 = vsel %vm316, %v6390, 0
      %v6413 = vsel %vm316, %v6391, 0
      %v6416 = vsel %vm316, %v6392, 0
      %v6419 = vsel %vm316, %v6393, 0
      %v6422 = vsel %vm316, %v6394, 0
      %v6425 = vsel %vm316, %v6395, 0
      %v6428 = vsel %vm316, %v6396, 0
      %v6431 = vsel %vm316, %v6397, 0
      %v6434 = vsel %vm316, %v6398, 0
      %v6437 = vsel %vm316, %v6399, 0
      %v6440 = vsel %vm316, %v6400, 0
      %v6443 = vsel %vm316, %v6401, 0
      %v6446 = vsel %vm316, %v6402, 0
      %v6449 = vsel %vm316, %v6403, 0
      %v6452 = vsel %vm316, %v6404, 0
      %v6455 = vsel %vm365, %v6405, 0
      %6457 = vmatprep.subr.mxu0 0.0
      %6458 = vmatpush1.msra.mxu0 %v6455
      %6459 = vmatprep.subr.mxu0 0.0
      %6460 = vmatpush1.msra.mxu0 0.0
      %6461 = vmatprep.subr.mxu0 0.0
      %6462 = vmatpush1.msra.mxu0 0.0
      %6463 = vmatprep.subr.mxu0 0.0
      %6464 = vmatpush1.msra.mxu0 0.0
      %6465 = vmatprep.subr.mxu0 0.0
      %6466 = vmatpush1.msra.mxu0 0.0
      %6467 = vmatprep.subr.mxu0 0.0
      %6468 = vmatpush1.msra.mxu0 0.0
      %6469 = vmatprep.subr.mxu0 0.0
      %6470 = vmatpush1.msra.mxu0 0.0
      %6471 = vmatprep.subr.mxu0 0.0
      %6472 = vmatpush1.msra.mxu0 0.0
      %6473 = vmatprep.subr.mxu0 0.0
      %6474 = vmatpush1.msra.mxu0 0.0
      %6475 = vmatprep.subr.mxu0 0.0
      %6476 = vmatpush1.msra.mxu0 0.0
      %6477 = vmatprep.subr.mxu0 0.0
      %6478 = vmatpush1.msra.mxu0 0.0
      %6479 = vmatprep.subr.mxu0 0.0
      %6480 = vmatpush1.msra.mxu0 0.0
      %6481 = vmatprep.subr.mxu0 0.0
      %6482 = vmatpush1.msra.mxu0 0.0
      %6483 = vmatprep.subr.mxu0 0.0
      %6484 = vmatpush1.msra.mxu0 0.0
      %6485 = vmatprep.subr.mxu0 0.0
      %6486 = vmatpush1.msra.mxu0 0.0
      %6487 = vmatprep.subr.mxu0 0.0
      %6488 = vmatpush1.msra.mxu0 0.0
      %6489 = vmatprep.subr.mxu0 0.0
      %6490 = vmatpush1.msra.mxu0 0.0
      %6491 = vmatprep.subr.mxu0 0.0
      %6492 = vmatpush1.msra.mxu0 0.0
      %6493 = vmatprep.subr.mxu0 0.0
      %6494 = vmatpush1.msra.mxu0 0.0
      %6495 = vmatprep.subr.mxu0 0.0
      %6496 = vmatpush1.msra.mxu0 0.0
      %6497 = vmatprep.subr.mxu0 0.0
      %6498 = vmatpush1.msra.mxu0 0.0
      %6499 = vmatprep.subr.mxu0 0.0
      %6500 = vmatpush1.msra.mxu0 0.0
      %6501 = vmatprep.subr.mxu0 0.0
      %6502 = vmatpush1.msra.mxu0 0.0
      %6503 = vmatprep.subr.mxu0 0.0
      %6504 = vmatpush1.msra.mxu0 0.0
      %6505 = vmatprep.subr.mxu0 0.0
      %6506 = vmatpush1.msra.mxu0 0.0
      %6507 = vmatprep.subr.mxu0 0.0
      %6508 = vmatpush1.msra.mxu0 0.0
      %6509 = vmatprep.subr.mxu0 0.0
      %6510 = vmatpush1.msra.mxu0 0.0
      %6511 = vmatprep.subr.mxu0 0.0
      %6512 = vmatpush1.msra.mxu0 0.0
      %6513 = vmatprep.subr.mxu0 0.0
      %6514 = vmatpush1.msra.mxu0 0.0
      %6515 = vmatprep.subr.mxu0 0.0
      %6516 = vmatpush1.msra.mxu0 0.0
      %6517 = vmatprep.subr.mxu0 0.0
      %6518 = vmatpush1.msra.mxu0 0.0
      %6519 = vmatprep.subr.mxu0 0.0
      %6520 = vmatpush1.msra.mxu0 0.0
      %6521 = vmatprep.mubr.f32.mxu0 0.0
      %6522 = vmatmul.mubr.f32.gmra.mrb[0].mxu0 %v6407
      %v6523 = vpop.f32.mrb[0].mxu0
      %v6524 = vadd.f32 0.0, %v6523
      %v6525 = vpop.f32.mrb[0].mxu0
      %6526 = vmatprep.mubr.f32.mxu0 0.0
      %6527 = vmatmul.mubr.f32.gmra.mrb[0].mxu0 %v6410
      %v6528 = vpop.f32.mrb[0].mxu0
      %v6529 = vadd.f32 0.0, %v6528
      %v6530 = vpop.f32.mrb[0].mxu0
      %6531 = vmatprep.mubr.f32.mxu0 0.0
      %6532 = vmatmul.mubr.f32.gmra.mrb[0].mxu0 %v6413
      %v6533 = vpop.f32.mrb[0].mxu0
      %v6534 = vadd.f32 0.0, %v6533
      %v6535 = vpop.f32.mrb[0].mxu0
      %6536 = vmatprep.mubr.f32.mxu0 0.0
      %6537 = vmatmul.mubr.f32.gmra.mrb[0].mxu0 %v6416
      %v6538 = vpop.f32.mrb[0].mxu0
      %v6539 = vadd.f32 0.0, %v6538
      %v6540 = vpop.f32.mrb[0].mxu0
      %6541 = vmatprep.mubr.f32.mxu0 0.0
      %6542 = vmatmul.mubr.f32.gmra.mrb[0].mxu0 %v6419
      %v6543 = vpop.f32.mrb[0].mxu0
      %v6544 = vadd.f32 0.0, %v6543
      %v6545 = vpop.f32.mrb[0].mxu0
      %6546 = vmatprep.mubr.f32.mxu0 0.0
      %6547 = vmatmul.mubr.f32.gmra.mrb[0].mxu0 %v6422
      %v6548 = vpop.f32.mrb[0].mxu0
      %v6549 = vadd.f32 0.0, %v6548
      %v6550 = vpop.f32.mrb[0].mxu0
      %6551 = vmatprep.mubr.f32.mxu0 0.0
      %6552 = vmatmul.mubr.f32.gmra.mrb[0].mxu0 %v6425
      %v6553 = vpop.f32.mrb[0].mxu0
      %v6554 = vadd.f32 0.0, %v6553
      %v6555 = vpop.f32.mrb[0].mxu0
      %6556 = vmatprep.mubr.f32.mxu0 0.0
      %6557 = vmatmul.mubr.f32.gmra.mrb[0].mxu0 %v6428
      %v6558 = vpop.f32.mrb[0].mxu0
      %v6559 = vadd.f32 0.0, %v6558
      %v6560 = vpop.f32.mrb[0].mxu0
      %6561 = vmatprep.mubr.f32.mxu0 0.0
      %6562 = vmatmul.mubr.f32.gmra.mrb[0].mxu0 %v6431
      %v6563 = vpop.f32.mrb[0].mxu0
      %v6564 = vadd.f32 0.0, %v6563
      %v6565 = vpop.f32.mrb[0].mxu0
      %6566 = vmatprep.mubr.f32.mxu0 0.0
      %6567 = vmatmul.mubr.f32.gmra.mrb[0].mxu0 %v6434
      %v6568 = vpop.f32.mrb[0].mxu0
      %v6569 = vadd.f32 0.0, %v6568
      %v6570 = vpop.f32.mrb[0].mxu0
      %6571 = vmatprep.mubr.f32.mxu0 0.0
      %6572 = vmatmul.mubr.f32.gmra.mrb[0].mxu0 %v6437
      %v6573 = vpop.f32.mrb[0].mxu0
      %v6574 = vadd.f32 0.0, %v6573
      %v6575 = vpop.f32.mrb[0].mxu0
      %6576 = vmatprep.mubr.f32.mxu0 0.0
      %6577 = vmatmul.mubr.f32.gmra.mrb[0].mxu0 %v6440
      %v6578 = vpop.f32.mrb[0].mxu0
      %v6579 = vadd.f32 0.0, %v6578
      %v6580 = vpop.f32.mrb[0].mxu0
      %6581 = vmatprep.mubr.f32.mxu0 0.0
      %6582 = vmatmul.mubr.f32.gmra.mrb[0].mxu0 %v6443
      %v6583 = vpop.f32.mrb[0].mxu0
      %v6584 = vadd.f32 0.0, %v6583
      %v6585 = vpop.f32.mrb[0].mxu0
      %6586 = vmatprep.mubr.f32.mxu0 0.0
      %6587 = vmatmul.mubr.f32.gmra.mrb[0].mxu0 %v6446
      %v6588 = vpop.f32.mrb[0].mxu0
      %v6589 = vadd.f32 0.0, %v6588
      %v6590 = vpop.f32.mrb[0].mxu0
      %6591 = vmatprep.mubr.f32.mxu0 0.0
      %6592 = vmatmul.mubr.f32.gmra.mrb[0].mxu0 %v6449
      %v6593 = vpop.f32.mrb[0].mxu0
      %v6594 = vadd.f32 0.0, %v6593
      %v6595 = vpop.f32.mrb[0].mxu0
      %6596 = vmatprep.mubr.f32.mxu0 0.0
      %6597 = vmatmul.mubr.f32.gmra.mrb[0].mxu0 %v6452
      %v6598 = vpop.f32.mrb[0].mxu0
      %v6599 = vadd.f32 0.0, %v6598
      %v6600 = vpop.f32.mrb[0].mxu0
      %6601 = vdwg.mxu0
      %v6602 = vadd.f32 %v6373, %v6524
      %v6603 = vadd.f32 %v6374, %v6529
      %v6604 = vadd.f32 %v6375, %v6534
      %v6605 = vadd.f32 %v6376, %v6539
      %v6606 = vadd.f32 %v6377, %v6544
      %v6607 = vadd.f32 %v6378, %v6549
      %v6608 = vadd.f32 %v6379, %v6554
      %v6609 = vadd.f32 %v6380, %v6559
      %v6610 = vadd.f32 %v6381, %v6564
      %v6611 = vadd.f32 %v6382, %v6569
      %v6612 = vadd.f32 %v6383, %v6574
      %v6613 = vadd.f32 %v6384, %v6579
      %v6614 = vadd.f32 %v6385, %v6584
      %v6615 = vadd.f32 %v6386, %v6589
      %v6616 = vadd.f32 %v6387, %v6594
      %v6617 = vadd.f32 %v6388, %v6599
      // Predicated region
      $region53: #{upsample_forward.1} parent=31 // pred_check
        %p6618 = pneg %p2386
      $region54: #{upsample_forward.1} parent=31 // pred_check_branch
        %6620 = sbr.rel (%p6618) target = $region56
      $region55: #{upsample_forward.1} parent=31 // pred_region
        %6621 = vst [vmem:[%s220 + $0x100] sm:$0xff] %v6602
        %6622 = vst [vmem:[%s220 + $0x108] sm:$0xff] %v6603
        %6623 = vst [vmem:[%s220 + $0x110] sm:$0xff] %v6604
        %6624 = vst [vmem:[%s220 + $0x118] sm:$0xff] %v6605
        %6625 = vst [vmem:[%s220 + $0x120] sm:$0xff] %v6606
        %6626 = vst [vmem:[%s220 + $0x128] sm:$0xff] %v6607
        %6627 = vst [vmem:[%s220 + $0x130] sm:$0xff] %v6608
        %6628 = vst [vmem:[%s220 + $0x138] sm:$0xff] %v6609
        %6629 = vst [vmem:[%s220 + $0x140] sm:$0xff] %v6610
        %6630 = vst [vmem:[%s220 + $0x148] sm:$0xff] %v6611
        %6631 = vst [vmem:[%s220 + $0x150] sm:$0xff] %v6612
        %6632 = vst [vmem:[%s220 + $0x158] sm:$0xff] %v6613
        %6633 = vst [vmem:[%s220 + $0x160] sm:$0xff] %v6614
        %6634 = vst [vmem:[%s220 + $0x168] sm:$0xff] %v6615
        %6635 = vst [vmem:[%s220 + $0x170] sm:$0xff] %v6616
        %6636 = vst [vmem:[%s220 + $0x178] sm:$0xff] %v6617
      $region56: #{upsample_forward.1} parent=31 // pred_fallthru
        _
      // Predicated region
      $region57: #{upsample_forward.1} parent=31 // pred_check
        %p6637 = pneg %p2406
      $region58: #{upsample_forward.1} parent=31 // pred_check_branch
        %6639 = sbr.rel (%p6637) target = $region60
      $region59: #{upsample_forward.1} parent=31 // pred_region
        %6640 = vst [vmem:[#allocation2 + $0x100] sm:$0xff] %v6602
        %6641 = vst [vmem:[#allocation2 + $0x108] sm:$0xff] %v6603
        %6642 = vst [vmem:[#allocation2 + $0x110] sm:$0xff] %v6604
        %6643 = vst [vmem:[#allocation2 + $0x118] sm:$0xff] %v6605
        %6644 = vst [vmem:[#allocation2 + $0x120] sm:$0xff] %v6606
        %6645 = vst [vmem:[#allocation2 + $0x128] sm:$0xff] %v6607
        %6646 = vst [vmem:[#allocation2 + $0x130] sm:$0xff] %v6608
        %6647 = vst [vmem:[#allocation2 + $0x138] sm:$0xff] %v6609
        %6648 = vst [vmem:[#allocation2 + $0x140] sm:$0xff] %v6610
        %6649 = vst [vmem:[#allocation2 + $0x148] sm:$0xff] %v6611
        %6650 = vst [vmem:[#allocation2 + $0x150] sm:$0xff] %v6612
        %6651 = vst [vmem:[#allocation2 + $0x158] sm:$0xff] %v6613
        %6652 = vst [vmem:[#allocation2 + $0x160] sm:$0xff] %v6614
        %6653 = vst [vmem:[#allocation2 + $0x168] sm:$0xff] %v6615
        %6654 = vst [vmem:[#allocation2 + $0x170] sm:$0xff] %v6616
        %6655 = vst [vmem:[#allocation2 + $0x178] sm:$0xff] %v6617
      $region60: #{upsample_forward.1} parent=31 // pred_fallthru
        _
      %p6656 = scmp.lt.s32.totalorder %s19, 1
      %s6657 = scalar_select %p6656, %s19, 1
      %p6658 = scmp.lt.s32.totalorder %s20, 7
      %s6659 = scalar_select %p6658, %s20, 7
      %s6660 = smul.addr %s6659, 48
      %s6661 = smul.addr %s6657, 384
      %s6662 = sadd.s32 %s6660, %s6661
      %s6663 = smul.addr %s6662, 8
      %s6664 = scalar_lea.vmem %s3, %s6663
      // Predicated region
      $region61: #{upsample_forward.1} parent=31 // pred_check
        %p6665 = pneg %p125
      $region62: #{upsample_forward.1} parent=31 // pred_check_branch
        %6667 = sbr.rel (%p6665) target = $region64
      $region63: #{upsample_forward.1} parent=31 // pred_region
        _
      $region64: #{upsample_forward.1} parent=31 // pred_fallthru
        _
    $region32: #{upsample_forward.1} parent=5 // pred_fallthru
      _
    %p6668 = scmp.le.s32.totalorder 2, %s9
    // Predicated region
    $region65: #{upsample_forward.1} parent=5 // pred_check
      %p6669 = pneg %p6668
    $region66: #{upsample_forward.1} parent=5 // pred_check_branch
      %6671 = sbr.rel (%p6669) target = $region68
    $region67: #{upsample_forward.1} parent=5 // pred_region
      %s6672 = ssub.s32 %s9, 2
      // Predicated region
      $region69: #{upsample_forward.1} parent=67 // pred_check
        %p6673 = pneg %p131
      $region70: #{upsample_forward.1} parent=67 // pred_check_branch
        %6675 = sbr.rel (%p6673) target = $region72
      $region71: #{upsample_forward.1} parent=67 // pred_region
        %p6676 = scmp.lt.s32.totalorder %s22, 1
        %s6677 = scalar_select %p6676, %s22, 1
        %p6678 = scmp.lt.s32.totalorder %s23, 7
        %s6679 = scalar_select %p6678, %s23, 7
        %s6680 = smul.addr %s6679, 48
        %s6681 = smul.addr %s6677, 384
        %s6682 = sadd.s32 %s6680, %s6681
        %s6683 = smul.addr %s6682, 8
        %s6684 = scalar_lea.vmem %s3, %s6683
      $region72: #{upsample_forward.1} parent=67 // pred_fallthru
        _
    $region68: #{upsample_forward.1} parent=5 // pred_fallthru
      _
  $region6: #{upsample_forward.1} parent=0 // loop_footer
    %s13 = sadd.s32 1, %s9
  $region7: #{upsample_forward.1} parent=0 // loop_footer_branch
    %8 = sbr.rel target = $region3
  $region8: #{upsample_forward.1} parent=0 // loop_exit
    _

</llo_original>
